<compile_context>
chip_gen: v6e
topology: v6e:2x2x1
jax: 0.10.0
libtpu: 0.0.40
codegen_flags: <defaults>
</compile_context>

<pallas_src>
import jax
import jax.numpy as jnp
import numpy as np
from jax import lax
from jax.experimental import pallas as pl
from jax.experimental.pallas import tpu as pltpu

INPUT1 = 10
INPUT_DIM = INPUT1 * INPUT1        # 100
N_CLASSES = 10
N_HIDDEN = 2 ** 14                 # 16384

TILE_H = 8192                      # hidden-dim tile -> 2 grid steps
N_TILES = N_HIDDEN // TILE_H

_CONTRACT_LAST = (((1,), (1,)), ((), ()))   # contract dim 1 of lhs with dim 1 of rhs


def _mlp_kernel_folded(x_ref, w1_ref, b1_ref, w2_ref, b2_ref,
                       h_ref, out_ref, acc_ref):
    """v5e/v6e path: logits accumulated in-kernel, b2 folded in at the end."""
    j = pl.program_id(0)

    # First layer for this hidden tile: (B, D) x (TH, D) contracting D -> (B, TH).
    h = lax.dot_general(x_ref[...], w1_ref[...], dimension_numbers=_CONTRACT_LAST,
                        preferred_element_type=jnp.float32)
    h = jnp.maximum(h + b1_ref[...], 0.0)
    h_ref[...] = h

    @pl.when(j == 0)
    def _():
        acc_ref[...] = jnp.zeros_like(acc_ref)

    # Second layer partial: (B, TH) x (C, TH) contracting TH -> (B, C).
    acc_ref[...] += lax.dot_general(h, w2_ref[...], dimension_numbers=_CONTRACT_LAST,
                                    preferred_element_type=jnp.float32)

    @pl.when(j == pl.num_programs(0) - 1)
    def _():
        out_ref[...] = acc_ref[...] + b2_ref[...]


def _mlp_kernel_partial(x_ref, w1_ref, b1_ref, w2_ref, h_ref, part_ref):
    """v7x path: per-step partial logits, grid axis 'parallel' (2-TC sharding)."""
    h = lax.dot_general(x_ref[...], w1_ref[...], dimension_numbers=_CONTRACT_LAST,
                        preferred_element_type=jnp.float32)
    h = jnp.maximum(h + b1_ref[...], 0.0)
    h_ref[...] = h
    part_ref[0] = lax.dot_general(h, w2_ref[...], dimension_numbers=_CONTRACT_LAST,
                                  preferred_element_type=jnp.float32)


def _forward_folded(x2, W1, b1, W2, b2):
    B = x2.shape[0]
    h, out = pl.pallas_call(
        _mlp_kernel_folded,
        out_shape=(
            jax.ShapeDtypeStruct((B, N_HIDDEN), jnp.float32),    # h
            jax.ShapeDtypeStruct((B, N_CLASSES), jnp.float32),   # logits
        ),
        grid_spec=pltpu.PrefetchScalarGridSpec(
            num_scalar_prefetch=0,
            grid=(N_TILES,),
            in_specs=[
                pl.BlockSpec((B, INPUT_DIM),        lambda j: (0, 0)),   # x
                pl.BlockSpec((TILE_H, INPUT_DIM),   lambda j: (j, 0)),   # W1 tile (natural)
                pl.BlockSpec((1, TILE_H),           lambda j: (0, j)),   # b1 tile
                pl.BlockSpec((N_CLASSES, TILE_H),   lambda j: (0, j)),   # W2 tile (natural)
                pl.BlockSpec((1, N_CLASSES),        lambda j: (0, 0)),   # b2
            ],
            out_specs=[
                pl.BlockSpec((B, TILE_H),           lambda j: (0, j)),   # h tile
                pl.BlockSpec((B, N_CLASSES),        lambda j: (0, 0)),   # logits
            ],
            scratch_shapes=[pltpu.VMEM((B, N_CLASSES), jnp.float32)],
        ),
        compiler_params=pltpu.CompilerParams(
            dimension_semantics=("arbitrary",),
        ),
    )(x2, W1, b1.reshape(1, N_HIDDEN), W2, b2.reshape(1, N_CLASSES))
    return out, h


def _forward_partial(x2, W1, b1, W2, b2):
    B = x2.shape[0]
    h, partials = pl.pallas_call(
        _mlp_kernel_partial,
        out_shape=(
            jax.ShapeDtypeStruct((B, N_HIDDEN), jnp.float32),              # h
            jax.ShapeDtypeStruct((N_TILES, B, N_CLASSES), jnp.float32),    # partial logits
        ),
        grid_spec=pltpu.PrefetchScalarGridSpec(
            num_scalar_prefetch=0,
            grid=(N_TILES,),
            in_specs=[
                pl.BlockSpec((B, INPUT_DIM),        lambda j: (0, 0)),     # x
                pl.BlockSpec((TILE_H, INPUT_DIM),   lambda j: (j, 0)),     # W1 tile (natural)
                pl.BlockSpec((1, TILE_H),           lambda j: (0, j)),     # b1 tile
                pl.BlockSpec((N_CLASSES, TILE_H),   lambda j: (0, j)),     # W2 tile (natural)
            ],
            out_specs=[
                pl.BlockSpec((B, TILE_H),           lambda j: (0, j)),     # h tile
                pl.BlockSpec((1, B, N_CLASSES),     lambda j: (j, 0, 0)),  # partial logits
            ],
        ),
        compiler_params=pltpu.CompilerParams(
            dimension_semantics=("parallel",),     # shard W1 stream across both TCs on v7x
        ),
    )(x2, W1, b1.reshape(1, N_HIDDEN), W2)
    logits = jnp.sum(partials, axis=0) + b2[None, :]
    return logits, h


def _use_partial_scheme():
    # v7x has 2 TensorCores/chip -> keep the per-step partial-output scheme
    # with a 'parallel' grid axis.  Single-TC chips (v5e/v6e) use the
    # folded-accumulator kernel (one fewer XLA op).
    try:
        kind = jax.devices()[0].device_kind.lower()
    except Exception:
        return False
    return "v7" in kind


_USE_PARTIAL = _use_partial_scheme()


@jax.jit
def mlp_forward(x, W1, b1, W2, b2):
    """x: (B, ...) flattened to (B, INPUT_DIM). Returns (logits, h) like the module."""
    B = x.shape[0]
    x2 = x.reshape(B, INPUT_DIM)          # mirrors x.view(x.size(0), -1)
    if _USE_PARTIAL:
        return _forward_partial(x2, W1, b1, W2, b2)
    return _forward_folded(x2, W1, b1, W2, b2)


if __name__ == "__main__":
    key = jax.random.PRNGKey(0)
    k_x, k_w1, k_w2 = jax.random.split(key, 3)

    B = 8
    x = jax.random.normal(k_x, (B, INPUT1, INPUT1), dtype=jnp.float32)

    # Deterministic parameter init matching the module's __init__ semantics.
    W1 = jax.random.normal(k_w1, (N_HIDDEN, INPUT_DIM), jnp.float32) * np.sqrt(1.0 / INPUT_DIM)
    b1 = jnp.zeros((N_HIDDEN,), jnp.float32)
    W2 = jax.random.normal(k_w2, (N_CLASSES, N_HIDDEN), jnp.float32) * np.sqrt(1.0 / N_HIDDEN)
    b2 = jnp.zeros((N_CLASSES,), jnp.float32)

    out, h = mlp_forward(x, W1, b1, W2, b2)
    out, h = jax.block_until_ready((out, h))

    # Pure-JAX reference for sanity.
    xf = x.reshape(B, -1)
    h_ref = jnp.maximum(xf @ W1.T + b1, 0.0)
    out_ref = h_ref @ W2.T + b2
    np.testing.assert_allclose(np.asarray(h), np.asarray(h_ref), rtol=1e-5, atol=1e-5)
    np.testing.assert_allclose(np.asarray(out), np.asarray(out_ref), rtol=1e-4, atol=1e-4)

    print("KERNEL_OK")
</pallas_src>

<mosaic_0001>
module attributes {stable_mosaic.version = 11 : i64} {
  func.func @_mlp_kernel_folded(%arg0: i32, %arg1: memref<8x100xf32, #tpu.memory_space<vmem>>, %arg2: memref<8192x100xf32, #tpu.memory_space<vmem>>, %arg3: memref<1x8192xf32, #tpu.memory_space<vmem>>, %arg4: memref<10x8192xf32, #tpu.memory_space<vmem>>, %arg5: memref<1x10xf32, #tpu.memory_space<vmem>>, %arg6: memref<8x8192xf32, #tpu.memory_space<vmem>>, %arg7: memref<8x10xf32, #tpu.memory_space<vmem>>, %arg8: memref<8x10xf32, #tpu.memory_space<vmem>>) attributes {dimension_semantics = [#tpu.dimension_semantics<arbitrary>], iteration_bounds = array<i64: 2>, scalar_prefetch = 0 : i64, scratch_operands = 1 : i64, tpu.core_type = #tpu.core_type<tc>, window_params = [{pipeline_mode = #tpu.pipeline_mode<synchronous>, transform_indices = @transform_0, window_bounds = array<i64: 8, 100>}, {transform_indices = @transform_1, window_bounds = array<i64: 8192, 100>}, {transform_indices = @transform_2, window_bounds = array<i64: 1, 8192>}, {transform_indices = @transform_3, window_bounds = array<i64: 10, 8192>}, {pipeline_mode = #tpu.pipeline_mode<synchronous>, transform_indices = @transform_4, window_bounds = array<i64: 1, 10>}, {transform_indices = @transform_5, window_bounds = array<i64: 8, 8192>}, {pipeline_mode = #tpu.pipeline_mode<synchronous>, transform_indices = @transform_6, window_bounds = array<i64: 8, 10>}]} {
    %c0 = arith.constant 0 : index
    %c0_0 = arith.constant 0 : index
    %0 = vector.load %arg1[%c0, %c0_0] : memref<8x100xf32, #tpu.memory_space<vmem>>, vector<8x100xf32>
    %c0_1 = arith.constant 0 : index
    %c0_2 = arith.constant 0 : index
    %1 = vector.load %arg2[%c0_1, %c0_2] : memref<8192x100xf32, #tpu.memory_space<vmem>>, vector<8192x100xf32>
    %cst = arith.constant dense<0.000000e+00> : vector<8x8192xf32>
    %2 = tpu.matmul %0, %1, %cst {dimension_numbers = #tpu.dot_dimension_numbers<[1], [1], [0], [0], [0, 0, 1, 0], [], []>} : vector<8x100xf32>, vector<8192x100xf32>, vector<8x8192xf32> -> vector<8x8192xf32>
    %c0_3 = arith.constant 0 : index
    %c0_4 = arith.constant 0 : index
    %3 = vector.load %arg3[%c0_3, %c0_4] : memref<1x8192xf32, #tpu.memory_space<vmem>>, vector<1x8192xf32>
    %4 = vector.broadcast %3 : vector<1x8192xf32> to vector<8x8192xf32>
    %5 = arith.addf %2, %4 : vector<8x8192xf32>
    %cst_5 = arith.constant 0.000000e+00 : f32
    %6 = vector.broadcast %cst_5 : f32 to vector<8x8192xf32>
    %7 = arith.maximumf %5, %6 : vector<8x8192xf32>
    %c0_6 = arith.constant 0 : index
    %c0_7 = arith.constant 0 : index
    %8 = vector.load %arg6[%c0_6, %c0_7] : memref<8x8192xf32, #tpu.memory_space<vmem>>, vector<8x8192xf32>
    tpu.vector_store %arg6[%c0_6, %c0_7], %7 {strides = array<i32>} : memref<8x8192xf32, #tpu.memory_space<vmem>>, vector<8x8192xf32>,
    %c0_i32 = arith.constant 0 : i32
    %9 = arith.cmpi eq, %arg0, %c0_i32 : i32
    %10 = arith.extui %9 : i1 to i32
    %c0_i32_8 = arith.constant 0 : i32
    %11 = arith.cmpi ne, %10, %c0_i32_8 : i32
    scf.if %11 {
      %cst_17 = arith.constant 0.000000e+00 : f32
      %20 = vector.broadcast %cst_17 : f32 to vector<8x10xf32>
      %c0_18 = arith.constant 0 : index
      %c0_19 = arith.constant 0 : index
      %21 = vector.load %arg8[%c0_18, %c0_19] : memref<8x10xf32, #tpu.memory_space<vmem>>, vector<8x10xf32>
      tpu.vector_store %arg8[%c0_18, %c0_19], %20 {strides = array<i32>} : memref<8x10xf32, #tpu.memory_space<vmem>>, vector<8x10xf32>,
    } else {
    }
    %c0_9 = arith.constant 0 : index
    %c0_10 = arith.constant 0 : index
    %12 = vector.load %arg8[%c0_9, %c0_10] : memref<8x10xf32, #tpu.memory_space<vmem>>, vector<8x10xf32>
    %c0_11 = arith.constant 0 : index
    %c0_12 = arith.constant 0 : index
    %13 = vector.load %arg4[%c0_11, %c0_12] : memref<10x8192xf32, #tpu.memory_space<vmem>>, vector<10x8192xf32>
    %cst_13 = arith.constant dense<0.000000e+00> : vector<8x10xf32>
    %14 = tpu.matmul %7, %13, %cst_13 {dimension_numbers = #tpu.dot_dimension_numbers<[1], [1], [0], [0], [0, 0, 1, 0], [], []>} : vector<8x8192xf32>, vector<10x8192xf32>, vector<8x10xf32> -> vector<8x10xf32>
    %15 = arith.addf %12, %14 : vector<8x10xf32>
    %c0_14 = arith.constant 0 : index
    %c0_15 = arith.constant 0 : index
    %16 = vector.load %arg8[%c0_14, %c0_15] : memref<8x10xf32, #tpu.memory_space<vmem>>, vector<8x10xf32>
    tpu.vector_store %arg8[%c0_14, %c0_15], %15 {strides = array<i32>} : memref<8x10xf32, #tpu.memory_space<vmem>>, vector<8x10xf32>,
    %c1_i32 = arith.constant 1 : i32
    %17 = arith.cmpi eq, %arg0, %c1_i32 : i32
    %18 = arith.extui %17 : i1 to i32
    %c0_i32_16 = arith.constant 0 : i32
    %19 = arith.cmpi ne, %18, %c0_i32_16 : i32
    scf.if %19 {
      %c0_17 = arith.constant 0 : index
      %c0_18 = arith.constant 0 : index
      %20 = vector.load %arg8[%c0_17, %c0_18] : memref<8x10xf32, #tpu.memory_space<vmem>>, vector<8x10xf32>
      %c0_19 = arith.constant 0 : index
      %c0_20 = arith.constant 0 : index
      %21 = vector.load %arg5[%c0_19, %c0_20] : memref<1x10xf32, #tpu.memory_space<vmem>>, vector<1x10xf32>
      %22 = vector.broadcast %21 : vector<1x10xf32> to vector<8x10xf32>
      %23 = arith.addf %20, %22 : vector<8x10xf32>
      %c0_21 = arith.constant 0 : index
      %c0_22 = arith.constant 0 : index
      %24 = vector.load %arg7[%c0_21, %c0_22] : memref<8x10xf32, #tpu.memory_space<vmem>>, vector<8x10xf32>
      tpu.vector_store %arg7[%c0_21, %c0_22], %23 {strides = array<i32>} : memref<8x10xf32, #tpu.memory_space<vmem>>, vector<8x10xf32>,
    } else {
    }
    return
  }
  func.func @transform_0(%arg0: i32) -> (i32, i32) {
    %c0_i32 = arith.constant 0 : i32
    %c0_i32_0 = arith.constant 0 : i32
    %c0_i32_1 = arith.constant 0 : i32
    return %c0_i32, %c0_i32_0 : i32, i32
  }
  func.func @transform_1(%arg0: i32) -> (i32, i32) {
    %c0_i32 = arith.constant 0 : i32
    %c0_i32_0 = arith.constant 0 : i32
    return %arg0, %c0_i32 : i32, i32
  }
  func.func @transform_2(%arg0: i32) -> (i32, i32) {
    %c0_i32 = arith.constant 0 : i32
    %c0_i32_0 = arith.constant 0 : i32
    return %c0_i32, %arg0 : i32, i32
  }
  func.func @transform_3(%arg0: i32) -> (i32, i32) {
    %c0_i32 = arith.constant 0 : i32
    %c0_i32_0 = arith.constant 0 : i32
    return %c0_i32, %arg0 : i32, i32
  }
  func.func @transform_4(%arg0: i32) -> (i32, i32) {
    %c0_i32 = arith.constant 0 : i32
    %c0_i32_0 = arith.constant 0 : i32
    %c0_i32_1 = arith.constant 0 : i32
    return %c0_i32, %c0_i32_0 : i32, i32
  }
  func.func @transform_5(%arg0: i32) -> (i32, i32) {
    %c0_i32 = arith.constant 0 : i32
    %c0_i32_0 = arith.constant 0 : i32
    return %c0_i32, %arg0 : i32, i32
  }
  func.func @transform_6(%arg0: i32) -> (i32, i32) {
    %c0_i32 = arith.constant 0 : i32
    %c0_i32_0 = arith.constant 0 : i32
    %c0_i32_1 = arith.constant 0 : i32
    return %c0_i32, %c0_i32_0 : i32, i32
  }
}

</mosaic_0001>

<llo_original>
// kernel: mlp_forward.1
$region0: #{mlp_forward.1}
  #allocation0 [shape = 'u32[]', space=smem, size = 0x4, offset = 0x4, fixed_abs, tag = 'smem constant byte address 0x4 - core index']
  #allocation1 [shape = 'u32[144,128]{1,0:T(1,128)}', space=vmem, size = 0x12000, scoped, tag = 'internal scratch']
  #allocation2 [shape = 'f32[8,10]{1,0:T(8,128)}', space=vmem, size = 0x1000, scoped, tag = 'scratch operand']
  %s0 = inlined_call_operand.vmem [shape: f32[8,100], index: 0, kind: input, shape index: {}]
  %s1 = inlined_call_operand.vmem [shape: f32[16384,100], index: 1, kind: input, shape index: {}]
  %s2 = inlined_call_operand.vmem [shape: f32[1,16384], index: 2, kind: input, shape index: {}]
  %s3 = inlined_call_operand.vmem [shape: f32[10,16384], index: 3, kind: input, shape index: {}]
  %s4 = inlined_call_operand.vmem [shape: f32[1,10], index: 4, kind: input, shape index: {}]
  %s5 = inlined_call_operand.hbm [shape: f32[8,16384], index: 5, kind: output, shape index: {0}]
  %s6 = inlined_call_operand.hbm [shape: f32[8,10], index: 6, kind: output, shape index: {1}]
  %7 = xla_tuple %s5, %s6
  %s8 = sld [smem:[#allocation0]]
  $region92: #{mlp_forward.1} parent=0
    _
  %s10 = ssub.s32 1, %s8
  %s11 = scalar_select 0, %s10, %s8
  $region1: #{mlp_forward.1} parent=0
    #allocation3 [shape = 'u8[1048576]{0}', space=vmem, size = 0x100000, scoped, tag = 'input window, operand 3']
    #allocation4 [shape = 'u8[524288]{0}', space=vmem, size = 0x80000, scoped, tag = 'output window, operand 0']
    #allocation5 [shape = 's32[2]{0}', space=sflag, size = 0x8, scoped, tag = 'scoped memory for mlp_forward.1']
    #allocation6 [shape = 'u8[4096]{0}', space=vmem, size = 0x1000, scoped, tag = 'output window, operand 1, single buffered']
    #allocation7 [shape = 's32[1]{0}', space=sflag, size = 0x4, scoped, tag = 'scoped memory for mlp_forward.1']
    %12 = vsyncpa [#allocation5], 0
    %s13 = scalar_lea.sflag [#allocation5], 1
    %14 = vsyncpa %s13, 0
    %15 = vsyncpa [#allocation7], 0
    loop: start=0, step=1, limit=4
    $region2: #{mlp_forward.1} parent=1 // loop_pre_header
      _
    $region3: #{mlp_forward.1} parent=1 // loop_header
      %s17 = sphi 0, %s21
      %p18 = scmp.ge.s32.totalorder %s17, 4
      %s25 = sphi 0, %s25
      %s27 = sphi 0, %s25
      %s28 = sphi 0, %s27
      %s42 = sphi 0, %s28
      %s48 = sphi 0, %s50
      %s51 = sphi 0, %s48
      %s52 = sphi 0, %s51
      %s68 = sphi 0, %s52
      %s74 = sphi 0, %s76
      %s77 = sphi 0, %s74
      %s78 = sphi 0, %s77
      %s94 = sphi 0, %s78
      %s100 = sphi 0, %s102
      %s103 = sphi 0, %s100
      %s104 = sphi 0, %s103
      %s120 = sphi 0, %s104
      %s124 = sphi 0, %s124
      %s126 = sphi 0, %s124
      %s127 = sphi 0, %s126
      %s141 = sphi 0, %s127
      %s147 = sphi 0, %s149
      %s150 = sphi 0, %s147
      %s151 = sphi 0, %s150
      %s167 = sphi 0, %s151
      %s171 = sphi 0, %s171
      %s173 = sphi 0, %s171
      %s174 = sphi 0, %s173
      %s188 = sphi 0, %s174
    $region4: #{mlp_forward.1} parent=1 // loop_header_branch
      %20 = sbr.rel (%p18) target = $region8
    $region5: #{mlp_forward.1} parent=1 // loop_body
      %s22 = ssub.s32 %s17, 1
      %s23 = ssub.s32 %s17, 2
      %s24 = sadd.s32 %s17, 1
      %s26 = sadd.s32 %s25, 1
      %p29 = scmp.eq.s32.totalorder %s17, 1
      %p30 = scmp.ne.s32.totalorder %s25, %s27
      %p31 = scmp.eq.s32.totalorder %s17, 0
      %p32 = por %p30, %p31
      %p33 = scmp.ne.s32.totalorder %s25, %s27
      %p34 = scmp.eq.s32.totalorder %s22, 1
      %p35 = por %p33, %p34
      %p36 = scmp.ne.s32.totalorder %s27, %s28
      %p37 = scmp.eq.s32.totalorder %s22, 0
      %p38 = por %p36, %p37
      %p39 = scmp.ne.s32.totalorder %s27, %s28
      %p40 = scmp.eq.s32.totalorder %s23, 1
      %p41 = por %p39, %p40
      %p43 = scmp.ne.s32.totalorder %s28, %s42
      %p44 = scmp.eq.s32.totalorder %s23, 0
      %p45 = por %p43, %p44
      %s46 = ssub.s32 %s17, %s24
      %p47 = scmp.eq.s32.totalorder %s46, 0
      %s49 = sadd.s32 %s48, 1
      %s50 = scalar_select %p47, %s48, %s49
      %p53 = pneg %p47
      %p54 = scmp.eq.s32.totalorder %s17, 1
      %p55 = por %p53, %p54
      %p56 = scmp.ne.s32.totalorder %s48, %s51
      %p57 = scmp.eq.s32.totalorder %s17, 0
      %p58 = por %p56, %p57
      %p59 = scmp.ne.s32.totalorder %s48, %s51
      %p60 = scmp.eq.s32.totalorder %s22, 1
      %p61 = por %p59, %p60
      %p62 = scmp.ne.s32.totalorder %s51, %s52
      %p63 = scmp.eq.s32.totalorder %s22, 0
      %p64 = por %p62, %p63
      %p65 = scmp.ne.s32.totalorder %s51, %s52
      %p66 = scmp.eq.s32.totalorder %s23, 1
      %p67 = por %p65, %p66
      %p69 = scmp.ne.s32.totalorder %s52, %s68
      %p70 = scmp.eq.s32.totalorder %s23, 0
      %p71 = por %p69, %p70
      %s72 = ssub.s32 %s17, %s24
      %p73 = scmp.eq.s32.totalorder %s72, 0
      %s75 = sadd.s32 %s74, 1
      %s76 = scalar_select %p73, %s74, %s75
      %p79 = pneg %p73
      %p80 = scmp.eq.s32.totalorder %s17, 1
      %p81 = por %p79, %p80
      %p82 = scmp.ne.s32.totalorder %s74, %s77
      %p83 = scmp.eq.s32.totalorder %s17, 0
      %p84 = por %p82, %p83
      %p85 = scmp.ne.s32.totalorder %s74, %s77
      %p86 = scmp.eq.s32.totalorder %s22, 1
      %p87 = por %p85, %p86
      %p88 = scmp.ne.s32.totalorder %s77, %s78
      %p89 = scmp.eq.s32.totalorder %s22, 0
      %p90 = por %p88, %p89
      %p91 = scmp.ne.s32.totalorder %s77, %s78
      %p92 = scmp.eq.s32.totalorder %s23, 1
      %p93 = por %p91, %p92
      %p95 = scmp.ne.s32.totalorder %s78, %s94
      %p96 = scmp.eq.s32.totalorder %s23, 0
      %p97 = por %p95, %p96
      %s98 = ssub.s32 %s17, %s24
      %p99 = scmp.eq.s32.totalorder %s98, 0
      %s101 = sadd.s32 %s100, 1
      %s102 = scalar_select %p99, %s100, %s101
      %p105 = pneg %p99
      %p106 = scmp.eq.s32.totalorder %s17, 1
      %p107 = por %p105, %p106
      %p108 = scmp.ne.s32.totalorder %s100, %s103
      %p109 = scmp.eq.s32.totalorder %s17, 0
      %p110 = por %p108, %p109
      %p111 = scmp.ne.s32.totalorder %s100, %s103
      %p112 = scmp.eq.s32.totalorder %s22, 1
      %p113 = por %p111, %p112
      %p114 = scmp.ne.s32.totalorder %s103, %s104
      %p115 = scmp.eq.s32.totalorder %s22, 0
      %p116 = por %p114, %p115
      %p117 = scmp.ne.s32.totalorder %s103, %s104
      %p118 = scmp.eq.s32.totalorder %s23, 1
      %p119 = por %p117, %p118
      %p121 = scmp.ne.s32.totalorder %s104, %s120
      %p122 = scmp.eq.s32.totalorder %s23, 0
      %p123 = por %p121, %p122
      %s125 = sadd.s32 %s124, 1
      %p128 = scmp.eq.s32.totalorder %s17, 1
      %p129 = scmp.ne.s32.totalorder %s124, %s126
      %p130 = scmp.eq.s32.totalorder %s17, 0
      %p131 = por %p129, %p130
      %p132 = scmp.ne.s32.totalorder %s124, %s126
      %p133 = scmp.eq.s32.totalorder %s22, 1
      %p134 = por %p132, %p133
      %p135 = scmp.ne.s32.totalorder %s126, %s127
      %p136 = scmp.eq.s32.totalorder %s22, 0
      %p137 = por %p135, %p136
      %p138 = scmp.ne.s32.totalorder %s126, %s127
      %p139 = scmp.eq.s32.totalorder %s23, 1
      %p140 = por %p138, %p139
      %p142 = scmp.ne.s32.totalorder %s127, %s141
      %p143 = scmp.eq.s32.totalorder %s23, 0
      %p144 = por %p142, %p143
      %s145 = ssub.s32 %s17, %s24
      %p146 = scmp.eq.s32.totalorder %s145, 0
      %s148 = sadd.s32 %s147, 1
      %s149 = scalar_select %p146, %s147, %s148
      %p152 = pneg %p146
      %p153 = scmp.eq.s32.totalorder %s17, 1
      %p154 = por %p152, %p153
      %p155 = scmp.ne.s32.totalorder %s147, %s150
      %p156 = scmp.eq.s32.totalorder %s17, 0
      %p157 = por %p155, %p156
      %p158 = scmp.ne.s32.totalorder %s147, %s150
      %p159 = scmp.eq.s32.totalorder %s22, 1
      %p160 = por %p158, %p159
      %p161 = scmp.ne.s32.totalorder %s150, %s151
      %p162 = scmp.eq.s32.totalorder %s22, 0
      %p163 = por %p161, %p162
      %p164 = scmp.ne.s32.totalorder %s150, %s151
      %p165 = scmp.eq.s32.totalorder %s23, 1
      %p166 = por %p164, %p165
      %p168 = scmp.ne.s32.totalorder %s151, %s167
      %p169 = scmp.eq.s32.totalorder %s23, 0
      %p170 = por %p168, %p169
      %s172 = sadd.s32 %s171, 1
      %p175 = scmp.eq.s32.totalorder %s17, 1
      %p176 = scmp.ne.s32.totalorder %s171, %s173
      %p177 = scmp.eq.s32.totalorder %s17, 0
      %p178 = por %p176, %p177
      %p179 = scmp.ne.s32.totalorder %s171, %s173
      %p180 = scmp.eq.s32.totalorder %s22, 1
      %p181 = por %p179, %p180
      %p182 = scmp.ne.s32.totalorder %s173, %s174
      %p183 = scmp.eq.s32.totalorder %s22, 0
      %p184 = por %p182, %p183
      %p185 = scmp.ne.s32.totalorder %s173, %s174
      %p186 = scmp.eq.s32.totalorder %s23, 1
      %p187 = por %p185, %p186
      %p189 = scmp.ne.s32.totalorder %s174, %s188
      %p190 = scmp.eq.s32.totalorder %s23, 0
      %p191 = por %p189, %p190
      %p192 = scmp.le.s32.totalorder 1, %s17
      %p193 = scmp.lt.s32.totalorder %s17, 3
      %p194 = pnand %p192, %p193
      %p195 = pneg %p194
      // Predicated region
      $region9: #{mlp_forward.1} parent=5 // pred_check
        _
      $region10: #{mlp_forward.1} parent=5 // pred_check_branch
        %197 = sbr.rel (%p194) target = $region12
      $region11: #{mlp_forward.1} parent=5 // pred_region
        %s198 = ssub.s32 %s17, 1
        // Predicated region
        $region13: #{mlp_forward.1} parent=11 // pred_check
          %p199 = pneg %p38
        $region14: #{mlp_forward.1} parent=11 // pred_check_branch
          %201 = sbr.rel (%p199) target = $region16
        $region15: #{mlp_forward.1} parent=11 // pred_region
          _
        $region16: #{mlp_forward.1} parent=11 // pred_fallthru
          _
        // Predicated region
        $region17: #{mlp_forward.1} parent=11 // pred_check
          %p202 = pneg %p137
        $region18: #{mlp_forward.1} parent=11 // pred_check_branch
          %204 = sbr.rel (%p202) target = $region20
        $region19: #{mlp_forward.1} parent=11 // pred_region
          _
        $region20: #{mlp_forward.1} parent=11 // pred_fallthru
          _
      $region12: #{mlp_forward.1} parent=5 // pred_fallthru
        _
      %p205 = scmp.lt.s32.totalorder %s17, 2
      // Predicated region
      $region21: #{mlp_forward.1} parent=5 // pred_check
        %p206 = pneg %p205
      $region22: #{mlp_forward.1} parent=5 // pred_check_branch
        %208 = sbr.rel (%p206) target = $region24
      $region23: #{mlp_forward.1} parent=5 // pred_region
        // Predicated region
        $region25: #{mlp_forward.1} parent=23 // pred_check
          %p209 = pneg %p58
        $region26: #{mlp_forward.1} parent=23 // pred_check_branch
          %211 = sbr.rel (%p209) target = $region28
        $region27: #{mlp_forward.1} parent=23 // pred_region
          %s212 = smul.u32 1024, %s17
          %p213 = scmp.lt.s32.totalorder %s212, 2047
          %s214 = scalar_select %p213, %s212, 2047
          %s215 = smul.addr %s214, 8
          %s216 = scalar_lea.vmem %s1, %s215
          %s217 = smul.u32 1024, %s17
        $region28: #{mlp_forward.1} parent=23 // pred_fallthru
          _
        // Predicated region
        $region29: #{mlp_forward.1} parent=23 // pred_check
          %p218 = pneg %p84
        $region30: #{mlp_forward.1} parent=23 // pred_check_branch
          %220 = sbr.rel (%p218) target = $region32
        $region31: #{mlp_forward.1} parent=23 // pred_region
          %s221 = smul.u32 64, %s17
          %p222 = scmp.lt.s32.totalorder %s221, 127
          %s223 = scalar_select %p222, %s221, 127
          %s224 = scalar_lea.vmem %s2, %s223
          %s225 = smul.u32 64, %s17
        $region32: #{mlp_forward.1} parent=23 // pred_fallthru
          _
        // Predicated region
        $region33: #{mlp_forward.1} parent=23 // pred_check
          %p226 = pneg %p110
        $region34: #{mlp_forward.1} parent=23 // pred_check_branch
          %228 = sbr.rel (%p226) target = $region36
        $region35: #{mlp_forward.1} parent=23 // pred_region
          %s229 = sand.u32 %s100, 1
          %s230 = sand.u32 %s100, 1
          %s231 = smul.addr %s230, 1024
          %s232 = scalar_lea.vmem [#allocation3], %s231
          %s233 = smul.u32 64, %s17
          %s234 = smul.addr %s233, 8
          %s235 = scalar_lea.vmem %s3, %s234
          // Predicated region
          $region37: #{mlp_forward.1} parent=35 // pred_check
            _
          $region38: #{mlp_forward.1} parent=35 // pred_check_branch
            %237 = sbr.rel (0) target = $region40
          $region39: #{mlp_forward.1} parent=35 // pred_region
            // Predicated region
            $region41: #{mlp_forward.1} parent=39 // pred_check
              _
            $region42: #{mlp_forward.1} parent=39 // pred_check_branch
              %239 = sbr.rel (0) target = $region44
            $region43: #{mlp_forward.1} parent=39 // pred_region
              loop: start=0, step=1, limit=1
              $region45: #{mlp_forward.1} parent=43 // loop_pre_header
                _
              $region46: #{mlp_forward.1} parent=43 // loop_header
                %s241 = sphi 0, %s245
                %p242 = scmp.ge.s32.totalorder %s241, 1
                %s246 = sphi %s235, %s235
                %s247 = sphi %s232, %s232
              $region47: #{mlp_forward.1} parent=43 // loop_header_branch
                %244 = sbr.rel (%p242) target = $region51
              $region48: #{mlp_forward.1} parent=43 // loop_body
                %v248 = vld [vmem:[%s246] sm:$0xff]
                %249 = vst [vmem:[%s247] sm:$0xff] %v248
                %v250 = vld [vmem:[%s246 + $0x8] sm:$0xff]
                %251 = vst [vmem:[%s247 + $0x8] sm:$0xff] %v250
                %v252 = vld [vmem:[%s246 + $0x10] sm:$0xff]
                %253 = vst [vmem:[%s247 + $0x10] sm:$0xff] %v252
                %v254 = vld [vmem:[%s246 + $0x18] sm:$0xff]
                %255 = vst [vmem:[%s247 + $0x18] sm:$0xff] %v254
                %v256 = vld [vmem:[%s246 + $0x20] sm:$0xff]
                %257 = vst [vmem:[%s247 + $0x20] sm:$0xff] %v256
                %v258 = vld [vmem:[%s246 + $0x28] sm:$0xff]
                %259 = vst [vmem:[%s247 + $0x28] sm:$0xff] %v258
                %v260 = vld [vmem:[%s246 + $0x30] sm:$0xff]
                %261 = vst [vmem:[%s247 + $0x30] sm:$0xff] %v260
                %v262 = vld [vmem:[%s246 + $0x38] sm:$0xff]
                %263 = vst [vmem:[%s247 + $0x38] sm:$0xff] %v262
                %v264 = vld [vmem:[%s246 + $0x40] sm:$0xff]
                %265 = vst [vmem:[%s247 + $0x40] sm:$0xff] %v264
                %v266 = vld [vmem:[%s246 + $0x48] sm:$0xff]
                %267 = vst [vmem:[%s247 + $0x48] sm:$0xff] %v266
                %v268 = vld [vmem:[%s246 + $0x50] sm:$0xff]
                %269 = vst [vmem:[%s247 + $0x50] sm:$0xff] %v268
                %v270 = vld [vmem:[%s246 + $0x58] sm:$0xff]
                %271 = vst [vmem:[%s247 + $0x58] sm:$0xff] %v270
                %v272 = vld [vmem:[%s246 + $0x60] sm:$0xff]
                %273 = vst [vmem:[%s247 + $0x60] sm:$0xff] %v272
                %v274 = vld [vmem:[%s246 + $0x68] sm:$0xff]
                %275 = vst [vmem:[%s247 + $0x68] sm:$0xff] %v274
                %v276 = vld [vmem:[%s246 + $0x70] sm:$0xff]
                %277 = vst [vmem:[%s247 + $0x70] sm:$0xff] %v276
                %v278 = vld [vmem:[%s246 + $0x78] sm:$0xff]
                %279 = vst [vmem:[%s247 + $0x78] sm:$0xff] %v278
                %v280 = vld [vmem:[%s246 + $0x80] sm:$0xff]
                %281 = vst [vmem:[%s247 + $0x80] sm:$0xff] %v280
                %v282 = vld [vmem:[%s246 + $0x88] sm:$0xff]
                %283 = vst [vmem:[%s247 + $0x88] sm:$0xff] %v282
                %v284 = vld [vmem:[%s246 + $0x90] sm:$0xff]
                %285 = vst [vmem:[%s247 + $0x90] sm:$0xff] %v284
                %v286 = vld [vmem:[%s246 + $0x98] sm:$0xff]
                %287 = vst [vmem:[%s247 + $0x98] sm:$0xff] %v286
                %v288 = vld [vmem:[%s246 + $0xa0] sm:$0xff]
                %289 = vst [vmem:[%s247 + $0xa0] sm:$0xff] %v288
                %v290 = vld [vmem:[%s246 + $0xa8] sm:$0xff]
                %291 = vst [vmem:[%s247 + $0xa8] sm:$0xff] %v290
                %v292 = vld [vmem:[%s246 + $0xb0] sm:$0xff]
                %293 = vst [vmem:[%s247 + $0xb0] sm:$0xff] %v292
                %v294 = vld [vmem:[%s246 + $0xb8] sm:$0xff]
                %295 = vst [vmem:[%s247 + $0xb8] sm:$0xff] %v294
                %v296 = vld [vmem:[%s246 + $0xc0] sm:$0xff]
                %297 = vst [vmem:[%s247 + $0xc0] sm:$0xff] %v296
                %v298 = vld [vmem:[%s246 + $0xc8] sm:$0xff]
                %299 = vst [vmem:[%s247 + $0xc8] sm:$0xff] %v298
                %v300 = vld [vmem:[%s246 + $0xd0] sm:$0xff]
                %301 = vst [vmem:[%s247 + $0xd0] sm:$0xff] %v300
                %v302 = vld [vmem:[%s246 + $0xd8] sm:$0xff]
                %303 = vst [vmem:[%s247 + $0xd8] sm:$0xff] %v302
                %v304 = vld [vmem:[%s246 + $0xe0] sm:$0xff]
                %305 = vst [vmem:[%s247 + $0xe0] sm:$0xff] %v304
                %v306 = vld [vmem:[%s246 + $0xe8] sm:$0xff]
                %307 = vst [vmem:[%s247 + $0xe8] sm:$0xff] %v306
                %v308 = vld [vmem:[%s246 + $0xf0] sm:$0xff]
                %309 = vst [vmem:[%s247 + $0xf0] sm:$0xff] %v308
                %v310 = vld [vmem:[%s246 + $0xf8] sm:$0xff]
                %311 = vst [vmem:[%s247 + $0xf8] sm:$0xff] %v310
                %v312 = vld [vmem:[%s246 + $0x100] sm:$0xff]
                %313 = vst [vmem:[%s247 + $0x100] sm:$0xff] %v312
                %v314 = vld [vmem:[%s246 + $0x108] sm:$0xff]
                %315 = vst [vmem:[%s247 + $0x108] sm:$0xff] %v314
                %v316 = vld [vmem:[%s246 + $0x110] sm:$0xff]
                %317 = vst [vmem:[%s247 + $0x110] sm:$0xff] %v316
                %v318 = vld [vmem:[%s246 + $0x118] sm:$0xff]
                %319 = vst [vmem:[%s247 + $0x118] sm:$0xff] %v318
                %v320 = vld [vmem:[%s246 + $0x120] sm:$0xff]
                %321 = vst [vmem:[%s247 + $0x120] sm:$0xff] %v320
                %v322 = vld [vmem:[%s246 + $0x128] sm:$0xff]
                %323 = vst [vmem:[%s247 + $0x128] sm:$0xff] %v322
                %v324 = vld [vmem:[%s246 + $0x130] sm:$0xff]
                %325 = vst [vmem:[%s247 + $0x130] sm:$0xff] %v324
                %v326 = vld [vmem:[%s246 + $0x138] sm:$0xff]
                %327 = vst [vmem:[%s247 + $0x138] sm:$0xff] %v326
                %v328 = vld [vmem:[%s246 + $0x140] sm:$0xff]
                %329 = vst [vmem:[%s247 + $0x140] sm:$0xff] %v328
                %v330 = vld [vmem:[%s246 + $0x148] sm:$0xff]
                %331 = vst [vmem:[%s247 + $0x148] sm:$0xff] %v330
                %v332 = vld [vmem:[%s246 + $0x150] sm:$0xff]
                %333 = vst [vmem:[%s247 + $0x150] sm:$0xff] %v332
                %v334 = vld [vmem:[%s246 + $0x158] sm:$0xff]
                %335 = vst [vmem:[%s247 + $0x158] sm:$0xff] %v334
                %v336 = vld [vmem:[%s246 + $0x160] sm:$0xff]
                %337 = vst [vmem:[%s247 + $0x160] sm:$0xff] %v336
                %v338 = vld [vmem:[%s246 + $0x168] sm:$0xff]
                %339 = vst [vmem:[%s247 + $0x168] sm:$0xff] %v338
                %v340 = vld [vmem:[%s246 + $0x170] sm:$0xff]
                %341 = vst [vmem:[%s247 + $0x170] sm:$0xff] %v340
                %v342 = vld [vmem:[%s246 + $0x178] sm:$0xff]
                %343 = vst [vmem:[%s247 + $0x178] sm:$0xff] %v342
                %v344 = vld [vmem:[%s246 + $0x180] sm:$0xff]
                %345 = vst [vmem:[%s247 + $0x180] sm:$0xff] %v344
                %v346 = vld [vmem:[%s246 + $0x188] sm:$0xff]
                %347 = vst [vmem:[%s247 + $0x188] sm:$0xff] %v346
                %v348 = vld [vmem:[%s246 + $0x190] sm:$0xff]
                %349 = vst [vmem:[%s247 + $0x190] sm:$0xff] %v348
                %v350 = vld [vmem:[%s246 + $0x198] sm:$0xff]
                %351 = vst [vmem:[%s247 + $0x198] sm:$0xff] %v350
                %v352 = vld [vmem:[%s246 + $0x1a0] sm:$0xff]
                %353 = vst [vmem:[%s247 + $0x1a0] sm:$0xff] %v352
                %v354 = vld [vmem:[%s246 + $0x1a8] sm:$0xff]
                %355 = vst [vmem:[%s247 + $0x1a8] sm:$0xff] %v354
                %v356 = vld [vmem:[%s246 + $0x1b0] sm:$0xff]
                %357 = vst [vmem:[%s247 + $0x1b0] sm:$0xff] %v356
                %v358 = vld [vmem:[%s246 + $0x1b8] sm:$0xff]
                %359 = vst [vmem:[%s247 + $0x1b8] sm:$0xff] %v358
                %v360 = vld [vmem:[%s246 + $0x1c0] sm:$0xff]
                %361 = vst [vmem:[%s247 + $0x1c0] sm:$0xff] %v360
                %v362 = vld [vmem:[%s246 + $0x1c8] sm:$0xff]
                %363 = vst [vmem:[%s247 + $0x1c8] sm:$0xff] %v362
                %v364 = vld [vmem:[%s246 + $0x1d0] sm:$0xff]
                %365 = vst [vmem:[%s247 + $0x1d0] sm:$0xff] %v364
                %v366 = vld [vmem:[%s246 + $0x1d8] sm:$0xff]
                %367 = vst [vmem:[%s247 + $0x1d8] sm:$0xff] %v366
                %v368 = vld [vmem:[%s246 + $0x1e0] sm:$0xff]
                %369 = vst [vmem:[%s247 + $0x1e0] sm:$0xff] %v368
                %v370 = vld [vmem:[%s246 + $0x1e8] sm:$0xff]
                %371 = vst [vmem:[%s247 + $0x1e8] sm:$0xff] %v370
                %v372 = vld [vmem:[%s246 + $0x1f0] sm:$0xff]
                %373 = vst [vmem:[%s247 + $0x1f0] sm:$0xff] %v372
                %v374 = vld [vmem:[%s246 + $0x1f8] sm:$0xff]
                %375 = vst [vmem:[%s247 + $0x1f8] sm:$0xff] %v374
                %v376 = vld [vmem:[%s246 + $0x400] sm:$0xff]
                %377 = vst [vmem:[%s247 + $0x200] sm:$0xff] %v376
                %v378 = vld [vmem:[%s246 + $0x408] sm:$0xff]
                %379 = vst [vmem:[%s247 + $0x208] sm:$0xff] %v378
                %v380 = vld [vmem:[%s246 + $0x410] sm:$0xff]
                %381 = vst [vmem:[%s247 + $0x210] sm:$0xff] %v380
                %v382 = vld [vmem:[%s246 + $0x418] sm:$0xff]
                %383 = vst [vmem:[%s247 + $0x218] sm:$0xff] %v382
                %v384 = vld [vmem:[%s246 + $0x420] sm:$0xff]
                %385 = vst [vmem:[%s247 + $0x220] sm:$0xff] %v384
                %v386 = vld [vmem:[%s246 + $0x428] sm:$0xff]
                %387 = vst [vmem:[%s247 + $0x228] sm:$0xff] %v386
                %v388 = vld [vmem:[%s246 + $0x430] sm:$0xff]
                %389 = vst [vmem:[%s247 + $0x230] sm:$0xff] %v388
                %v390 = vld [vmem:[%s246 + $0x438] sm:$0xff]
                %391 = vst [vmem:[%s247 + $0x238] sm:$0xff] %v390
                %v392 = vld [vmem:[%s246 + $0x440] sm:$0xff]
                %393 = vst [vmem:[%s247 + $0x240] sm:$0xff] %v392
                %v394 = vld [vmem:[%s246 + $0x448] sm:$0xff]
                %395 = vst [vmem:[%s247 + $0x248] sm:$0xff] %v394
                %v396 = vld [vmem:[%s246 + $0x450] sm:$0xff]
                %397 = vst [vmem:[%s247 + $0x250] sm:$0xff] %v396
                %v398 = vld [vmem:[%s246 + $0x458] sm:$0xff]
                %399 = vst [vmem:[%s247 + $0x258] sm:$0xff] %v398
                %v400 = vld [vmem:[%s246 + $0x460] sm:$0xff]
                %401 = vst [vmem:[%s247 + $0x260] sm:$0xff] %v400
                %v402 = vld [vmem:[%s246 + $0x468] sm:$0xff]
                %403 = vst [vmem:[%s247 + $0x268] sm:$0xff] %v402
                %v404 = vld [vmem:[%s246 + $0x470] sm:$0xff]
                %405 = vst [vmem:[%s247 + $0x270] sm:$0xff] %v404
                %v406 = vld [vmem:[%s246 + $0x478] sm:$0xff]
                %407 = vst [vmem:[%s247 + $0x278] sm:$0xff] %v406
                %v408 = vld [vmem:[%s246 + $0x480] sm:$0xff]
                %409 = vst [vmem:[%s247 + $0x280] sm:$0xff] %v408
                %v410 = vld [vmem:[%s246 + $0x488] sm:$0xff]
                %411 = vst [vmem:[%s247 + $0x288] sm:$0xff] %v410
                %v412 = vld [vmem:[%s246 + $0x490] sm:$0xff]
                %413 = vst [vmem:[%s247 + $0x290] sm:$0xff] %v412
                %v414 = vld [vmem:[%s246 + $0x498] sm:$0xff]
                %415 = vst [vmem:[%s247 + $0x298] sm:$0xff] %v414
                %v416 = vld [vmem:[%s246 + $0x4a0] sm:$0xff]
                %417 = vst [vmem:[%s247 + $0x2a0] sm:$0xff] %v416
                %v418 = vld [vmem:[%s246 + $0x4a8] sm:$0xff]
                %419 = vst [vmem:[%s247 + $0x2a8] sm:$0xff] %v418
                %v420 = vld [vmem:[%s246 + $0x4b0] sm:$0xff]
                %421 = vst [vmem:[%s247 + $0x2b0] sm:$0xff] %v420
                %v422 = vld [vmem:[%s246 + $0x4b8] sm:$0xff]
                %423 = vst [vmem:[%s247 + $0x2b8] sm:$0xff] %v422
                %v424 = vld [vmem:[%s246 + $0x4c0] sm:$0xff]
                %425 = vst [vmem:[%s247 + $0x2c0] sm:$0xff] %v424
                %v426 = vld [vmem:[%s246 + $0x4c8] sm:$0xff]
                %427 = vst [vmem:[%s247 + $0x2c8] sm:$0xff] %v426
                %v428 = vld [vmem:[%s246 + $0x4d0] sm:$0xff]
                %429 = vst [vmem:[%s247 + $0x2d0] sm:$0xff] %v428
                %v430 = vld [vmem:[%s246 + $0x4d8] sm:$0xff]
                %431 = vst [vmem:[%s247 + $0x2d8] sm:$0xff] %v430
                %v432 = vld [vmem:[%s246 + $0x4e0] sm:$0xff]
                %433 = vst [vmem:[%s247 + $0x2e0] sm:$0xff] %v432
                %v434 = vld [vmem:[%s246 + $0x4e8] sm:$0xff]
                %435 = vst [vmem:[%s247 + $0x2e8] sm:$0xff] %v434
                %v436 = vld [vmem:[%s246 + $0x4f0] sm:$0xff]
                %437 = vst [vmem:[%s247 + $0x2f0] sm:$0xff] %v436
                %v438 = vld [vmem:[%s246 + $0x4f8] sm:$0xff]
                %439 = vst [vmem:[%s247 + $0x2f8] sm:$0xff] %v438
                %v440 = vld [vmem:[%s246 + $0x500] sm:$0xff]
                %441 = vst [vmem:[%s247 + $0x300] sm:$0xff] %v440
                %v442 = vld [vmem:[%s246 + $0x508] sm:$0xff]
                %443 = vst [vmem:[%s247 + $0x308] sm:$0xff] %v442
                %v444 = vld [vmem:[%s246 + $0x510] sm:$0xff]
                %445 = vst [vmem:[%s247 + $0x310] sm:$0xff] %v444
                %v446 = vld [vmem:[%s246 + $0x518] sm:$0xff]
                %447 = vst [vmem:[%s247 + $0x318] sm:$0xff] %v446
                %v448 = vld [vmem:[%s246 + $0x520] sm:$0xff]
                %449 = vst [vmem:[%s247 + $0x320] sm:$0xff] %v448
                %v450 = vld [vmem:[%s246 + $0x528] sm:$0xff]
                %451 = vst [vmem:[%s247 + $0x328] sm:$0xff] %v450
                %v452 = vld [vmem:[%s246 + $0x530] sm:$0xff]
                %453 = vst [vmem:[%s247 + $0x330] sm:$0xff] %v452
                %v454 = vld [vmem:[%s246 + $0x538] sm:$0xff]
                %455 = vst [vmem:[%s247 + $0x338] sm:$0xff] %v454
                %v456 = vld [vmem:[%s246 + $0x540] sm:$0xff]
                %457 = vst [vmem:[%s247 + $0x340] sm:$0xff] %v456
                %v458 = vld [vmem:[%s246 + $0x548] sm:$0xff]
                %459 = vst [vmem:[%s247 + $0x348] sm:$0xff] %v458
                %v460 = vld [vmem:[%s246 + $0x550] sm:$0xff]
                %461 = vst [vmem:[%s247 + $0x350] sm:$0xff] %v460
                %v462 = vld [vmem:[%s246 + $0x558] sm:$0xff]
                %463 = vst [vmem:[%s247 + $0x358] sm:$0xff] %v462
                %v464 = vld [vmem:[%s246 + $0x560] sm:$0xff]
                %465 = vst [vmem:[%s247 + $0x360] sm:$0xff] %v464
                %v466 = vld [vmem:[%s246 + $0x568] sm:$0xff]
                %467 = vst [vmem:[%s247 + $0x368] sm:$0xff] %v466
                %v468 = vld [vmem:[%s246 + $0x570] sm:$0xff]
                %469 = vst [vmem:[%s247 + $0x370] sm:$0xff] %v468
                %v470 = vld [vmem:[%s246 + $0x578] sm:$0xff]
                %471 = vst [vmem:[%s247 + $0x378] sm:$0xff] %v470
                %v472 = vld [vmem:[%s246 + $0x580] sm:$0xff]
                %473 = vst [vmem:[%s247 + $0x380] sm:$0xff] %v472
                %v474 = vld [vmem:[%s246 + $0x588] sm:$0xff]
                %475 = vst [vmem:[%s247 + $0x388] sm:$0xff] %v474
                %v476 = vld [vmem:[%s246 + $0x590] sm:$0xff]
                %477 = vst [vmem:[%s247 + $0x390] sm:$0xff] %v476
                %v478 = vld [vmem:[%s246 + $0x598] sm:$0xff]
                %479 = vst [vmem:[%s247 + $0x398] sm:$0xff] %v478
                %v480 = vld [vmem:[%s246 + $0x5a0] sm:$0xff]
                %481 = vst [vmem:[%s247 + $0x3a0] sm:$0xff] %v480
                %v482 = vld [vmem:[%s246 + $0x5a8] sm:$0xff]
                %483 = vst [vmem:[%s247 + $0x3a8] sm:$0xff] %v482
                %v484 = vld [vmem:[%s246 + $0x5b0] sm:$0xff]
                %485 = vst [vmem:[%s247 + $0x3b0] sm:$0xff] %v484
                %v486 = vld [vmem:[%s246 + $0x5b8] sm:$0xff]
                %487 = vst [vmem:[%s247 + $0x3b8] sm:$0xff] %v486
                %v488 = vld [vmem:[%s246 + $0x5c0] sm:$0xff]
                %489 = vst [vmem:[%s247 + $0x3c0] sm:$0xff] %v488
                %v490 = vld [vmem:[%s246 + $0x5c8] sm:$0xff]
                %491 = vst [vmem:[%s247 + $0x3c8] sm:$0xff] %v490
                %v492 = vld [vmem:[%s246 + $0x5d0] sm:$0xff]
                %493 = vst [vmem:[%s247 + $0x3d0] sm:$0xff] %v492
                %v494 = vld [vmem:[%s246 + $0x5d8] sm:$0xff]
                %495 = vst [vmem:[%s247 + $0x3d8] sm:$0xff] %v494
                %v496 = vld [vmem:[%s246 + $0x5e0] sm:$0xff]
                %497 = vst [vmem:[%s247 + $0x3e0] sm:$0xff] %v496
                %v498 = vld [vmem:[%s246 + $0x5e8] sm:$0xff]
                %499 = vst [vmem:[%s247 + $0x3e8] sm:$0xff] %v498
                %v500 = vld [vmem:[%s246 + $0x5f0] sm:$0xff]
                %501 = vst [vmem:[%s247 + $0x3f0] sm:$0xff] %v500
                %v502 = vld [vmem:[%s246 + $0x5f8] sm:$0xff]
                %503 = vst [vmem:[%s247 + $0x3f8] sm:$0xff] %v502
              $region49: #{mlp_forward.1} parent=43 // loop_footer
                %s245 = sadd.s32 1, %s241
              $region50: #{mlp_forward.1} parent=43 // loop_footer_branch
                %240 = sbr.rel target = $region46
              $region51: #{mlp_forward.1} parent=43 // loop_exit
                _
            $region44: #{mlp_forward.1} parent=39 // pred_fallthru
              _
            // Predicated region
            $region52: #{mlp_forward.1} parent=39 // pred_check
              _
            $region53: #{mlp_forward.1} parent=39 // pred_check_branch
              %505 = sbr.rel target = $region55
            $region54: #{mlp_forward.1} parent=39 // pred_region
              _
            $region55: #{mlp_forward.1} parent=39 // pred_fallthru
              _
          $region40: #{mlp_forward.1} parent=35 // pred_fallthru
            _
          %506 = vnop
        $region36: #{mlp_forward.1} parent=23 // pred_fallthru
          _
      $region24: #{mlp_forward.1} parent=5 // pred_fallthru
        _
      %p507 = scmp.le.s32.totalorder 1, %s17
      %p508 = scmp.lt.s32.totalorder %s17, 3
      %p509 = pnand %p507, %p508
      %p510 = pneg %p509
      // Predicated region
      $region56: #{mlp_forward.1} parent=5 // pred_check
        _
      $region57: #{mlp_forward.1} parent=5 // pred_check_branch
        %512 = sbr.rel (%p509) target = $region59
      $region58: #{mlp_forward.1} parent=5 // pred_region
        %s513 = ssub.s32 %s17, 1
        %s514 = sand.u32 %s103, 1
        %s515 = sand.u32 %s103, 1
        %s516 = smul.addr %s515, 1024
        %s517 = scalar_lea.vmem [#allocation3], %s516
        // Predicated region
        $region60: #{mlp_forward.1} parent=58 // pred_check
          %p518 = pneg %p116
        $region61: #{mlp_forward.1} parent=58 // pred_check_branch
          %520 = sbr.rel (%p518) target = $region63
        $region62: #{mlp_forward.1} parent=58 // pred_region
          _
        $region63: #{mlp_forward.1} parent=58 // pred_fallthru
          _
        %p521 = pneg %p38
        %p522 = pneg %p35
        %s523 = smul.u32 1024, %s22
        %p524 = scmp.lt.s32.totalorder %s523, 2047
        %s525 = scalar_select %p524, %s523, 2047
        %s526 = smul.addr %s525, 8
        %s527 = scalar_lea.vmem %s1, %s526
        %p528 = pneg %p64
        %p529 = pneg %p61
        %s530 = smul.u32 64, %s22
        %p531 = scmp.lt.s32.totalorder %s530, 127
        %s532 = scalar_select %p531, %s530, 127
        %s533 = scalar_lea.vmem %s2, %s532
        %p534 = pneg %p90
        %p535 = pneg %p87
        %s536 = sand.u32 %s103, 1
        %s537 = sand.u32 %s103, 1
        %s538 = smul.addr %s537, 1024
        %s539 = scalar_lea.vmem [#allocation3], %s538
        %p540 = pneg %p116
        %p541 = pneg %p113
        %p542 = pneg %p137
        %p543 = pneg %p134
        %p544 = pneg %p163
        %p545 = pneg %p160
        %s546 = sand.u32 %s150, 1
        %s547 = scalar_lea.sflag [#allocation5], %s546
        %s548 = sand.u32 %s150, 1
        %s549 = smul.addr %s548, 512
        %s550 = scalar_lea.vmem [#allocation4], %s549
        %p551 = pneg %p184
        %p552 = pneg %p181
        %s553 = smul.u32 1024, %s22
        %p554 = scmp.lt.s32.totalorder %s553, 2047
        %s555 = scalar_select %p554, %s553, 2047
        %s556 = smul.addr %s555, 8
        %s557 = scalar_lea.vmem %s1, %s556
        %s558 = smul.u32 1024, %s22
        %s559 = smul.u32 64, %s22
        %p560 = scmp.lt.s32.totalorder %s559, 127
        %s561 = scalar_select %p560, %s559, 127
        %s562 = scalar_lea.vmem %s2, %s561
        %s563 = smul.u32 64, %s22
        %s564 = smul.u32 64, %s22
        %s565 = smul.u32 64, %s22
        %v566 = vld [vmem:[%s0] sm:$0xff]
        %v567 = vld [vmem:[%s557] sm:$0xff]
        %v568 = vld [vmem:[%s557 + $0x8] sm:$0xff]
        %v569 = vld [vmem:[%s557 + $0x10] sm:$0xff]
        %v570 = vld [vmem:[%s557 + $0x18] sm:$0xff]
        %v571 = vld [vmem:[%s557 + $0x20] sm:$0xff]
        %v572 = vld [vmem:[%s557 + $0x28] sm:$0xff]
        %v573 = vld [vmem:[%s557 + $0x30] sm:$0xff]
        %v574 = vld [vmem:[%s557 + $0x38] sm:$0xff]
        %v575 = vld [vmem:[%s557 + $0x40] sm:$0xff]
        %v576 = vld [vmem:[%s557 + $0x48] sm:$0xff]
        %v577 = vld [vmem:[%s557 + $0x50] sm:$0xff]
        %v578 = vld [vmem:[%s557 + $0x58] sm:$0xff]
        %v579 = vld [vmem:[%s557 + $0x60] sm:$0xff]
        %v580 = vld [vmem:[%s557 + $0x68] sm:$0xff]
        %v581 = vld [vmem:[%s557 + $0x70] sm:$0xff]
        %v582 = vld [vmem:[%s557 + $0x78] sm:$0xff]
        %v583 = vld [vmem:[%s557 + $0x80] sm:$0xff]
        %v584 = vld [vmem:[%s557 + $0x88] sm:$0xff]
        %v585 = vld [vmem:[%s557 + $0x90] sm:$0xff]
        %v586 = vld [vmem:[%s557 + $0x98] sm:$0xff]
        %v587 = vld [vmem:[%s557 + $0xa0] sm:$0xff]
        %v588 = vld [vmem:[%s557 + $0xa8] sm:$0xff]
        %v589 = vld [vmem:[%s557 + $0xb0] sm:$0xff]
        %v590 = vld [vmem:[%s557 + $0xb8] sm:$0xff]
        %v591 = vld [vmem:[%s557 + $0xc0] sm:$0xff]
        %v592 = vld [vmem:[%s557 + $0xc8] sm:$0xff]
        %v593 = vld [vmem:[%s557 + $0xd0] sm:$0xff]
        %v594 = vld [vmem:[%s557 + $0xd8] sm:$0xff]
        %v595 = vld [vmem:[%s557 + $0xe0] sm:$0xff]
        %v596 = vld [vmem:[%s557 + $0xe8] sm:$0xff]
        %v597 = vld [vmem:[%s557 + $0xf0] sm:$0xff]
        %v598 = vld [vmem:[%s557 + $0xf8] sm:$0xff]
        %v599 = vld [vmem:[%s557 + $0x100] sm:$0xff]
        %v600 = vld [vmem:[%s557 + $0x108] sm:$0xff]
        %v601 = vld [vmem:[%s557 + $0x110] sm:$0xff]
        %v602 = vld [vmem:[%s557 + $0x118] sm:$0xff]
        %v603 = vld [vmem:[%s557 + $0x120] sm:$0xff]
        %v604 = vld [vmem:[%s557 + $0x128] sm:$0xff]
        %v605 = vld [vmem:[%s557 + $0x130] sm:$0xff]
        %v606 = vld [vmem:[%s557 + $0x138] sm:$0xff]
        %v607 = vld [vmem:[%s557 + $0x140] sm:$0xff]
        %v608 = vld [vmem:[%s557 + $0x148] sm:$0xff]
        %v609 = vld [vmem:[%s557 + $0x150] sm:$0xff]
        %v610 = vld [vmem:[%s557 + $0x158] sm:$0xff]
        %v611 = vld [vmem:[%s557 + $0x160] sm:$0xff]
        %v612 = vld [vmem:[%s557 + $0x168] sm:$0xff]
        %v613 = vld [vmem:[%s557 + $0x170] sm:$0xff]
        %v614 = vld [vmem:[%s557 + $0x178] sm:$0xff]
        %v615 = vld [vmem:[%s557 + $0x180] sm:$0xff]
        %v616 = vld [vmem:[%s557 + $0x188] sm:$0xff]
        %v617 = vld [vmem:[%s557 + $0x190] sm:$0xff]
        %v618 = vld [vmem:[%s557 + $0x198] sm:$0xff]
        %v619 = vld [vmem:[%s557 + $0x1a0] sm:$0xff]
        %v620 = vld [vmem:[%s557 + $0x1a8] sm:$0xff]
        %v621 = vld [vmem:[%s557 + $0x1b0] sm:$0xff]
        %v622 = vld [vmem:[%s557 + $0x1b8] sm:$0xff]
        %v623 = vld [vmem:[%s557 + $0x1c0] sm:$0xff]
        %v624 = vld [vmem:[%s557 + $0x1c8] sm:$0xff]
        %v625 = vld [vmem:[%s557 + $0x1d0] sm:$0xff]
        %v626 = vld [vmem:[%s557 + $0x1d8] sm:$0xff]
        %v627 = vld [vmem:[%s557 + $0x1e0] sm:$0xff]
        %v628 = vld [vmem:[%s557 + $0x1e8] sm:$0xff]
        %v629 = vld [vmem:[%s557 + $0x1f0] sm:$0xff]
        %v630 = vld [vmem:[%s557 + $0x1f8] sm:$0xff]
        %v631 = vld [vmem:[%s557 + $0x200] sm:$0xff]
        %v632 = vld [vmem:[%s557 + $0x208] sm:$0xff]
        %v633 = vld [vmem:[%s557 + $0x210] sm:$0xff]
        %v634 = vld [vmem:[%s557 + $0x218] sm:$0xff]
        %v635 = vld [vmem:[%s557 + $0x220] sm:$0xff]
        %v636 = vld [vmem:[%s557 + $0x228] sm:$0xff]
        %v637 = vld [vmem:[%s557 + $0x230] sm:$0xff]
        %v638 = vld [vmem:[%s557 + $0x238] sm:$0xff]
        %v639 = vld [vmem:[%s557 + $0x240] sm:$0xff]
        %v640 = vld [vmem:[%s557 + $0x248] sm:$0xff]
        %v641 = vld [vmem:[%s557 + $0x250] sm:$0xff]
        %v642 = vld [vmem:[%s557 + $0x258] sm:$0xff]
        %v643 = vld [vmem:[%s557 + $0x260] sm:$0xff]
        %v644 = vld [vmem:[%s557 + $0x268] sm:$0xff]
        %v645 = vld [vmem:[%s557 + $0x270] sm:$0xff]
        %v646 = vld [vmem:[%s557 + $0x278] sm:$0xff]
        %v647 = vld [vmem:[%s557 + $0x280] sm:$0xff]
        %v648 = vld [vmem:[%s557 + $0x288] sm:$0xff]
        %v649 = vld [vmem:[%s557 + $0x290] sm:$0xff]
        %v650 = vld [vmem:[%s557 + $0x298] sm:$0xff]
        %v651 = vld [vmem:[%s557 + $0x2a0] sm:$0xff]
        %v652 = vld [vmem:[%s557 + $0x2a8] sm:$0xff]
        %v653 = vld [vmem:[%s557 + $0x2b0] sm:$0xff]
        %v654 = vld [vmem:[%s557 + $0x2b8] sm:$0xff]
        %v655 = vld [vmem:[%s557 + $0x2c0] sm:$0xff]
        %v656 = vld [vmem:[%s557 + $0x2c8] sm:$0xff]
        %v657 = vld [vmem:[%s557 + $0x2d0] sm:$0xff]
        %v658 = vld [vmem:[%s557 + $0x2d8] sm:$0xff]
        %v659 = vld [vmem:[%s557 + $0x2e0] sm:$0xff]
        %v660 = vld [vmem:[%s557 + $0x2e8] sm:$0xff]
        %v661 = vld [vmem:[%s557 + $0x2f0] sm:$0xff]
        %v662 = vld [vmem:[%s557 + $0x2f8] sm:$0xff]
        %v663 = vld [vmem:[%s557 + $0x300] sm:$0xff]
        %v664 = vld [vmem:[%s557 + $0x308] sm:$0xff]
        %v665 = vld [vmem:[%s557 + $0x310] sm:$0xff]
        %v666 = vld [vmem:[%s557 + $0x318] sm:$0xff]
        %v667 = vld [vmem:[%s557 + $0x320] sm:$0xff]
        %v668 = vld [vmem:[%s557 + $0x328] sm:$0xff]
        %v669 = vld [vmem:[%s557 + $0x330] sm:$0xff]
        %v670 = vld [vmem:[%s557 + $0x338] sm:$0xff]
        %v671 = vld [vmem:[%s557 + $0x340] sm:$0xff]
        %v672 = vld [vmem:[%s557 + $0x348] sm:$0xff]
        %v673 = vld [vmem:[%s557 + $0x350] sm:$0xff]
        %v674 = vld [vmem:[%s557 + $0x358] sm:$0xff]
        %v675 = vld [vmem:[%s557 + $0x360] sm:$0xff]
        %v676 = vld [vmem:[%s557 + $0x368] sm:$0xff]
        %v677 = vld [vmem:[%s557 + $0x370] sm:$0xff]
        %v678 = vld [vmem:[%s557 + $0x378] sm:$0xff]
        %v679 = vld [vmem:[%s557 + $0x380] sm:$0xff]
        %v680 = vld [vmem:[%s557 + $0x388] sm:$0xff]
        %v681 = vld [vmem:[%s557 + $0x390] sm:$0xff]
        %v682 = vld [vmem:[%s557 + $0x398] sm:$0xff]
        %v683 = vld [vmem:[%s557 + $0x3a0] sm:$0xff]
        %v684 = vld [vmem:[%s557 + $0x3a8] sm:$0xff]
        %v685 = vld [vmem:[%s557 + $0x3b0] sm:$0xff]
        %v686 = vld [vmem:[%s557 + $0x3b8] sm:$0xff]
        %v687 = vld [vmem:[%s557 + $0x3c0] sm:$0xff]
        %v688 = vld [vmem:[%s557 + $0x3c8] sm:$0xff]
        %v689 = vld [vmem:[%s557 + $0x3d0] sm:$0xff]
        %v690 = vld [vmem:[%s557 + $0x3d8] sm:$0xff]
        %v691 = vld [vmem:[%s557 + $0x3e0] sm:$0xff]
        %v692 = vld [vmem:[%s557 + $0x3e8] sm:$0xff]
        %v693 = vld [vmem:[%s557 + $0x3f0] sm:$0xff]
        %v694 = vld [vmem:[%s557 + $0x3f8] sm:$0xff]
        %v695 = vld [vmem:[%s557 + $0x400] sm:$0xff]
        %v696 = vld [vmem:[%s557 + $0x408] sm:$0xff]
        %v697 = vld [vmem:[%s557 + $0x410] sm:$0xff]
        %v698 = vld [vmem:[%s557 + $0x418] sm:$0xff]
        %v699 = vld [vmem:[%s557 + $0x420] sm:$0xff]
        %v700 = vld [vmem:[%s557 + $0x428] sm:$0xff]
        %v701 = vld [vmem:[%s557 + $0x430] sm:$0xff]
        %v702 = vld [vmem:[%s557 + $0x438] sm:$0xff]
        %v703 = vld [vmem:[%s557 + $0x440] sm:$0xff]
        %v704 = vld [vmem:[%s557 + $0x448] sm:$0xff]
        %v705 = vld [vmem:[%s557 + $0x450] sm:$0xff]
        %v706 = vld [vmem:[%s557 + $0x458] sm:$0xff]
        %v707 = vld [vmem:[%s557 + $0x460] sm:$0xff]
        %v708 = vld [vmem:[%s557 + $0x468] sm:$0xff]
        %v709 = vld [vmem:[%s557 + $0x470] sm:$0xff]
        %v710 = vld [vmem:[%s557 + $0x478] sm:$0xff]
        %v711 = vld [vmem:[%s557 + $0x480] sm:$0xff]
        %v712 = vld [vmem:[%s557 + $0x488] sm:$0xff]
        %v713 = vld [vmem:[%s557 + $0x490] sm:$0xff]
        %v714 = vld [vmem:[%s557 + $0x498] sm:$0xff]
        %v715 = vld [vmem:[%s557 + $0x4a0] sm:$0xff]
        %v716 = vld [vmem:[%s557 + $0x4a8] sm:$0xff]
        %v717 = vld [vmem:[%s557 + $0x4b0] sm:$0xff]
        %v718 = vld [vmem:[%s557 + $0x4b8] sm:$0xff]
        %v719 = vld [vmem:[%s557 + $0x4c0] sm:$0xff]
        %v720 = vld [vmem:[%s557 + $0x4c8] sm:$0xff]
        %v721 = vld [vmem:[%s557 + $0x4d0] sm:$0xff]
        %v722 = vld [vmem:[%s557 + $0x4d8] sm:$0xff]
        %v723 = vld [vmem:[%s557 + $0x4e0] sm:$0xff]
        %v724 = vld [vmem:[%s557 + $0x4e8] sm:$0xff]
        %v725 = vld [vmem:[%s557 + $0x4f0] sm:$0xff]
        %v726 = vld [vmem:[%s557 + $0x4f8] sm:$0xff]
        %v727 = vld [vmem:[%s557 + $0x500] sm:$0xff]
        %v728 = vld [vmem:[%s557 + $0x508] sm:$0xff]
        %v729 = vld [vmem:[%s557 + $0x510] sm:$0xff]
        %v730 = vld [vmem:[%s557 + $0x518] sm:$0xff]
        %v731 = vld [vmem:[%s557 + $0x520] sm:$0xff]
        %v732 = vld [vmem:[%s557 + $0x528] sm:$0xff]
        %v733 = vld [vmem:[%s557 + $0x530] sm:$0xff]
        %v734 = vld [vmem:[%s557 + $0x538] sm:$0xff]
        %v735 = vld [vmem:[%s557 + $0x540] sm:$0xff]
        %v736 = vld [vmem:[%s557 + $0x548] sm:$0xff]
        %v737 = vld [vmem:[%s557 + $0x550] sm:$0xff]
        %v738 = vld [vmem:[%s557 + $0x558] sm:$0xff]
        %v739 = vld [vmem:[%s557 + $0x560] sm:$0xff]
        %v740 = vld [vmem:[%s557 + $0x568] sm:$0xff]
        %v741 = vld [vmem:[%s557 + $0x570] sm:$0xff]
        %v742 = vld [vmem:[%s557 + $0x578] sm:$0xff]
        %v743 = vld [vmem:[%s557 + $0x580] sm:$0xff]
        %v744 = vld [vmem:[%s557 + $0x588] sm:$0xff]
        %v745 = vld [vmem:[%s557 + $0x590] sm:$0xff]
        %v746 = vld [vmem:[%s557 + $0x598] sm:$0xff]
        %v747 = vld [vmem:[%s557 + $0x5a0] sm:$0xff]
        %v748 = vld [vmem:[%s557 + $0x5a8] sm:$0xff]
        %v749 = vld [vmem:[%s557 + $0x5b0] sm:$0xff]
        %v750 = vld [vmem:[%s557 + $0x5b8] sm:$0xff]
        %v751 = vld [vmem:[%s557 + $0x5c0] sm:$0xff]
        %v752 = vld [vmem:[%s557 + $0x5c8] sm:$0xff]
        %v753 = vld [vmem:[%s557 + $0x5d0] sm:$0xff]
        %v754 = vld [vmem:[%s557 + $0x5d8] sm:$0xff]
        %v755 = vld [vmem:[%s557 + $0x5e0] sm:$0xff]
        %v756 = vld [vmem:[%s557 + $0x5e8] sm:$0xff]
        %v757 = vld [vmem:[%s557 + $0x5f0] sm:$0xff]
        %v758 = vld [vmem:[%s557 + $0x5f8] sm:$0xff]
        %v759 = vld [vmem:[%s557 + $0x600] sm:$0xff]
        %v760 = vld [vmem:[%s557 + $0x608] sm:$0xff]
        %v761 = vld [vmem:[%s557 + $0x610] sm:$0xff]
        %v762 = vld [vmem:[%s557 + $0x618] sm:$0xff]
        %v763 = vld [vmem:[%s557 + $0x620] sm:$0xff]
        %v764 = vld [vmem:[%s557 + $0x628] sm:$0xff]
        %v765 = vld [vmem:[%s557 + $0x630] sm:$0xff]
        %v766 = vld [vmem:[%s557 + $0x638] sm:$0xff]
        %v767 = vld [vmem:[%s557 + $0x640] sm:$0xff]
        %v768 = vld [vmem:[%s557 + $0x648] sm:$0xff]
        %v769 = vld [vmem:[%s557 + $0x650] sm:$0xff]
        %v770 = vld [vmem:[%s557 + $0x658] sm:$0xff]
        %v771 = vld [vmem:[%s557 + $0x660] sm:$0xff]
        %v772 = vld [vmem:[%s557 + $0x668] sm:$0xff]
        %v773 = vld [vmem:[%s557 + $0x670] sm:$0xff]
        %v774 = vld [vmem:[%s557 + $0x678] sm:$0xff]
        %v775 = vld [vmem:[%s557 + $0x680] sm:$0xff]
        %v776 = vld [vmem:[%s557 + $0x688] sm:$0xff]
        %v777 = vld [vmem:[%s557 + $0x690] sm:$0xff]
        %v778 = vld [vmem:[%s557 + $0x698] sm:$0xff]
        %v779 = vld [vmem:[%s557 + $0x6a0] sm:$0xff]
        %v780 = vld [vmem:[%s557 + $0x6a8] sm:$0xff]
        %v781 = vld [vmem:[%s557 + $0x6b0] sm:$0xff]
        %v782 = vld [vmem:[%s557 + $0x6b8] sm:$0xff]
        %v783 = vld [vmem:[%s557 + $0x6c0] sm:$0xff]
        %v784 = vld [vmem:[%s557 + $0x6c8] sm:$0xff]
        %v785 = vld [vmem:[%s557 + $0x6d0] sm:$0xff]
        %v786 = vld [vmem:[%s557 + $0x6d8] sm:$0xff]
        %v787 = vld [vmem:[%s557 + $0x6e0] sm:$0xff]
        %v788 = vld [vmem:[%s557 + $0x6e8] sm:$0xff]
        %v789 = vld [vmem:[%s557 + $0x6f0] sm:$0xff]
        %v790 = vld [vmem:[%s557 + $0x6f8] sm:$0xff]
        %v791 = vld [vmem:[%s557 + $0x700] sm:$0xff]
        %v792 = vld [vmem:[%s557 + $0x708] sm:$0xff]
        %v793 = vld [vmem:[%s557 + $0x710] sm:$0xff]
        %v794 = vld [vmem:[%s557 + $0x718] sm:$0xff]
        %v795 = vld [vmem:[%s557 + $0x720] sm:$0xff]
        %v796 = vld [vmem:[%s557 + $0x728] sm:$0xff]
        %v797 = vld [vmem:[%s557 + $0x730] sm:$0xff]
        %v798 = vld [vmem:[%s557 + $0x738] sm:$0xff]
        %v799 = vld [vmem:[%s557 + $0x740] sm:$0xff]
        %v800 = vld [vmem:[%s557 + $0x748] sm:$0xff]
        %v801 = vld [vmem:[%s557 + $0x750] sm:$0xff]
        %v802 = vld [vmem:[%s557 + $0x758] sm:$0xff]
        %v803 = vld [vmem:[%s557 + $0x760] sm:$0xff]
        %v804 = vld [vmem:[%s557 + $0x768] sm:$0xff]
        %v805 = vld [vmem:[%s557 + $0x770] sm:$0xff]
        %v806 = vld [vmem:[%s557 + $0x778] sm:$0xff]
        %v807 = vld [vmem:[%s557 + $0x780] sm:$0xff]
        %v808 = vld [vmem:[%s557 + $0x788] sm:$0xff]
        %v809 = vld [vmem:[%s557 + $0x790] sm:$0xff]
        %v810 = vld [vmem:[%s557 + $0x798] sm:$0xff]
        %v811 = vld [vmem:[%s557 + $0x7a0] sm:$0xff]
        %v812 = vld [vmem:[%s557 + $0x7a8] sm:$0xff]
        %v813 = vld [vmem:[%s557 + $0x7b0] sm:$0xff]
        %v814 = vld [vmem:[%s557 + $0x7b8] sm:$0xff]
        %v815 = vld [vmem:[%s557 + $0x7c0] sm:$0xff]
        %v816 = vld [vmem:[%s557 + $0x7c8] sm:$0xff]
        %v817 = vld [vmem:[%s557 + $0x7d0] sm:$0xff]
        %v818 = vld [vmem:[%s557 + $0x7d8] sm:$0xff]
        %v819 = vld [vmem:[%s557 + $0x7e0] sm:$0xff]
        %v820 = vld [vmem:[%s557 + $0x7e8] sm:$0xff]
        %v821 = vld [vmem:[%s557 + $0x7f0] sm:$0xff]
        %v822 = vld [vmem:[%s557 + $0x7f8] sm:$0xff]
        %v823 = vld [vmem:[%s557 + $0x800] sm:$0xff]
        %v824 = vld [vmem:[%s557 + $0x808] sm:$0xff]
        %v825 = vld [vmem:[%s557 + $0x810] sm:$0xff]
        %v826 = vld [vmem:[%s557 + $0x818] sm:$0xff]
        %v827 = vld [vmem:[%s557 + $0x820] sm:$0xff]
        %v828 = vld [vmem:[%s557 + $0x828] sm:$0xff]
        %v829 = vld [vmem:[%s557 + $0x830] sm:$0xff]
        %v830 = vld [vmem:[%s557 + $0x838] sm:$0xff]
        %v831 = vld [vmem:[%s557 + $0x840] sm:$0xff]
        %v832 = vld [vmem:[%s557 + $0x848] sm:$0xff]
        %v833 = vld [vmem:[%s557 + $0x850] sm:$0xff]
        %v834 = vld [vmem:[%s557 + $0x858] sm:$0xff]
        %v835 = vld [vmem:[%s557 + $0x860] sm:$0xff]
        %v836 = vld [vmem:[%s557 + $0x868] sm:$0xff]
        %v837 = vld [vmem:[%s557 + $0x870] sm:$0xff]
        %v838 = vld [vmem:[%s557 + $0x878] sm:$0xff]
        %v839 = vld [vmem:[%s557 + $0x880] sm:$0xff]
        %v840 = vld [vmem:[%s557 + $0x888] sm:$0xff]
        %v841 = vld [vmem:[%s557 + $0x890] sm:$0xff]
        %v842 = vld [vmem:[%s557 + $0x898] sm:$0xff]
        %v843 = vld [vmem:[%s557 + $0x8a0] sm:$0xff]
        %v844 = vld [vmem:[%s557 + $0x8a8] sm:$0xff]
        %v845 = vld [vmem:[%s557 + $0x8b0] sm:$0xff]
        %v846 = vld [vmem:[%s557 + $0x8b8] sm:$0xff]
        %v847 = vld [vmem:[%s557 + $0x8c0] sm:$0xff]
        %v848 = vld [vmem:[%s557 + $0x8c8] sm:$0xff]
        %v849 = vld [vmem:[%s557 + $0x8d0] sm:$0xff]
        %v850 = vld [vmem:[%s557 + $0x8d8] sm:$0xff]
        %v851 = vld [vmem:[%s557 + $0x8e0] sm:$0xff]
        %v852 = vld [vmem:[%s557 + $0x8e8] sm:$0xff]
        %v853 = vld [vmem:[%s557 + $0x8f0] sm:$0xff]
        %v854 = vld [vmem:[%s557 + $0x8f8] sm:$0xff]
        %v855 = vld [vmem:[%s557 + $0x900] sm:$0xff]
        %v856 = vld [vmem:[%s557 + $0x908] sm:$0xff]
        %v857 = vld [vmem:[%s557 + $0x910] sm:$0xff]
        %v858 = vld [vmem:[%s557 + $0x918] sm:$0xff]
        %v859 = vld [vmem:[%s557 + $0x920] sm:$0xff]
        %v860 = vld [vmem:[%s557 + $0x928] sm:$0xff]
        %v861 = vld [vmem:[%s557 + $0x930] sm:$0xff]
        %v862 = vld [vmem:[%s557 + $0x938] sm:$0xff]
        %v863 = vld [vmem:[%s557 + $0x940] sm:$0xff]
        %v864 = vld [vmem:[%s557 + $0x948] sm:$0xff]
        %v865 = vld [vmem:[%s557 + $0x950] sm:$0xff]
        %v866 = vld [vmem:[%s557 + $0x958] sm:$0xff]
        %v867 = vld [vmem:[%s557 + $0x960] sm:$0xff]
        %v868 = vld [vmem:[%s557 + $0x968] sm:$0xff]
        %v869 = vld [vmem:[%s557 + $0x970] sm:$0xff]
        %v870 = vld [vmem:[%s557 + $0x978] sm:$0xff]
        %v871 = vld [vmem:[%s557 + $0x980] sm:$0xff]
        %v872 = vld [vmem:[%s557 + $0x988] sm:$0xff]
        %v873 = vld [vmem:[%s557 + $0x990] sm:$0xff]
        %v874 = vld [vmem:[%s557 + $0x998] sm:$0xff]
        %v875 = vld [vmem:[%s557 + $0x9a0] sm:$0xff]
        %v876 = vld [vmem:[%s557 + $0x9a8] sm:$0xff]
        %v877 = vld [vmem:[%s557 + $0x9b0] sm:$0xff]
        %v878 = vld [vmem:[%s557 + $0x9b8] sm:$0xff]
        %v879 = vld [vmem:[%s557 + $0x9c0] sm:$0xff]
        %v880 = vld [vmem:[%s557 + $0x9c8] sm:$0xff]
        %v881 = vld [vmem:[%s557 + $0x9d0] sm:$0xff]
        %v882 = vld [vmem:[%s557 + $0x9d8] sm:$0xff]
        %v883 = vld [vmem:[%s557 + $0x9e0] sm:$0xff]
        %v884 = vld [vmem:[%s557 + $0x9e8] sm:$0xff]
        %v885 = vld [vmem:[%s557 + $0x9f0] sm:$0xff]
        %v886 = vld [vmem:[%s557 + $0x9f8] sm:$0xff]
        %v887 = vld [vmem:[%s557 + $0xa00] sm:$0xff]
        %v888 = vld [vmem:[%s557 + $0xa08] sm:$0xff]
        %v889 = vld [vmem:[%s557 + $0xa10] sm:$0xff]
        %v890 = vld [vmem:[%s557 + $0xa18] sm:$0xff]
        %v891 = vld [vmem:[%s557 + $0xa20] sm:$0xff]
        %v892 = vld [vmem:[%s557 + $0xa28] sm:$0xff]
        %v893 = vld [vmem:[%s557 + $0xa30] sm:$0xff]
        %v894 = vld [vmem:[%s557 + $0xa38] sm:$0xff]
        %v895 = vld [vmem:[%s557 + $0xa40] sm:$0xff]
        %v896 = vld [vmem:[%s557 + $0xa48] sm:$0xff]
        %v897 = vld [vmem:[%s557 + $0xa50] sm:$0xff]
        %v898 = vld [vmem:[%s557 + $0xa58] sm:$0xff]
        %v899 = vld [vmem:[%s557 + $0xa60] sm:$0xff]
        %v900 = vld [vmem:[%s557 + $0xa68] sm:$0xff]
        %v901 = vld [vmem:[%s557 + $0xa70] sm:$0xff]
        %v902 = vld [vmem:[%s557 + $0xa78] sm:$0xff]
        %v903 = vld [vmem:[%s557 + $0xa80] sm:$0xff]
        %v904 = vld [vmem:[%s557 + $0xa88] sm:$0xff]
        %v905 = vld [vmem:[%s557 + $0xa90] sm:$0xff]
        %v906 = vld [vmem:[%s557 + $0xa98] sm:$0xff]
        %v907 = vld [vmem:[%s557 + $0xaa0] sm:$0xff]
        %v908 = vld [vmem:[%s557 + $0xaa8] sm:$0xff]
        %v909 = vld [vmem:[%s557 + $0xab0] sm:$0xff]
        %v910 = vld [vmem:[%s557 + $0xab8] sm:$0xff]
        %v911 = vld [vmem:[%s557 + $0xac0] sm:$0xff]
        %v912 = vld [vmem:[%s557 + $0xac8] sm:$0xff]
        %v913 = vld [vmem:[%s557 + $0xad0] sm:$0xff]
        %v914 = vld [vmem:[%s557 + $0xad8] sm:$0xff]
        %v915 = vld [vmem:[%s557 + $0xae0] sm:$0xff]
        %v916 = vld [vmem:[%s557 + $0xae8] sm:$0xff]
        %v917 = vld [vmem:[%s557 + $0xaf0] sm:$0xff]
        %v918 = vld [vmem:[%s557 + $0xaf8] sm:$0xff]
        %v919 = vld [vmem:[%s557 + $0xb00] sm:$0xff]
        %v920 = vld [vmem:[%s557 + $0xb08] sm:$0xff]
        %v921 = vld [vmem:[%s557 + $0xb10] sm:$0xff]
        %v922 = vld [vmem:[%s557 + $0xb18] sm:$0xff]
        %v923 = vld [vmem:[%s557 + $0xb20] sm:$0xff]
        %v924 = vld [vmem:[%s557 + $0xb28] sm:$0xff]
        %v925 = vld [vmem:[%s557 + $0xb30] sm:$0xff]
        %v926 = vld [vmem:[%s557 + $0xb38] sm:$0xff]
        %v927 = vld [vmem:[%s557 + $0xb40] sm:$0xff]
        %v928 = vld [vmem:[%s557 + $0xb48] sm:$0xff]
        %v929 = vld [vmem:[%s557 + $0xb50] sm:$0xff]
        %v930 = vld [vmem:[%s557 + $0xb58] sm:$0xff]
        %v931 = vld [vmem:[%s557 + $0xb60] sm:$0xff]
        %v932 = vld [vmem:[%s557 + $0xb68] sm:$0xff]
        %v933 = vld [vmem:[%s557 + $0xb70] sm:$0xff]
        %v934 = vld [vmem:[%s557 + $0xb78] sm:$0xff]
        %v935 = vld [vmem:[%s557 + $0xb80] sm:$0xff]
        %v936 = vld [vmem:[%s557 + $0xb88] sm:$0xff]
        %v937 = vld [vmem:[%s557 + $0xb90] sm:$0xff]
        %v938 = vld [vmem:[%s557 + $0xb98] sm:$0xff]
        %v939 = vld [vmem:[%s557 + $0xba0] sm:$0xff]
        %v940 = vld [vmem:[%s557 + $0xba8] sm:$0xff]
        %v941 = vld [vmem:[%s557 + $0xbb0] sm:$0xff]
        %v942 = vld [vmem:[%s557 + $0xbb8] sm:$0xff]
        %v943 = vld [vmem:[%s557 + $0xbc0] sm:$0xff]
        %v944 = vld [vmem:[%s557 + $0xbc8] sm:$0xff]
        %v945 = vld [vmem:[%s557 + $0xbd0] sm:$0xff]
        %v946 = vld [vmem:[%s557 + $0xbd8] sm:$0xff]
        %v947 = vld [vmem:[%s557 + $0xbe0] sm:$0xff]
        %v948 = vld [vmem:[%s557 + $0xbe8] sm:$0xff]
        %v949 = vld [vmem:[%s557 + $0xbf0] sm:$0xff]
        %v950 = vld [vmem:[%s557 + $0xbf8] sm:$0xff]
        %v951 = vld [vmem:[%s557 + $0xc00] sm:$0xff]
        %v952 = vld [vmem:[%s557 + $0xc08] sm:$0xff]
        %v953 = vld [vmem:[%s557 + $0xc10] sm:$0xff]
        %v954 = vld [vmem:[%s557 + $0xc18] sm:$0xff]
        %v955 = vld [vmem:[%s557 + $0xc20] sm:$0xff]
        %v956 = vld [vmem:[%s557 + $0xc28] sm:$0xff]
        %v957 = vld [vmem:[%s557 + $0xc30] sm:$0xff]
        %v958 = vld [vmem:[%s557 + $0xc38] sm:$0xff]
        %v959 = vld [vmem:[%s557 + $0xc40] sm:$0xff]
        %v960 = vld [vmem:[%s557 + $0xc48] sm:$0xff]
        %v961 = vld [vmem:[%s557 + $0xc50] sm:$0xff]
        %v962 = vld [vmem:[%s557 + $0xc58] sm:$0xff]
        %v963 = vld [vmem:[%s557 + $0xc60] sm:$0xff]
        %v964 = vld [vmem:[%s557 + $0xc68] sm:$0xff]
        %v965 = vld [vmem:[%s557 + $0xc70] sm:$0xff]
        %v966 = vld [vmem:[%s557 + $0xc78] sm:$0xff]
        %v967 = vld [vmem:[%s557 + $0xc80] sm:$0xff]
        %v968 = vld [vmem:[%s557 + $0xc88] sm:$0xff]
        %v969 = vld [vmem:[%s557 + $0xc90] sm:$0xff]
        %v970 = vld [vmem:[%s557 + $0xc98] sm:$0xff]
        %v971 = vld [vmem:[%s557 + $0xca0] sm:$0xff]
        %v972 = vld [vmem:[%s557 + $0xca8] sm:$0xff]
        %v973 = vld [vmem:[%s557 + $0xcb0] sm:$0xff]
        %v974 = vld [vmem:[%s557 + $0xcb8] sm:$0xff]
        %v975 = vld [vmem:[%s557 + $0xcc0] sm:$0xff]
        %v976 = vld [vmem:[%s557 + $0xcc8] sm:$0xff]
        %v977 = vld [vmem:[%s557 + $0xcd0] sm:$0xff]
        %v978 = vld [vmem:[%s557 + $0xcd8] sm:$0xff]
        %v979 = vld [vmem:[%s557 + $0xce0] sm:$0xff]
        %v980 = vld [vmem:[%s557 + $0xce8] sm:$0xff]
        %v981 = vld [vmem:[%s557 + $0xcf0] sm:$0xff]
        %v982 = vld [vmem:[%s557 + $0xcf8] sm:$0xff]
        %v983 = vld [vmem:[%s557 + $0xd00] sm:$0xff]
        %v984 = vld [vmem:[%s557 + $0xd08] sm:$0xff]
        %v985 = vld [vmem:[%s557 + $0xd10] sm:$0xff]
        %v986 = vld [vmem:[%s557 + $0xd18] sm:$0xff]
        %v987 = vld [vmem:[%s557 + $0xd20] sm:$0xff]
        %v988 = vld [vmem:[%s557 + $0xd28] sm:$0xff]
        %v989 = vld [vmem:[%s557 + $0xd30] sm:$0xff]
        %v990 = vld [vmem:[%s557 + $0xd38] sm:$0xff]
        %v991 = vld [vmem:[%s557 + $0xd40] sm:$0xff]
        %v992 = vld [vmem:[%s557 + $0xd48] sm:$0xff]
        %v993 = vld [vmem:[%s557 + $0xd50] sm:$0xff]
        %v994 = vld [vmem:[%s557 + $0xd58] sm:$0xff]
        %v995 = vld [vmem:[%s557 + $0xd60] sm:$0xff]
        %v996 = vld [vmem:[%s557 + $0xd68] sm:$0xff]
        %v997 = vld [vmem:[%s557 + $0xd70] sm:$0xff]
        %v998 = vld [vmem:[%s557 + $0xd78] sm:$0xff]
        %v999 = vld [vmem:[%s557 + $0xd80] sm:$0xff]
        %v1000 = vld [vmem:[%s557 + $0xd88] sm:$0xff]
        %v1001 = vld [vmem:[%s557 + $0xd90] sm:$0xff]
        %v1002 = vld [vmem:[%s557 + $0xd98] sm:$0xff]
        %v1003 = vld [vmem:[%s557 + $0xda0] sm:$0xff]
        %v1004 = vld [vmem:[%s557 + $0xda8] sm:$0xff]
        %v1005 = vld [vmem:[%s557 + $0xdb0] sm:$0xff]
        %v1006 = vld [vmem:[%s557 + $0xdb8] sm:$0xff]
        %v1007 = vld [vmem:[%s557 + $0xdc0] sm:$0xff]
        %v1008 = vld [vmem:[%s557 + $0xdc8] sm:$0xff]
        %v1009 = vld [vmem:[%s557 + $0xdd0] sm:$0xff]
        %v1010 = vld [vmem:[%s557 + $0xdd8] sm:$0xff]
        %v1011 = vld [vmem:[%s557 + $0xde0] sm:$0xff]
        %v1012 = vld [vmem:[%s557 + $0xde8] sm:$0xff]
        %v1013 = vld [vmem:[%s557 + $0xdf0] sm:$0xff]
        %v1014 = vld [vmem:[%s557 + $0xdf8] sm:$0xff]
        %v1015 = vld [vmem:[%s557 + $0xe00] sm:$0xff]
        %v1016 = vld [vmem:[%s557 + $0xe08] sm:$0xff]
        %v1017 = vld [vmem:[%s557 + $0xe10] sm:$0xff]
        %v1018 = vld [vmem:[%s557 + $0xe18] sm:$0xff]
        %v1019 = vld [vmem:[%s557 + $0xe20] sm:$0xff]
        %v1020 = vld [vmem:[%s557 + $0xe28] sm:$0xff]
        %v1021 = vld [vmem:[%s557 + $0xe30] sm:$0xff]
        %v1022 = vld [vmem:[%s557 + $0xe38] sm:$0xff]
        %v1023 = vld [vmem:[%s557 + $0xe40] sm:$0xff]
        %v1024 = vld [vmem:[%s557 + $0xe48] sm:$0xff]
        %v1025 = vld [vmem:[%s557 + $0xe50] sm:$0xff]
        %v1026 = vld [vmem:[%s557 + $0xe58] sm:$0xff]
        %v1027 = vld [vmem:[%s557 + $0xe60] sm:$0xff]
        %v1028 = vld [vmem:[%s557 + $0xe68] sm:$0xff]
        %v1029 = vld [vmem:[%s557 + $0xe70] sm:$0xff]
        %v1030 = vld [vmem:[%s557 + $0xe78] sm:$0xff]
        %v1031 = vld [vmem:[%s557 + $0xe80] sm:$0xff]
        %v1032 = vld [vmem:[%s557 + $0xe88] sm:$0xff]
        %v1033 = vld [vmem:[%s557 + $0xe90] sm:$0xff]
        %v1034 = vld [vmem:[%s557 + $0xe98] sm:$0xff]
        %v1035 = vld [vmem:[%s557 + $0xea0] sm:$0xff]
        %v1036 = vld [vmem:[%s557 + $0xea8] sm:$0xff]
        %v1037 = vld [vmem:[%s557 + $0xeb0] sm:$0xff]
        %v1038 = vld [vmem:[%s557 + $0xeb8] sm:$0xff]
        %v1039 = vld [vmem:[%s557 + $0xec0] sm:$0xff]
        %v1040 = vld [vmem:[%s557 + $0xec8] sm:$0xff]
        %v1041 = vld [vmem:[%s557 + $0xed0] sm:$0xff]
        %v1042 = vld [vmem:[%s557 + $0xed8] sm:$0xff]
        %v1043 = vld [vmem:[%s557 + $0xee0] sm:$0xff]
        %v1044 = vld [vmem:[%s557 + $0xee8] sm:$0xff]
        %v1045 = vld [vmem:[%s557 + $0xef0] sm:$0xff]
        %v1046 = vld [vmem:[%s557 + $0xef8] sm:$0xff]
        %v1047 = vld [vmem:[%s557 + $0xf00] sm:$0xff]
        %v1048 = vld [vmem:[%s557 + $0xf08] sm:$0xff]
        %v1049 = vld [vmem:[%s557 + $0xf10] sm:$0xff]
        %v1050 = vld [vmem:[%s557 + $0xf18] sm:$0xff]
        %v1051 = vld [vmem:[%s557 + $0xf20] sm:$0xff]
        %v1052 = vld [vmem:[%s557 + $0xf28] sm:$0xff]
        %v1053 = vld [vmem:[%s557 + $0xf30] sm:$0xff]
        %v1054 = vld [vmem:[%s557 + $0xf38] sm:$0xff]
        %v1055 = vld [vmem:[%s557 + $0xf40] sm:$0xff]
        %v1056 = vld [vmem:[%s557 + $0xf48] sm:$0xff]
        %v1057 = vld [vmem:[%s557 + $0xf50] sm:$0xff]
        %v1058 = vld [vmem:[%s557 + $0xf58] sm:$0xff]
        %v1059 = vld [vmem:[%s557 + $0xf60] sm:$0xff]
        %v1060 = vld [vmem:[%s557 + $0xf68] sm:$0xff]
        %v1061 = vld [vmem:[%s557 + $0xf70] sm:$0xff]
        %v1062 = vld [vmem:[%s557 + $0xf78] sm:$0xff]
        %v1063 = vld [vmem:[%s557 + $0xf80] sm:$0xff]
        %v1064 = vld [vmem:[%s557 + $0xf88] sm:$0xff]
        %v1065 = vld [vmem:[%s557 + $0xf90] sm:$0xff]
        %v1066 = vld [vmem:[%s557 + $0xf98] sm:$0xff]
        %v1067 = vld [vmem:[%s557 + $0xfa0] sm:$0xff]
        %v1068 = vld [vmem:[%s557 + $0xfa8] sm:$0xff]
        %v1069 = vld [vmem:[%s557 + $0xfb0] sm:$0xff]
        %v1070 = vld [vmem:[%s557 + $0xfb8] sm:$0xff]
        %v1071 = vld [vmem:[%s557 + $0xfc0] sm:$0xff]
        %v1072 = vld [vmem:[%s557 + $0xfc8] sm:$0xff]
        %v1073 = vld [vmem:[%s557 + $0xfd0] sm:$0xff]
        %v1074 = vld [vmem:[%s557 + $0xfd8] sm:$0xff]
        %v1075 = vld [vmem:[%s557 + $0xfe0] sm:$0xff]
        %v1076 = vld [vmem:[%s557 + $0xfe8] sm:$0xff]
        %v1077 = vld [vmem:[%s557 + $0xff0] sm:$0xff]
        %v1078 = vld [vmem:[%s557 + $0xff8] sm:$0xff]
        %v1079 = vld [vmem:[%s557 + $0x1000] sm:$0xff]
        %v1080 = vld [vmem:[%s557 + $0x1008] sm:$0xff]
        %v1081 = vld [vmem:[%s557 + $0x1010] sm:$0xff]
        %v1082 = vld [vmem:[%s557 + $0x1018] sm:$0xff]
        %v1083 = vld [vmem:[%s557 + $0x1020] sm:$0xff]
        %v1084 = vld [vmem:[%s557 + $0x1028] sm:$0xff]
        %v1085 = vld [vmem:[%s557 + $0x1030] sm:$0xff]
        %v1086 = vld [vmem:[%s557 + $0x1038] sm:$0xff]
        %v1087 = vld [vmem:[%s557 + $0x1040] sm:$0xff]
        %v1088 = vld [vmem:[%s557 + $0x1048] sm:$0xff]
        %v1089 = vld [vmem:[%s557 + $0x1050] sm:$0xff]
        %v1090 = vld [vmem:[%s557 + $0x1058] sm:$0xff]
        %v1091 = vld [vmem:[%s557 + $0x1060] sm:$0xff]
        %v1092 = vld [vmem:[%s557 + $0x1068] sm:$0xff]
        %v1093 = vld [vmem:[%s557 + $0x1070] sm:$0xff]
        %v1094 = vld [vmem:[%s557 + $0x1078] sm:$0xff]
        %v1095 = vld [vmem:[%s557 + $0x1080] sm:$0xff]
        %v1096 = vld [vmem:[%s557 + $0x1088] sm:$0xff]
        %v1097 = vld [vmem:[%s557 + $0x1090] sm:$0xff]
        %v1098 = vld [vmem:[%s557 + $0x1098] sm:$0xff]
        %v1099 = vld [vmem:[%s557 + $0x10a0] sm:$0xff]
        %v1100 = vld [vmem:[%s557 + $0x10a8] sm:$0xff]
        %v1101 = vld [vmem:[%s557 + $0x10b0] sm:$0xff]
        %v1102 = vld [vmem:[%s557 + $0x10b8] sm:$0xff]
        %v1103 = vld [vmem:[%s557 + $0x10c0] sm:$0xff]
        %v1104 = vld [vmem:[%s557 + $0x10c8] sm:$0xff]
        %v1105 = vld [vmem:[%s557 + $0x10d0] sm:$0xff]
        %v1106 = vld [vmem:[%s557 + $0x10d8] sm:$0xff]
        %v1107 = vld [vmem:[%s557 + $0x10e0] sm:$0xff]
        %v1108 = vld [vmem:[%s557 + $0x10e8] sm:$0xff]
        %v1109 = vld [vmem:[%s557 + $0x10f0] sm:$0xff]
        %v1110 = vld [vmem:[%s557 + $0x10f8] sm:$0xff]
        %v1111 = vld [vmem:[%s557 + $0x1100] sm:$0xff]
        %v1112 = vld [vmem:[%s557 + $0x1108] sm:$0xff]
        %v1113 = vld [vmem:[%s557 + $0x1110] sm:$0xff]
        %v1114 = vld [vmem:[%s557 + $0x1118] sm:$0xff]
        %v1115 = vld [vmem:[%s557 + $0x1120] sm:$0xff]
        %v1116 = vld [vmem:[%s557 + $0x1128] sm:$0xff]
        %v1117 = vld [vmem:[%s557 + $0x1130] sm:$0xff]
        %v1118 = vld [vmem:[%s557 + $0x1138] sm:$0xff]
        %v1119 = vld [vmem:[%s557 + $0x1140] sm:$0xff]
        %v1120 = vld [vmem:[%s557 + $0x1148] sm:$0xff]
        %v1121 = vld [vmem:[%s557 + $0x1150] sm:$0xff]
        %v1122 = vld [vmem:[%s557 + $0x1158] sm:$0xff]
        %v1123 = vld [vmem:[%s557 + $0x1160] sm:$0xff]
        %v1124 = vld [vmem:[%s557 + $0x1168] sm:$0xff]
        %v1125 = vld [vmem:[%s557 + $0x1170] sm:$0xff]
        %v1126 = vld [vmem:[%s557 + $0x1178] sm:$0xff]
        %v1127 = vld [vmem:[%s557 + $0x1180] sm:$0xff]
        %v1128 = vld [vmem:[%s557 + $0x1188] sm:$0xff]
        %v1129 = vld [vmem:[%s557 + $0x1190] sm:$0xff]
        %v1130 = vld [vmem:[%s557 + $0x1198] sm:$0xff]
        %v1131 = vld [vmem:[%s557 + $0x11a0] sm:$0xff]
        %v1132 = vld [vmem:[%s557 + $0x11a8] sm:$0xff]
        %v1133 = vld [vmem:[%s557 + $0x11b0] sm:$0xff]
        %v1134 = vld [vmem:[%s557 + $0x11b8] sm:$0xff]
        %v1135 = vld [vmem:[%s557 + $0x11c0] sm:$0xff]
        %v1136 = vld [vmem:[%s557 + $0x11c8] sm:$0xff]
        %v1137 = vld [vmem:[%s557 + $0x11d0] sm:$0xff]
        %v1138 = vld [vmem:[%s557 + $0x11d8] sm:$0xff]
        %v1139 = vld [vmem:[%s557 + $0x11e0] sm:$0xff]
        %v1140 = vld [vmem:[%s557 + $0x11e8] sm:$0xff]
        %v1141 = vld [vmem:[%s557 + $0x11f0] sm:$0xff]
        %v1142 = vld [vmem:[%s557 + $0x11f8] sm:$0xff]
        %v1143 = vld [vmem:[%s557 + $0x1200] sm:$0xff]
        %v1144 = vld [vmem:[%s557 + $0x1208] sm:$0xff]
        %v1145 = vld [vmem:[%s557 + $0x1210] sm:$0xff]
        %v1146 = vld [vmem:[%s557 + $0x1218] sm:$0xff]
        %v1147 = vld [vmem:[%s557 + $0x1220] sm:$0xff]
        %v1148 = vld [vmem:[%s557 + $0x1228] sm:$0xff]
        %v1149 = vld [vmem:[%s557 + $0x1230] sm:$0xff]
        %v1150 = vld [vmem:[%s557 + $0x1238] sm:$0xff]
        %v1151 = vld [vmem:[%s557 + $0x1240] sm:$0xff]
        %v1152 = vld [vmem:[%s557 + $0x1248] sm:$0xff]
        %v1153 = vld [vmem:[%s557 + $0x1250] sm:$0xff]
        %v1154 = vld [vmem:[%s557 + $0x1258] sm:$0xff]
        %v1155 = vld [vmem:[%s557 + $0x1260] sm:$0xff]
        %v1156 = vld [vmem:[%s557 + $0x1268] sm:$0xff]
        %v1157 = vld [vmem:[%s557 + $0x1270] sm:$0xff]
        %v1158 = vld [vmem:[%s557 + $0x1278] sm:$0xff]
        %v1159 = vld [vmem:[%s557 + $0x1280] sm:$0xff]
        %v1160 = vld [vmem:[%s557 + $0x1288] sm:$0xff]
        %v1161 = vld [vmem:[%s557 + $0x1290] sm:$0xff]
        %v1162 = vld [vmem:[%s557 + $0x1298] sm:$0xff]
        %v1163 = vld [vmem:[%s557 + $0x12a0] sm:$0xff]
        %v1164 = vld [vmem:[%s557 + $0x12a8] sm:$0xff]
        %v1165 = vld [vmem:[%s557 + $0x12b0] sm:$0xff]
        %v1166 = vld [vmem:[%s557 + $0x12b8] sm:$0xff]
        %v1167 = vld [vmem:[%s557 + $0x12c0] sm:$0xff]
        %v1168 = vld [vmem:[%s557 + $0x12c8] sm:$0xff]
        %v1169 = vld [vmem:[%s557 + $0x12d0] sm:$0xff]
        %v1170 = vld [vmem:[%s557 + $0x12d8] sm:$0xff]
        %v1171 = vld [vmem:[%s557 + $0x12e0] sm:$0xff]
        %v1172 = vld [vmem:[%s557 + $0x12e8] sm:$0xff]
        %v1173 = vld [vmem:[%s557 + $0x12f0] sm:$0xff]
        %v1174 = vld [vmem:[%s557 + $0x12f8] sm:$0xff]
        %v1175 = vld [vmem:[%s557 + $0x1300] sm:$0xff]
        %v1176 = vld [vmem:[%s557 + $0x1308] sm:$0xff]
        %v1177 = vld [vmem:[%s557 + $0x1310] sm:$0xff]
        %v1178 = vld [vmem:[%s557 + $0x1318] sm:$0xff]
        %v1179 = vld [vmem:[%s557 + $0x1320] sm:$0xff]
        %v1180 = vld [vmem:[%s557 + $0x1328] sm:$0xff]
        %v1181 = vld [vmem:[%s557 + $0x1330] sm:$0xff]
        %v1182 = vld [vmem:[%s557 + $0x1338] sm:$0xff]
        %v1183 = vld [vmem:[%s557 + $0x1340] sm:$0xff]
        %v1184 = vld [vmem:[%s557 + $0x1348] sm:$0xff]
        %v1185 = vld [vmem:[%s557 + $0x1350] sm:$0xff]
        %v1186 = vld [vmem:[%s557 + $0x1358] sm:$0xff]
        %v1187 = vld [vmem:[%s557 + $0x1360] sm:$0xff]
        %v1188 = vld [vmem:[%s557 + $0x1368] sm:$0xff]
        %v1189 = vld [vmem:[%s557 + $0x1370] sm:$0xff]
        %v1190 = vld [vmem:[%s557 + $0x1378] sm:$0xff]
        %v1191 = vld [vmem:[%s557 + $0x1380] sm:$0xff]
        %v1192 = vld [vmem:[%s557 + $0x1388] sm:$0xff]
        %v1193 = vld [vmem:[%s557 + $0x1390] sm:$0xff]
        %v1194 = vld [vmem:[%s557 + $0x1398] sm:$0xff]
        %v1195 = vld [vmem:[%s557 + $0x13a0] sm:$0xff]
        %v1196 = vld [vmem:[%s557 + $0x13a8] sm:$0xff]
        %v1197 = vld [vmem:[%s557 + $0x13b0] sm:$0xff]
        %v1198 = vld [vmem:[%s557 + $0x13b8] sm:$0xff]
        %v1199 = vld [vmem:[%s557 + $0x13c0] sm:$0xff]
        %v1200 = vld [vmem:[%s557 + $0x13c8] sm:$0xff]
        %v1201 = vld [vmem:[%s557 + $0x13d0] sm:$0xff]
        %v1202 = vld [vmem:[%s557 + $0x13d8] sm:$0xff]
        %v1203 = vld [vmem:[%s557 + $0x13e0] sm:$0xff]
        %v1204 = vld [vmem:[%s557 + $0x13e8] sm:$0xff]
        %v1205 = vld [vmem:[%s557 + $0x13f0] sm:$0xff]
        %v1206 = vld [vmem:[%s557 + $0x13f8] sm:$0xff]
        %v1207 = vld [vmem:[%s557 + $0x1400] sm:$0xff]
        %v1208 = vld [vmem:[%s557 + $0x1408] sm:$0xff]
        %v1209 = vld [vmem:[%s557 + $0x1410] sm:$0xff]
        %v1210 = vld [vmem:[%s557 + $0x1418] sm:$0xff]
        %v1211 = vld [vmem:[%s557 + $0x1420] sm:$0xff]
        %v1212 = vld [vmem:[%s557 + $0x1428] sm:$0xff]
        %v1213 = vld [vmem:[%s557 + $0x1430] sm:$0xff]
        %v1214 = vld [vmem:[%s557 + $0x1438] sm:$0xff]
        %v1215 = vld [vmem:[%s557 + $0x1440] sm:$0xff]
        %v1216 = vld [vmem:[%s557 + $0x1448] sm:$0xff]
        %v1217 = vld [vmem:[%s557 + $0x1450] sm:$0xff]
        %v1218 = vld [vmem:[%s557 + $0x1458] sm:$0xff]
        %v1219 = vld [vmem:[%s557 + $0x1460] sm:$0xff]
        %v1220 = vld [vmem:[%s557 + $0x1468] sm:$0xff]
        %v1221 = vld [vmem:[%s557 + $0x1470] sm:$0xff]
        %v1222 = vld [vmem:[%s557 + $0x1478] sm:$0xff]
        %v1223 = vld [vmem:[%s557 + $0x1480] sm:$0xff]
        %v1224 = vld [vmem:[%s557 + $0x1488] sm:$0xff]
        %v1225 = vld [vmem:[%s557 + $0x1490] sm:$0xff]
        %v1226 = vld [vmem:[%s557 + $0x1498] sm:$0xff]
        %v1227 = vld [vmem:[%s557 + $0x14a0] sm:$0xff]
        %v1228 = vld [vmem:[%s557 + $0x14a8] sm:$0xff]
        %v1229 = vld [vmem:[%s557 + $0x14b0] sm:$0xff]
        %v1230 = vld [vmem:[%s557 + $0x14b8] sm:$0xff]
        %v1231 = vld [vmem:[%s557 + $0x14c0] sm:$0xff]
        %v1232 = vld [vmem:[%s557 + $0x14c8] sm:$0xff]
        %v1233 = vld [vmem:[%s557 + $0x14d0] sm:$0xff]
        %v1234 = vld [vmem:[%s557 + $0x14d8] sm:$0xff]
        %v1235 = vld [vmem:[%s557 + $0x14e0] sm:$0xff]
        %v1236 = vld [vmem:[%s557 + $0x14e8] sm:$0xff]
        %v1237 = vld [vmem:[%s557 + $0x14f0] sm:$0xff]
        %v1238 = vld [vmem:[%s557 + $0x14f8] sm:$0xff]
        %v1239 = vld [vmem:[%s557 + $0x1500] sm:$0xff]
        %v1240 = vld [vmem:[%s557 + $0x1508] sm:$0xff]
        %v1241 = vld [vmem:[%s557 + $0x1510] sm:$0xff]
        %v1242 = vld [vmem:[%s557 + $0x1518] sm:$0xff]
        %v1243 = vld [vmem:[%s557 + $0x1520] sm:$0xff]
        %v1244 = vld [vmem:[%s557 + $0x1528] sm:$0xff]
        %v1245 = vld [vmem:[%s557 + $0x1530] sm:$0xff]
        %v1246 = vld [vmem:[%s557 + $0x1538] sm:$0xff]
        %v1247 = vld [vmem:[%s557 + $0x1540] sm:$0xff]
        %v1248 = vld [vmem:[%s557 + $0x1548] sm:$0xff]
        %v1249 = vld [vmem:[%s557 + $0x1550] sm:$0xff]
        %v1250 = vld [vmem:[%s557 + $0x1558] sm:$0xff]
        %v1251 = vld [vmem:[%s557 + $0x1560] sm:$0xff]
        %v1252 = vld [vmem:[%s557 + $0x1568] sm:$0xff]
        %v1253 = vld [vmem:[%s557 + $0x1570] sm:$0xff]
        %v1254 = vld [vmem:[%s557 + $0x1578] sm:$0xff]
        %v1255 = vld [vmem:[%s557 + $0x1580] sm:$0xff]
        %v1256 = vld [vmem:[%s557 + $0x1588] sm:$0xff]
        %v1257 = vld [vmem:[%s557 + $0x1590] sm:$0xff]
        %v1258 = vld [vmem:[%s557 + $0x1598] sm:$0xff]
        %v1259 = vld [vmem:[%s557 + $0x15a0] sm:$0xff]
        %v1260 = vld [vmem:[%s557 + $0x15a8] sm:$0xff]
        %v1261 = vld [vmem:[%s557 + $0x15b0] sm:$0xff]
        %v1262 = vld [vmem:[%s557 + $0x15b8] sm:$0xff]
        %v1263 = vld [vmem:[%s557 + $0x15c0] sm:$0xff]
        %v1264 = vld [vmem:[%s557 + $0x15c8] sm:$0xff]
        %v1265 = vld [vmem:[%s557 + $0x15d0] sm:$0xff]
        %v1266 = vld [vmem:[%s557 + $0x15d8] sm:$0xff]
        %v1267 = vld [vmem:[%s557 + $0x15e0] sm:$0xff]
        %v1268 = vld [vmem:[%s557 + $0x15e8] sm:$0xff]
        %v1269 = vld [vmem:[%s557 + $0x15f0] sm:$0xff]
        %v1270 = vld [vmem:[%s557 + $0x15f8] sm:$0xff]
        %v1271 = vld [vmem:[%s557 + $0x1600] sm:$0xff]
        %v1272 = vld [vmem:[%s557 + $0x1608] sm:$0xff]
        %v1273 = vld [vmem:[%s557 + $0x1610] sm:$0xff]
        %v1274 = vld [vmem:[%s557 + $0x1618] sm:$0xff]
        %v1275 = vld [vmem:[%s557 + $0x1620] sm:$0xff]
        %v1276 = vld [vmem:[%s557 + $0x1628] sm:$0xff]
        %v1277 = vld [vmem:[%s557 + $0x1630] sm:$0xff]
        %v1278 = vld [vmem:[%s557 + $0x1638] sm:$0xff]
        %v1279 = vld [vmem:[%s557 + $0x1640] sm:$0xff]
        %v1280 = vld [vmem:[%s557 + $0x1648] sm:$0xff]
        %v1281 = vld [vmem:[%s557 + $0x1650] sm:$0xff]
        %v1282 = vld [vmem:[%s557 + $0x1658] sm:$0xff]
        %v1283 = vld [vmem:[%s557 + $0x1660] sm:$0xff]
        %v1284 = vld [vmem:[%s557 + $0x1668] sm:$0xff]
        %v1285 = vld [vmem:[%s557 + $0x1670] sm:$0xff]
        %v1286 = vld [vmem:[%s557 + $0x1678] sm:$0xff]
        %v1287 = vld [vmem:[%s557 + $0x1680] sm:$0xff]
        %v1288 = vld [vmem:[%s557 + $0x1688] sm:$0xff]
        %v1289 = vld [vmem:[%s557 + $0x1690] sm:$0xff]
        %v1290 = vld [vmem:[%s557 + $0x1698] sm:$0xff]
        %v1291 = vld [vmem:[%s557 + $0x16a0] sm:$0xff]
        %v1292 = vld [vmem:[%s557 + $0x16a8] sm:$0xff]
        %v1293 = vld [vmem:[%s557 + $0x16b0] sm:$0xff]
        %v1294 = vld [vmem:[%s557 + $0x16b8] sm:$0xff]
        %v1295 = vld [vmem:[%s557 + $0x16c0] sm:$0xff]
        %v1296 = vld [vmem:[%s557 + $0x16c8] sm:$0xff]
        %v1297 = vld [vmem:[%s557 + $0x16d0] sm:$0xff]
        %v1298 = vld [vmem:[%s557 + $0x16d8] sm:$0xff]
        %v1299 = vld [vmem:[%s557 + $0x16e0] sm:$0xff]
        %v1300 = vld [vmem:[%s557 + $0x16e8] sm:$0xff]
        %v1301 = vld [vmem:[%s557 + $0x16f0] sm:$0xff]
        %v1302 = vld [vmem:[%s557 + $0x16f8] sm:$0xff]
        %v1303 = vld [vmem:[%s557 + $0x1700] sm:$0xff]
        %v1304 = vld [vmem:[%s557 + $0x1708] sm:$0xff]
        %v1305 = vld [vmem:[%s557 + $0x1710] sm:$0xff]
        %v1306 = vld [vmem:[%s557 + $0x1718] sm:$0xff]
        %v1307 = vld [vmem:[%s557 + $0x1720] sm:$0xff]
        %v1308 = vld [vmem:[%s557 + $0x1728] sm:$0xff]
        %v1309 = vld [vmem:[%s557 + $0x1730] sm:$0xff]
        %v1310 = vld [vmem:[%s557 + $0x1738] sm:$0xff]
        %v1311 = vld [vmem:[%s557 + $0x1740] sm:$0xff]
        %v1312 = vld [vmem:[%s557 + $0x1748] sm:$0xff]
        %v1313 = vld [vmem:[%s557 + $0x1750] sm:$0xff]
        %v1314 = vld [vmem:[%s557 + $0x1758] sm:$0xff]
        %v1315 = vld [vmem:[%s557 + $0x1760] sm:$0xff]
        %v1316 = vld [vmem:[%s557 + $0x1768] sm:$0xff]
        %v1317 = vld [vmem:[%s557 + $0x1770] sm:$0xff]
        %v1318 = vld [vmem:[%s557 + $0x1778] sm:$0xff]
        %v1319 = vld [vmem:[%s557 + $0x1780] sm:$0xff]
        %v1320 = vld [vmem:[%s557 + $0x1788] sm:$0xff]
        %v1321 = vld [vmem:[%s557 + $0x1790] sm:$0xff]
        %v1322 = vld [vmem:[%s557 + $0x1798] sm:$0xff]
        %v1323 = vld [vmem:[%s557 + $0x17a0] sm:$0xff]
        %v1324 = vld [vmem:[%s557 + $0x17a8] sm:$0xff]
        %v1325 = vld [vmem:[%s557 + $0x17b0] sm:$0xff]
        %v1326 = vld [vmem:[%s557 + $0x17b8] sm:$0xff]
        %v1327 = vld [vmem:[%s557 + $0x17c0] sm:$0xff]
        %v1328 = vld [vmem:[%s557 + $0x17c8] sm:$0xff]
        %v1329 = vld [vmem:[%s557 + $0x17d0] sm:$0xff]
        %v1330 = vld [vmem:[%s557 + $0x17d8] sm:$0xff]
        %v1331 = vld [vmem:[%s557 + $0x17e0] sm:$0xff]
        %v1332 = vld [vmem:[%s557 + $0x17e8] sm:$0xff]
        %v1333 = vld [vmem:[%s557 + $0x17f0] sm:$0xff]
        %v1334 = vld [vmem:[%s557 + $0x17f8] sm:$0xff]
        %v1335 = vld [vmem:[%s557 + $0x1800] sm:$0xff]
        %v1336 = vld [vmem:[%s557 + $0x1808] sm:$0xff]
        %v1337 = vld [vmem:[%s557 + $0x1810] sm:$0xff]
        %v1338 = vld [vmem:[%s557 + $0x1818] sm:$0xff]
        %v1339 = vld [vmem:[%s557 + $0x1820] sm:$0xff]
        %v1340 = vld [vmem:[%s557 + $0x1828] sm:$0xff]
        %v1341 = vld [vmem:[%s557 + $0x1830] sm:$0xff]
        %v1342 = vld [vmem:[%s557 + $0x1838] sm:$0xff]
        %v1343 = vld [vmem:[%s557 + $0x1840] sm:$0xff]
        %v1344 = vld [vmem:[%s557 + $0x1848] sm:$0xff]
        %v1345 = vld [vmem:[%s557 + $0x1850] sm:$0xff]
        %v1346 = vld [vmem:[%s557 + $0x1858] sm:$0xff]
        %v1347 = vld [vmem:[%s557 + $0x1860] sm:$0xff]
        %v1348 = vld [vmem:[%s557 + $0x1868] sm:$0xff]
        %v1349 = vld [vmem:[%s557 + $0x1870] sm:$0xff]
        %v1350 = vld [vmem:[%s557 + $0x1878] sm:$0xff]
        %v1351 = vld [vmem:[%s557 + $0x1880] sm:$0xff]
        %v1352 = vld [vmem:[%s557 + $0x1888] sm:$0xff]
        %v1353 = vld [vmem:[%s557 + $0x1890] sm:$0xff]
        %v1354 = vld [vmem:[%s557 + $0x1898] sm:$0xff]
        %v1355 = vld [vmem:[%s557 + $0x18a0] sm:$0xff]
        %v1356 = vld [vmem:[%s557 + $0x18a8] sm:$0xff]
        %v1357 = vld [vmem:[%s557 + $0x18b0] sm:$0xff]
        %v1358 = vld [vmem:[%s557 + $0x18b8] sm:$0xff]
        %v1359 = vld [vmem:[%s557 + $0x18c0] sm:$0xff]
        %v1360 = vld [vmem:[%s557 + $0x18c8] sm:$0xff]
        %v1361 = vld [vmem:[%s557 + $0x18d0] sm:$0xff]
        %v1362 = vld [vmem:[%s557 + $0x18d8] sm:$0xff]
        %v1363 = vld [vmem:[%s557 + $0x18e0] sm:$0xff]
        %v1364 = vld [vmem:[%s557 + $0x18e8] sm:$0xff]
        %v1365 = vld [vmem:[%s557 + $0x18f0] sm:$0xff]
        %v1366 = vld [vmem:[%s557 + $0x18f8] sm:$0xff]
        %v1367 = vld [vmem:[%s557 + $0x1900] sm:$0xff]
        %v1368 = vld [vmem:[%s557 + $0x1908] sm:$0xff]
        %v1369 = vld [vmem:[%s557 + $0x1910] sm:$0xff]
        %v1370 = vld [vmem:[%s557 + $0x1918] sm:$0xff]
        %v1371 = vld [vmem:[%s557 + $0x1920] sm:$0xff]
        %v1372 = vld [vmem:[%s557 + $0x1928] sm:$0xff]
        %v1373 = vld [vmem:[%s557 + $0x1930] sm:$0xff]
        %v1374 = vld [vmem:[%s557 + $0x1938] sm:$0xff]
        %v1375 = vld [vmem:[%s557 + $0x1940] sm:$0xff]
        %v1376 = vld [vmem:[%s557 + $0x1948] sm:$0xff]
        %v1377 = vld [vmem:[%s557 + $0x1950] sm:$0xff]
        %v1378 = vld [vmem:[%s557 + $0x1958] sm:$0xff]
        %v1379 = vld [vmem:[%s557 + $0x1960] sm:$0xff]
        %v1380 = vld [vmem:[%s557 + $0x1968] sm:$0xff]
        %v1381 = vld [vmem:[%s557 + $0x1970] sm:$0xff]
        %v1382 = vld [vmem:[%s557 + $0x1978] sm:$0xff]
        %v1383 = vld [vmem:[%s557 + $0x1980] sm:$0xff]
        %v1384 = vld [vmem:[%s557 + $0x1988] sm:$0xff]
        %v1385 = vld [vmem:[%s557 + $0x1990] sm:$0xff]
        %v1386 = vld [vmem:[%s557 + $0x1998] sm:$0xff]
        %v1387 = vld [vmem:[%s557 + $0x19a0] sm:$0xff]
        %v1388 = vld [vmem:[%s557 + $0x19a8] sm:$0xff]
        %v1389 = vld [vmem:[%s557 + $0x19b0] sm:$0xff]
        %v1390 = vld [vmem:[%s557 + $0x19b8] sm:$0xff]
        %v1391 = vld [vmem:[%s557 + $0x19c0] sm:$0xff]
        %v1392 = vld [vmem:[%s557 + $0x19c8] sm:$0xff]
        %v1393 = vld [vmem:[%s557 + $0x19d0] sm:$0xff]
        %v1394 = vld [vmem:[%s557 + $0x19d8] sm:$0xff]
        %v1395 = vld [vmem:[%s557 + $0x19e0] sm:$0xff]
        %v1396 = vld [vmem:[%s557 + $0x19e8] sm:$0xff]
        %v1397 = vld [vmem:[%s557 + $0x19f0] sm:$0xff]
        %v1398 = vld [vmem:[%s557 + $0x19f8] sm:$0xff]
        %v1399 = vld [vmem:[%s557 + $0x1a00] sm:$0xff]
        %v1400 = vld [vmem:[%s557 + $0x1a08] sm:$0xff]
        %v1401 = vld [vmem:[%s557 + $0x1a10] sm:$0xff]
        %v1402 = vld [vmem:[%s557 + $0x1a18] sm:$0xff]
        %v1403 = vld [vmem:[%s557 + $0x1a20] sm:$0xff]
        %v1404 = vld [vmem:[%s557 + $0x1a28] sm:$0xff]
        %v1405 = vld [vmem:[%s557 + $0x1a30] sm:$0xff]
        %v1406 = vld [vmem:[%s557 + $0x1a38] sm:$0xff]
        %v1407 = vld [vmem:[%s557 + $0x1a40] sm:$0xff]
        %v1408 = vld [vmem:[%s557 + $0x1a48] sm:$0xff]
        %v1409 = vld [vmem:[%s557 + $0x1a50] sm:$0xff]
        %v1410 = vld [vmem:[%s557 + $0x1a58] sm:$0xff]
        %v1411 = vld [vmem:[%s557 + $0x1a60] sm:$0xff]
        %v1412 = vld [vmem:[%s557 + $0x1a68] sm:$0xff]
        %v1413 = vld [vmem:[%s557 + $0x1a70] sm:$0xff]
        %v1414 = vld [vmem:[%s557 + $0x1a78] sm:$0xff]
        %v1415 = vld [vmem:[%s557 + $0x1a80] sm:$0xff]
        %v1416 = vld [vmem:[%s557 + $0x1a88] sm:$0xff]
        %v1417 = vld [vmem:[%s557 + $0x1a90] sm:$0xff]
        %v1418 = vld [vmem:[%s557 + $0x1a98] sm:$0xff]
        %v1419 = vld [vmem:[%s557 + $0x1aa0] sm:$0xff]
        %v1420 = vld [vmem:[%s557 + $0x1aa8] sm:$0xff]
        %v1421 = vld [vmem:[%s557 + $0x1ab0] sm:$0xff]
        %v1422 = vld [vmem:[%s557 + $0x1ab8] sm:$0xff]
        %v1423 = vld [vmem:[%s557 + $0x1ac0] sm:$0xff]
        %v1424 = vld [vmem:[%s557 + $0x1ac8] sm:$0xff]
        %v1425 = vld [vmem:[%s557 + $0x1ad0] sm:$0xff]
        %v1426 = vld [vmem:[%s557 + $0x1ad8] sm:$0xff]
        %v1427 = vld [vmem:[%s557 + $0x1ae0] sm:$0xff]
        %v1428 = vld [vmem:[%s557 + $0x1ae8] sm:$0xff]
        %v1429 = vld [vmem:[%s557 + $0x1af0] sm:$0xff]
        %v1430 = vld [vmem:[%s557 + $0x1af8] sm:$0xff]
        %v1431 = vld [vmem:[%s557 + $0x1b00] sm:$0xff]
        %v1432 = vld [vmem:[%s557 + $0x1b08] sm:$0xff]
        %v1433 = vld [vmem:[%s557 + $0x1b10] sm:$0xff]
        %v1434 = vld [vmem:[%s557 + $0x1b18] sm:$0xff]
        %v1435 = vld [vmem:[%s557 + $0x1b20] sm:$0xff]
        %v1436 = vld [vmem:[%s557 + $0x1b28] sm:$0xff]
        %v1437 = vld [vmem:[%s557 + $0x1b30] sm:$0xff]
        %v1438 = vld [vmem:[%s557 + $0x1b38] sm:$0xff]
        %v1439 = vld [vmem:[%s557 + $0x1b40] sm:$0xff]
        %v1440 = vld [vmem:[%s557 + $0x1b48] sm:$0xff]
        %v1441 = vld [vmem:[%s557 + $0x1b50] sm:$0xff]
        %v1442 = vld [vmem:[%s557 + $0x1b58] sm:$0xff]
        %v1443 = vld [vmem:[%s557 + $0x1b60] sm:$0xff]
        %v1444 = vld [vmem:[%s557 + $0x1b68] sm:$0xff]
        %v1445 = vld [vmem:[%s557 + $0x1b70] sm:$0xff]
        %v1446 = vld [vmem:[%s557 + $0x1b78] sm:$0xff]
        %v1447 = vld [vmem:[%s557 + $0x1b80] sm:$0xff]
        %v1448 = vld [vmem:[%s557 + $0x1b88] sm:$0xff]
        %v1449 = vld [vmem:[%s557 + $0x1b90] sm:$0xff]
        %v1450 = vld [vmem:[%s557 + $0x1b98] sm:$0xff]
        %v1451 = vld [vmem:[%s557 + $0x1ba0] sm:$0xff]
        %v1452 = vld [vmem:[%s557 + $0x1ba8] sm:$0xff]
        %v1453 = vld [vmem:[%s557 + $0x1bb0] sm:$0xff]
        %v1454 = vld [vmem:[%s557 + $0x1bb8] sm:$0xff]
        %v1455 = vld [vmem:[%s557 + $0x1bc0] sm:$0xff]
        %v1456 = vld [vmem:[%s557 + $0x1bc8] sm:$0xff]
        %v1457 = vld [vmem:[%s557 + $0x1bd0] sm:$0xff]
        %v1458 = vld [vmem:[%s557 + $0x1bd8] sm:$0xff]
        %v1459 = vld [vmem:[%s557 + $0x1be0] sm:$0xff]
        %v1460 = vld [vmem:[%s557 + $0x1be8] sm:$0xff]
        %v1461 = vld [vmem:[%s557 + $0x1bf0] sm:$0xff]
        %v1462 = vld [vmem:[%s557 + $0x1bf8] sm:$0xff]
        %v1463 = vld [vmem:[%s557 + $0x1c00] sm:$0xff]
        %v1464 = vld [vmem:[%s557 + $0x1c08] sm:$0xff]
        %v1465 = vld [vmem:[%s557 + $0x1c10] sm:$0xff]
        %v1466 = vld [vmem:[%s557 + $0x1c18] sm:$0xff]
        %v1467 = vld [vmem:[%s557 + $0x1c20] sm:$0xff]
        %v1468 = vld [vmem:[%s557 + $0x1c28] sm:$0xff]
        %v1469 = vld [vmem:[%s557 + $0x1c30] sm:$0xff]
        %v1470 = vld [vmem:[%s557 + $0x1c38] sm:$0xff]
        %v1471 = vld [vmem:[%s557 + $0x1c40] sm:$0xff]
        %v1472 = vld [vmem:[%s557 + $0x1c48] sm:$0xff]
        %v1473 = vld [vmem:[%s557 + $0x1c50] sm:$0xff]
        %v1474 = vld [vmem:[%s557 + $0x1c58] sm:$0xff]
        %v1475 = vld [vmem:[%s557 + $0x1c60] sm:$0xff]
        %v1476 = vld [vmem:[%s557 + $0x1c68] sm:$0xff]
        %v1477 = vld [vmem:[%s557 + $0x1c70] sm:$0xff]
        %v1478 = vld [vmem:[%s557 + $0x1c78] sm:$0xff]
        %v1479 = vld [vmem:[%s557 + $0x1c80] sm:$0xff]
        %v1480 = vld [vmem:[%s557 + $0x1c88] sm:$0xff]
        %v1481 = vld [vmem:[%s557 + $0x1c90] sm:$0xff]
        %v1482 = vld [vmem:[%s557 + $0x1c98] sm:$0xff]
        %v1483 = vld [vmem:[%s557 + $0x1ca0] sm:$0xff]
        %v1484 = vld [vmem:[%s557 + $0x1ca8] sm:$0xff]
        %v1485 = vld [vmem:[%s557 + $0x1cb0] sm:$0xff]
        %v1486 = vld [vmem:[%s557 + $0x1cb8] sm:$0xff]
        %v1487 = vld [vmem:[%s557 + $0x1cc0] sm:$0xff]
        %v1488 = vld [vmem:[%s557 + $0x1cc8] sm:$0xff]
        %v1489 = vld [vmem:[%s557 + $0x1cd0] sm:$0xff]
        %v1490 = vld [vmem:[%s557 + $0x1cd8] sm:$0xff]
        %v1491 = vld [vmem:[%s557 + $0x1ce0] sm:$0xff]
        %v1492 = vld [vmem:[%s557 + $0x1ce8] sm:$0xff]
        %v1493 = vld [vmem:[%s557 + $0x1cf0] sm:$0xff]
        %v1494 = vld [vmem:[%s557 + $0x1cf8] sm:$0xff]
        %v1495 = vld [vmem:[%s557 + $0x1d00] sm:$0xff]
        %v1496 = vld [vmem:[%s557 + $0x1d08] sm:$0xff]
        %v1497 = vld [vmem:[%s557 + $0x1d10] sm:$0xff]
        %v1498 = vld [vmem:[%s557 + $0x1d18] sm:$0xff]
        %v1499 = vld [vmem:[%s557 + $0x1d20] sm:$0xff]
        %v1500 = vld [vmem:[%s557 + $0x1d28] sm:$0xff]
        %v1501 = vld [vmem:[%s557 + $0x1d30] sm:$0xff]
        %v1502 = vld [vmem:[%s557 + $0x1d38] sm:$0xff]
        %v1503 = vld [vmem:[%s557 + $0x1d40] sm:$0xff]
        %v1504 = vld [vmem:[%s557 + $0x1d48] sm:$0xff]
        %v1505 = vld [vmem:[%s557 + $0x1d50] sm:$0xff]
        %v1506 = vld [vmem:[%s557 + $0x1d58] sm:$0xff]
        %v1507 = vld [vmem:[%s557 + $0x1d60] sm:$0xff]
        %v1508 = vld [vmem:[%s557 + $0x1d68] sm:$0xff]
        %v1509 = vld [vmem:[%s557 + $0x1d70] sm:$0xff]
        %v1510 = vld [vmem:[%s557 + $0x1d78] sm:$0xff]
        %v1511 = vld [vmem:[%s557 + $0x1d80] sm:$0xff]
        %v1512 = vld [vmem:[%s557 + $0x1d88] sm:$0xff]
        %v1513 = vld [vmem:[%s557 + $0x1d90] sm:$0xff]
        %v1514 = vld [vmem:[%s557 + $0x1d98] sm:$0xff]
        %v1515 = vld [vmem:[%s557 + $0x1da0] sm:$0xff]
        %v1516 = vld [vmem:[%s557 + $0x1da8] sm:$0xff]
        %v1517 = vld [vmem:[%s557 + $0x1db0] sm:$0xff]
        %v1518 = vld [vmem:[%s557 + $0x1db8] sm:$0xff]
        %v1519 = vld [vmem:[%s557 + $0x1dc0] sm:$0xff]
        %v1520 = vld [vmem:[%s557 + $0x1dc8] sm:$0xff]
        %v1521 = vld [vmem:[%s557 + $0x1dd0] sm:$0xff]
        %v1522 = vld [vmem:[%s557 + $0x1dd8] sm:$0xff]
        %v1523 = vld [vmem:[%s557 + $0x1de0] sm:$0xff]
        %v1524 = vld [vmem:[%s557 + $0x1de8] sm:$0xff]
        %v1525 = vld [vmem:[%s557 + $0x1df0] sm:$0xff]
        %v1526 = vld [vmem:[%s557 + $0x1df8] sm:$0xff]
        %v1527 = vld [vmem:[%s557 + $0x1e00] sm:$0xff]
        %v1528 = vld [vmem:[%s557 + $0x1e08] sm:$0xff]
        %v1529 = vld [vmem:[%s557 + $0x1e10] sm:$0xff]
        %v1530 = vld [vmem:[%s557 + $0x1e18] sm:$0xff]
        %v1531 = vld [vmem:[%s557 + $0x1e20] sm:$0xff]
        %v1532 = vld [vmem:[%s557 + $0x1e28] sm:$0xff]
        %v1533 = vld [vmem:[%s557 + $0x1e30] sm:$0xff]
        %v1534 = vld [vmem:[%s557 + $0x1e38] sm:$0xff]
        %v1535 = vld [vmem:[%s557 + $0x1e40] sm:$0xff]
        %v1536 = vld [vmem:[%s557 + $0x1e48] sm:$0xff]
        %v1537 = vld [vmem:[%s557 + $0x1e50] sm:$0xff]
        %v1538 = vld [vmem:[%s557 + $0x1e58] sm:$0xff]
        %v1539 = vld [vmem:[%s557 + $0x1e60] sm:$0xff]
        %v1540 = vld [vmem:[%s557 + $0x1e68] sm:$0xff]
        %v1541 = vld [vmem:[%s557 + $0x1e70] sm:$0xff]
        %v1542 = vld [vmem:[%s557 + $0x1e78] sm:$0xff]
        %v1543 = vld [vmem:[%s557 + $0x1e80] sm:$0xff]
        %v1544 = vld [vmem:[%s557 + $0x1e88] sm:$0xff]
        %v1545 = vld [vmem:[%s557 + $0x1e90] sm:$0xff]
        %v1546 = vld [vmem:[%s557 + $0x1e98] sm:$0xff]
        %v1547 = vld [vmem:[%s557 + $0x1ea0] sm:$0xff]
        %v1548 = vld [vmem:[%s557 + $0x1ea8] sm:$0xff]
        %v1549 = vld [vmem:[%s557 + $0x1eb0] sm:$0xff]
        %v1550 = vld [vmem:[%s557 + $0x1eb8] sm:$0xff]
        %v1551 = vld [vmem:[%s557 + $0x1ec0] sm:$0xff]
        %v1552 = vld [vmem:[%s557 + $0x1ec8] sm:$0xff]
        %v1553 = vld [vmem:[%s557 + $0x1ed0] sm:$0xff]
        %v1554 = vld [vmem:[%s557 + $0x1ed8] sm:$0xff]
        %v1555 = vld [vmem:[%s557 + $0x1ee0] sm:$0xff]
        %v1556 = vld [vmem:[%s557 + $0x1ee8] sm:$0xff]
        %v1557 = vld [vmem:[%s557 + $0x1ef0] sm:$0xff]
        %v1558 = vld [vmem:[%s557 + $0x1ef8] sm:$0xff]
        %v1559 = vld [vmem:[%s557 + $0x1f00] sm:$0xff]
        %v1560 = vld [vmem:[%s557 + $0x1f08] sm:$0xff]
        %v1561 = vld [vmem:[%s557 + $0x1f10] sm:$0xff]
        %v1562 = vld [vmem:[%s557 + $0x1f18] sm:$0xff]
        %v1563 = vld [vmem:[%s557 + $0x1f20] sm:$0xff]
        %v1564 = vld [vmem:[%s557 + $0x1f28] sm:$0xff]
        %v1565 = vld [vmem:[%s557 + $0x1f30] sm:$0xff]
        %v1566 = vld [vmem:[%s557 + $0x1f38] sm:$0xff]
        %v1567 = vld [vmem:[%s557 + $0x1f40] sm:$0xff]
        %v1568 = vld [vmem:[%s557 + $0x1f48] sm:$0xff]
        %v1569 = vld [vmem:[%s557 + $0x1f50] sm:$0xff]
        %v1570 = vld [vmem:[%s557 + $0x1f58] sm:$0xff]
        %v1571 = vld [vmem:[%s557 + $0x1f60] sm:$0xff]
        %v1572 = vld [vmem:[%s557 + $0x1f68] sm:$0xff]
        %v1573 = vld [vmem:[%s557 + $0x1f70] sm:$0xff]
        %v1574 = vld [vmem:[%s557 + $0x1f78] sm:$0xff]
        %v1575 = vld [vmem:[%s557 + $0x1f80] sm:$0xff]
        %v1576 = vld [vmem:[%s557 + $0x1f88] sm:$0xff]
        %v1577 = vld [vmem:[%s557 + $0x1f90] sm:$0xff]
        %v1578 = vld [vmem:[%s557 + $0x1f98] sm:$0xff]
        %v1579 = vld [vmem:[%s557 + $0x1fa0] sm:$0xff]
        %v1580 = vld [vmem:[%s557 + $0x1fa8] sm:$0xff]
        %v1581 = vld [vmem:[%s557 + $0x1fb0] sm:$0xff]
        %v1582 = vld [vmem:[%s557 + $0x1fb8] sm:$0xff]
        %v1583 = vld [vmem:[%s557 + $0x1fc0] sm:$0xff]
        %v1584 = vld [vmem:[%s557 + $0x1fc8] sm:$0xff]
        %v1585 = vld [vmem:[%s557 + $0x1fd0] sm:$0xff]
        %v1586 = vld [vmem:[%s557 + $0x1fd8] sm:$0xff]
        %v1587 = vld [vmem:[%s557 + $0x1fe0] sm:$0xff]
        %v1588 = vld [vmem:[%s557 + $0x1fe8] sm:$0xff]
        %v1589 = vld [vmem:[%s557 + $0x1ff0] sm:$0xff]
        %v1590 = vld [vmem:[%s557 + $0x1ff8] sm:$0xff]
        %v1591 = vld [vmem:[%s562] sm:$0xff]
        %v1592 = vld [vmem:[%s562 + $0x8] sm:$0xff]
        %v1593 = vld [vmem:[%s562 + $0x10] sm:$0xff]
        %v1594 = vld [vmem:[%s562 + $0x18] sm:$0xff]
        %v1595 = vld [vmem:[%s562 + $0x20] sm:$0xff]
        %v1596 = vld [vmem:[%s562 + $0x28] sm:$0xff]
        %v1597 = vld [vmem:[%s562 + $0x30] sm:$0xff]
        %v1598 = vld [vmem:[%s562 + $0x38] sm:$0xff]
        %v1607 = vlaneseq
        %v1608 = vshrl.u32 %v1607, 7
        %v1609 = vsub.s32 0, %v1608
        %v1610 = vrot.slane %v1591, %v1609
        %v1611 = vlaneseq
        %v1612 = vshrl.u32 %v1611, 7
        %v1613 = vsub.s32 1, %v1612
        %v1614 = vrot.slane %v1591, %v1613
        %v1615 = vlaneseq
        %v1616 = vshrl.u32 %v1615, 7
        %v1617 = vsub.s32 2, %v1616
        %v1618 = vrot.slane %v1591, %v1617
        %v1619 = vlaneseq
        %v1620 = vshrl.u32 %v1619, 7
        %v1621 = vsub.s32 3, %v1620
        %v1622 = vrot.slane %v1591, %v1621
        %v1623 = vlaneseq
        %v1624 = vshrl.u32 %v1623, 7
        %v1625 = vsub.s32 4, %v1624
        %v1626 = vrot.slane %v1591, %v1625
        %v1627 = vlaneseq
        %v1628 = vshrl.u32 %v1627, 7
        %v1629 = vsub.s32 5, %v1628
        %v1630 = vrot.slane %v1591, %v1629
        %v1631 = vlaneseq
        %v1632 = vshrl.u32 %v1631, 7
        %v1633 = vsub.s32 6, %v1632
        %v1634 = vrot.slane %v1591, %v1633
        %v1635 = vlaneseq
        %v1636 = vshrl.u32 %v1635, 7
        %v1637 = vsub.s32 7, %v1636
        %v1638 = vrot.slane %v1591, %v1637
        %v1639 = vlaneseq
        %v1640 = vshrl.u32 %v1639, 7
        %v1641 = vsub.s32 0, %v1640
        %v1642 = vrot.slane %v1592, %v1641
        %v1643 = vlaneseq
        %v1644 = vshrl.u32 %v1643, 7
        %v1645 = vsub.s32 1, %v1644
        %v1646 = vrot.slane %v1592, %v1645
        %v1647 = vlaneseq
        %v1648 = vshrl.u32 %v1647, 7
        %v1649 = vsub.s32 2, %v1648
        %v1650 = vrot.slane %v1592, %v1649
        %v1651 = vlaneseq
        %v1652 = vshrl.u32 %v1651, 7
        %v1653 = vsub.s32 3, %v1652
        %v1654 = vrot.slane %v1592, %v1653
        %v1655 = vlaneseq
        %v1656 = vshrl.u32 %v1655, 7
        %v1657 = vsub.s32 4, %v1656
        %v1658 = vrot.slane %v1592, %v1657
        %v1659 = vlaneseq
        %v1660 = vshrl.u32 %v1659, 7
        %v1661 = vsub.s32 5, %v1660
        %v1662 = vrot.slane %v1592, %v1661
        %v1663 = vlaneseq
        %v1664 = vshrl.u32 %v1663, 7
        %v1665 = vsub.s32 6, %v1664
        %v1666 = vrot.slane %v1592, %v1665
        %v1667 = vlaneseq
        %v1668 = vshrl.u32 %v1667, 7
        %v1669 = vsub.s32 7, %v1668
        %v1670 = vrot.slane %v1592, %v1669
        %v1671 = vlaneseq
        %v1672 = vshrl.u32 %v1671, 7
        %v1673 = vsub.s32 0, %v1672
        %v1674 = vrot.slane %v1593, %v1673
        %v1675 = vlaneseq
        %v1676 = vshrl.u32 %v1675, 7
        %v1677 = vsub.s32 1, %v1676
        %v1678 = vrot.slane %v1593, %v1677
        %v1679 = vlaneseq
        %v1680 = vshrl.u32 %v1679, 7
        %v1681 = vsub.s32 2, %v1680
        %v1682 = vrot.slane %v1593, %v1681
        %v1683 = vlaneseq
        %v1684 = vshrl.u32 %v1683, 7
        %v1685 = vsub.s32 3, %v1684
        %v1686 = vrot.slane %v1593, %v1685
        %v1687 = vlaneseq
        %v1688 = vshrl.u32 %v1687, 7
        %v1689 = vsub.s32 4, %v1688
        %v1690 = vrot.slane %v1593, %v1689
        %v1691 = vlaneseq
        %v1692 = vshrl.u32 %v1691, 7
        %v1693 = vsub.s32 5, %v1692
        %v1694 = vrot.slane %v1593, %v1693
        %v1695 = vlaneseq
        %v1696 = vshrl.u32 %v1695, 7
        %v1697 = vsub.s32 6, %v1696
        %v1698 = vrot.slane %v1593, %v1697
        %v1699 = vlaneseq
        %v1700 = vshrl.u32 %v1699, 7
        %v1701 = vsub.s32 7, %v1700
        %v1702 = vrot.slane %v1593, %v1701
        %v1703 = vlaneseq
        %v1704 = vshrl.u32 %v1703, 7
        %v1705 = vsub.s32 0, %v1704
        %v1706 = vrot.slane %v1594, %v1705
        %v1707 = vlaneseq
        %v1708 = vshrl.u32 %v1707, 7
        %v1709 = vsub.s32 1, %v1708
        %v1710 = vrot.slane %v1594, %v1709
        %v1711 = vlaneseq
        %v1712 = vshrl.u32 %v1711, 7
        %v1713 = vsub.s32 2, %v1712
        %v1714 = vrot.slane %v1594, %v1713
        %v1715 = vlaneseq
        %v1716 = vshrl.u32 %v1715, 7
        %v1717 = vsub.s32 3, %v1716
        %v1718 = vrot.slane %v1594, %v1717
        %v1719 = vlaneseq
        %v1720 = vshrl.u32 %v1719, 7
        %v1721 = vsub.s32 4, %v1720
        %v1722 = vrot.slane %v1594, %v1721
        %v1723 = vlaneseq
        %v1724 = vshrl.u32 %v1723, 7
        %v1725 = vsub.s32 5, %v1724
        %v1726 = vrot.slane %v1594, %v1725
        %v1727 = vlaneseq
        %v1728 = vshrl.u32 %v1727, 7
        %v1729 = vsub.s32 6, %v1728
        %v1730 = vrot.slane %v1594, %v1729
        %v1731 = vlaneseq
        %v1732 = vshrl.u32 %v1731, 7
        %v1733 = vsub.s32 7, %v1732
        %v1734 = vrot.slane %v1594, %v1733
        %v1735 = vlaneseq
        %v1736 = vshrl.u32 %v1735, 7
        %v1737 = vsub.s32 0, %v1736
        %v1738 = vrot.slane %v1595, %v1737
        %v1739 = vlaneseq
        %v1740 = vshrl.u32 %v1739, 7
        %v1741 = vsub.s32 1, %v1740
        %v1742 = vrot.slane %v1595, %v1741
        %v1743 = vlaneseq
        %v1744 = vshrl.u32 %v1743, 7
        %v1745 = vsub.s32 2, %v1744
        %v1746 = vrot.slane %v1595, %v1745
        %v1747 = vlaneseq
        %v1748 = vshrl.u32 %v1747, 7
        %v1749 = vsub.s32 3, %v1748
        %v1750 = vrot.slane %v1595, %v1749
        %v1751 = vlaneseq
        %v1752 = vshrl.u32 %v1751, 7
        %v1753 = vsub.s32 4, %v1752
        %v1754 = vrot.slane %v1595, %v1753
        %v1755 = vlaneseq
        %v1756 = vshrl.u32 %v1755, 7
        %v1757 = vsub.s32 5, %v1756
        %v1758 = vrot.slane %v1595, %v1757
        %v1759 = vlaneseq
        %v1760 = vshrl.u32 %v1759, 7
        %v1761 = vsub.s32 6, %v1760
        %v1762 = vrot.slane %v1595, %v1761
        %v1763 = vlaneseq
        %v1764 = vshrl.u32 %v1763, 7
        %v1765 = vsub.s32 7, %v1764
        %v1766 = vrot.slane %v1595, %v1765
        %v1767 = vlaneseq
        %v1768 = vshrl.u32 %v1767, 7
        %v1769 = vsub.s32 0, %v1768
        %v1770 = vrot.slane %v1596, %v1769
        %v1771 = vlaneseq
        %v1772 = vshrl.u32 %v1771, 7
        %v1773 = vsub.s32 1, %v1772
        %v1774 = vrot.slane %v1596, %v1773
        %v1775 = vlaneseq
        %v1776 = vshrl.u32 %v1775, 7
        %v1777 = vsub.s32 2, %v1776
        %v1778 = vrot.slane %v1596, %v1777
        %v1779 = vlaneseq
        %v1780 = vshrl.u32 %v1779, 7
        %v1781 = vsub.s32 3, %v1780
        %v1782 = vrot.slane %v1596, %v1781
        %v1783 = vlaneseq
        %v1784 = vshrl.u32 %v1783, 7
        %v1785 = vsub.s32 4, %v1784
        %v1786 = vrot.slane %v1596, %v1785
        %v1787 = vlaneseq
        %v1788 = vshrl.u32 %v1787, 7
        %v1789 = vsub.s32 5, %v1788
        %v1790 = vrot.slane %v1596, %v1789
        %v1791 = vlaneseq
        %v1792 = vshrl.u32 %v1791, 7
        %v1793 = vsub.s32 6, %v1792
        %v1794 = vrot.slane %v1596, %v1793
        %v1795 = vlaneseq
        %v1796 = vshrl.u32 %v1795, 7
        %v1797 = vsub.s32 7, %v1796
        %v1798 = vrot.slane %v1596, %v1797
        %v1799 = vlaneseq
        %v1800 = vshrl.u32 %v1799, 7
        %v1801 = vsub.s32 0, %v1800
        %v1802 = vrot.slane %v1597, %v1801
        %v1803 = vlaneseq
        %v1804 = vshrl.u32 %v1803, 7
        %v1805 = vsub.s32 1, %v1804
        %v1806 = vrot.slane %v1597, %v1805
        %v1807 = vlaneseq
        %v1808 = vshrl.u32 %v1807, 7
        %v1809 = vsub.s32 2, %v1808
        %v1810 = vrot.slane %v1597, %v1809
        %v1811 = vlaneseq
        %v1812 = vshrl.u32 %v1811, 7
        %v1813 = vsub.s32 3, %v1812
        %v1814 = vrot.slane %v1597, %v1813
        %v1815 = vlaneseq
        %v1816 = vshrl.u32 %v1815, 7
        %v1817 = vsub.s32 4, %v1816
        %v1818 = vrot.slane %v1597, %v1817
        %v1819 = vlaneseq
        %v1820 = vshrl.u32 %v1819, 7
        %v1821 = vsub.s32 5, %v1820
        %v1822 = vrot.slane %v1597, %v1821
        %v1823 = vlaneseq
        %v1824 = vshrl.u32 %v1823, 7
        %v1825 = vsub.s32 6, %v1824
        %v1826 = vrot.slane %v1597, %v1825
        %v1827 = vlaneseq
        %v1828 = vshrl.u32 %v1827, 7
        %v1829 = vsub.s32 7, %v1828
        %v1830 = vrot.slane %v1597, %v1829
        %v1831 = vlaneseq
        %v1832 = vshrl.u32 %v1831, 7
        %v1833 = vsub.s32 0, %v1832
        %v1834 = vrot.slane %v1598, %v1833
        %v1835 = vlaneseq
        %v1836 = vshrl.u32 %v1835, 7
        %v1837 = vsub.s32 1, %v1836
        %v1838 = vrot.slane %v1598, %v1837
        %v1839 = vlaneseq
        %v1840 = vshrl.u32 %v1839, 7
        %v1841 = vsub.s32 2, %v1840
        %v1842 = vrot.slane %v1598, %v1841
        %v1843 = vlaneseq
        %v1844 = vshrl.u32 %v1843, 7
        %v1845 = vsub.s32 3, %v1844
        %v1846 = vrot.slane %v1598, %v1845
        %v1847 = vlaneseq
        %v1848 = vshrl.u32 %v1847, 7
        %v1849 = vsub.s32 4, %v1848
        %v1850 = vrot.slane %v1598, %v1849
        %v1851 = vlaneseq
        %v1852 = vshrl.u32 %v1851, 7
        %v1853 = vsub.s32 5, %v1852
        %v1854 = vrot.slane %v1598, %v1853
        %v1855 = vlaneseq
        %v1856 = vshrl.u32 %v1855, 7
        %v1857 = vsub.s32 6, %v1856
        %v1858 = vrot.slane %v1598, %v1857
        %v1859 = vlaneseq
        %v1860 = vshrl.u32 %v1859, 7
        %v1861 = vsub.s32 7, %v1860
        %v1862 = vrot.slane %v1598, %v1861
        %vm1927 = vcmask 818176
        %v1929 = vsel %vm1927, %v566, 0
        %v1932 = vsel %vm1927, %v567, 0
        %v1935 = vsel %vm1927, %v568, 0
        %v1938 = vsel %vm1927, %v569, 0
        %v1941 = vsel %vm1927, %v570, 0
        %v1944 = vsel %vm1927, %v571, 0
        %v1947 = vsel %vm1927, %v572, 0
        %v1950 = vsel %vm1927, %v573, 0
        %v1953 = vsel %vm1927, %v574, 0
        %v1956 = vsel %vm1927, %v575, 0
        %v1959 = vsel %vm1927, %v576, 0
        %v1962 = vsel %vm1927, %v577, 0
        %v1965 = vsel %vm1927, %v578, 0
        %v1968 = vsel %vm1927, %v579, 0
        %v1971 = vsel %vm1927, %v580, 0
        %v1974 = vsel %vm1927, %v581, 0
        %v1977 = vsel %vm1927, %v582, 0
        %v1980 = vsel %vm1927, %v583, 0
        %v1983 = vsel %vm1927, %v584, 0
        %v1986 = vsel %vm1927, %v585, 0
        %v1989 = vsel %vm1927, %v586, 0
        %v1992 = vsel %vm1927, %v587, 0
        %v1995 = vsel %vm1927, %v588, 0
        %v1998 = vsel %vm1927, %v589, 0
        %v2001 = vsel %vm1927, %v590, 0
        %v2004 = vsel %vm1927, %v591, 0
        %v2007 = vsel %vm1927, %v592, 0
        %v2010 = vsel %vm1927, %v593, 0
        %v2013 = vsel %vm1927, %v594, 0
        %v2016 = vsel %vm1927, %v595, 0
        %v2019 = vsel %vm1927, %v596, 0
        %v2022 = vsel %vm1927, %v597, 0
        %v2025 = vsel %vm1927, %v598, 0
        %v2028 = vsel %vm1927, %v599, 0
        %v2031 = vsel %vm1927, %v600, 0
        %v2034 = vsel %vm1927, %v601, 0
        %v2037 = vsel %vm1927, %v602, 0
        %v2040 = vsel %vm1927, %v603, 0
        %v2043 = vsel %vm1927, %v604, 0
        %v2046 = vsel %vm1927, %v605, 0
        %v2049 = vsel %vm1927, %v606, 0
        %v2052 = vsel %vm1927, %v607, 0
        %v2055 = vsel %vm1927, %v608, 0
        %v2058 = vsel %vm1927, %v609, 0
        %v2061 = vsel %vm1927, %v610, 0
        %v2064 = vsel %vm1927, %v611, 0
        %v2067 = vsel %vm1927, %v612, 0
        %v2070 = vsel %vm1927, %v613, 0
        %v2073 = vsel %vm1927, %v614, 0
        %v2076 = vsel %vm1927, %v615, 0
        %v2079 = vsel %vm1927, %v616, 0
        %v2082 = vsel %vm1927, %v617, 0
        %v2085 = vsel %vm1927, %v618, 0
        %v2088 = vsel %vm1927, %v619, 0
        %v2091 = vsel %vm1927, %v620, 0
        %v2094 = vsel %vm1927, %v621, 0
        %v2097 = vsel %vm1927, %v622, 0
        %v2100 = vsel %vm1927, %v623, 0
        %v2103 = vsel %vm1927, %v624, 0
        %v2106 = vsel %vm1927, %v625, 0
        %v2109 = vsel %vm1927, %v626, 0
        %v2112 = vsel %vm1927, %v627, 0
        %v2115 = vsel %vm1927, %v628, 0
        %v2118 = vsel %vm1927, %v629, 0
        %v2121 = vsel %vm1927, %v630, 0
        %v2124 = vsel %vm1927, %v631, 0
        %v2127 = vsel %vm1927, %v632, 0
        %v2130 = vsel %vm1927, %v633, 0
        %v2133 = vsel %vm1927, %v634, 0
        %v2136 = vsel %vm1927, %v635, 0
        %v2139 = vsel %vm1927, %v636, 0
        %v2142 = vsel %vm1927, %v637, 0
        %v2145 = vsel %vm1927, %v638, 0
        %v2148 = vsel %vm1927, %v639, 0
        %v2151 = vsel %vm1927, %v640, 0
        %v2154 = vsel %vm1927, %v641, 0
        %v2157 = vsel %vm1927, %v642, 0
        %v2160 = vsel %vm1927, %v643, 0
        %v2163 = vsel %vm1927, %v644, 0
        %v2166 = vsel %vm1927, %v645, 0
        %v2169 = vsel %vm1927, %v646, 0
        %v2172 = vsel %vm1927, %v647, 0
        %v2175 = vsel %vm1927, %v648, 0
        %v2178 = vsel %vm1927, %v649, 0
        %v2181 = vsel %vm1927, %v650, 0
        %v2184 = vsel %vm1927, %v651, 0
        %v2187 = vsel %vm1927, %v652, 0
        %v2190 = vsel %vm1927, %v653, 0
        %v2193 = vsel %vm1927, %v654, 0
        %v2196 = vsel %vm1927, %v655, 0
        %v2199 = vsel %vm1927, %v656, 0
        %v2202 = vsel %vm1927, %v657, 0
        %v2205 = vsel %vm1927, %v658, 0
        %v2208 = vsel %vm1927, %v659, 0
        %v2211 = vsel %vm1927, %v660, 0
        %v2214 = vsel %vm1927, %v661, 0
        %v2217 = vsel %vm1927, %v662, 0
        %v2220 = vsel %vm1927, %v663, 0
        %v2223 = vsel %vm1927, %v664, 0
        %v2226 = vsel %vm1927, %v665, 0
        %v2229 = vsel %vm1927, %v666, 0
        %v2232 = vsel %vm1927, %v667, 0
        %v2235 = vsel %vm1927, %v668, 0
        %v2238 = vsel %vm1927, %v669, 0
        %v2241 = vsel %vm1927, %v670, 0
        %v2244 = vsel %vm1927, %v671, 0
        %v2247 = vsel %vm1927, %v672, 0
        %v2250 = vsel %vm1927, %v673, 0
        %v2253 = vsel %vm1927, %v674, 0
        %v2256 = vsel %vm1927, %v675, 0
        %v2259 = vsel %vm1927, %v676, 0
        %v2262 = vsel %vm1927, %v677, 0
        %v2265 = vsel %vm1927, %v678, 0
        %v2268 = vsel %vm1927, %v679, 0
        %v2271 = vsel %vm1927, %v680, 0
        %v2274 = vsel %vm1927, %v681, 0
        %v2277 = vsel %vm1927, %v682, 0
        %v2280 = vsel %vm1927, %v683, 0
        %v2283 = vsel %vm1927, %v684, 0
        %v2286 = vsel %vm1927, %v685, 0
        %v2289 = vsel %vm1927, %v686, 0
        %v2292 = vsel %vm1927, %v687, 0
        %v2295 = vsel %vm1927, %v688, 0
        %v2298 = vsel %vm1927, %v689, 0
        %v2301 = vsel %vm1927, %v690, 0
        %v2304 = vsel %vm1927, %v691, 0
        %v2307 = vsel %vm1927, %v692, 0
        %v2310 = vsel %vm1927, %v693, 0
        %v2313 = vsel %vm1927, %v694, 0
        %v2316 = vsel %vm1927, %v695, 0
        %v2319 = vsel %vm1927, %v696, 0
        %v2322 = vsel %vm1927, %v697, 0
        %v2325 = vsel %vm1927, %v698, 0
        %v2328 = vsel %vm1927, %v699, 0
        %v2331 = vsel %vm1927, %v700, 0
        %v2334 = vsel %vm1927, %v701, 0
        %v2337 = vsel %vm1927, %v702, 0
        %v2340 = vsel %vm1927, %v703, 0
        %v2343 = vsel %vm1927, %v704, 0
        %v2346 = vsel %vm1927, %v705, 0
        %v2349 = vsel %vm1927, %v706, 0
        %v2352 = vsel %vm1927, %v707, 0
        %v2355 = vsel %vm1927, %v708, 0
        %v2358 = vsel %vm1927, %v709, 0
        %v2361 = vsel %vm1927, %v710, 0
        %v2364 = vsel %vm1927, %v711, 0
        %v2367 = vsel %vm1927, %v712, 0
        %v2370 = vsel %vm1927, %v713, 0
        %v2373 = vsel %vm1927, %v714, 0
        %v2376 = vsel %vm1927, %v715, 0
        %v2379 = vsel %vm1927, %v716, 0
        %v2382 = vsel %vm1927, %v717, 0
        %v2385 = vsel %vm1927, %v718, 0
        %v2388 = vsel %vm1927, %v719, 0
        %v2391 = vsel %vm1927, %v720, 0
        %v2394 = vsel %vm1927, %v721, 0
        %v2397 = vsel %vm1927, %v722, 0
        %v2400 = vsel %vm1927, %v723, 0
        %v2403 = vsel %vm1927, %v724, 0
        %v2406 = vsel %vm1927, %v725, 0
        %v2409 = vsel %vm1927, %v726, 0
        %v2412 = vsel %vm1927, %v727, 0
        %v2415 = vsel %vm1927, %v728, 0
        %v2418 = vsel %vm1927, %v729, 0
        %v2421 = vsel %vm1927, %v730, 0
        %v2424 = vsel %vm1927, %v731, 0
        %v2427 = vsel %vm1927, %v732, 0
        %v2430 = vsel %vm1927, %v733, 0
        %v2433 = vsel %vm1927, %v734, 0
        %v2436 = vsel %vm1927, %v735, 0
        %v2439 = vsel %vm1927, %v736, 0
        %v2442 = vsel %vm1927, %v737, 0
        %v2445 = vsel %vm1927, %v738, 0
        %v2448 = vsel %vm1927, %v739, 0
        %v2451 = vsel %vm1927, %v740, 0
        %v2454 = vsel %vm1927, %v741, 0
        %v2457 = vsel %vm1927, %v742, 0
        %v2460 = vsel %vm1927, %v743, 0
        %v2463 = vsel %vm1927, %v744, 0
        %v2466 = vsel %vm1927, %v745, 0
        %v2469 = vsel %vm1927, %v746, 0
        %v2472 = vsel %vm1927, %v747, 0
        %v2475 = vsel %vm1927, %v748, 0
        %v2478 = vsel %vm1927, %v749, 0
        %v2481 = vsel %vm1927, %v750, 0
        %v2484 = vsel %vm1927, %v751, 0
        %v2487 = vsel %vm1927, %v752, 0
        %v2490 = vsel %vm1927, %v753, 0
        %v2493 = vsel %vm1927, %v754, 0
        %v2496 = vsel %vm1927, %v755, 0
        %v2499 = vsel %vm1927, %v756, 0
        %v2502 = vsel %vm1927, %v757, 0
        %v2505 = vsel %vm1927, %v758, 0
        %v2508 = vsel %vm1927, %v759, 0
        %v2511 = vsel %vm1927, %v760, 0
        %v2514 = vsel %vm1927, %v761, 0
        %v2517 = vsel %vm1927, %v762, 0
        %v2520 = vsel %vm1927, %v763, 0
        %v2523 = vsel %vm1927, %v764, 0
        %v2526 = vsel %vm1927, %v765, 0
        %v2529 = vsel %vm1927, %v766, 0
        %v2532 = vsel %vm1927, %v767, 0
        %v2535 = vsel %vm1927, %v768, 0
        %v2538 = vsel %vm1927, %v769, 0
        %v2541 = vsel %vm1927, %v770, 0
        %v2544 = vsel %vm1927, %v771, 0
        %v2547 = vsel %vm1927, %v772, 0
        %v2550 = vsel %vm1927, %v773, 0
        %v2553 = vsel %vm1927, %v774, 0
        %v2556 = vsel %vm1927, %v775, 0
        %v2559 = vsel %vm1927, %v776, 0
        %v2562 = vsel %vm1927, %v777, 0
        %v2565 = vsel %vm1927, %v778, 0
        %v2568 = vsel %vm1927, %v779, 0
        %v2571 = vsel %vm1927, %v780, 0
        %v2574 = vsel %vm1927, %v781, 0
        %v2577 = vsel %vm1927, %v782, 0
        %v2580 = vsel %vm1927, %v783, 0
        %v2583 = vsel %vm1927, %v784, 0
        %v2586 = vsel %vm1927, %v785, 0
        %v2589 = vsel %vm1927, %v786, 0
        %v2592 = vsel %vm1927, %v787, 0
        %v2595 = vsel %vm1927, %v788, 0
        %v2598 = vsel %vm1927, %v789, 0
        %v2601 = vsel %vm1927, %v790, 0
        %v2604 = vsel %vm1927, %v791, 0
        %v2607 = vsel %vm1927, %v792, 0
        %v2610 = vsel %vm1927, %v793, 0
        %v2613 = vsel %vm1927, %v794, 0
        %v2616 = vsel %vm1927, %v795, 0
        %v2619 = vsel %vm1927, %v796, 0
        %v2622 = vsel %vm1927, %v797, 0
        %v2625 = vsel %vm1927, %v798, 0
        %v2628 = vsel %vm1927, %v799, 0
        %v2631 = vsel %vm1927, %v800, 0
        %v2634 = vsel %vm1927, %v801, 0
        %v2637 = vsel %vm1927, %v802, 0
        %v2640 = vsel %vm1927, %v803, 0
        %v2643 = vsel %vm1927, %v804, 0
        %v2646 = vsel %vm1927, %v805, 0
        %v2649 = vsel %vm1927, %v806, 0
        %v2652 = vsel %vm1927, %v807, 0
        %v2655 = vsel %vm1927, %v808, 0
        %v2658 = vsel %vm1927, %v809, 0
        %v2661 = vsel %vm1927, %v810, 0
        %v2664 = vsel %vm1927, %v811, 0
        %v2667 = vsel %vm1927, %v812, 0
        %v2670 = vsel %vm1927, %v813, 0
        %v2673 = vsel %vm1927, %v814, 0
        %v2676 = vsel %vm1927, %v815, 0
        %v2679 = vsel %vm1927, %v816, 0
        %v2682 = vsel %vm1927, %v817, 0
        %v2685 = vsel %vm1927, %v818, 0
        %v2688 = vsel %vm1927, %v819, 0
        %v2691 = vsel %vm1927, %v820, 0
        %v2694 = vsel %vm1927, %v821, 0
        %v2697 = vsel %vm1927, %v822, 0
        %v2700 = vsel %vm1927, %v823, 0
        %v2703 = vsel %vm1927, %v824, 0
        %v2706 = vsel %vm1927, %v825, 0
        %v2709 = vsel %vm1927, %v826, 0
        %v2712 = vsel %vm1927, %v827, 0
        %v2715 = vsel %vm1927, %v828, 0
        %v2718 = vsel %vm1927, %v829, 0
        %v2721 = vsel %vm1927, %v830, 0
        %v2724 = vsel %vm1927, %v831, 0
        %v2727 = vsel %vm1927, %v832, 0
        %v2730 = vsel %vm1927, %v833, 0
        %v2733 = vsel %vm1927, %v834, 0
        %v2736 = vsel %vm1927, %v835, 0
        %v2739 = vsel %vm1927, %v836, 0
        %v2742 = vsel %vm1927, %v837, 0
        %v2745 = vsel %vm1927, %v838, 0
        %v2748 = vsel %vm1927, %v839, 0
        %v2751 = vsel %vm1927, %v840, 0
        %v2754 = vsel %vm1927, %v841, 0
        %v2757 = vsel %vm1927, %v842, 0
        %v2760 = vsel %vm1927, %v843, 0
        %v2763 = vsel %vm1927, %v844, 0
        %v2766 = vsel %vm1927, %v845, 0
        %v2769 = vsel %vm1927, %v846, 0
        %v2772 = vsel %vm1927, %v847, 0
        %v2775 = vsel %vm1927, %v848, 0
        %v2778 = vsel %vm1927, %v849, 0
        %v2781 = vsel %vm1927, %v850, 0
        %v2784 = vsel %vm1927, %v851, 0
        %v2787 = vsel %vm1927, %v852, 0
        %v2790 = vsel %vm1927, %v853, 0
        %v2793 = vsel %vm1927, %v854, 0
        %v2796 = vsel %vm1927, %v855, 0
        %v2799 = vsel %vm1927, %v856, 0
        %v2802 = vsel %vm1927, %v857, 0
        %v2805 = vsel %vm1927, %v858, 0
        %v2808 = vsel %vm1927, %v859, 0
        %v2811 = vsel %vm1927, %v860, 0
        %v2814 = vsel %vm1927, %v861, 0
        %v2817 = vsel %vm1927, %v862, 0
        %v2820 = vsel %vm1927, %v863, 0
        %v2823 = vsel %vm1927, %v864, 0
        %v2826 = vsel %vm1927, %v865, 0
        %v2829 = vsel %vm1927, %v866, 0
        %v2832 = vsel %vm1927, %v867, 0
        %v2835 = vsel %vm1927, %v868, 0
        %v2838 = vsel %vm1927, %v869, 0
        %v2841 = vsel %vm1927, %v870, 0
        %v2844 = vsel %vm1927, %v871, 0
        %v2847 = vsel %vm1927, %v872, 0
        %v2850 = vsel %vm1927, %v873, 0
        %v2853 = vsel %vm1927, %v874, 0
        %v2856 = vsel %vm1927, %v875, 0
        %v2859 = vsel %vm1927, %v876, 0
        %v2862 = vsel %vm1927, %v877, 0
        %v2865 = vsel %vm1927, %v878, 0
        %v2868 = vsel %vm1927, %v879, 0
        %v2871 = vsel %vm1927, %v880, 0
        %v2874 = vsel %vm1927, %v881, 0
        %v2877 = vsel %vm1927, %v882, 0
        %v2880 = vsel %vm1927, %v883, 0
        %v2883 = vsel %vm1927, %v884, 0
        %v2886 = vsel %vm1927, %v885, 0
        %v2889 = vsel %vm1927, %v886, 0
        %v2892 = vsel %vm1927, %v887, 0
        %v2895 = vsel %vm1927, %v888, 0
        %v2898 = vsel %vm1927, %v889, 0
        %v2901 = vsel %vm1927, %v890, 0
        %v2904 = vsel %vm1927, %v891, 0
        %v2907 = vsel %vm1927, %v892, 0
        %v2910 = vsel %vm1927, %v893, 0
        %v2913 = vsel %vm1927, %v894, 0
        %v2916 = vsel %vm1927, %v895, 0
        %v2919 = vsel %vm1927, %v896, 0
        %v2922 = vsel %vm1927, %v897, 0
        %v2925 = vsel %vm1927, %v898, 0
        %v2928 = vsel %vm1927, %v899, 0
        %v2931 = vsel %vm1927, %v900, 0
        %v2934 = vsel %vm1927, %v901, 0
        %v2937 = vsel %vm1927, %v902, 0
        %v2940 = vsel %vm1927, %v903, 0
        %v2943 = vsel %vm1927, %v904, 0
        %v2946 = vsel %vm1927, %v905, 0
        %v2949 = vsel %vm1927, %v906, 0
        %v2952 = vsel %vm1927, %v907, 0
        %v2955 = vsel %vm1927, %v908, 0
        %v2958 = vsel %vm1927, %v909, 0
        %v2961 = vsel %vm1927, %v910, 0
        %v2964 = vsel %vm1927, %v911, 0
        %v2967 = vsel %vm1927, %v912, 0
        %v2970 = vsel %vm1927, %v913, 0
        %v2973 = vsel %vm1927, %v914, 0
        %v2976 = vsel %vm1927, %v915, 0
        %v2979 = vsel %vm1927, %v916, 0
        %v2982 = vsel %vm1927, %v917, 0
        %v2985 = vsel %vm1927, %v918, 0
        %v2988 = vsel %vm1927, %v919, 0
        %v2991 = vsel %vm1927, %v920, 0
        %v2994 = vsel %vm1927, %v921, 0
        %v2997 = vsel %vm1927, %v922, 0
        %v3000 = vsel %vm1927, %v923, 0
        %v3003 = vsel %vm1927, %v924, 0
        %v3006 = vsel %vm1927, %v925, 0
        %v3009 = vsel %vm1927, %v926, 0
        %v3012 = vsel %vm1927, %v927, 0
        %v3015 = vsel %vm1927, %v928, 0
        %v3018 = vsel %vm1927, %v929, 0
        %v3021 = vsel %vm1927, %v930, 0
        %v3024 = vsel %vm1927, %v931, 0
        %v3027 = vsel %vm1927, %v932, 0
        %v3030 = vsel %vm1927, %v933, 0
        %v3033 = vsel %vm1927, %v934, 0
        %v3036 = vsel %vm1927, %v935, 0
        %v3039 = vsel %vm1927, %v936, 0
        %v3042 = vsel %vm1927, %v937, 0
        %v3045 = vsel %vm1927, %v938, 0
        %v3048 = vsel %vm1927, %v939, 0
        %v3051 = vsel %vm1927, %v940, 0
        %v3054 = vsel %vm1927, %v941, 0
        %v3057 = vsel %vm1927, %v942, 0
        %v3060 = vsel %vm1927, %v943, 0
        %v3063 = vsel %vm1927, %v944, 0
        %v3066 = vsel %vm1927, %v945, 0
        %v3069 = vsel %vm1927, %v946, 0
        %v3072 = vsel %vm1927, %v947, 0
        %v3075 = vsel %vm1927, %v948, 0
        %v3078 = vsel %vm1927, %v949, 0
        %v3081 = vsel %vm1927, %v950, 0
        %v3084 = vsel %vm1927, %v951, 0
        %v3087 = vsel %vm1927, %v952, 0
        %v3090 = vsel %vm1927, %v953, 0
        %v3093 = vsel %vm1927, %v954, 0
        %v3096 = vsel %vm1927, %v955, 0
        %v3099 = vsel %vm1927, %v956, 0
        %v3102 = vsel %vm1927, %v957, 0
        %v3105 = vsel %vm1927, %v958, 0
        %v3108 = vsel %vm1927, %v959, 0
        %v3111 = vsel %vm1927, %v960, 0
        %v3114 = vsel %vm1927, %v961, 0
        %v3117 = vsel %vm1927, %v962, 0
        %v3120 = vsel %vm1927, %v963, 0
        %v3123 = vsel %vm1927, %v964, 0
        %v3126 = vsel %vm1927, %v965, 0
        %v3129 = vsel %vm1927, %v966, 0
        %v3132 = vsel %vm1927, %v967, 0
        %v3135 = vsel %vm1927, %v968, 0
        %v3138 = vsel %vm1927, %v969, 0
        %v3141 = vsel %vm1927, %v970, 0
        %v3144 = vsel %vm1927, %v971, 0
        %v3147 = vsel %vm1927, %v972, 0
        %v3150 = vsel %vm1927, %v973, 0
        %v3153 = vsel %vm1927, %v974, 0
        %v3156 = vsel %vm1927, %v975, 0
        %v3159 = vsel %vm1927, %v976, 0
        %v3162 = vsel %vm1927, %v977, 0
        %v3165 = vsel %vm1927, %v978, 0
        %v3168 = vsel %vm1927, %v979, 0
        %v3171 = vsel %vm1927, %v980, 0
        %v3174 = vsel %vm1927, %v981, 0
        %v3177 = vsel %vm1927, %v982, 0
        %v3180 = vsel %vm1927, %v983, 0
        %v3183 = vsel %vm1927, %v984, 0
        %v3186 = vsel %vm1927, %v985, 0
        %v3189 = vsel %vm1927, %v986, 0
        %v3192 = vsel %vm1927, %v987, 0
        %v3195 = vsel %vm1927, %v988, 0
        %v3198 = vsel %vm1927, %v989, 0
        %v3201 = vsel %vm1927, %v990, 0
        %v3204 = vsel %vm1927, %v991, 0
        %v3207 = vsel %vm1927, %v992, 0
        %v3210 = vsel %vm1927, %v993, 0
        %v3213 = vsel %vm1927, %v994, 0
        %v3216 = vsel %vm1927, %v995, 0
        %v3219 = vsel %vm1927, %v996, 0
        %v3222 = vsel %vm1927, %v997, 0
        %v3225 = vsel %vm1927, %v998, 0
        %v3228 = vsel %vm1927, %v999, 0
        %v3231 = vsel %vm1927, %v1000, 0
        %v3234 = vsel %vm1927, %v1001, 0
        %v3237 = vsel %vm1927, %v1002, 0
        %v3240 = vsel %vm1927, %v1003, 0
        %v3243 = vsel %vm1927, %v1004, 0
        %v3246 = vsel %vm1927, %v1005, 0
        %v3249 = vsel %vm1927, %v1006, 0
        %v3252 = vsel %vm1927, %v1007, 0
        %v3255 = vsel %vm1927, %v1008, 0
        %v3258 = vsel %vm1927, %v1009, 0
        %v3261 = vsel %vm1927, %v1010, 0
        %v3264 = vsel %vm1927, %v1011, 0
        %v3267 = vsel %vm1927, %v1012, 0
        %v3270 = vsel %vm1927, %v1013, 0
        %v3273 = vsel %vm1927, %v1014, 0
        %v3276 = vsel %vm1927, %v1015, 0
        %v3279 = vsel %vm1927, %v1016, 0
        %v3282 = vsel %vm1927, %v1017, 0
        %v3285 = vsel %vm1927, %v1018, 0
        %v3288 = vsel %vm1927, %v1019, 0
        %v3291 = vsel %vm1927, %v1020, 0
        %v3294 = vsel %vm1927, %v1021, 0
        %v3297 = vsel %vm1927, %v1022, 0
        %v3300 = vsel %vm1927, %v1023, 0
        %v3303 = vsel %vm1927, %v1024, 0
        %v3306 = vsel %vm1927, %v1025, 0
        %v3309 = vsel %vm1927, %v1026, 0
        %v3312 = vsel %vm1927, %v1027, 0
        %v3315 = vsel %vm1927, %v1028, 0
        %v3318 = vsel %vm1927, %v1029, 0
        %v3321 = vsel %vm1927, %v1030, 0
        %v3324 = vsel %vm1927, %v1031, 0
        %v3327 = vsel %vm1927, %v1032, 0
        %v3330 = vsel %vm1927, %v1033, 0
        %v3333 = vsel %vm1927, %v1034, 0
        %v3336 = vsel %vm1927, %v1035, 0
        %v3339 = vsel %vm1927, %v1036, 0
        %v3342 = vsel %vm1927, %v1037, 0
        %v3345 = vsel %vm1927, %v1038, 0
        %v3348 = vsel %vm1927, %v1039, 0
        %v3351 = vsel %vm1927, %v1040, 0
        %v3354 = vsel %vm1927, %v1041, 0
        %v3357 = vsel %vm1927, %v1042, 0
        %v3360 = vsel %vm1927, %v1043, 0
        %v3363 = vsel %vm1927, %v1044, 0
        %v3366 = vsel %vm1927, %v1045, 0
        %v3369 = vsel %vm1927, %v1046, 0
        %v3372 = vsel %vm1927, %v1047, 0
        %v3375 = vsel %vm1927, %v1048, 0
        %v3378 = vsel %vm1927, %v1049, 0
        %v3381 = vsel %vm1927, %v1050, 0
        %v3384 = vsel %vm1927, %v1051, 0
        %v3387 = vsel %vm1927, %v1052, 0
        %v3390 = vsel %vm1927, %v1053, 0
        %v3393 = vsel %vm1927, %v1054, 0
        %v3396 = vsel %vm1927, %v1055, 0
        %v3399 = vsel %vm1927, %v1056, 0
        %v3402 = vsel %vm1927, %v1057, 0
        %v3405 = vsel %vm1927, %v1058, 0
        %v3408 = vsel %vm1927, %v1059, 0
        %v3411 = vsel %vm1927, %v1060, 0
        %v3414 = vsel %vm1927, %v1061, 0
        %v3417 = vsel %vm1927, %v1062, 0
        %v3420 = vsel %vm1927, %v1063, 0
        %v3423 = vsel %vm1927, %v1064, 0
        %v3426 = vsel %vm1927, %v1065, 0
        %v3429 = vsel %vm1927, %v1066, 0
        %v3432 = vsel %vm1927, %v1067, 0
        %v3435 = vsel %vm1927, %v1068, 0
        %v3438 = vsel %vm1927, %v1069, 0
        %v3441 = vsel %vm1927, %v1070, 0
        %v3444 = vsel %vm1927, %v1071, 0
        %v3447 = vsel %vm1927, %v1072, 0
        %v3450 = vsel %vm1927, %v1073, 0
        %v3453 = vsel %vm1927, %v1074, 0
        %v3456 = vsel %vm1927, %v1075, 0
        %v3459 = vsel %vm1927, %v1076, 0
        %v3462 = vsel %vm1927, %v1077, 0
        %v3465 = vsel %vm1927, %v1078, 0
        %v3468 = vsel %vm1927, %v1079, 0
        %v3471 = vsel %vm1927, %v1080, 0
        %v3474 = vsel %vm1927, %v1081, 0
        %v3477 = vsel %vm1927, %v1082, 0
        %v3480 = vsel %vm1927, %v1083, 0
        %v3483 = vsel %vm1927, %v1084, 0
        %v3486 = vsel %vm1927, %v1085, 0
        %v3489 = vsel %vm1927, %v1086, 0
        %v3492 = vsel %vm1927, %v1087, 0
        %v3495 = vsel %vm1927, %v1088, 0
        %v3498 = vsel %vm1927, %v1089, 0
        %v3501 = vsel %vm1927, %v1090, 0
        %v3504 = vsel %vm1927, %v1091, 0
        %v3507 = vsel %vm1927, %v1092, 0
        %v3510 = vsel %vm1927, %v1093, 0
        %v3513 = vsel %vm1927, %v1094, 0
        %v3516 = vsel %vm1927, %v1095, 0
        %v3519 = vsel %vm1927, %v1096, 0
        %v3522 = vsel %vm1927, %v1097, 0
        %v3525 = vsel %vm1927, %v1098, 0
        %v3528 = vsel %vm1927, %v1099, 0
        %v3531 = vsel %vm1927, %v1100, 0
        %v3534 = vsel %vm1927, %v1101, 0
        %v3537 = vsel %vm1927, %v1102, 0
        %v3540 = vsel %vm1927, %v1103, 0
        %v3543 = vsel %vm1927, %v1104, 0
        %v3546 = vsel %vm1927, %v1105, 0
        %v3549 = vsel %vm1927, %v1106, 0
        %v3552 = vsel %vm1927, %v1107, 0
        %v3555 = vsel %vm1927, %v1108, 0
        %v3558 = vsel %vm1927, %v1109, 0
        %v3561 = vsel %vm1927, %v1110, 0
        %v3564 = vsel %vm1927, %v1111, 0
        %v3567 = vsel %vm1927, %v1112, 0
        %v3570 = vsel %vm1927, %v1113, 0
        %v3573 = vsel %vm1927, %v1114, 0
        %v3576 = vsel %vm1927, %v1115, 0
        %v3579 = vsel %vm1927, %v1116, 0
        %v3582 = vsel %vm1927, %v1117, 0
        %v3585 = vsel %vm1927, %v1118, 0
        %v3588 = vsel %vm1927, %v1119, 0
        %v3591 = vsel %vm1927, %v1120, 0
        %v3594 = vsel %vm1927, %v1121, 0
        %v3597 = vsel %vm1927, %v1122, 0
        %v3600 = vsel %vm1927, %v1123, 0
        %v3603 = vsel %vm1927, %v1124, 0
        %v3606 = vsel %vm1927, %v1125, 0
        %v3609 = vsel %vm1927, %v1126, 0
        %v3612 = vsel %vm1927, %v1127, 0
        %v3615 = vsel %vm1927, %v1128, 0
        %v3618 = vsel %vm1927, %v1129, 0
        %v3621 = vsel %vm1927, %v1130, 0
        %v3624 = vsel %vm1927, %v1131, 0
        %v3627 = vsel %vm1927, %v1132, 0
        %v3630 = vsel %vm1927, %v1133, 0
        %v3633 = vsel %vm1927, %v1134, 0
        %v3636 = vsel %vm1927, %v1135, 0
        %v3639 = vsel %vm1927, %v1136, 0
        %v3642 = vsel %vm1927, %v1137, 0
        %v3645 = vsel %vm1927, %v1138, 0
        %v3648 = vsel %vm1927, %v1139, 0
        %v3651 = vsel %vm1927, %v1140, 0
        %v3654 = vsel %vm1927, %v1141, 0
        %v3657 = vsel %vm1927, %v1142, 0
        %v3660 = vsel %vm1927, %v1143, 0
        %v3663 = vsel %vm1927, %v1144, 0
        %v3666 = vsel %vm1927, %v1145, 0
        %v3669 = vsel %vm1927, %v1146, 0
        %v3672 = vsel %vm1927, %v1147, 0
        %v3675 = vsel %vm1927, %v1148, 0
        %v3678 = vsel %vm1927, %v1149, 0
        %v3681 = vsel %vm1927, %v1150, 0
        %v3684 = vsel %vm1927, %v1151, 0
        %v3687 = vsel %vm1927, %v1152, 0
        %v3690 = vsel %vm1927, %v1153, 0
        %v3693 = vsel %vm1927, %v1154, 0
        %v3696 = vsel %vm1927, %v1155, 0
        %v3699 = vsel %vm1927, %v1156, 0
        %v3702 = vsel %vm1927, %v1157, 0
        %v3705 = vsel %vm1927, %v1158, 0
        %v3708 = vsel %vm1927, %v1159, 0
        %v3711 = vsel %vm1927, %v1160, 0
        %v3714 = vsel %vm1927, %v1161, 0
        %v3717 = vsel %vm1927, %v1162, 0
        %v3720 = vsel %vm1927, %v1163, 0
        %v3723 = vsel %vm1927, %v1164, 0
        %v3726 = vsel %vm1927, %v1165, 0
        %v3729 = vsel %vm1927, %v1166, 0
        %v3732 = vsel %vm1927, %v1167, 0
        %v3735 = vsel %vm1927, %v1168, 0
        %v3738 = vsel %vm1927, %v1169, 0
        %v3741 = vsel %vm1927, %v1170, 0
        %v3744 = vsel %vm1927, %v1171, 0
        %v3747 = vsel %vm1927, %v1172, 0
        %v3750 = vsel %vm1927, %v1173, 0
        %v3753 = vsel %vm1927, %v1174, 0
        %v3756 = vsel %vm1927, %v1175, 0
        %v3759 = vsel %vm1927, %v1176, 0
        %v3762 = vsel %vm1927, %v1177, 0
        %v3765 = vsel %vm1927, %v1178, 0
        %v3768 = vsel %vm1927, %v1179, 0
        %v3771 = vsel %vm1927, %v1180, 0
        %v3774 = vsel %vm1927, %v1181, 0
        %v3777 = vsel %vm1927, %v1182, 0
        %v3780 = vsel %vm1927, %v1183, 0
        %v3783 = vsel %vm1927, %v1184, 0
        %v3786 = vsel %vm1927, %v1185, 0
        %v3789 = vsel %vm1927, %v1186, 0
        %v3792 = vsel %vm1927, %v1187, 0
        %v3795 = vsel %vm1927, %v1188, 0
        %v3798 = vsel %vm1927, %v1189, 0
        %v3801 = vsel %vm1927, %v1190, 0
        %v3804 = vsel %vm1927, %v1191, 0
        %v3807 = vsel %vm1927, %v1192, 0
        %v3810 = vsel %vm1927, %v1193, 0
        %v3813 = vsel %vm1927, %v1194, 0
        %v3816 = vsel %vm1927, %v1195, 0
        %v3819 = vsel %vm1927, %v1196, 0
        %v3822 = vsel %vm1927, %v1197, 0
        %v3825 = vsel %vm1927, %v1198, 0
        %v3828 = vsel %vm1927, %v1199, 0
        %v3831 = vsel %vm1927, %v1200, 0
        %v3834 = vsel %vm1927, %v1201, 0
        %v3837 = vsel %vm1927, %v1202, 0
        %v3840 = vsel %vm1927, %v1203, 0
        %v3843 = vsel %vm1927, %v1204, 0
        %v3846 = vsel %vm1927, %v1205, 0
        %v3849 = vsel %vm1927, %v1206, 0
        %v3852 = vsel %vm1927, %v1207, 0
        %v3855 = vsel %vm1927, %v1208, 0
        %v3858 = vsel %vm1927, %v1209, 0
        %v3861 = vsel %vm1927, %v1210, 0
        %v3864 = vsel %vm1927, %v1211, 0
        %v3867 = vsel %vm1927, %v1212, 0
        %v3870 = vsel %vm1927, %v1213, 0
        %v3873 = vsel %vm1927, %v1214, 0
        %v3876 = vsel %vm1927, %v1215, 0
        %v3879 = vsel %vm1927, %v1216, 0
        %v3882 = vsel %vm1927, %v1217, 0
        %v3885 = vsel %vm1927, %v1218, 0
        %v3888 = vsel %vm1927, %v1219, 0
        %v3891 = vsel %vm1927, %v1220, 0
        %v3894 = vsel %vm1927, %v1221, 0
        %v3897 = vsel %vm1927, %v1222, 0
        %v3900 = vsel %vm1927, %v1223, 0
        %v3903 = vsel %vm1927, %v1224, 0
        %v3906 = vsel %vm1927, %v1225, 0
        %v3909 = vsel %vm1927, %v1226, 0
        %v3912 = vsel %vm1927, %v1227, 0
        %v3915 = vsel %vm1927, %v1228, 0
        %v3918 = vsel %vm1927, %v1229, 0
        %v3921 = vsel %vm1927, %v1230, 0
        %v3924 = vsel %vm1927, %v1231, 0
        %v3927 = vsel %vm1927, %v1232, 0
        %v3930 = vsel %vm1927, %v1233, 0
        %v3933 = vsel %vm1927, %v1234, 0
        %v3936 = vsel %vm1927, %v1235, 0
        %v3939 = vsel %vm1927, %v1236, 0
        %v3942 = vsel %vm1927, %v1237, 0
        %v3945 = vsel %vm1927, %v1238, 0
        %v3948 = vsel %vm1927, %v1239, 0
        %v3951 = vsel %vm1927, %v1240, 0
        %v3954 = vsel %vm1927, %v1241, 0
        %v3957 = vsel %vm1927, %v1242, 0
        %v3960 = vsel %vm1927, %v1243, 0
        %v3963 = vsel %vm1927, %v1244, 0
        %v3966 = vsel %vm1927, %v1245, 0
        %v3969 = vsel %vm1927, %v1246, 0
        %v3972 = vsel %vm1927, %v1247, 0
        %v3975 = vsel %vm1927, %v1248, 0
        %v3978 = vsel %vm1927, %v1249, 0
        %v3981 = vsel %vm1927, %v1250, 0
        %v3984 = vsel %vm1927, %v1251, 0
        %v3987 = vsel %vm1927, %v1252, 0
        %v3990 = vsel %vm1927, %v1253, 0
        %v3993 = vsel %vm1927, %v1254, 0
        %v3996 = vsel %vm1927, %v1255, 0
        %v3999 = vsel %vm1927, %v1256, 0
        %v4002 = vsel %vm1927, %v1257, 0
        %v4005 = vsel %vm1927, %v1258, 0
        %v4008 = vsel %vm1927, %v1259, 0
        %v4011 = vsel %vm1927, %v1260, 0
        %v4014 = vsel %vm1927, %v1261, 0
        %v4017 = vsel %vm1927, %v1262, 0
        %v4020 = vsel %vm1927, %v1263, 0
        %v4023 = vsel %vm1927, %v1264, 0
        %v4026 = vsel %vm1927, %v1265, 0
        %v4029 = vsel %vm1927, %v1266, 0
        %v4032 = vsel %vm1927, %v1267, 0
        %v4035 = vsel %vm1927, %v1268, 0
        %v4038 = vsel %vm1927, %v1269, 0
        %v4041 = vsel %vm1927, %v1270, 0
        %v4044 = vsel %vm1927, %v1271, 0
        %v4047 = vsel %vm1927, %v1272, 0
        %v4050 = vsel %vm1927, %v1273, 0
        %v4053 = vsel %vm1927, %v1274, 0
        %v4056 = vsel %vm1927, %v1275, 0
        %v4059 = vsel %vm1927, %v1276, 0
        %v4062 = vsel %vm1927, %v1277, 0
        %v4065 = vsel %vm1927, %v1278, 0
        %v4068 = vsel %vm1927, %v1279, 0
        %v4071 = vsel %vm1927, %v1280, 0
        %v4074 = vsel %vm1927, %v1281, 0
        %v4077 = vsel %vm1927, %v1282, 0
        %v4080 = vsel %vm1927, %v1283, 0
        %v4083 = vsel %vm1927, %v1284, 0
        %v4086 = vsel %vm1927, %v1285, 0
        %v4089 = vsel %vm1927, %v1286, 0
        %v4092 = vsel %vm1927, %v1287, 0
        %v4095 = vsel %vm1927, %v1288, 0
        %v4098 = vsel %vm1927, %v1289, 0
        %v4101 = vsel %vm1927, %v1290, 0
        %v4104 = vsel %vm1927, %v1291, 0
        %v4107 = vsel %vm1927, %v1292, 0
        %v4110 = vsel %vm1927, %v1293, 0
        %v4113 = vsel %vm1927, %v1294, 0
        %v4116 = vsel %vm1927, %v1295, 0
        %v4119 = vsel %vm1927, %v1296, 0
        %v4122 = vsel %vm1927, %v1297, 0
        %v4125 = vsel %vm1927, %v1298, 0
        %v4128 = vsel %vm1927, %v1299, 0
        %v4131 = vsel %vm1927, %v1300, 0
        %v4134 = vsel %vm1927, %v1301, 0
        %v4137 = vsel %vm1927, %v1302, 0
        %v4140 = vsel %vm1927, %v1303, 0
        %v4143 = vsel %vm1927, %v1304, 0
        %v4146 = vsel %vm1927, %v1305, 0
        %v4149 = vsel %vm1927, %v1306, 0
        %v4152 = vsel %vm1927, %v1307, 0
        %v4155 = vsel %vm1927, %v1308, 0
        %v4158 = vsel %vm1927, %v1309, 0
        %v4161 = vsel %vm1927, %v1310, 0
        %v4164 = vsel %vm1927, %v1311, 0
        %v4167 = vsel %vm1927, %v1312, 0
        %v4170 = vsel %vm1927, %v1313, 0
        %v4173 = vsel %vm1927, %v1314, 0
        %v4176 = vsel %vm1927, %v1315, 0
        %v4179 = vsel %vm1927, %v1316, 0
        %v4182 = vsel %vm1927, %v1317, 0
        %v4185 = vsel %vm1927, %v1318, 0
        %v4188 = vsel %vm1927, %v1319, 0
        %v4191 = vsel %vm1927, %v1320, 0
        %v4194 = vsel %vm1927, %v1321, 0
        %v4197 = vsel %vm1927, %v1322, 0
        %v4200 = vsel %vm1927, %v1323, 0
        %v4203 = vsel %vm1927, %v1324, 0
        %v4206 = vsel %vm1927, %v1325, 0
        %v4209 = vsel %vm1927, %v1326, 0
        %v4212 = vsel %vm1927, %v1327, 0
        %v4215 = vsel %vm1927, %v1328, 0
        %v4218 = vsel %vm1927, %v1329, 0
        %v4221 = vsel %vm1927, %v1330, 0
        %v4224 = vsel %vm1927, %v1331, 0
        %v4227 = vsel %vm1927, %v1332, 0
        %v4230 = vsel %vm1927, %v1333, 0
        %v4233 = vsel %vm1927, %v1334, 0
        %v4236 = vsel %vm1927, %v1335, 0
        %v4239 = vsel %vm1927, %v1336, 0
        %v4242 = vsel %vm1927, %v1337, 0
        %v4245 = vsel %vm1927, %v1338, 0
        %v4248 = vsel %vm1927, %v1339, 0
        %v4251 = vsel %vm1927, %v1340, 0
        %v4254 = vsel %vm1927, %v1341, 0
        %v4257 = vsel %vm1927, %v1342, 0
        %v4260 = vsel %vm1927, %v1343, 0
        %v4263 = vsel %vm1927, %v1344, 0
        %v4266 = vsel %vm1927, %v1345, 0
        %v4269 = vsel %vm1927, %v1346, 0
        %v4272 = vsel %vm1927, %v1347, 0
        %v4275 = vsel %vm1927, %v1348, 0
        %v4278 = vsel %vm1927, %v1349, 0
        %v4281 = vsel %vm1927, %v1350, 0
        %v4284 = vsel %vm1927, %v1351, 0
        %v4287 = vsel %vm1927, %v1352, 0
        %v4290 = vsel %vm1927, %v1353, 0
        %v4293 = vsel %vm1927, %v1354, 0
        %v4296 = vsel %vm1927, %v1355, 0
        %v4299 = vsel %vm1927, %v1356, 0
        %v4302 = vsel %vm1927, %v1357, 0
        %v4305 = vsel %vm1927, %v1358, 0
        %v4308 = vsel %vm1927, %v1359, 0
        %v4311 = vsel %vm1927, %v1360, 0
        %v4314 = vsel %vm1927, %v1361, 0
        %v4317 = vsel %vm1927, %v1362, 0
        %v4320 = vsel %vm1927, %v1363, 0
        %v4323 = vsel %vm1927, %v1364, 0
        %v4326 = vsel %vm1927, %v1365, 0
        %v4329 = vsel %vm1927, %v1366, 0
        %v4332 = vsel %vm1927, %v1367, 0
        %v4335 = vsel %vm1927, %v1368, 0
        %v4338 = vsel %vm1927, %v1369, 0
        %v4341 = vsel %vm1927, %v1370, 0
        %v4344 = vsel %vm1927, %v1371, 0
        %v4347 = vsel %vm1927, %v1372, 0
        %v4350 = vsel %vm1927, %v1373, 0
        %v4353 = vsel %vm1927, %v1374, 0
        %v4356 = vsel %vm1927, %v1375, 0
        %v4359 = vsel %vm1927, %v1376, 0
        %v4362 = vsel %vm1927, %v1377, 0
        %v4365 = vsel %vm1927, %v1378, 0
        %v4368 = vsel %vm1927, %v1379, 0
        %v4371 = vsel %vm1927, %v1380, 0
        %v4374 = vsel %vm1927, %v1381, 0
        %v4377 = vsel %vm1927, %v1382, 0
        %v4380 = vsel %vm1927, %v1383, 0
        %v4383 = vsel %vm1927, %v1384, 0
        %v4386 = vsel %vm1927, %v1385, 0
        %v4389 = vsel %vm1927, %v1386, 0
        %v4392 = vsel %vm1927, %v1387, 0
        %v4395 = vsel %vm1927, %v1388, 0
        %v4398 = vsel %vm1927, %v1389, 0
        %v4401 = vsel %vm1927, %v1390, 0
        %v4404 = vsel %vm1927, %v1391, 0
        %v4407 = vsel %vm1927, %v1392, 0
        %v4410 = vsel %vm1927, %v1393, 0
        %v4413 = vsel %vm1927, %v1394, 0
        %v4416 = vsel %vm1927, %v1395, 0
        %v4419 = vsel %vm1927, %v1396, 0
        %v4422 = vsel %vm1927, %v1397, 0
        %v4425 = vsel %vm1927, %v1398, 0
        %v4428 = vsel %vm1927, %v1399, 0
        %v4431 = vsel %vm1927, %v1400, 0
        %v4434 = vsel %vm1927, %v1401, 0
        %v4437 = vsel %vm1927, %v1402, 0
        %v4440 = vsel %vm1927, %v1403, 0
        %v4443 = vsel %vm1927, %v1404, 0
        %v4446 = vsel %vm1927, %v1405, 0
        %v4449 = vsel %vm1927, %v1406, 0
        %v4452 = vsel %vm1927, %v1407, 0
        %v4455 = vsel %vm1927, %v1408, 0
        %v4458 = vsel %vm1927, %v1409, 0
        %v4461 = vsel %vm1927, %v1410, 0
        %v4464 = vsel %vm1927, %v1411, 0
        %v4467 = vsel %vm1927, %v1412, 0
        %v4470 = vsel %vm1927, %v1413, 0
        %v4473 = vsel %vm1927, %v1414, 0
        %v4476 = vsel %vm1927, %v1415, 0
        %v4479 = vsel %vm1927, %v1416, 0
        %v4482 = vsel %vm1927, %v1417, 0
        %v4485 = vsel %vm1927, %v1418, 0
        %v4488 = vsel %vm1927, %v1419, 0
        %v4491 = vsel %vm1927, %v1420, 0
        %v4494 = vsel %vm1927, %v1421, 0
        %v4497 = vsel %vm1927, %v1422, 0
        %v4500 = vsel %vm1927, %v1423, 0
        %v4503 = vsel %vm1927, %v1424, 0
        %v4506 = vsel %vm1927, %v1425, 0
        %v4509 = vsel %vm1927, %v1426, 0
        %v4512 = vsel %vm1927, %v1427, 0
        %v4515 = vsel %vm1927, %v1428, 0
        %v4518 = vsel %vm1927, %v1429, 0
        %v4521 = vsel %vm1927, %v1430, 0
        %v4524 = vsel %vm1927, %v1431, 0
        %v4527 = vsel %vm1927, %v1432, 0
        %v4530 = vsel %vm1927, %v1433, 0
        %v4533 = vsel %vm1927, %v1434, 0
        %v4536 = vsel %vm1927, %v1435, 0
        %v4539 = vsel %vm1927, %v1436, 0
        %v4542 = vsel %vm1927, %v1437, 0
        %v4545 = vsel %vm1927, %v1438, 0
        %v4548 = vsel %vm1927, %v1439, 0
        %v4551 = vsel %vm1927, %v1440, 0
        %v4554 = vsel %vm1927, %v1441, 0
        %v4557 = vsel %vm1927, %v1442, 0
        %v4560 = vsel %vm1927, %v1443, 0
        %v4563 = vsel %vm1927, %v1444, 0
        %v4566 = vsel %vm1927, %v1445, 0
        %v4569 = vsel %vm1927, %v1446, 0
        %v4572 = vsel %vm1927, %v1447, 0
        %v4575 = vsel %vm1927, %v1448, 0
        %v4578 = vsel %vm1927, %v1449, 0
        %v4581 = vsel %vm1927, %v1450, 0
        %v4584 = vsel %vm1927, %v1451, 0
        %v4587 = vsel %vm1927, %v1452, 0
        %v4590 = vsel %vm1927, %v1453, 0
        %v4593 = vsel %vm1927, %v1454, 0
        %v4596 = vsel %vm1927, %v1455, 0
        %v4599 = vsel %vm1927, %v1456, 0
        %v4602 = vsel %vm1927, %v1457, 0
        %v4605 = vsel %vm1927, %v1458, 0
        %v4608 = vsel %vm1927, %v1459, 0
        %v4611 = vsel %vm1927, %v1460, 0
        %v4614 = vsel %vm1927, %v1461, 0
        %v4617 = vsel %vm1927, %v1462, 0
        %v4620 = vsel %vm1927, %v1463, 0
        %v4623 = vsel %vm1927, %v1464, 0
        %v4626 = vsel %vm1927, %v1465, 0
        %v4629 = vsel %vm1927, %v1466, 0
        %v4632 = vsel %vm1927, %v1467, 0
        %v4635 = vsel %vm1927, %v1468, 0
        %v4638 = vsel %vm1927, %v1469, 0
        %v4641 = vsel %vm1927, %v1470, 0
        %v4644 = vsel %vm1927, %v1471, 0
        %v4647 = vsel %vm1927, %v1472, 0
        %v4650 = vsel %vm1927, %v1473, 0
        %v4653 = vsel %vm1927, %v1474, 0
        %v4656 = vsel %vm1927, %v1475, 0
        %v4659 = vsel %vm1927, %v1476, 0
        %v4662 = vsel %vm1927, %v1477, 0
        %v4665 = vsel %vm1927, %v1478, 0
        %v4668 = vsel %vm1927, %v1479, 0
        %v4671 = vsel %vm1927, %v1480, 0
        %v4674 = vsel %vm1927, %v1481, 0
        %v4677 = vsel %vm1927, %v1482, 0
        %v4680 = vsel %vm1927, %v1483, 0
        %v4683 = vsel %vm1927, %v1484, 0
        %v4686 = vsel %vm1927, %v1485, 0
        %v4689 = vsel %vm1927, %v1486, 0
        %v4692 = vsel %vm1927, %v1487, 0
        %v4695 = vsel %vm1927, %v1488, 0
        %v4698 = vsel %vm1927, %v1489, 0
        %v4701 = vsel %vm1927, %v1490, 0
        %v4704 = vsel %vm1927, %v1491, 0
        %v4707 = vsel %vm1927, %v1492, 0
        %v4710 = vsel %vm1927, %v1493, 0
        %v4713 = vsel %vm1927, %v1494, 0
        %v4716 = vsel %vm1927, %v1495, 0
        %v4719 = vsel %vm1927, %v1496, 0
        %v4722 = vsel %vm1927, %v1497, 0
        %v4725 = vsel %vm1927, %v1498, 0
        %v4728 = vsel %vm1927, %v1499, 0
        %v4731 = vsel %vm1927, %v1500, 0
        %v4734 = vsel %vm1927, %v1501, 0
        %v4737 = vsel %vm1927, %v1502, 0
        %v4740 = vsel %vm1927, %v1503, 0
        %v4743 = vsel %vm1927, %v1504, 0
        %v4746 = vsel %vm1927, %v1505, 0
        %v4749 = vsel %vm1927, %v1506, 0
        %v4752 = vsel %vm1927, %v1507, 0
        %v4755 = vsel %vm1927, %v1508, 0
        %v4758 = vsel %vm1927, %v1509, 0
        %v4761 = vsel %vm1927, %v1510, 0
        %v4764 = vsel %vm1927, %v1511, 0
        %v4767 = vsel %vm1927, %v1512, 0
        %v4770 = vsel %vm1927, %v1513, 0
        %v4773 = vsel %vm1927, %v1514, 0
        %v4776 = vsel %vm1927, %v1515, 0
        %v4779 = vsel %vm1927, %v1516, 0
        %v4782 = vsel %vm1927, %v1517, 0
        %v4785 = vsel %vm1927, %v1518, 0
        %v4788 = vsel %vm1927, %v1519, 0
        %v4791 = vsel %vm1927, %v1520, 0
        %v4794 = vsel %vm1927, %v1521, 0
        %v4797 = vsel %vm1927, %v1522, 0
        %v4800 = vsel %vm1927, %v1523, 0
        %v4803 = vsel %vm1927, %v1524, 0
        %v4806 = vsel %vm1927, %v1525, 0
        %v4809 = vsel %vm1927, %v1526, 0
        %v4812 = vsel %vm1927, %v1527, 0
        %v4815 = vsel %vm1927, %v1528, 0
        %v4818 = vsel %vm1927, %v1529, 0
        %v4821 = vsel %vm1927, %v1530, 0
        %v4824 = vsel %vm1927, %v1531, 0
        %v4827 = vsel %vm1927, %v1532, 0
        %v4830 = vsel %vm1927, %v1533, 0
        %v4833 = vsel %vm1927, %v1534, 0
        %v4836 = vsel %vm1927, %v1535, 0
        %v4839 = vsel %vm1927, %v1536, 0
        %v4842 = vsel %vm1927, %v1537, 0
        %v4845 = vsel %vm1927, %v1538, 0
        %v4848 = vsel %vm1927, %v1539, 0
        %v4851 = vsel %vm1927, %v1540, 0
        %v4854 = vsel %vm1927, %v1541, 0
        %v4857 = vsel %vm1927, %v1542, 0
        %v4860 = vsel %vm1927, %v1543, 0
        %v4863 = vsel %vm1927, %v1544, 0
        %v4866 = vsel %vm1927, %v1545, 0
        %v4869 = vsel %vm1927, %v1546, 0
        %v4872 = vsel %vm1927, %v1547, 0
        %v4875 = vsel %vm1927, %v1548, 0
        %v4878 = vsel %vm1927, %v1549, 0
        %v4881 = vsel %vm1927, %v1550, 0
        %v4884 = vsel %vm1927, %v1551, 0
        %v4887 = vsel %vm1927, %v1552, 0
        %v4890 = vsel %vm1927, %v1553, 0
        %v4893 = vsel %vm1927, %v1554, 0
        %v4896 = vsel %vm1927, %v1555, 0
        %v4899 = vsel %vm1927, %v1556, 0
        %v4902 = vsel %vm1927, %v1557, 0
        %v4905 = vsel %vm1927, %v1558, 0
        %v4908 = vsel %vm1927, %v1559, 0
        %v4911 = vsel %vm1927, %v1560, 0
        %v4914 = vsel %vm1927, %v1561, 0
        %v4917 = vsel %vm1927, %v1562, 0
        %v4920 = vsel %vm1927, %v1563, 0
        %v4923 = vsel %vm1927, %v1564, 0
        %v4926 = vsel %vm1927, %v1565, 0
        %v4929 = vsel %vm1927, %v1566, 0
        %v4932 = vsel %vm1927, %v1567, 0
        %v4935 = vsel %vm1927, %v1568, 0
        %v4938 = vsel %vm1927, %v1569, 0
        %v4941 = vsel %vm1927, %v1570, 0
        %v4944 = vsel %vm1927, %v1571, 0
        %v4947 = vsel %vm1927, %v1572, 0
        %v4950 = vsel %vm1927, %v1573, 0
        %v4953 = vsel %vm1927, %v1574, 0
        %v4956 = vsel %vm1927, %v1575, 0
        %v4959 = vsel %vm1927, %v1576, 0
        %v4962 = vsel %vm1927, %v1577, 0
        %v4965 = vsel %vm1927, %v1578, 0
        %v4968 = vsel %vm1927, %v1579, 0
        %v4971 = vsel %vm1927, %v1580, 0
        %v4974 = vsel %vm1927, %v1581, 0
        %v4977 = vsel %vm1927, %v1582, 0
        %v4980 = vsel %vm1927, %v1583, 0
        %v4983 = vsel %vm1927, %v1584, 0
        %v4986 = vsel %vm1927, %v1585, 0
        %v4989 = vsel %vm1927, %v1586, 0
        %v4992 = vsel %vm1927, %v1587, 0
        %v4995 = vsel %vm1927, %v1588, 0
        %v4998 = vsel %vm1927, %v1589, 0
        %v5001 = vsel %vm1927, %v1590, 0
        %5003 = vmatprep.subr.mxu0 0.0
        %5004 = vmatpush1.xpose.msra.mxu0 %v1977
        %5005 = vmatprep.subr.mxu0 0.0
        %5006 = vmatpush1.xpose.msra.mxu0 %v1974
        %5007 = vmatprep.subr.mxu0 0.0
        %5008 = vmatpush1.xpose.msra.mxu0 %v1971
        %5009 = vmatprep.subr.mxu0 0.0
        %5010 = vmatpush1.xpose.msra.mxu0 %v1968
        %5011 = vmatprep.subr.mxu0 0.0
        %5012 = vmatpush1.xpose.msra.mxu0 %v1965
        %5013 = vmatprep.subr.mxu0 0.0
        %5014 = vmatpush1.xpose.msra.mxu0 %v1962
        %5015 = vmatprep.subr.mxu0 0.0
        %5016 = vmatpush1.xpose.msra.mxu0 %v1959
        %5017 = vmatprep.subr.mxu0 0.0
        %5018 = vmatpush1.xpose.msra.mxu0 %v1956
        %5019 = vmatprep.subr.mxu0 0.0
        %5020 = vmatpush1.xpose.msra.mxu0 %v1953
        %5021 = vmatprep.subr.mxu0 0.0
        %5022 = vmatpush1.xpose.msra.mxu0 %v1950
        %5023 = vmatprep.subr.mxu0 0.0
        %5024 = vmatpush1.xpose.msra.mxu0 %v1947
        %5025 = vmatprep.subr.mxu0 0.0
        %5026 = vmatpush1.xpose.msra.mxu0 %v1944
        %5027 = vmatprep.subr.mxu0 0.0
        %5028 = vmatpush1.xpose.msra.mxu0 %v1941
        %5029 = vmatprep.subr.mxu0 0.0
        %5030 = vmatpush1.xpose.msra.mxu0 %v1938
        %5031 = vmatprep.subr.mxu0 0.0
        %5032 = vmatpush1.xpose.msra.mxu0 %v1935
        %5033 = vmatprep.subr.mxu0 0.0
        %5034 = vmatpush1.xpose.msra.mxu0 %v1932
        %5035 = vmatprep.subr.mxu0 0.0
        %5036 = vmatpush2.xpose.msra.mxu0 %v2025
        %5037 = vmatprep.subr.mxu0 0.0
        %5038 = vmatpush2.xpose.msra.mxu0 %v2022
        %5039 = vmatprep.subr.mxu0 0.0
        %5040 = vmatpush2.xpose.msra.mxu0 %v2019
        %5041 = vmatprep.subr.mxu0 0.0
        %5042 = vmatpush2.xpose.msra.mxu0 %v2016
        %5043 = vmatprep.subr.mxu0 0.0
        %5044 = vmatpush2.xpose.msra.mxu0 %v2013
        %5045 = vmatprep.subr.mxu0 0.0
        %5046 = vmatpush2.xpose.msra.mxu0 %v2010
        %5047 = vmatprep.subr.mxu0 0.0
        %5048 = vmatpush2.xpose.msra.mxu0 %v2007
        %5049 = vmatprep.subr.mxu0 0.0
        %5050 = vmatpush2.xpose.msra.mxu0 %v2004
        %5051 = vmatprep.subr.mxu0 0.0
        %5052 = vmatpush2.xpose.msra.mxu0 %v2001
        %5053 = vmatprep.subr.mxu0 0.0
        %5054 = vmatpush2.xpose.msra.mxu0 %v1998
        %5055 = vmatprep.subr.mxu0 0.0
        %5056 = vmatpush2.xpose.msra.mxu0 %v1995
        %5057 = vmatprep.subr.mxu0 0.0
        %5058 = vmatpush2.xpose.msra.mxu0 %v1992
        %5059 = vmatprep.subr.mxu0 0.0
        %5060 = vmatpush2.xpose.msra.mxu0 %v1989
        %5061 = vmatprep.subr.mxu0 0.0
        %5062 = vmatpush2.xpose.msra.mxu0 %v1986
        %5063 = vmatprep.subr.mxu0 0.0
        %5064 = vmatpush2.xpose.msra.mxu0 %v1983
        %5065 = vmatprep.subr.mxu0 0.0
        %5066 = vmatpush2.xpose.msra.mxu0 %v1980
        %5067 = vmatprep.mubr.f32.mxu0 0.0
        %5068 = vmatmul.mubr.f32.gmra.mxu0 %v1929
        %v5069 = vpop.f32.mrf.mxu0
        %v5070 = vadd.f32 %v1610, %v5069
        %v5071 = vpop.f32.mrf.mxu0
        %v5072 = vadd.f32 %v1614, %v5071
        %5073 = vdwg.mxu0
        %5074 = vmatprep.subr.mxu0 0.0
        %5075 = vmatpush1.xpose.msra.mxu0 %v2073
        %5076 = vmatprep.subr.mxu0 0.0
        %5077 = vmatpush1.xpose.msra.mxu0 %v2070
        %5078 = vmatprep.subr.mxu0 0.0
        %5079 = vmatpush1.xpose.msra.mxu0 %v2067
        %5080 = vmatprep.subr.mxu0 0.0
        %5081 = vmatpush1.xpose.msra.mxu0 %v2064
        %5082 = vmatprep.subr.mxu0 0.0
        %5083 = vmatpush1.xpose.msra.mxu0 %v2061
        %5084 = vmatprep.subr.mxu0 0.0
        %5085 = vmatpush1.xpose.msra.mxu0 %v2058
        %5086 = vmatprep.subr.mxu0 0.0
        %5087 = vmatpush1.xpose.msra.mxu0 %v2055
        %5088 = vmatprep.subr.mxu0 0.0
        %5089 = vmatpush1.xpose.msra.mxu0 %v2052
        %5090 = vmatprep.subr.mxu0 0.0
        %5091 = vmatpush1.xpose.msra.mxu0 %v2049
        %5092 = vmatprep.subr.mxu0 0.0
        %5093 = vmatpush1.xpose.msra.mxu0 %v2046
        %5094 = vmatprep.subr.mxu0 0.0
        %5095 = vmatpush1.xpose.msra.mxu0 %v2043
        %5096 = vmatprep.subr.mxu0 0.0
        %5097 = vmatpush1.xpose.msra.mxu0 %v2040
        %5098 = vmatprep.subr.mxu0 0.0
        %5099 = vmatpush1.xpose.msra.mxu0 %v2037
        %5100 = vmatprep.subr.mxu0 0.0
        %5101 = vmatpush1.xpose.msra.mxu0 %v2034
        %5102 = vmatprep.subr.mxu0 0.0
        %5103 = vmatpush1.xpose.msra.mxu0 %v2031
        %5104 = vmatprep.subr.mxu0 0.0
        %5105 = vmatpush1.xpose.msra.mxu0 %v2028
        %5106 = vmatprep.subr.mxu0 0.0
        %5107 = vmatpush2.xpose.msra.mxu0 %v2121
        %5108 = vmatprep.subr.mxu0 0.0
        %5109 = vmatpush2.xpose.msra.mxu0 %v2118
        %5110 = vmatprep.subr.mxu0 0.0
        %5111 = vmatpush2.xpose.msra.mxu0 %v2115
        %5112 = vmatprep.subr.mxu0 0.0
        %5113 = vmatpush2.xpose.msra.mxu0 %v2112
        %5114 = vmatprep.subr.mxu0 0.0
        %5115 = vmatpush2.xpose.msra.mxu0 %v2109
        %5116 = vmatprep.subr.mxu0 0.0
        %5117 = vmatpush2.xpose.msra.mxu0 %v2106
        %5118 = vmatprep.subr.mxu0 0.0
        %5119 = vmatpush2.xpose.msra.mxu0 %v2103
        %5120 = vmatprep.subr.mxu0 0.0
        %5121 = vmatpush2.xpose.msra.mxu0 %v2100
        %5122 = vmatprep.subr.mxu0 0.0
        %5123 = vmatpush2.xpose.msra.mxu0 %v2097
        %5124 = vmatprep.subr.mxu0 0.0
        %5125 = vmatpush2.xpose.msra.mxu0 %v2094
        %5126 = vmatprep.subr.mxu0 0.0
        %5127 = vmatpush2.xpose.msra.mxu0 %v2091
        %5128 = vmatprep.subr.mxu0 0.0
        %5129 = vmatpush2.xpose.msra.mxu0 %v2088
        %5130 = vmatprep.subr.mxu0 0.0
        %5131 = vmatpush2.xpose.msra.mxu0 %v2085
        %5132 = vmatprep.subr.mxu0 0.0
        %5133 = vmatpush2.xpose.msra.mxu0 %v2082
        %5134 = vmatprep.subr.mxu0 0.0
        %5135 = vmatpush2.xpose.msra.mxu0 %v2079
        %5136 = vmatprep.subr.mxu0 0.0
        %5137 = vmatpush2.xpose.msra.mxu0 %v2076
        %5138 = vmatprep.mubr.f32.mxu0 0.0
        %5139 = vmatmul.mubr.f32.gmra.mxu0 %v1929
        %v5140 = vpop.f32.mrf.mxu0
        %v5141 = vadd.f32 %v1618, %v5140
        %v5142 = vpop.f32.mrf.mxu0
        %v5143 = vadd.f32 %v1622, %v5142
        %5144 = vdwg.mxu0
        %5145 = vmatprep.subr.mxu0 0.0
        %5146 = vmatpush1.xpose.msra.mxu0 %v2169
        %5147 = vmatprep.subr.mxu0 0.0
        %5148 = vmatpush1.xpose.msra.mxu0 %v2166
        %5149 = vmatprep.subr.mxu0 0.0
        %5150 = vmatpush1.xpose.msra.mxu0 %v2163
        %5151 = vmatprep.subr.mxu0 0.0
        %5152 = vmatpush1.xpose.msra.mxu0 %v2160
        %5153 = vmatprep.subr.mxu0 0.0
        %5154 = vmatpush1.xpose.msra.mxu0 %v2157
        %5155 = vmatprep.subr.mxu0 0.0
        %5156 = vmatpush1.xpose.msra.mxu0 %v2154
        %5157 = vmatprep.subr.mxu0 0.0
        %5158 = vmatpush1.xpose.msra.mxu0 %v2151
        %5159 = vmatprep.subr.mxu0 0.0
        %5160 = vmatpush1.xpose.msra.mxu0 %v2148
        %5161 = vmatprep.subr.mxu0 0.0
        %5162 = vmatpush1.xpose.msra.mxu0 %v2145
        %5163 = vmatprep.subr.mxu0 0.0
        %5164 = vmatpush1.xpose.msra.mxu0 %v2142
        %5165 = vmatprep.subr.mxu0 0.0
        %5166 = vmatpush1.xpose.msra.mxu0 %v2139
        %5167 = vmatprep.subr.mxu0 0.0
        %5168 = vmatpush1.xpose.msra.mxu0 %v2136
        %5169 = vmatprep.subr.mxu0 0.0
        %5170 = vmatpush1.xpose.msra.mxu0 %v2133
        %5171 = vmatprep.subr.mxu0 0.0
        %5172 = vmatpush1.xpose.msra.mxu0 %v2130
        %5173 = vmatprep.subr.mxu0 0.0
        %5174 = vmatpush1.xpose.msra.mxu0 %v2127
        %5175 = vmatprep.subr.mxu0 0.0
        %5176 = vmatpush1.xpose.msra.mxu0 %v2124
        %5177 = vmatprep.subr.mxu0 0.0
        %5178 = vmatpush2.xpose.msra.mxu0 %v2217
        %5179 = vmatprep.subr.mxu0 0.0
        %5180 = vmatpush2.xpose.msra.mxu0 %v2214
        %5181 = vmatprep.subr.mxu0 0.0
        %5182 = vmatpush2.xpose.msra.mxu0 %v2211
        %5183 = vmatprep.subr.mxu0 0.0
        %5184 = vmatpush2.xpose.msra.mxu0 %v2208
        %5185 = vmatprep.subr.mxu0 0.0
        %5186 = vmatpush2.xpose.msra.mxu0 %v2205
        %5187 = vmatprep.subr.mxu0 0.0
        %5188 = vmatpush2.xpose.msra.mxu0 %v2202
        %5189 = vmatprep.subr.mxu0 0.0
        %5190 = vmatpush2.xpose.msra.mxu0 %v2199
        %5191 = vmatprep.subr.mxu0 0.0
        %5192 = vmatpush2.xpose.msra.mxu0 %v2196
        %5193 = vmatprep.subr.mxu0 0.0
        %5194 = vmatpush2.xpose.msra.mxu0 %v2193
        %5195 = vmatprep.subr.mxu0 0.0
        %5196 = vmatpush2.xpose.msra.mxu0 %v2190
        %5197 = vmatprep.subr.mxu0 0.0
        %5198 = vmatpush2.xpose.msra.mxu0 %v2187
        %5199 = vmatprep.subr.mxu0 0.0
        %5200 = vmatpush2.xpose.msra.mxu0 %v2184
        %5201 = vmatprep.subr.mxu0 0.0
        %5202 = vmatpush2.xpose.msra.mxu0 %v2181
        %5203 = vmatprep.subr.mxu0 0.0
        %5204 = vmatpush2.xpose.msra.mxu0 %v2178
        %5205 = vmatprep.subr.mxu0 0.0
        %5206 = vmatpush2.xpose.msra.mxu0 %v2175
        %5207 = vmatprep.subr.mxu0 0.0
        %5208 = vmatpush2.xpose.msra.mxu0 %v2172
        %5209 = vmatprep.mubr.f32.mxu0 0.0
        %5210 = vmatmul.mubr.f32.gmra.mxu0 %v1929
        %v5211 = vpop.f32.mrf.mxu0
        %v5212 = vadd.f32 %v1626, %v5211
        %v5213 = vpop.f32.mrf.mxu0
        %v5214 = vadd.f32 %v1630, %v5213
        %5215 = vdwg.mxu0
        %5216 = vmatprep.subr.mxu0 0.0
        %5217 = vmatpush1.xpose.msra.mxu0 %v2265
        %5218 = vmatprep.subr.mxu0 0.0
        %5219 = vmatpush1.xpose.msra.mxu0 %v2262
        %5220 = vmatprep.subr.mxu0 0.0
        %5221 = vmatpush1.xpose.msra.mxu0 %v2259
        %5222 = vmatprep.subr.mxu0 0.0
        %5223 = vmatpush1.xpose.msra.mxu0 %v2256
        %5224 = vmatprep.subr.mxu0 0.0
        %5225 = vmatpush1.xpose.msra.mxu0 %v2253
        %5226 = vmatprep.subr.mxu0 0.0
        %5227 = vmatpush1.xpose.msra.mxu0 %v2250
        %5228 = vmatprep.subr.mxu0 0.0
        %5229 = vmatpush1.xpose.msra.mxu0 %v2247
        %5230 = vmatprep.subr.mxu0 0.0
        %5231 = vmatpush1.xpose.msra.mxu0 %v2244
        %5232 = vmatprep.subr.mxu0 0.0
        %5233 = vmatpush1.xpose.msra.mxu0 %v2241
        %5234 = vmatprep.subr.mxu0 0.0
        %5235 = vmatpush1.xpose.msra.mxu0 %v2238
        %5236 = vmatprep.subr.mxu0 0.0
        %5237 = vmatpush1.xpose.msra.mxu0 %v2235
        %5238 = vmatprep.subr.mxu0 0.0
        %5239 = vmatpush1.xpose.msra.mxu0 %v2232
        %5240 = vmatprep.subr.mxu0 0.0
        %5241 = vmatpush1.xpose.msra.mxu0 %v2229
        %5242 = vmatprep.subr.mxu0 0.0
        %5243 = vmatpush1.xpose.msra.mxu0 %v2226
        %5244 = vmatprep.subr.mxu0 0.0
        %5245 = vmatpush1.xpose.msra.mxu0 %v2223
        %5246 = vmatprep.subr.mxu0 0.0
        %5247 = vmatpush1.xpose.msra.mxu0 %v2220
        %5248 = vmatprep.subr.mxu0 0.0
        %5249 = vmatpush2.xpose.msra.mxu0 %v2313
        %5250 = vmatprep.subr.mxu0 0.0
        %5251 = vmatpush2.xpose.msra.mxu0 %v2310
        %5252 = vmatprep.subr.mxu0 0.0
        %5253 = vmatpush2.xpose.msra.mxu0 %v2307
        %5254 = vmatprep.subr.mxu0 0.0
        %5255 = vmatpush2.xpose.msra.mxu0 %v2304
        %5256 = vmatprep.subr.mxu0 0.0
        %5257 = vmatpush2.xpose.msra.mxu0 %v2301
        %5258 = vmatprep.subr.mxu0 0.0
        %5259 = vmatpush2.xpose.msra.mxu0 %v2298
        %5260 = vmatprep.subr.mxu0 0.0
        %5261 = vmatpush2.xpose.msra.mxu0 %v2295
        %5262 = vmatprep.subr.mxu0 0.0
        %5263 = vmatpush2.xpose.msra.mxu0 %v2292
        %5264 = vmatprep.subr.mxu0 0.0
        %5265 = vmatpush2.xpose.msra.mxu0 %v2289
        %5266 = vmatprep.subr.mxu0 0.0
        %5267 = vmatpush2.xpose.msra.mxu0 %v2286
        %5268 = vmatprep.subr.mxu0 0.0
        %5269 = vmatpush2.xpose.msra.mxu0 %v2283
        %5270 = vmatprep.subr.mxu0 0.0
        %5271 = vmatpush2.xpose.msra.mxu0 %v2280
        %5272 = vmatprep.subr.mxu0 0.0
        %5273 = vmatpush2.xpose.msra.mxu0 %v2277
        %5274 = vmatprep.subr.mxu0 0.0
        %5275 = vmatpush2.xpose.msra.mxu0 %v2274
        %5276 = vmatprep.subr.mxu0 0.0
        %5277 = vmatpush2.xpose.msra.mxu0 %v2271
        %5278 = vmatprep.subr.mxu0 0.0
        %5279 = vmatpush2.xpose.msra.mxu0 %v2268
        %5280 = vmatprep.mubr.f32.mxu0 0.0
        %5281 = vmatmul.mubr.f32.gmra.mxu0 %v1929
        %v5282 = vpop.f32.mrf.mxu0
        %v5283 = vadd.f32 %v1634, %v5282
        %v5284 = vpop.f32.mrf.mxu0
        %v5285 = vadd.f32 %v1638, %v5284
        %5286 = vdwg.mxu0
        %5287 = vmatprep.subr.mxu0 0.0
        %5288 = vmatpush1.xpose.msra.mxu0 %v2361
        %5289 = vmatprep.subr.mxu0 0.0
        %5290 = vmatpush1.xpose.msra.mxu0 %v2358
        %5291 = vmatprep.subr.mxu0 0.0
        %5292 = vmatpush1.xpose.msra.mxu0 %v2355
        %5293 = vmatprep.subr.mxu0 0.0
        %5294 = vmatpush1.xpose.msra.mxu0 %v2352
        %5295 = vmatprep.subr.mxu0 0.0
        %5296 = vmatpush1.xpose.msra.mxu0 %v2349
        %5297 = vmatprep.subr.mxu0 0.0
        %5298 = vmatpush1.xpose.msra.mxu0 %v2346
        %5299 = vmatprep.subr.mxu0 0.0
        %5300 = vmatpush1.xpose.msra.mxu0 %v2343
        %5301 = vmatprep.subr.mxu0 0.0
        %5302 = vmatpush1.xpose.msra.mxu0 %v2340
        %5303 = vmatprep.subr.mxu0 0.0
        %5304 = vmatpush1.xpose.msra.mxu0 %v2337
        %5305 = vmatprep.subr.mxu0 0.0
        %5306 = vmatpush1.xpose.msra.mxu0 %v2334
        %5307 = vmatprep.subr.mxu0 0.0
        %5308 = vmatpush1.xpose.msra.mxu0 %v2331
        %5309 = vmatprep.subr.mxu0 0.0
        %5310 = vmatpush1.xpose.msra.mxu0 %v2328
        %5311 = vmatprep.subr.mxu0 0.0
        %5312 = vmatpush1.xpose.msra.mxu0 %v2325
        %5313 = vmatprep.subr.mxu0 0.0
        %5314 = vmatpush1.xpose.msra.mxu0 %v2322
        %5315 = vmatprep.subr.mxu0 0.0
        %5316 = vmatpush1.xpose.msra.mxu0 %v2319
        %5317 = vmatprep.subr.mxu0 0.0
        %5318 = vmatpush1.xpose.msra.mxu0 %v2316
        %5319 = vmatprep.subr.mxu0 0.0
        %5320 = vmatpush2.xpose.msra.mxu0 %v2409
        %5321 = vmatprep.subr.mxu0 0.0
        %5322 = vmatpush2.xpose.msra.mxu0 %v2406
        %5323 = vmatprep.subr.mxu0 0.0
        %5324 = vmatpush2.xpose.msra.mxu0 %v2403
        %5325 = vmatprep.subr.mxu0 0.0
        %5326 = vmatpush2.xpose.msra.mxu0 %v2400
        %5327 = vmatprep.subr.mxu0 0.0
        %5328 = vmatpush2.xpose.msra.mxu0 %v2397
        %5329 = vmatprep.subr.mxu0 0.0
        %5330 = vmatpush2.xpose.msra.mxu0 %v2394
        %5331 = vmatprep.subr.mxu0 0.0
        %5332 = vmatpush2.xpose.msra.mxu0 %v2391
        %5333 = vmatprep.subr.mxu0 0.0
        %5334 = vmatpush2.xpose.msra.mxu0 %v2388
        %5335 = vmatprep.subr.mxu0 0.0
        %5336 = vmatpush2.xpose.msra.mxu0 %v2385
        %5337 = vmatprep.subr.mxu0 0.0
        %5338 = vmatpush2.xpose.msra.mxu0 %v2382
        %5339 = vmatprep.subr.mxu0 0.0
        %5340 = vmatpush2.xpose.msra.mxu0 %v2379
        %5341 = vmatprep.subr.mxu0 0.0
        %5342 = vmatpush2.xpose.msra.mxu0 %v2376
        %5343 = vmatprep.subr.mxu0 0.0
        %5344 = vmatpush2.xpose.msra.mxu0 %v2373
        %5345 = vmatprep.subr.mxu0 0.0
        %5346 = vmatpush2.xpose.msra.mxu0 %v2370
        %5347 = vmatprep.subr.mxu0 0.0
        %5348 = vmatpush2.xpose.msra.mxu0 %v2367
        %5349 = vmatprep.subr.mxu0 0.0
        %5350 = vmatpush2.xpose.msra.mxu0 %v2364
        %5351 = vmatprep.mubr.f32.mxu0 0.0
        %5352 = vmatmul.mubr.f32.gmra.mxu0 %v1929
        %v5353 = vpop.f32.mrf.mxu0
        %v5354 = vadd.f32 %v1642, %v5353
        %v5355 = vpop.f32.mrf.mxu0
        %v5356 = vadd.f32 %v1646, %v5355
        %5357 = vdwg.mxu0
        %5358 = vmatprep.subr.mxu0 0.0
        %5359 = vmatpush1.xpose.msra.mxu0 %v2457
        %5360 = vmatprep.subr.mxu0 0.0
        %5361 = vmatpush1.xpose.msra.mxu0 %v2454
        %5362 = vmatprep.subr.mxu0 0.0
        %5363 = vmatpush1.xpose.msra.mxu0 %v2451
        %5364 = vmatprep.subr.mxu0 0.0
        %5365 = vmatpush1.xpose.msra.mxu0 %v2448
        %5366 = vmatprep.subr.mxu0 0.0
        %5367 = vmatpush1.xpose.msra.mxu0 %v2445
        %5368 = vmatprep.subr.mxu0 0.0
        %5369 = vmatpush1.xpose.msra.mxu0 %v2442
        %5370 = vmatprep.subr.mxu0 0.0
        %5371 = vmatpush1.xpose.msra.mxu0 %v2439
        %5372 = vmatprep.subr.mxu0 0.0
        %5373 = vmatpush1.xpose.msra.mxu0 %v2436
        %5374 = vmatprep.subr.mxu0 0.0
        %5375 = vmatpush1.xpose.msra.mxu0 %v2433
        %5376 = vmatprep.subr.mxu0 0.0
        %5377 = vmatpush1.xpose.msra.mxu0 %v2430
        %5378 = vmatprep.subr.mxu0 0.0
        %5379 = vmatpush1.xpose.msra.mxu0 %v2427
        %5380 = vmatprep.subr.mxu0 0.0
        %5381 = vmatpush1.xpose.msra.mxu0 %v2424
        %5382 = vmatprep.subr.mxu0 0.0
        %5383 = vmatpush1.xpose.msra.mxu0 %v2421
        %5384 = vmatprep.subr.mxu0 0.0
        %5385 = vmatpush1.xpose.msra.mxu0 %v2418
        %5386 = vmatprep.subr.mxu0 0.0
        %5387 = vmatpush1.xpose.msra.mxu0 %v2415
        %5388 = vmatprep.subr.mxu0 0.0
        %5389 = vmatpush1.xpose.msra.mxu0 %v2412
        %5390 = vmatprep.subr.mxu0 0.0
        %5391 = vmatpush2.xpose.msra.mxu0 %v2505
        %5392 = vmatprep.subr.mxu0 0.0
        %5393 = vmatpush2.xpose.msra.mxu0 %v2502
        %5394 = vmatprep.subr.mxu0 0.0
        %5395 = vmatpush2.xpose.msra.mxu0 %v2499
        %5396 = vmatprep.subr.mxu0 0.0
        %5397 = vmatpush2.xpose.msra.mxu0 %v2496
        %5398 = vmatprep.subr.mxu0 0.0
        %5399 = vmatpush2.xpose.msra.mxu0 %v2493
        %5400 = vmatprep.subr.mxu0 0.0
        %5401 = vmatpush2.xpose.msra.mxu0 %v2490
        %5402 = vmatprep.subr.mxu0 0.0
        %5403 = vmatpush2.xpose.msra.mxu0 %v2487
        %5404 = vmatprep.subr.mxu0 0.0
        %5405 = vmatpush2.xpose.msra.mxu0 %v2484
        %5406 = vmatprep.subr.mxu0 0.0
        %5407 = vmatpush2.xpose.msra.mxu0 %v2481
        %5408 = vmatprep.subr.mxu0 0.0
        %5409 = vmatpush2.xpose.msra.mxu0 %v2478
        %5410 = vmatprep.subr.mxu0 0.0
        %5411 = vmatpush2.xpose.msra.mxu0 %v2475
        %5412 = vmatprep.subr.mxu0 0.0
        %5413 = vmatpush2.xpose.msra.mxu0 %v2472
        %5414 = vmatprep.subr.mxu0 0.0
        %5415 = vmatpush2.xpose.msra.mxu0 %v2469
        %5416 = vmatprep.subr.mxu0 0.0
        %5417 = vmatpush2.xpose.msra.mxu0 %v2466
        %5418 = vmatprep.subr.mxu0 0.0
        %5419 = vmatpush2.xpose.msra.mxu0 %v2463
        %5420 = vmatprep.subr.mxu0 0.0
        %5421 = vmatpush2.xpose.msra.mxu0 %v2460
        %5422 = vmatprep.mubr.f32.mxu0 0.0
        %5423 = vmatmul.mubr.f32.gmra.mxu0 %v1929
        %v5424 = vpop.f32.mrf.mxu0
        %v5425 = vadd.f32 %v1650, %v5424
        %v5426 = vpop.f32.mrf.mxu0
        %v5427 = vadd.f32 %v1654, %v5426
        %5428 = vdwg.mxu0
        %5429 = vmatprep.subr.mxu0 0.0
        %5430 = vmatpush1.xpose.msra.mxu0 %v2553
        %5431 = vmatprep.subr.mxu0 0.0
        %5432 = vmatpush1.xpose.msra.mxu0 %v2550
        %5433 = vmatprep.subr.mxu0 0.0
        %5434 = vmatpush1.xpose.msra.mxu0 %v2547
        %5435 = vmatprep.subr.mxu0 0.0
        %5436 = vmatpush1.xpose.msra.mxu0 %v2544
        %5437 = vmatprep.subr.mxu0 0.0
        %5438 = vmatpush1.xpose.msra.mxu0 %v2541
        %5439 = vmatprep.subr.mxu0 0.0
        %5440 = vmatpush1.xpose.msra.mxu0 %v2538
        %5441 = vmatprep.subr.mxu0 0.0
        %5442 = vmatpush1.xpose.msra.mxu0 %v2535
        %5443 = vmatprep.subr.mxu0 0.0
        %5444 = vmatpush1.xpose.msra.mxu0 %v2532
        %5445 = vmatprep.subr.mxu0 0.0
        %5446 = vmatpush1.xpose.msra.mxu0 %v2529
        %5447 = vmatprep.subr.mxu0 0.0
        %5448 = vmatpush1.xpose.msra.mxu0 %v2526
        %5449 = vmatprep.subr.mxu0 0.0
        %5450 = vmatpush1.xpose.msra.mxu0 %v2523
        %5451 = vmatprep.subr.mxu0 0.0
        %5452 = vmatpush1.xpose.msra.mxu0 %v2520
        %5453 = vmatprep.subr.mxu0 0.0
        %5454 = vmatpush1.xpose.msra.mxu0 %v2517
        %5455 = vmatprep.subr.mxu0 0.0
        %5456 = vmatpush1.xpose.msra.mxu0 %v2514
        %5457 = vmatprep.subr.mxu0 0.0
        %5458 = vmatpush1.xpose.msra.mxu0 %v2511
        %5459 = vmatprep.subr.mxu0 0.0
        %5460 = vmatpush1.xpose.msra.mxu0 %v2508
        %5461 = vmatprep.subr.mxu0 0.0
        %5462 = vmatpush2.xpose.msra.mxu0 %v2601
        %5463 = vmatprep.subr.mxu0 0.0
        %5464 = vmatpush2.xpose.msra.mxu0 %v2598
        %5465 = vmatprep.subr.mxu0 0.0
        %5466 = vmatpush2.xpose.msra.mxu0 %v2595
        %5467 = vmatprep.subr.mxu0 0.0
        %5468 = vmatpush2.xpose.msra.mxu0 %v2592
        %5469 = vmatprep.subr.mxu0 0.0
        %5470 = vmatpush2.xpose.msra.mxu0 %v2589
        %5471 = vmatprep.subr.mxu0 0.0
        %5472 = vmatpush2.xpose.msra.mxu0 %v2586
        %5473 = vmatprep.subr.mxu0 0.0
        %5474 = vmatpush2.xpose.msra.mxu0 %v2583
        %5475 = vmatprep.subr.mxu0 0.0
        %5476 = vmatpush2.xpose.msra.mxu0 %v2580
        %5477 = vmatprep.subr.mxu0 0.0
        %5478 = vmatpush2.xpose.msra.mxu0 %v2577
        %5479 = vmatprep.subr.mxu0 0.0
        %5480 = vmatpush2.xpose.msra.mxu0 %v2574
        %5481 = vmatprep.subr.mxu0 0.0
        %5482 = vmatpush2.xpose.msra.mxu0 %v2571
        %5483 = vmatprep.subr.mxu0 0.0
        %5484 = vmatpush2.xpose.msra.mxu0 %v2568
        %5485 = vmatprep.subr.mxu0 0.0
        %5486 = vmatpush2.xpose.msra.mxu0 %v2565
        %5487 = vmatprep.subr.mxu0 0.0
        %5488 = vmatpush2.xpose.msra.mxu0 %v2562
        %5489 = vmatprep.subr.mxu0 0.0
        %5490 = vmatpush2.xpose.msra.mxu0 %v2559
        %5491 = vmatprep.subr.mxu0 0.0
        %5492 = vmatpush2.xpose.msra.mxu0 %v2556
        %5493 = vmatprep.mubr.f32.mxu0 0.0
        %5494 = vmatmul.mubr.f32.gmra.mxu0 %v1929
        %v5495 = vpop.f32.mrf.mxu0
        %v5496 = vadd.f32 %v1658, %v5495
        %v5497 = vpop.f32.mrf.mxu0
        %v5498 = vadd.f32 %v1662, %v5497
        %5499 = vdwg.mxu0
        %5500 = vmatprep.subr.mxu0 0.0
        %5501 = vmatpush1.xpose.msra.mxu0 %v2649
        %5502 = vmatprep.subr.mxu0 0.0
        %5503 = vmatpush1.xpose.msra.mxu0 %v2646
        %5504 = vmatprep.subr.mxu0 0.0
        %5505 = vmatpush1.xpose.msra.mxu0 %v2643
        %5506 = vmatprep.subr.mxu0 0.0
        %5507 = vmatpush1.xpose.msra.mxu0 %v2640
        %5508 = vmatprep.subr.mxu0 0.0
        %5509 = vmatpush1.xpose.msra.mxu0 %v2637
        %5510 = vmatprep.subr.mxu0 0.0
        %5511 = vmatpush1.xpose.msra.mxu0 %v2634
        %5512 = vmatprep.subr.mxu0 0.0
        %5513 = vmatpush1.xpose.msra.mxu0 %v2631
        %5514 = vmatprep.subr.mxu0 0.0
        %5515 = vmatpush1.xpose.msra.mxu0 %v2628
        %5516 = vmatprep.subr.mxu0 0.0
        %5517 = vmatpush1.xpose.msra.mxu0 %v2625
        %5518 = vmatprep.subr.mxu0 0.0
        %5519 = vmatpush1.xpose.msra.mxu0 %v2622
        %5520 = vmatprep.subr.mxu0 0.0
        %5521 = vmatpush1.xpose.msra.mxu0 %v2619
        %5522 = vmatprep.subr.mxu0 0.0
        %5523 = vmatpush1.xpose.msra.mxu0 %v2616
        %5524 = vmatprep.subr.mxu0 0.0
        %5525 = vmatpush1.xpose.msra.mxu0 %v2613
        %5526 = vmatprep.subr.mxu0 0.0
        %5527 = vmatpush1.xpose.msra.mxu0 %v2610
        %5528 = vmatprep.subr.mxu0 0.0
        %5529 = vmatpush1.xpose.msra.mxu0 %v2607
        %5530 = vmatprep.subr.mxu0 0.0
        %5531 = vmatpush1.xpose.msra.mxu0 %v2604
        %5532 = vmatprep.subr.mxu0 0.0
        %5533 = vmatpush2.xpose.msra.mxu0 %v2697
        %5534 = vmatprep.subr.mxu0 0.0
        %5535 = vmatpush2.xpose.msra.mxu0 %v2694
        %5536 = vmatprep.subr.mxu0 0.0
        %5537 = vmatpush2.xpose.msra.mxu0 %v2691
        %5538 = vmatprep.subr.mxu0 0.0
        %5539 = vmatpush2.xpose.msra.mxu0 %v2688
        %5540 = vmatprep.subr.mxu0 0.0
        %5541 = vmatpush2.xpose.msra.mxu0 %v2685
        %5542 = vmatprep.subr.mxu0 0.0
        %5543 = vmatpush2.xpose.msra.mxu0 %v2682
        %5544 = vmatprep.subr.mxu0 0.0
        %5545 = vmatpush2.xpose.msra.mxu0 %v2679
        %5546 = vmatprep.subr.mxu0 0.0
        %5547 = vmatpush2.xpose.msra.mxu0 %v2676
        %5548 = vmatprep.subr.mxu0 0.0
        %5549 = vmatpush2.xpose.msra.mxu0 %v2673
        %5550 = vmatprep.subr.mxu0 0.0
        %5551 = vmatpush2.xpose.msra.mxu0 %v2670
        %5552 = vmatprep.subr.mxu0 0.0
        %5553 = vmatpush2.xpose.msra.mxu0 %v2667
        %5554 = vmatprep.subr.mxu0 0.0
        %5555 = vmatpush2.xpose.msra.mxu0 %v2664
        %5556 = vmatprep.subr.mxu0 0.0
        %5557 = vmatpush2.xpose.msra.mxu0 %v2661
        %5558 = vmatprep.subr.mxu0 0.0
        %5559 = vmatpush2.xpose.msra.mxu0 %v2658
        %5560 = vmatprep.subr.mxu0 0.0
        %5561 = vmatpush2.xpose.msra.mxu0 %v2655
        %5562 = vmatprep.subr.mxu0 0.0
        %5563 = vmatpush2.xpose.msra.mxu0 %v2652
        %5564 = vmatprep.mubr.f32.mxu0 0.0
        %5565 = vmatmul.mubr.f32.gmra.mxu0 %v1929
        %v5566 = vpop.f32.mrf.mxu0
        %v5567 = vadd.f32 %v1666, %v5566
        %v5568 = vpop.f32.mrf.mxu0
        %v5569 = vadd.f32 %v1670, %v5568
        %5570 = vdwg.mxu0
        %5571 = vmatprep.subr.mxu0 0.0
        %5572 = vmatpush1.xpose.msra.mxu0 %v2745
        %5573 = vmatprep.subr.mxu0 0.0
        %5574 = vmatpush1.xpose.msra.mxu0 %v2742
        %5575 = vmatprep.subr.mxu0 0.0
        %5576 = vmatpush1.xpose.msra.mxu0 %v2739
        %5577 = vmatprep.subr.mxu0 0.0
        %5578 = vmatpush1.xpose.msra.mxu0 %v2736
        %5579 = vmatprep.subr.mxu0 0.0
        %5580 = vmatpush1.xpose.msra.mxu0 %v2733
        %5581 = vmatprep.subr.mxu0 0.0
        %5582 = vmatpush1.xpose.msra.mxu0 %v2730
        %5583 = vmatprep.subr.mxu0 0.0
        %5584 = vmatpush1.xpose.msra.mxu0 %v2727
        %5585 = vmatprep.subr.mxu0 0.0
        %5586 = vmatpush1.xpose.msra.mxu0 %v2724
        %5587 = vmatprep.subr.mxu0 0.0
        %5588 = vmatpush1.xpose.msra.mxu0 %v2721
        %5589 = vmatprep.subr.mxu0 0.0
        %5590 = vmatpush1.xpose.msra.mxu0 %v2718
        %5591 = vmatprep.subr.mxu0 0.0
        %5592 = vmatpush1.xpose.msra.mxu0 %v2715
        %5593 = vmatprep.subr.mxu0 0.0
        %5594 = vmatpush1.xpose.msra.mxu0 %v2712
        %5595 = vmatprep.subr.mxu0 0.0
        %5596 = vmatpush1.xpose.msra.mxu0 %v2709
        %5597 = vmatprep.subr.mxu0 0.0
        %5598 = vmatpush1.xpose.msra.mxu0 %v2706
        %5599 = vmatprep.subr.mxu0 0.0
        %5600 = vmatpush1.xpose.msra.mxu0 %v2703
        %5601 = vmatprep.subr.mxu0 0.0
        %5602 = vmatpush1.xpose.msra.mxu0 %v2700
        %5603 = vmatprep.subr.mxu0 0.0
        %5604 = vmatpush2.xpose.msra.mxu0 %v2793
        %5605 = vmatprep.subr.mxu0 0.0
        %5606 = vmatpush2.xpose.msra.mxu0 %v2790
        %5607 = vmatprep.subr.mxu0 0.0
        %5608 = vmatpush2.xpose.msra.mxu0 %v2787
        %5609 = vmatprep.subr.mxu0 0.0
        %5610 = vmatpush2.xpose.msra.mxu0 %v2784
        %5611 = vmatprep.subr.mxu0 0.0
        %5612 = vmatpush2.xpose.msra.mxu0 %v2781
        %5613 = vmatprep.subr.mxu0 0.0
        %5614 = vmatpush2.xpose.msra.mxu0 %v2778
        %5615 = vmatprep.subr.mxu0 0.0
        %5616 = vmatpush2.xpose.msra.mxu0 %v2775
        %5617 = vmatprep.subr.mxu0 0.0
        %5618 = vmatpush2.xpose.msra.mxu0 %v2772
        %5619 = vmatprep.subr.mxu0 0.0
        %5620 = vmatpush2.xpose.msra.mxu0 %v2769
        %5621 = vmatprep.subr.mxu0 0.0
        %5622 = vmatpush2.xpose.msra.mxu0 %v2766
        %5623 = vmatprep.subr.mxu0 0.0
        %5624 = vmatpush2.xpose.msra.mxu0 %v2763
        %5625 = vmatprep.subr.mxu0 0.0
        %5626 = vmatpush2.xpose.msra.mxu0 %v2760
        %5627 = vmatprep.subr.mxu0 0.0
        %5628 = vmatpush2.xpose.msra.mxu0 %v2757
        %5629 = vmatprep.subr.mxu0 0.0
        %5630 = vmatpush2.xpose.msra.mxu0 %v2754
        %5631 = vmatprep.subr.mxu0 0.0
        %5632 = vmatpush2.xpose.msra.mxu0 %v2751
        %5633 = vmatprep.subr.mxu0 0.0
        %5634 = vmatpush2.xpose.msra.mxu0 %v2748
        %5635 = vmatprep.mubr.f32.mxu0 0.0
        %5636 = vmatmul.mubr.f32.gmra.mxu0 %v1929
        %v5637 = vpop.f32.mrf.mxu0
        %v5638 = vadd.f32 %v1674, %v5637
        %v5639 = vpop.f32.mrf.mxu0
        %v5640 = vadd.f32 %v1678, %v5639
        %5641 = vdwg.mxu0
        %5642 = vmatprep.subr.mxu0 0.0
        %5643 = vmatpush1.xpose.msra.mxu0 %v2841
        %5644 = vmatprep.subr.mxu0 0.0
        %5645 = vmatpush1.xpose.msra.mxu0 %v2838
        %5646 = vmatprep.subr.mxu0 0.0
        %5647 = vmatpush1.xpose.msra.mxu0 %v2835
        %5648 = vmatprep.subr.mxu0 0.0
        %5649 = vmatpush1.xpose.msra.mxu0 %v2832
        %5650 = vmatprep.subr.mxu0 0.0
        %5651 = vmatpush1.xpose.msra.mxu0 %v2829
        %5652 = vmatprep.subr.mxu0 0.0
        %5653 = vmatpush1.xpose.msra.mxu0 %v2826
        %5654 = vmatprep.subr.mxu0 0.0
        %5655 = vmatpush1.xpose.msra.mxu0 %v2823
        %5656 = vmatprep.subr.mxu0 0.0
        %5657 = vmatpush1.xpose.msra.mxu0 %v2820
        %5658 = vmatprep.subr.mxu0 0.0
        %5659 = vmatpush1.xpose.msra.mxu0 %v2817
        %5660 = vmatprep.subr.mxu0 0.0
        %5661 = vmatpush1.xpose.msra.mxu0 %v2814
        %5662 = vmatprep.subr.mxu0 0.0
        %5663 = vmatpush1.xpose.msra.mxu0 %v2811
        %5664 = vmatprep.subr.mxu0 0.0
        %5665 = vmatpush1.xpose.msra.mxu0 %v2808
        %5666 = vmatprep.subr.mxu0 0.0
        %5667 = vmatpush1.xpose.msra.mxu0 %v2805
        %5668 = vmatprep.subr.mxu0 0.0
        %5669 = vmatpush1.xpose.msra.mxu0 %v2802
        %5670 = vmatprep.subr.mxu0 0.0
        %5671 = vmatpush1.xpose.msra.mxu0 %v2799
        %5672 = vmatprep.subr.mxu0 0.0
        %5673 = vmatpush1.xpose.msra.mxu0 %v2796
        %5674 = vmatprep.subr.mxu0 0.0
        %5675 = vmatpush2.xpose.msra.mxu0 %v2889
        %5676 = vmatprep.subr.mxu0 0.0
        %5677 = vmatpush2.xpose.msra.mxu0 %v2886
        %5678 = vmatprep.subr.mxu0 0.0
        %5679 = vmatpush2.xpose.msra.mxu0 %v2883
        %5680 = vmatprep.subr.mxu0 0.0
        %5681 = vmatpush2.xpose.msra.mxu0 %v2880
        %5682 = vmatprep.subr.mxu0 0.0
        %5683 = vmatpush2.xpose.msra.mxu0 %v2877
        %5684 = vmatprep.subr.mxu0 0.0
        %5685 = vmatpush2.xpose.msra.mxu0 %v2874
        %5686 = vmatprep.subr.mxu0 0.0
        %5687 = vmatpush2.xpose.msra.mxu0 %v2871
        %5688 = vmatprep.subr.mxu0 0.0
        %5689 = vmatpush2.xpose.msra.mxu0 %v2868
        %5690 = vmatprep.subr.mxu0 0.0
        %5691 = vmatpush2.xpose.msra.mxu0 %v2865
        %5692 = vmatprep.subr.mxu0 0.0
        %5693 = vmatpush2.xpose.msra.mxu0 %v2862
        %5694 = vmatprep.subr.mxu0 0.0
        %5695 = vmatpush2.xpose.msra.mxu0 %v2859
        %5696 = vmatprep.subr.mxu0 0.0
        %5697 = vmatpush2.xpose.msra.mxu0 %v2856
        %5698 = vmatprep.subr.mxu0 0.0
        %5699 = vmatpush2.xpose.msra.mxu0 %v2853
        %5700 = vmatprep.subr.mxu0 0.0
        %5701 = vmatpush2.xpose.msra.mxu0 %v2850
        %5702 = vmatprep.subr.mxu0 0.0
        %5703 = vmatpush2.xpose.msra.mxu0 %v2847
        %5704 = vmatprep.subr.mxu0 0.0
        %5705 = vmatpush2.xpose.msra.mxu0 %v2844
        %5706 = vmatprep.mubr.f32.mxu0 0.0
        %5707 = vmatmul.mubr.f32.gmra.mxu0 %v1929
        %v5708 = vpop.f32.mrf.mxu0
        %v5709 = vadd.f32 %v1682, %v5708
        %v5710 = vpop.f32.mrf.mxu0
        %v5711 = vadd.f32 %v1686, %v5710
        %5712 = vdwg.mxu0
        %5713 = vmatprep.subr.mxu0 0.0
        %5714 = vmatpush1.xpose.msra.mxu0 %v2937
        %5715 = vmatprep.subr.mxu0 0.0
        %5716 = vmatpush1.xpose.msra.mxu0 %v2934
        %5717 = vmatprep.subr.mxu0 0.0
        %5718 = vmatpush1.xpose.msra.mxu0 %v2931
        %5719 = vmatprep.subr.mxu0 0.0
        %5720 = vmatpush1.xpose.msra.mxu0 %v2928
        %5721 = vmatprep.subr.mxu0 0.0
        %5722 = vmatpush1.xpose.msra.mxu0 %v2925
        %5723 = vmatprep.subr.mxu0 0.0
        %5724 = vmatpush1.xpose.msra.mxu0 %v2922
        %5725 = vmatprep.subr.mxu0 0.0
        %5726 = vmatpush1.xpose.msra.mxu0 %v2919
        %5727 = vmatprep.subr.mxu0 0.0
        %5728 = vmatpush1.xpose.msra.mxu0 %v2916
        %5729 = vmatprep.subr.mxu0 0.0
        %5730 = vmatpush1.xpose.msra.mxu0 %v2913
        %5731 = vmatprep.subr.mxu0 0.0
        %5732 = vmatpush1.xpose.msra.mxu0 %v2910
        %5733 = vmatprep.subr.mxu0 0.0
        %5734 = vmatpush1.xpose.msra.mxu0 %v2907
        %5735 = vmatprep.subr.mxu0 0.0
        %5736 = vmatpush1.xpose.msra.mxu0 %v2904
        %5737 = vmatprep.subr.mxu0 0.0
        %5738 = vmatpush1.xpose.msra.mxu0 %v2901
        %5739 = vmatprep.subr.mxu0 0.0
        %5740 = vmatpush1.xpose.msra.mxu0 %v2898
        %5741 = vmatprep.subr.mxu0 0.0
        %5742 = vmatpush1.xpose.msra.mxu0 %v2895
        %5743 = vmatprep.subr.mxu0 0.0
        %5744 = vmatpush1.xpose.msra.mxu0 %v2892
        %5745 = vmatprep.subr.mxu0 0.0
        %5746 = vmatpush2.xpose.msra.mxu0 %v2985
        %5747 = vmatprep.subr.mxu0 0.0
        %5748 = vmatpush2.xpose.msra.mxu0 %v2982
        %5749 = vmatprep.subr.mxu0 0.0
        %5750 = vmatpush2.xpose.msra.mxu0 %v2979
        %5751 = vmatprep.subr.mxu0 0.0
        %5752 = vmatpush2.xpose.msra.mxu0 %v2976
        %5753 = vmatprep.subr.mxu0 0.0
        %5754 = vmatpush2.xpose.msra.mxu0 %v2973
        %5755 = vmatprep.subr.mxu0 0.0
        %5756 = vmatpush2.xpose.msra.mxu0 %v2970
        %5757 = vmatprep.subr.mxu0 0.0
        %5758 = vmatpush2.xpose.msra.mxu0 %v2967
        %5759 = vmatprep.subr.mxu0 0.0
        %5760 = vmatpush2.xpose.msra.mxu0 %v2964
        %5761 = vmatprep.subr.mxu0 0.0
        %5762 = vmatpush2.xpose.msra.mxu0 %v2961
        %5763 = vmatprep.subr.mxu0 0.0
        %5764 = vmatpush2.xpose.msra.mxu0 %v2958
        %5765 = vmatprep.subr.mxu0 0.0
        %5766 = vmatpush2.xpose.msra.mxu0 %v2955
        %5767 = vmatprep.subr.mxu0 0.0
        %5768 = vmatpush2.xpose.msra.mxu0 %v2952
        %5769 = vmatprep.subr.mxu0 0.0
        %5770 = vmatpush2.xpose.msra.mxu0 %v2949
        %5771 = vmatprep.subr.mxu0 0.0
        %5772 = vmatpush2.xpose.msra.mxu0 %v2946
        %5773 = vmatprep.subr.mxu0 0.0
        %5774 = vmatpush2.xpose.msra.mxu0 %v2943
        %5775 = vmatprep.subr.mxu0 0.0
        %5776 = vmatpush2.xpose.msra.mxu0 %v2940
        %5777 = vmatprep.mubr.f32.mxu0 0.0
        %5778 = vmatmul.mubr.f32.gmra.mxu0 %v1929
        %v5779 = vpop.f32.mrf.mxu0
        %v5780 = vadd.f32 %v1690, %v5779
        %v5781 = vpop.f32.mrf.mxu0
        %v5782 = vadd.f32 %v1694, %v5781
        %5783 = vdwg.mxu0
        %5784 = vmatprep.subr.mxu0 0.0
        %5785 = vmatpush1.xpose.msra.mxu0 %v3033
        %5786 = vmatprep.subr.mxu0 0.0
        %5787 = vmatpush1.xpose.msra.mxu0 %v3030
        %5788 = vmatprep.subr.mxu0 0.0
        %5789 = vmatpush1.xpose.msra.mxu0 %v3027
        %5790 = vmatprep.subr.mxu0 0.0
        %5791 = vmatpush1.xpose.msra.mxu0 %v3024
        %5792 = vmatprep.subr.mxu0 0.0
        %5793 = vmatpush1.xpose.msra.mxu0 %v3021
        %5794 = vmatprep.subr.mxu0 0.0
        %5795 = vmatpush1.xpose.msra.mxu0 %v3018
        %5796 = vmatprep.subr.mxu0 0.0
        %5797 = vmatpush1.xpose.msra.mxu0 %v3015
        %5798 = vmatprep.subr.mxu0 0.0
        %5799 = vmatpush1.xpose.msra.mxu0 %v3012
        %5800 = vmatprep.subr.mxu0 0.0
        %5801 = vmatpush1.xpose.msra.mxu0 %v3009
        %5802 = vmatprep.subr.mxu0 0.0
        %5803 = vmatpush1.xpose.msra.mxu0 %v3006
        %5804 = vmatprep.subr.mxu0 0.0
        %5805 = vmatpush1.xpose.msra.mxu0 %v3003
        %5806 = vmatprep.subr.mxu0 0.0
        %5807 = vmatpush1.xpose.msra.mxu0 %v3000
        %5808 = vmatprep.subr.mxu0 0.0
        %5809 = vmatpush1.xpose.msra.mxu0 %v2997
        %5810 = vmatprep.subr.mxu0 0.0
        %5811 = vmatpush1.xpose.msra.mxu0 %v2994
        %5812 = vmatprep.subr.mxu0 0.0
        %5813 = vmatpush1.xpose.msra.mxu0 %v2991
        %5814 = vmatprep.subr.mxu0 0.0
        %5815 = vmatpush1.xpose.msra.mxu0 %v2988
        %5816 = vmatprep.subr.mxu0 0.0
        %5817 = vmatpush2.xpose.msra.mxu0 %v3081
        %5818 = vmatprep.subr.mxu0 0.0
        %5819 = vmatpush2.xpose.msra.mxu0 %v3078
        %5820 = vmatprep.subr.mxu0 0.0
        %5821 = vmatpush2.xpose.msra.mxu0 %v3075
        %5822 = vmatprep.subr.mxu0 0.0
        %5823 = vmatpush2.xpose.msra.mxu0 %v3072
        %5824 = vmatprep.subr.mxu0 0.0
        %5825 = vmatpush2.xpose.msra.mxu0 %v3069
        %5826 = vmatprep.subr.mxu0 0.0
        %5827 = vmatpush2.xpose.msra.mxu0 %v3066
        %5828 = vmatprep.subr.mxu0 0.0
        %5829 = vmatpush2.xpose.msra.mxu0 %v3063
        %5830 = vmatprep.subr.mxu0 0.0
        %5831 = vmatpush2.xpose.msra.mxu0 %v3060
        %5832 = vmatprep.subr.mxu0 0.0
        %5833 = vmatpush2.xpose.msra.mxu0 %v3057
        %5834 = vmatprep.subr.mxu0 0.0
        %5835 = vmatpush2.xpose.msra.mxu0 %v3054
        %5836 = vmatprep.subr.mxu0 0.0
        %5837 = vmatpush2.xpose.msra.mxu0 %v3051
        %5838 = vmatprep.subr.mxu0 0.0
        %5839 = vmatpush2.xpose.msra.mxu0 %v3048
        %5840 = vmatprep.subr.mxu0 0.0
        %5841 = vmatpush2.xpose.msra.mxu0 %v3045
        %5842 = vmatprep.subr.mxu0 0.0
        %5843 = vmatpush2.xpose.msra.mxu0 %v3042
        %5844 = vmatprep.subr.mxu0 0.0
        %5845 = vmatpush2.xpose.msra.mxu0 %v3039
        %5846 = vmatprep.subr.mxu0 0.0
        %5847 = vmatpush2.xpose.msra.mxu0 %v3036
        %5848 = vmatprep.mubr.f32.mxu0 0.0
        %5849 = vmatmul.mubr.f32.gmra.mxu0 %v1929
        %v5850 = vpop.f32.mrf.mxu0
        %v5851 = vadd.f32 %v1698, %v5850
        %v5852 = vpop.f32.mrf.mxu0
        %v5853 = vadd.f32 %v1702, %v5852
        %5854 = vdwg.mxu0
        %5855 = vmatprep.subr.mxu0 0.0
        %5856 = vmatpush1.xpose.msra.mxu0 %v3129
        %5857 = vmatprep.subr.mxu0 0.0
        %5858 = vmatpush1.xpose.msra.mxu0 %v3126
        %5859 = vmatprep.subr.mxu0 0.0
        %5860 = vmatpush1.xpose.msra.mxu0 %v3123
        %5861 = vmatprep.subr.mxu0 0.0
        %5862 = vmatpush1.xpose.msra.mxu0 %v3120
        %5863 = vmatprep.subr.mxu0 0.0
        %5864 = vmatpush1.xpose.msra.mxu0 %v3117
        %5865 = vmatprep.subr.mxu0 0.0
        %5866 = vmatpush1.xpose.msra.mxu0 %v3114
        %5867 = vmatprep.subr.mxu0 0.0
        %5868 = vmatpush1.xpose.msra.mxu0 %v3111
        %5869 = vmatprep.subr.mxu0 0.0
        %5870 = vmatpush1.xpose.msra.mxu0 %v3108
        %5871 = vmatprep.subr.mxu0 0.0
        %5872 = vmatpush1.xpose.msra.mxu0 %v3105
        %5873 = vmatprep.subr.mxu0 0.0
        %5874 = vmatpush1.xpose.msra.mxu0 %v3102
        %5875 = vmatprep.subr.mxu0 0.0
        %5876 = vmatpush1.xpose.msra.mxu0 %v3099
        %5877 = vmatprep.subr.mxu0 0.0
        %5878 = vmatpush1.xpose.msra.mxu0 %v3096
        %5879 = vmatprep.subr.mxu0 0.0
        %5880 = vmatpush1.xpose.msra.mxu0 %v3093
        %5881 = vmatprep.subr.mxu0 0.0
        %5882 = vmatpush1.xpose.msra.mxu0 %v3090
        %5883 = vmatprep.subr.mxu0 0.0
        %5884 = vmatpush1.xpose.msra.mxu0 %v3087
        %5885 = vmatprep.subr.mxu0 0.0
        %5886 = vmatpush1.xpose.msra.mxu0 %v3084
        %5887 = vmatprep.subr.mxu0 0.0
        %5888 = vmatpush2.xpose.msra.mxu0 %v3177
        %5889 = vmatprep.subr.mxu0 0.0
        %5890 = vmatpush2.xpose.msra.mxu0 %v3174
        %5891 = vmatprep.subr.mxu0 0.0
        %5892 = vmatpush2.xpose.msra.mxu0 %v3171
        %5893 = vmatprep.subr.mxu0 0.0
        %5894 = vmatpush2.xpose.msra.mxu0 %v3168
        %5895 = vmatprep.subr.mxu0 0.0
        %5896 = vmatpush2.xpose.msra.mxu0 %v3165
        %5897 = vmatprep.subr.mxu0 0.0
        %5898 = vmatpush2.xpose.msra.mxu0 %v3162
        %5899 = vmatprep.subr.mxu0 0.0
        %5900 = vmatpush2.xpose.msra.mxu0 %v3159
        %5901 = vmatprep.subr.mxu0 0.0
        %5902 = vmatpush2.xpose.msra.mxu0 %v3156
        %5903 = vmatprep.subr.mxu0 0.0
        %5904 = vmatpush2.xpose.msra.mxu0 %v3153
        %5905 = vmatprep.subr.mxu0 0.0
        %5906 = vmatpush2.xpose.msra.mxu0 %v3150
        %5907 = vmatprep.subr.mxu0 0.0
        %5908 = vmatpush2.xpose.msra.mxu0 %v3147
        %5909 = vmatprep.subr.mxu0 0.0
        %5910 = vmatpush2.xpose.msra.mxu0 %v3144
        %5911 = vmatprep.subr.mxu0 0.0
        %5912 = vmatpush2.xpose.msra.mxu0 %v3141
        %5913 = vmatprep.subr.mxu0 0.0
        %5914 = vmatpush2.xpose.msra.mxu0 %v3138
        %5915 = vmatprep.subr.mxu0 0.0
        %5916 = vmatpush2.xpose.msra.mxu0 %v3135
        %5917 = vmatprep.subr.mxu0 0.0
        %5918 = vmatpush2.xpose.msra.mxu0 %v3132
        %5919 = vmatprep.mubr.f32.mxu0 0.0
        %5920 = vmatmul.mubr.f32.gmra.mxu0 %v1929
        %v5921 = vpop.f32.mrf.mxu0
        %v5922 = vadd.f32 %v1706, %v5921
        %v5923 = vpop.f32.mrf.mxu0
        %v5924 = vadd.f32 %v1710, %v5923
        %5925 = vdwg.mxu0
        %5926 = vmatprep.subr.mxu0 0.0
        %5927 = vmatpush1.xpose.msra.mxu0 %v3225
        %5928 = vmatprep.subr.mxu0 0.0
        %5929 = vmatpush1.xpose.msra.mxu0 %v3222
        %5930 = vmatprep.subr.mxu0 0.0
        %5931 = vmatpush1.xpose.msra.mxu0 %v3219
        %5932 = vmatprep.subr.mxu0 0.0
        %5933 = vmatpush1.xpose.msra.mxu0 %v3216
        %5934 = vmatprep.subr.mxu0 0.0
        %5935 = vmatpush1.xpose.msra.mxu0 %v3213
        %5936 = vmatprep.subr.mxu0 0.0
        %5937 = vmatpush1.xpose.msra.mxu0 %v3210
        %5938 = vmatprep.subr.mxu0 0.0
        %5939 = vmatpush1.xpose.msra.mxu0 %v3207
        %5940 = vmatprep.subr.mxu0 0.0
        %5941 = vmatpush1.xpose.msra.mxu0 %v3204
        %5942 = vmatprep.subr.mxu0 0.0
        %5943 = vmatpush1.xpose.msra.mxu0 %v3201
        %5944 = vmatprep.subr.mxu0 0.0
        %5945 = vmatpush1.xpose.msra.mxu0 %v3198
        %5946 = vmatprep.subr.mxu0 0.0
        %5947 = vmatpush1.xpose.msra.mxu0 %v3195
        %5948 = vmatprep.subr.mxu0 0.0
        %5949 = vmatpush1.xpose.msra.mxu0 %v3192
        %5950 = vmatprep.subr.mxu0 0.0
        %5951 = vmatpush1.xpose.msra.mxu0 %v3189
        %5952 = vmatprep.subr.mxu0 0.0
        %5953 = vmatpush1.xpose.msra.mxu0 %v3186
        %5954 = vmatprep.subr.mxu0 0.0
        %5955 = vmatpush1.xpose.msra.mxu0 %v3183
        %5956 = vmatprep.subr.mxu0 0.0
        %5957 = vmatpush1.xpose.msra.mxu0 %v3180
        %5958 = vmatprep.subr.mxu0 0.0
        %5959 = vmatpush2.xpose.msra.mxu0 %v3273
        %5960 = vmatprep.subr.mxu0 0.0
        %5961 = vmatpush2.xpose.msra.mxu0 %v3270
        %5962 = vmatprep.subr.mxu0 0.0
        %5963 = vmatpush2.xpose.msra.mxu0 %v3267
        %5964 = vmatprep.subr.mxu0 0.0
        %5965 = vmatpush2.xpose.msra.mxu0 %v3264
        %5966 = vmatprep.subr.mxu0 0.0
        %5967 = vmatpush2.xpose.msra.mxu0 %v3261
        %5968 = vmatprep.subr.mxu0 0.0
        %5969 = vmatpush2.xpose.msra.mxu0 %v3258
        %5970 = vmatprep.subr.mxu0 0.0
        %5971 = vmatpush2.xpose.msra.mxu0 %v3255
        %5972 = vmatprep.subr.mxu0 0.0
        %5973 = vmatpush2.xpose.msra.mxu0 %v3252
        %5974 = vmatprep.subr.mxu0 0.0
        %5975 = vmatpush2.xpose.msra.mxu0 %v3249
        %5976 = vmatprep.subr.mxu0 0.0
        %5977 = vmatpush2.xpose.msra.mxu0 %v3246
        %5978 = vmatprep.subr.mxu0 0.0
        %5979 = vmatpush2.xpose.msra.mxu0 %v3243
        %5980 = vmatprep.subr.mxu0 0.0
        %5981 = vmatpush2.xpose.msra.mxu0 %v3240
        %5982 = vmatprep.subr.mxu0 0.0
        %5983 = vmatpush2.xpose.msra.mxu0 %v3237
        %5984 = vmatprep.subr.mxu0 0.0
        %5985 = vmatpush2.xpose.msra.mxu0 %v3234
        %5986 = vmatprep.subr.mxu0 0.0
        %5987 = vmatpush2.xpose.msra.mxu0 %v3231
        %5988 = vmatprep.subr.mxu0 0.0
        %5989 = vmatpush2.xpose.msra.mxu0 %v3228
        %5990 = vmatprep.mubr.f32.mxu0 0.0
        %5991 = vmatmul.mubr.f32.gmra.mxu0 %v1929
        %v5992 = vpop.f32.mrf.mxu0
        %v5993 = vadd.f32 %v1714, %v5992
        %v5994 = vpop.f32.mrf.mxu0
        %v5995 = vadd.f32 %v1718, %v5994
        %5996 = vdwg.mxu0
        %5997 = vmatprep.subr.mxu0 0.0
        %5998 = vmatpush1.xpose.msra.mxu0 %v3321
        %5999 = vmatprep.subr.mxu0 0.0
        %6000 = vmatpush1.xpose.msra.mxu0 %v3318
        %6001 = vmatprep.subr.mxu0 0.0
        %6002 = vmatpush1.xpose.msra.mxu0 %v3315
        %6003 = vmatprep.subr.mxu0 0.0
        %6004 = vmatpush1.xpose.msra.mxu0 %v3312
        %6005 = vmatprep.subr.mxu0 0.0
        %6006 = vmatpush1.xpose.msra.mxu0 %v3309
        %6007 = vmatprep.subr.mxu0 0.0
        %6008 = vmatpush1.xpose.msra.mxu0 %v3306
        %6009 = vmatprep.subr.mxu0 0.0
        %6010 = vmatpush1.xpose.msra.mxu0 %v3303
        %6011 = vmatprep.subr.mxu0 0.0
        %6012 = vmatpush1.xpose.msra.mxu0 %v3300
        %6013 = vmatprep.subr.mxu0 0.0
        %6014 = vmatpush1.xpose.msra.mxu0 %v3297
        %6015 = vmatprep.subr.mxu0 0.0
        %6016 = vmatpush1.xpose.msra.mxu0 %v3294
        %6017 = vmatprep.subr.mxu0 0.0
        %6018 = vmatpush1.xpose.msra.mxu0 %v3291
        %6019 = vmatprep.subr.mxu0 0.0
        %6020 = vmatpush1.xpose.msra.mxu0 %v3288
        %6021 = vmatprep.subr.mxu0 0.0
        %6022 = vmatpush1.xpose.msra.mxu0 %v3285
        %6023 = vmatprep.subr.mxu0 0.0
        %6024 = vmatpush1.xpose.msra.mxu0 %v3282
        %6025 = vmatprep.subr.mxu0 0.0
        %6026 = vmatpush1.xpose.msra.mxu0 %v3279
        %6027 = vmatprep.subr.mxu0 0.0
        %6028 = vmatpush1.xpose.msra.mxu0 %v3276
        %6029 = vmatprep.subr.mxu0 0.0
        %6030 = vmatpush2.xpose.msra.mxu0 %v3369
        %6031 = vmatprep.subr.mxu0 0.0
        %6032 = vmatpush2.xpose.msra.mxu0 %v3366
        %6033 = vmatprep.subr.mxu0 0.0
        %6034 = vmatpush2.xpose.msra.mxu0 %v3363
        %6035 = vmatprep.subr.mxu0 0.0
        %6036 = vmatpush2.xpose.msra.mxu0 %v3360
        %6037 = vmatprep.subr.mxu0 0.0
        %6038 = vmatpush2.xpose.msra.mxu0 %v3357
        %6039 = vmatprep.subr.mxu0 0.0
        %6040 = vmatpush2.xpose.msra.mxu0 %v3354
        %6041 = vmatprep.subr.mxu0 0.0
        %6042 = vmatpush2.xpose.msra.mxu0 %v3351
        %6043 = vmatprep.subr.mxu0 0.0
        %6044 = vmatpush2.xpose.msra.mxu0 %v3348
        %6045 = vmatprep.subr.mxu0 0.0
        %6046 = vmatpush2.xpose.msra.mxu0 %v3345
        %6047 = vmatprep.subr.mxu0 0.0
        %6048 = vmatpush2.xpose.msra.mxu0 %v3342
        %6049 = vmatprep.subr.mxu0 0.0
        %6050 = vmatpush2.xpose.msra.mxu0 %v3339
        %6051 = vmatprep.subr.mxu0 0.0
        %6052 = vmatpush2.xpose.msra.mxu0 %v3336
        %6053 = vmatprep.subr.mxu0 0.0
        %6054 = vmatpush2.xpose.msra.mxu0 %v3333
        %6055 = vmatprep.subr.mxu0 0.0
        %6056 = vmatpush2.xpose.msra.mxu0 %v3330
        %6057 = vmatprep.subr.mxu0 0.0
        %6058 = vmatpush2.xpose.msra.mxu0 %v3327
        %6059 = vmatprep.subr.mxu0 0.0
        %6060 = vmatpush2.xpose.msra.mxu0 %v3324
        %6061 = vmatprep.mubr.f32.mxu0 0.0
        %6062 = vmatmul.mubr.f32.gmra.mxu0 %v1929
        %v6063 = vpop.f32.mrf.mxu0
        %v6064 = vadd.f32 %v1722, %v6063
        %v6065 = vpop.f32.mrf.mxu0
        %v6066 = vadd.f32 %v1726, %v6065
        %6067 = vdwg.mxu0
        %6068 = vmatprep.subr.mxu0 0.0
        %6069 = vmatpush1.xpose.msra.mxu0 %v3417
        %6070 = vmatprep.subr.mxu0 0.0
        %6071 = vmatpush1.xpose.msra.mxu0 %v3414
        %6072 = vmatprep.subr.mxu0 0.0
        %6073 = vmatpush1.xpose.msra.mxu0 %v3411
        %6074 = vmatprep.subr.mxu0 0.0
        %6075 = vmatpush1.xpose.msra.mxu0 %v3408
        %6076 = vmatprep.subr.mxu0 0.0
        %6077 = vmatpush1.xpose.msra.mxu0 %v3405
        %6078 = vmatprep.subr.mxu0 0.0
        %6079 = vmatpush1.xpose.msra.mxu0 %v3402
        %6080 = vmatprep.subr.mxu0 0.0
        %6081 = vmatpush1.xpose.msra.mxu0 %v3399
        %6082 = vmatprep.subr.mxu0 0.0
        %6083 = vmatpush1.xpose.msra.mxu0 %v3396
        %6084 = vmatprep.subr.mxu0 0.0
        %6085 = vmatpush1.xpose.msra.mxu0 %v3393
        %6086 = vmatprep.subr.mxu0 0.0
        %6087 = vmatpush1.xpose.msra.mxu0 %v3390
        %6088 = vmatprep.subr.mxu0 0.0
        %6089 = vmatpush1.xpose.msra.mxu0 %v3387
        %6090 = vmatprep.subr.mxu0 0.0
        %6091 = vmatpush1.xpose.msra.mxu0 %v3384
        %6092 = vmatprep.subr.mxu0 0.0
        %6093 = vmatpush1.xpose.msra.mxu0 %v3381
        %6094 = vmatprep.subr.mxu0 0.0
        %6095 = vmatpush1.xpose.msra.mxu0 %v3378
        %6096 = vmatprep.subr.mxu0 0.0
        %6097 = vmatpush1.xpose.msra.mxu0 %v3375
        %6098 = vmatprep.subr.mxu0 0.0
        %6099 = vmatpush1.xpose.msra.mxu0 %v3372
        %6100 = vmatprep.subr.mxu0 0.0
        %6101 = vmatpush2.xpose.msra.mxu0 %v3465
        %6102 = vmatprep.subr.mxu0 0.0
        %6103 = vmatpush2.xpose.msra.mxu0 %v3462
        %6104 = vmatprep.subr.mxu0 0.0
        %6105 = vmatpush2.xpose.msra.mxu0 %v3459
        %6106 = vmatprep.subr.mxu0 0.0
        %6107 = vmatpush2.xpose.msra.mxu0 %v3456
        %6108 = vmatprep.subr.mxu0 0.0
        %6109 = vmatpush2.xpose.msra.mxu0 %v3453
        %6110 = vmatprep.subr.mxu0 0.0
        %6111 = vmatpush2.xpose.msra.mxu0 %v3450
        %6112 = vmatprep.subr.mxu0 0.0
        %6113 = vmatpush2.xpose.msra.mxu0 %v3447
        %6114 = vmatprep.subr.mxu0 0.0
        %6115 = vmatpush2.xpose.msra.mxu0 %v3444
        %6116 = vmatprep.subr.mxu0 0.0
        %6117 = vmatpush2.xpose.msra.mxu0 %v3441
        %6118 = vmatprep.subr.mxu0 0.0
        %6119 = vmatpush2.xpose.msra.mxu0 %v3438
        %6120 = vmatprep.subr.mxu0 0.0
        %6121 = vmatpush2.xpose.msra.mxu0 %v3435
        %6122 = vmatprep.subr.mxu0 0.0
        %6123 = vmatpush2.xpose.msra.mxu0 %v3432
        %6124 = vmatprep.subr.mxu0 0.0
        %6125 = vmatpush2.xpose.msra.mxu0 %v3429
        %6126 = vmatprep.subr.mxu0 0.0
        %6127 = vmatpush2.xpose.msra.mxu0 %v3426
        %6128 = vmatprep.subr.mxu0 0.0
        %6129 = vmatpush2.xpose.msra.mxu0 %v3423
        %6130 = vmatprep.subr.mxu0 0.0
        %6131 = vmatpush2.xpose.msra.mxu0 %v3420
        %6132 = vmatprep.mubr.f32.mxu0 0.0
        %6133 = vmatmul.mubr.f32.gmra.mxu0 %v1929
        %v6134 = vpop.f32.mrf.mxu0
        %v6135 = vadd.f32 %v1730, %v6134
        %v6136 = vpop.f32.mrf.mxu0
        %v6137 = vadd.f32 %v1734, %v6136
        %6138 = vdwg.mxu0
        %6139 = vmatprep.subr.mxu0 0.0
        %6140 = vmatpush1.xpose.msra.mxu0 %v3513
        %6141 = vmatprep.subr.mxu0 0.0
        %6142 = vmatpush1.xpose.msra.mxu0 %v3510
        %6143 = vmatprep.subr.mxu0 0.0
        %6144 = vmatpush1.xpose.msra.mxu0 %v3507
        %6145 = vmatprep.subr.mxu0 0.0
        %6146 = vmatpush1.xpose.msra.mxu0 %v3504
        %6147 = vmatprep.subr.mxu0 0.0
        %6148 = vmatpush1.xpose.msra.mxu0 %v3501
        %6149 = vmatprep.subr.mxu0 0.0
        %6150 = vmatpush1.xpose.msra.mxu0 %v3498
        %6151 = vmatprep.subr.mxu0 0.0
        %6152 = vmatpush1.xpose.msra.mxu0 %v3495
        %6153 = vmatprep.subr.mxu0 0.0
        %6154 = vmatpush1.xpose.msra.mxu0 %v3492
        %6155 = vmatprep.subr.mxu0 0.0
        %6156 = vmatpush1.xpose.msra.mxu0 %v3489
        %6157 = vmatprep.subr.mxu0 0.0
        %6158 = vmatpush1.xpose.msra.mxu0 %v3486
        %6159 = vmatprep.subr.mxu0 0.0
        %6160 = vmatpush1.xpose.msra.mxu0 %v3483
        %6161 = vmatprep.subr.mxu0 0.0
        %6162 = vmatpush1.xpose.msra.mxu0 %v3480
        %6163 = vmatprep.subr.mxu0 0.0
        %6164 = vmatpush1.xpose.msra.mxu0 %v3477
        %6165 = vmatprep.subr.mxu0 0.0
        %6166 = vmatpush1.xpose.msra.mxu0 %v3474
        %6167 = vmatprep.subr.mxu0 0.0
        %6168 = vmatpush1.xpose.msra.mxu0 %v3471
        %6169 = vmatprep.subr.mxu0 0.0
        %6170 = vmatpush1.xpose.msra.mxu0 %v3468
        %6171 = vmatprep.subr.mxu0 0.0
        %6172 = vmatpush2.xpose.msra.mxu0 %v3561
        %6173 = vmatprep.subr.mxu0 0.0
        %6174 = vmatpush2.xpose.msra.mxu0 %v3558
        %6175 = vmatprep.subr.mxu0 0.0
        %6176 = vmatpush2.xpose.msra.mxu0 %v3555
        %6177 = vmatprep.subr.mxu0 0.0
        %6178 = vmatpush2.xpose.msra.mxu0 %v3552
        %6179 = vmatprep.subr.mxu0 0.0
        %6180 = vmatpush2.xpose.msra.mxu0 %v3549
        %6181 = vmatprep.subr.mxu0 0.0
        %6182 = vmatpush2.xpose.msra.mxu0 %v3546
        %6183 = vmatprep.subr.mxu0 0.0
        %6184 = vmatpush2.xpose.msra.mxu0 %v3543
        %6185 = vmatprep.subr.mxu0 0.0
        %6186 = vmatpush2.xpose.msra.mxu0 %v3540
        %6187 = vmatprep.subr.mxu0 0.0
        %6188 = vmatpush2.xpose.msra.mxu0 %v3537
        %6189 = vmatprep.subr.mxu0 0.0
        %6190 = vmatpush2.xpose.msra.mxu0 %v3534
        %6191 = vmatprep.subr.mxu0 0.0
        %6192 = vmatpush2.xpose.msra.mxu0 %v3531
        %6193 = vmatprep.subr.mxu0 0.0
        %6194 = vmatpush2.xpose.msra.mxu0 %v3528
        %6195 = vmatprep.subr.mxu0 0.0
        %6196 = vmatpush2.xpose.msra.mxu0 %v3525
        %6197 = vmatprep.subr.mxu0 0.0
        %6198 = vmatpush2.xpose.msra.mxu0 %v3522
        %6199 = vmatprep.subr.mxu0 0.0
        %6200 = vmatpush2.xpose.msra.mxu0 %v3519
        %6201 = vmatprep.subr.mxu0 0.0
        %6202 = vmatpush2.xpose.msra.mxu0 %v3516
        %6203 = vmatprep.mubr.f32.mxu0 0.0
        %6204 = vmatmul.mubr.f32.gmra.mxu0 %v1929
        %v6205 = vpop.f32.mrf.mxu0
        %v6206 = vadd.f32 %v1738, %v6205
        %v6207 = vpop.f32.mrf.mxu0
        %v6208 = vadd.f32 %v1742, %v6207
        %6209 = vdwg.mxu0
        %6210 = vmatprep.subr.mxu0 0.0
        %6211 = vmatpush1.xpose.msra.mxu0 %v3609
        %6212 = vmatprep.subr.mxu0 0.0
        %6213 = vmatpush1.xpose.msra.mxu0 %v3606
        %6214 = vmatprep.subr.mxu0 0.0
        %6215 = vmatpush1.xpose.msra.mxu0 %v3603
        %6216 = vmatprep.subr.mxu0 0.0
        %6217 = vmatpush1.xpose.msra.mxu0 %v3600
        %6218 = vmatprep.subr.mxu0 0.0
        %6219 = vmatpush1.xpose.msra.mxu0 %v3597
        %6220 = vmatprep.subr.mxu0 0.0
        %6221 = vmatpush1.xpose.msra.mxu0 %v3594
        %6222 = vmatprep.subr.mxu0 0.0
        %6223 = vmatpush1.xpose.msra.mxu0 %v3591
        %6224 = vmatprep.subr.mxu0 0.0
        %6225 = vmatpush1.xpose.msra.mxu0 %v3588
        %6226 = vmatprep.subr.mxu0 0.0
        %6227 = vmatpush1.xpose.msra.mxu0 %v3585
        %6228 = vmatprep.subr.mxu0 0.0
        %6229 = vmatpush1.xpose.msra.mxu0 %v3582
        %6230 = vmatprep.subr.mxu0 0.0
        %6231 = vmatpush1.xpose.msra.mxu0 %v3579
        %6232 = vmatprep.subr.mxu0 0.0
        %6233 = vmatpush1.xpose.msra.mxu0 %v3576
        %6234 = vmatprep.subr.mxu0 0.0
        %6235 = vmatpush1.xpose.msra.mxu0 %v3573
        %6236 = vmatprep.subr.mxu0 0.0
        %6237 = vmatpush1.xpose.msra.mxu0 %v3570
        %6238 = vmatprep.subr.mxu0 0.0
        %6239 = vmatpush1.xpose.msra.mxu0 %v3567
        %6240 = vmatprep.subr.mxu0 0.0
        %6241 = vmatpush1.xpose.msra.mxu0 %v3564
        %6242 = vmatprep.subr.mxu0 0.0
        %6243 = vmatpush2.xpose.msra.mxu0 %v3657
        %6244 = vmatprep.subr.mxu0 0.0
        %6245 = vmatpush2.xpose.msra.mxu0 %v3654
        %6246 = vmatprep.subr.mxu0 0.0
        %6247 = vmatpush2.xpose.msra.mxu0 %v3651
        %6248 = vmatprep.subr.mxu0 0.0
        %6249 = vmatpush2.xpose.msra.mxu0 %v3648
        %6250 = vmatprep.subr.mxu0 0.0
        %6251 = vmatpush2.xpose.msra.mxu0 %v3645
        %6252 = vmatprep.subr.mxu0 0.0
        %6253 = vmatpush2.xpose.msra.mxu0 %v3642
        %6254 = vmatprep.subr.mxu0 0.0
        %6255 = vmatpush2.xpose.msra.mxu0 %v3639
        %6256 = vmatprep.subr.mxu0 0.0
        %6257 = vmatpush2.xpose.msra.mxu0 %v3636
        %6258 = vmatprep.subr.mxu0 0.0
        %6259 = vmatpush2.xpose.msra.mxu0 %v3633
        %6260 = vmatprep.subr.mxu0 0.0
        %6261 = vmatpush2.xpose.msra.mxu0 %v3630
        %6262 = vmatprep.subr.mxu0 0.0
        %6263 = vmatpush2.xpose.msra.mxu0 %v3627
        %6264 = vmatprep.subr.mxu0 0.0
        %6265 = vmatpush2.xpose.msra.mxu0 %v3624
        %6266 = vmatprep.subr.mxu0 0.0
        %6267 = vmatpush2.xpose.msra.mxu0 %v3621
        %6268 = vmatprep.subr.mxu0 0.0
        %6269 = vmatpush2.xpose.msra.mxu0 %v3618
        %6270 = vmatprep.subr.mxu0 0.0
        %6271 = vmatpush2.xpose.msra.mxu0 %v3615
        %6272 = vmatprep.subr.mxu0 0.0
        %6273 = vmatpush2.xpose.msra.mxu0 %v3612
        %6274 = vmatprep.mubr.f32.mxu0 0.0
        %6275 = vmatmul.mubr.f32.gmra.mxu0 %v1929
        %v6276 = vpop.f32.mrf.mxu0
        %v6277 = vadd.f32 %v1746, %v6276
        %v6278 = vpop.f32.mrf.mxu0
        %v6279 = vadd.f32 %v1750, %v6278
        %6280 = vdwg.mxu0
        %6281 = vmatprep.subr.mxu0 0.0
        %6282 = vmatpush1.xpose.msra.mxu0 %v3705
        %6283 = vmatprep.subr.mxu0 0.0
        %6284 = vmatpush1.xpose.msra.mxu0 %v3702
        %6285 = vmatprep.subr.mxu0 0.0
        %6286 = vmatpush1.xpose.msra.mxu0 %v3699
        %6287 = vmatprep.subr.mxu0 0.0
        %6288 = vmatpush1.xpose.msra.mxu0 %v3696
        %6289 = vmatprep.subr.mxu0 0.0
        %6290 = vmatpush1.xpose.msra.mxu0 %v3693
        %6291 = vmatprep.subr.mxu0 0.0
        %6292 = vmatpush1.xpose.msra.mxu0 %v3690
        %6293 = vmatprep.subr.mxu0 0.0
        %6294 = vmatpush1.xpose.msra.mxu0 %v3687
        %6295 = vmatprep.subr.mxu0 0.0
        %6296 = vmatpush1.xpose.msra.mxu0 %v3684
        %6297 = vmatprep.subr.mxu0 0.0
        %6298 = vmatpush1.xpose.msra.mxu0 %v3681
        %6299 = vmatprep.subr.mxu0 0.0
        %6300 = vmatpush1.xpose.msra.mxu0 %v3678
        %6301 = vmatprep.subr.mxu0 0.0
        %6302 = vmatpush1.xpose.msra.mxu0 %v3675
        %6303 = vmatprep.subr.mxu0 0.0
        %6304 = vmatpush1.xpose.msra.mxu0 %v3672
        %6305 = vmatprep.subr.mxu0 0.0
        %6306 = vmatpush1.xpose.msra.mxu0 %v3669
        %6307 = vmatprep.subr.mxu0 0.0
        %6308 = vmatpush1.xpose.msra.mxu0 %v3666
        %6309 = vmatprep.subr.mxu0 0.0
        %6310 = vmatpush1.xpose.msra.mxu0 %v3663
        %6311 = vmatprep.subr.mxu0 0.0
        %6312 = vmatpush1.xpose.msra.mxu0 %v3660
        %6313 = vmatprep.subr.mxu0 0.0
        %6314 = vmatpush2.xpose.msra.mxu0 %v3753
        %6315 = vmatprep.subr.mxu0 0.0
        %6316 = vmatpush2.xpose.msra.mxu0 %v3750
        %6317 = vmatprep.subr.mxu0 0.0
        %6318 = vmatpush2.xpose.msra.mxu0 %v3747
        %6319 = vmatprep.subr.mxu0 0.0
        %6320 = vmatpush2.xpose.msra.mxu0 %v3744
        %6321 = vmatprep.subr.mxu0 0.0
        %6322 = vmatpush2.xpose.msra.mxu0 %v3741
        %6323 = vmatprep.subr.mxu0 0.0
        %6324 = vmatpush2.xpose.msra.mxu0 %v3738
        %6325 = vmatprep.subr.mxu0 0.0
        %6326 = vmatpush2.xpose.msra.mxu0 %v3735
        %6327 = vmatprep.subr.mxu0 0.0
        %6328 = vmatpush2.xpose.msra.mxu0 %v3732
        %6329 = vmatprep.subr.mxu0 0.0
        %6330 = vmatpush2.xpose.msra.mxu0 %v3729
        %6331 = vmatprep.subr.mxu0 0.0
        %6332 = vmatpush2.xpose.msra.mxu0 %v3726
        %6333 = vmatprep.subr.mxu0 0.0
        %6334 = vmatpush2.xpose.msra.mxu0 %v3723
        %6335 = vmatprep.subr.mxu0 0.0
        %6336 = vmatpush2.xpose.msra.mxu0 %v3720
        %6337 = vmatprep.subr.mxu0 0.0
        %6338 = vmatpush2.xpose.msra.mxu0 %v3717
        %6339 = vmatprep.subr.mxu0 0.0
        %6340 = vmatpush2.xpose.msra.mxu0 %v3714
        %6341 = vmatprep.subr.mxu0 0.0
        %6342 = vmatpush2.xpose.msra.mxu0 %v3711
        %6343 = vmatprep.subr.mxu0 0.0
        %6344 = vmatpush2.xpose.msra.mxu0 %v3708
        %6345 = vmatprep.mubr.f32.mxu0 0.0
        %6346 = vmatmul.mubr.f32.gmra.mxu0 %v1929
        %v6347 = vpop.f32.mrf.mxu0
        %v6348 = vadd.f32 %v1754, %v6347
        %v6349 = vpop.f32.mrf.mxu0
        %v6350 = vadd.f32 %v1758, %v6349
        %6351 = vdwg.mxu0
        %6352 = vmatprep.subr.mxu0 0.0
        %6353 = vmatpush1.xpose.msra.mxu0 %v3801
        %6354 = vmatprep.subr.mxu0 0.0
        %6355 = vmatpush1.xpose.msra.mxu0 %v3798
        %6356 = vmatprep.subr.mxu0 0.0
        %6357 = vmatpush1.xpose.msra.mxu0 %v3795
        %6358 = vmatprep.subr.mxu0 0.0
        %6359 = vmatpush1.xpose.msra.mxu0 %v3792
        %6360 = vmatprep.subr.mxu0 0.0
        %6361 = vmatpush1.xpose.msra.mxu0 %v3789
        %6362 = vmatprep.subr.mxu0 0.0
        %6363 = vmatpush1.xpose.msra.mxu0 %v3786
        %6364 = vmatprep.subr.mxu0 0.0
        %6365 = vmatpush1.xpose.msra.mxu0 %v3783
        %6366 = vmatprep.subr.mxu0 0.0
        %6367 = vmatpush1.xpose.msra.mxu0 %v3780
        %6368 = vmatprep.subr.mxu0 0.0
        %6369 = vmatpush1.xpose.msra.mxu0 %v3777
        %6370 = vmatprep.subr.mxu0 0.0
        %6371 = vmatpush1.xpose.msra.mxu0 %v3774
        %6372 = vmatprep.subr.mxu0 0.0
        %6373 = vmatpush1.xpose.msra.mxu0 %v3771
        %6374 = vmatprep.subr.mxu0 0.0
        %6375 = vmatpush1.xpose.msra.mxu0 %v3768
        %6376 = vmatprep.subr.mxu0 0.0
        %6377 = vmatpush1.xpose.msra.mxu0 %v3765
        %6378 = vmatprep.subr.mxu0 0.0
        %6379 = vmatpush1.xpose.msra.mxu0 %v3762
        %6380 = vmatprep.subr.mxu0 0.0
        %6381 = vmatpush1.xpose.msra.mxu0 %v3759
        %6382 = vmatprep.subr.mxu0 0.0
        %6383 = vmatpush1.xpose.msra.mxu0 %v3756
        %6384 = vmatprep.subr.mxu0 0.0
        %6385 = vmatpush2.xpose.msra.mxu0 %v3849
        %6386 = vmatprep.subr.mxu0 0.0
        %6387 = vmatpush2.xpose.msra.mxu0 %v3846
        %6388 = vmatprep.subr.mxu0 0.0
        %6389 = vmatpush2.xpose.msra.mxu0 %v3843
        %6390 = vmatprep.subr.mxu0 0.0
        %6391 = vmatpush2.xpose.msra.mxu0 %v3840
        %6392 = vmatprep.subr.mxu0 0.0
        %6393 = vmatpush2.xpose.msra.mxu0 %v3837
        %6394 = vmatprep.subr.mxu0 0.0
        %6395 = vmatpush2.xpose.msra.mxu0 %v3834
        %6396 = vmatprep.subr.mxu0 0.0
        %6397 = vmatpush2.xpose.msra.mxu0 %v3831
        %6398 = vmatprep.subr.mxu0 0.0
        %6399 = vmatpush2.xpose.msra.mxu0 %v3828
        %6400 = vmatprep.subr.mxu0 0.0
        %6401 = vmatpush2.xpose.msra.mxu0 %v3825
        %6402 = vmatprep.subr.mxu0 0.0
        %6403 = vmatpush2.xpose.msra.mxu0 %v3822
        %6404 = vmatprep.subr.mxu0 0.0
        %6405 = vmatpush2.xpose.msra.mxu0 %v3819
        %6406 = vmatprep.subr.mxu0 0.0
        %6407 = vmatpush2.xpose.msra.mxu0 %v3816
        %6408 = vmatprep.subr.mxu0 0.0
        %6409 = vmatpush2.xpose.msra.mxu0 %v3813
        %6410 = vmatprep.subr.mxu0 0.0
        %6411 = vmatpush2.xpose.msra.mxu0 %v3810
        %6412 = vmatprep.subr.mxu0 0.0
        %6413 = vmatpush2.xpose.msra.mxu0 %v3807
        %6414 = vmatprep.subr.mxu0 0.0
        %6415 = vmatpush2.xpose.msra.mxu0 %v3804
        %6416 = vmatprep.mubr.f32.mxu0 0.0
        %6417 = vmatmul.mubr.f32.gmra.mxu0 %v1929
        %v6418 = vpop.f32.mrf.mxu0
        %v6419 = vadd.f32 %v1762, %v6418
        %v6420 = vpop.f32.mrf.mxu0
        %v6421 = vadd.f32 %v1766, %v6420
        %6422 = vdwg.mxu0
        %6423 = vmatprep.subr.mxu0 0.0
        %6424 = vmatpush1.xpose.msra.mxu0 %v3897
        %6425 = vmatprep.subr.mxu0 0.0
        %6426 = vmatpush1.xpose.msra.mxu0 %v3894
        %6427 = vmatprep.subr.mxu0 0.0
        %6428 = vmatpush1.xpose.msra.mxu0 %v3891
        %6429 = vmatprep.subr.mxu0 0.0
        %6430 = vmatpush1.xpose.msra.mxu0 %v3888
        %6431 = vmatprep.subr.mxu0 0.0
        %6432 = vmatpush1.xpose.msra.mxu0 %v3885
        %6433 = vmatprep.subr.mxu0 0.0
        %6434 = vmatpush1.xpose.msra.mxu0 %v3882
        %6435 = vmatprep.subr.mxu0 0.0
        %6436 = vmatpush1.xpose.msra.mxu0 %v3879
        %6437 = vmatprep.subr.mxu0 0.0
        %6438 = vmatpush1.xpose.msra.mxu0 %v3876
        %6439 = vmatprep.subr.mxu0 0.0
        %6440 = vmatpush1.xpose.msra.mxu0 %v3873
        %6441 = vmatprep.subr.mxu0 0.0
        %6442 = vmatpush1.xpose.msra.mxu0 %v3870
        %6443 = vmatprep.subr.mxu0 0.0
        %6444 = vmatpush1.xpose.msra.mxu0 %v3867
        %6445 = vmatprep.subr.mxu0 0.0
        %6446 = vmatpush1.xpose.msra.mxu0 %v3864
        %6447 = vmatprep.subr.mxu0 0.0
        %6448 = vmatpush1.xpose.msra.mxu0 %v3861
        %6449 = vmatprep.subr.mxu0 0.0
        %6450 = vmatpush1.xpose.msra.mxu0 %v3858
        %6451 = vmatprep.subr.mxu0 0.0
        %6452 = vmatpush1.xpose.msra.mxu0 %v3855
        %6453 = vmatprep.subr.mxu0 0.0
        %6454 = vmatpush1.xpose.msra.mxu0 %v3852
        %6455 = vmatprep.subr.mxu0 0.0
        %6456 = vmatpush2.xpose.msra.mxu0 %v3945
        %6457 = vmatprep.subr.mxu0 0.0
        %6458 = vmatpush2.xpose.msra.mxu0 %v3942
        %6459 = vmatprep.subr.mxu0 0.0
        %6460 = vmatpush2.xpose.msra.mxu0 %v3939
        %6461 = vmatprep.subr.mxu0 0.0
        %6462 = vmatpush2.xpose.msra.mxu0 %v3936
        %6463 = vmatprep.subr.mxu0 0.0
        %6464 = vmatpush2.xpose.msra.mxu0 %v3933
        %6465 = vmatprep.subr.mxu0 0.0
        %6466 = vmatpush2.xpose.msra.mxu0 %v3930
        %6467 = vmatprep.subr.mxu0 0.0
        %6468 = vmatpush2.xpose.msra.mxu0 %v3927
        %6469 = vmatprep.subr.mxu0 0.0
        %6470 = vmatpush2.xpose.msra.mxu0 %v3924
        %6471 = vmatprep.subr.mxu0 0.0
        %6472 = vmatpush2.xpose.msra.mxu0 %v3921
        %6473 = vmatprep.subr.mxu0 0.0
        %6474 = vmatpush2.xpose.msra.mxu0 %v3918
        %6475 = vmatprep.subr.mxu0 0.0
        %6476 = vmatpush2.xpose.msra.mxu0 %v3915
        %6477 = vmatprep.subr.mxu0 0.0
        %6478 = vmatpush2.xpose.msra.mxu0 %v3912
        %6479 = vmatprep.subr.mxu0 0.0
        %6480 = vmatpush2.xpose.msra.mxu0 %v3909
        %6481 = vmatprep.subr.mxu0 0.0
        %6482 = vmatpush2.xpose.msra.mxu0 %v3906
        %6483 = vmatprep.subr.mxu0 0.0
        %6484 = vmatpush2.xpose.msra.mxu0 %v3903
        %6485 = vmatprep.subr.mxu0 0.0
        %6486 = vmatpush2.xpose.msra.mxu0 %v3900
        %6487 = vmatprep.mubr.f32.mxu0 0.0
        %6488 = vmatmul.mubr.f32.gmra.mxu0 %v1929
        %v6489 = vpop.f32.mrf.mxu0
        %v6490 = vadd.f32 %v1770, %v6489
        %v6491 = vpop.f32.mrf.mxu0
        %v6492 = vadd.f32 %v1774, %v6491
        %6493 = vdwg.mxu0
        %6494 = vmatprep.subr.mxu0 0.0
        %6495 = vmatpush1.xpose.msra.mxu0 %v3993
        %6496 = vmatprep.subr.mxu0 0.0
        %6497 = vmatpush1.xpose.msra.mxu0 %v3990
        %6498 = vmatprep.subr.mxu0 0.0
        %6499 = vmatpush1.xpose.msra.mxu0 %v3987
        %6500 = vmatprep.subr.mxu0 0.0
        %6501 = vmatpush1.xpose.msra.mxu0 %v3984
        %6502 = vmatprep.subr.mxu0 0.0
        %6503 = vmatpush1.xpose.msra.mxu0 %v3981
        %6504 = vmatprep.subr.mxu0 0.0
        %6505 = vmatpush1.xpose.msra.mxu0 %v3978
        %6506 = vmatprep.subr.mxu0 0.0
        %6507 = vmatpush1.xpose.msra.mxu0 %v3975
        %6508 = vmatprep.subr.mxu0 0.0
        %6509 = vmatpush1.xpose.msra.mxu0 %v3972
        %6510 = vmatprep.subr.mxu0 0.0
        %6511 = vmatpush1.xpose.msra.mxu0 %v3969
        %6512 = vmatprep.subr.mxu0 0.0
        %6513 = vmatpush1.xpose.msra.mxu0 %v3966
        %6514 = vmatprep.subr.mxu0 0.0
        %6515 = vmatpush1.xpose.msra.mxu0 %v3963
        %6516 = vmatprep.subr.mxu0 0.0
        %6517 = vmatpush1.xpose.msra.mxu0 %v3960
        %6518 = vmatprep.subr.mxu0 0.0
        %6519 = vmatpush1.xpose.msra.mxu0 %v3957
        %6520 = vmatprep.subr.mxu0 0.0
        %6521 = vmatpush1.xpose.msra.mxu0 %v3954
        %6522 = vmatprep.subr.mxu0 0.0
        %6523 = vmatpush1.xpose.msra.mxu0 %v3951
        %6524 = vmatprep.subr.mxu0 0.0
        %6525 = vmatpush1.xpose.msra.mxu0 %v3948
        %6526 = vmatprep.subr.mxu0 0.0
        %6527 = vmatpush2.xpose.msra.mxu0 %v4041
        %6528 = vmatprep.subr.mxu0 0.0
        %6529 = vmatpush2.xpose.msra.mxu0 %v4038
        %6530 = vmatprep.subr.mxu0 0.0
        %6531 = vmatpush2.xpose.msra.mxu0 %v4035
        %6532 = vmatprep.subr.mxu0 0.0
        %6533 = vmatpush2.xpose.msra.mxu0 %v4032
        %6534 = vmatprep.subr.mxu0 0.0
        %6535 = vmatpush2.xpose.msra.mxu0 %v4029
        %6536 = vmatprep.subr.mxu0 0.0
        %6537 = vmatpush2.xpose.msra.mxu0 %v4026
        %6538 = vmatprep.subr.mxu0 0.0
        %6539 = vmatpush2.xpose.msra.mxu0 %v4023
        %6540 = vmatprep.subr.mxu0 0.0
        %6541 = vmatpush2.xpose.msra.mxu0 %v4020
        %6542 = vmatprep.subr.mxu0 0.0
        %6543 = vmatpush2.xpose.msra.mxu0 %v4017
        %6544 = vmatprep.subr.mxu0 0.0
        %6545 = vmatpush2.xpose.msra.mxu0 %v4014
        %6546 = vmatprep.subr.mxu0 0.0
        %6547 = vmatpush2.xpose.msra.mxu0 %v4011
        %6548 = vmatprep.subr.mxu0 0.0
        %6549 = vmatpush2.xpose.msra.mxu0 %v4008
        %6550 = vmatprep.subr.mxu0 0.0
        %6551 = vmatpush2.xpose.msra.mxu0 %v4005
        %6552 = vmatprep.subr.mxu0 0.0
        %6553 = vmatpush2.xpose.msra.mxu0 %v4002
        %6554 = vmatprep.subr.mxu0 0.0
        %6555 = vmatpush2.xpose.msra.mxu0 %v3999
        %6556 = vmatprep.subr.mxu0 0.0
        %6557 = vmatpush2.xpose.msra.mxu0 %v3996
        %6558 = vmatprep.mubr.f32.mxu0 0.0
        %6559 = vmatmul.mubr.f32.gmra.mxu0 %v1929
        %v6560 = vpop.f32.mrf.mxu0
        %v6561 = vadd.f32 %v1778, %v6560
        %v6562 = vpop.f32.mrf.mxu0
        %v6563 = vadd.f32 %v1782, %v6562
        %6564 = vdwg.mxu0
        %6565 = vmatprep.subr.mxu0 0.0
        %6566 = vmatpush1.xpose.msra.mxu0 %v4089
        %6567 = vmatprep.subr.mxu0 0.0
        %6568 = vmatpush1.xpose.msra.mxu0 %v4086
        %6569 = vmatprep.subr.mxu0 0.0
        %6570 = vmatpush1.xpose.msra.mxu0 %v4083
        %6571 = vmatprep.subr.mxu0 0.0
        %6572 = vmatpush1.xpose.msra.mxu0 %v4080
        %6573 = vmatprep.subr.mxu0 0.0
        %6574 = vmatpush1.xpose.msra.mxu0 %v4077
        %6575 = vmatprep.subr.mxu0 0.0
        %6576 = vmatpush1.xpose.msra.mxu0 %v4074
        %6577 = vmatprep.subr.mxu0 0.0
        %6578 = vmatpush1.xpose.msra.mxu0 %v4071
        %6579 = vmatprep.subr.mxu0 0.0
        %6580 = vmatpush1.xpose.msra.mxu0 %v4068
        %6581 = vmatprep.subr.mxu0 0.0
        %6582 = vmatpush1.xpose.msra.mxu0 %v4065
        %6583 = vmatprep.subr.mxu0 0.0
        %6584 = vmatpush1.xpose.msra.mxu0 %v4062
        %6585 = vmatprep.subr.mxu0 0.0
        %6586 = vmatpush1.xpose.msra.mxu0 %v4059
        %6587 = vmatprep.subr.mxu0 0.0
        %6588 = vmatpush1.xpose.msra.mxu0 %v4056
        %6589 = vmatprep.subr.mxu0 0.0
        %6590 = vmatpush1.xpose.msra.mxu0 %v4053
        %6591 = vmatprep.subr.mxu0 0.0
        %6592 = vmatpush1.xpose.msra.mxu0 %v4050
        %6593 = vmatprep.subr.mxu0 0.0
        %6594 = vmatpush1.xpose.msra.mxu0 %v4047
        %6595 = vmatprep.subr.mxu0 0.0
        %6596 = vmatpush1.xpose.msra.mxu0 %v4044
        %6597 = vmatprep.subr.mxu0 0.0
        %6598 = vmatpush2.xpose.msra.mxu0 %v4137
        %6599 = vmatprep.subr.mxu0 0.0
        %6600 = vmatpush2.xpose.msra.mxu0 %v4134
        %6601 = vmatprep.subr.mxu0 0.0
        %6602 = vmatpush2.xpose.msra.mxu0 %v4131
        %6603 = vmatprep.subr.mxu0 0.0
        %6604 = vmatpush2.xpose.msra.mxu0 %v4128
        %6605 = vmatprep.subr.mxu0 0.0
        %6606 = vmatpush2.xpose.msra.mxu0 %v4125
        %6607 = vmatprep.subr.mxu0 0.0
        %6608 = vmatpush2.xpose.msra.mxu0 %v4122
        %6609 = vmatprep.subr.mxu0 0.0
        %6610 = vmatpush2.xpose.msra.mxu0 %v4119
        %6611 = vmatprep.subr.mxu0 0.0
        %6612 = vmatpush2.xpose.msra.mxu0 %v4116
        %6613 = vmatprep.subr.mxu0 0.0
        %6614 = vmatpush2.xpose.msra.mxu0 %v4113
        %6615 = vmatprep.subr.mxu0 0.0
        %6616 = vmatpush2.xpose.msra.mxu0 %v4110
        %6617 = vmatprep.subr.mxu0 0.0
        %6618 = vmatpush2.xpose.msra.mxu0 %v4107
        %6619 = vmatprep.subr.mxu0 0.0
        %6620 = vmatpush2.xpose.msra.mxu0 %v4104
        %6621 = vmatprep.subr.mxu0 0.0
        %6622 = vmatpush2.xpose.msra.mxu0 %v4101
        %6623 = vmatprep.subr.mxu0 0.0
        %6624 = vmatpush2.xpose.msra.mxu0 %v4098
        %6625 = vmatprep.subr.mxu0 0.0
        %6626 = vmatpush2.xpose.msra.mxu0 %v4095
        %6627 = vmatprep.subr.mxu0 0.0
        %6628 = vmatpush2.xpose.msra.mxu0 %v4092
        %6629 = vmatprep.mubr.f32.mxu0 0.0
        %6630 = vmatmul.mubr.f32.gmra.mxu0 %v1929
        %v6631 = vpop.f32.mrf.mxu0
        %v6632 = vadd.f32 %v1786, %v6631
        %v6633 = vpop.f32.mrf.mxu0
        %v6634 = vadd.f32 %v1790, %v6633
        %6635 = vdwg.mxu0
        %6636 = vmatprep.subr.mxu0 0.0
        %6637 = vmatpush1.xpose.msra.mxu0 %v4185
        %6638 = vmatprep.subr.mxu0 0.0
        %6639 = vmatpush1.xpose.msra.mxu0 %v4182
        %6640 = vmatprep.subr.mxu0 0.0
        %6641 = vmatpush1.xpose.msra.mxu0 %v4179
        %6642 = vmatprep.subr.mxu0 0.0
        %6643 = vmatpush1.xpose.msra.mxu0 %v4176
        %6644 = vmatprep.subr.mxu0 0.0
        %6645 = vmatpush1.xpose.msra.mxu0 %v4173
        %6646 = vmatprep.subr.mxu0 0.0
        %6647 = vmatpush1.xpose.msra.mxu0 %v4170
        %6648 = vmatprep.subr.mxu0 0.0
        %6649 = vmatpush1.xpose.msra.mxu0 %v4167
        %6650 = vmatprep.subr.mxu0 0.0
        %6651 = vmatpush1.xpose.msra.mxu0 %v4164
        %6652 = vmatprep.subr.mxu0 0.0
        %6653 = vmatpush1.xpose.msra.mxu0 %v4161
        %6654 = vmatprep.subr.mxu0 0.0
        %6655 = vmatpush1.xpose.msra.mxu0 %v4158
        %6656 = vmatprep.subr.mxu0 0.0
        %6657 = vmatpush1.xpose.msra.mxu0 %v4155
        %6658 = vmatprep.subr.mxu0 0.0
        %6659 = vmatpush1.xpose.msra.mxu0 %v4152
        %6660 = vmatprep.subr.mxu0 0.0
        %6661 = vmatpush1.xpose.msra.mxu0 %v4149
        %6662 = vmatprep.subr.mxu0 0.0
        %6663 = vmatpush1.xpose.msra.mxu0 %v4146
        %6664 = vmatprep.subr.mxu0 0.0
        %6665 = vmatpush1.xpose.msra.mxu0 %v4143
        %6666 = vmatprep.subr.mxu0 0.0
        %6667 = vmatpush1.xpose.msra.mxu0 %v4140
        %6668 = vmatprep.subr.mxu0 0.0
        %6669 = vmatpush2.xpose.msra.mxu0 %v4233
        %6670 = vmatprep.subr.mxu0 0.0
        %6671 = vmatpush2.xpose.msra.mxu0 %v4230
        %6672 = vmatprep.subr.mxu0 0.0
        %6673 = vmatpush2.xpose.msra.mxu0 %v4227
        %6674 = vmatprep.subr.mxu0 0.0
        %6675 = vmatpush2.xpose.msra.mxu0 %v4224
        %6676 = vmatprep.subr.mxu0 0.0
        %6677 = vmatpush2.xpose.msra.mxu0 %v4221
        %6678 = vmatprep.subr.mxu0 0.0
        %6679 = vmatpush2.xpose.msra.mxu0 %v4218
        %6680 = vmatprep.subr.mxu0 0.0
        %6681 = vmatpush2.xpose.msra.mxu0 %v4215
        %6682 = vmatprep.subr.mxu0 0.0
        %6683 = vmatpush2.xpose.msra.mxu0 %v4212
        %6684 = vmatprep.subr.mxu0 0.0
        %6685 = vmatpush2.xpose.msra.mxu0 %v4209
        %6686 = vmatprep.subr.mxu0 0.0
        %6687 = vmatpush2.xpose.msra.mxu0 %v4206
        %6688 = vmatprep.subr.mxu0 0.0
        %6689 = vmatpush2.xpose.msra.mxu0 %v4203
        %6690 = vmatprep.subr.mxu0 0.0
        %6691 = vmatpush2.xpose.msra.mxu0 %v4200
        %6692 = vmatprep.subr.mxu0 0.0
        %6693 = vmatpush2.xpose.msra.mxu0 %v4197
        %6694 = vmatprep.subr.mxu0 0.0
        %6695 = vmatpush2.xpose.msra.mxu0 %v4194
        %6696 = vmatprep.subr.mxu0 0.0
        %6697 = vmatpush2.xpose.msra.mxu0 %v4191
        %6698 = vmatprep.subr.mxu0 0.0
        %6699 = vmatpush2.xpose.msra.mxu0 %v4188
        %6700 = vmatprep.mubr.f32.mxu0 0.0
        %6701 = vmatmul.mubr.f32.gmra.mxu0 %v1929
        %v6702 = vpop.f32.mrf.mxu0
        %v6703 = vadd.f32 %v1794, %v6702
        %v6704 = vpop.f32.mrf.mxu0
        %v6705 = vadd.f32 %v1798, %v6704
        %6706 = vdwg.mxu0
        %6707 = vmatprep.subr.mxu0 0.0
        %6708 = vmatpush1.xpose.msra.mxu0 %v4281
        %6709 = vmatprep.subr.mxu0 0.0
        %6710 = vmatpush1.xpose.msra.mxu0 %v4278
        %6711 = vmatprep.subr.mxu0 0.0
        %6712 = vmatpush1.xpose.msra.mxu0 %v4275
        %6713 = vmatprep.subr.mxu0 0.0
        %6714 = vmatpush1.xpose.msra.mxu0 %v4272
        %6715 = vmatprep.subr.mxu0 0.0
        %6716 = vmatpush1.xpose.msra.mxu0 %v4269
        %6717 = vmatprep.subr.mxu0 0.0
        %6718 = vmatpush1.xpose.msra.mxu0 %v4266
        %6719 = vmatprep.subr.mxu0 0.0
        %6720 = vmatpush1.xpose.msra.mxu0 %v4263
        %6721 = vmatprep.subr.mxu0 0.0
        %6722 = vmatpush1.xpose.msra.mxu0 %v4260
        %6723 = vmatprep.subr.mxu0 0.0
        %6724 = vmatpush1.xpose.msra.mxu0 %v4257
        %6725 = vmatprep.subr.mxu0 0.0
        %6726 = vmatpush1.xpose.msra.mxu0 %v4254
        %6727 = vmatprep.subr.mxu0 0.0
        %6728 = vmatpush1.xpose.msra.mxu0 %v4251
        %6729 = vmatprep.subr.mxu0 0.0
        %6730 = vmatpush1.xpose.msra.mxu0 %v4248
        %6731 = vmatprep.subr.mxu0 0.0
        %6732 = vmatpush1.xpose.msra.mxu0 %v4245
        %6733 = vmatprep.subr.mxu0 0.0
        %6734 = vmatpush1.xpose.msra.mxu0 %v4242
        %6735 = vmatprep.subr.mxu0 0.0
        %6736 = vmatpush1.xpose.msra.mxu0 %v4239
        %6737 = vmatprep.subr.mxu0 0.0
        %6738 = vmatpush1.xpose.msra.mxu0 %v4236
        %6739 = vmatprep.subr.mxu0 0.0
        %6740 = vmatpush2.xpose.msra.mxu0 %v4329
        %6741 = vmatprep.subr.mxu0 0.0
        %6742 = vmatpush2.xpose.msra.mxu0 %v4326
        %6743 = vmatprep.subr.mxu0 0.0
        %6744 = vmatpush2.xpose.msra.mxu0 %v4323
        %6745 = vmatprep.subr.mxu0 0.0
        %6746 = vmatpush2.xpose.msra.mxu0 %v4320
        %6747 = vmatprep.subr.mxu0 0.0
        %6748 = vmatpush2.xpose.msra.mxu0 %v4317
        %6749 = vmatprep.subr.mxu0 0.0
        %6750 = vmatpush2.xpose.msra.mxu0 %v4314
        %6751 = vmatprep.subr.mxu0 0.0
        %6752 = vmatpush2.xpose.msra.mxu0 %v4311
        %6753 = vmatprep.subr.mxu0 0.0
        %6754 = vmatpush2.xpose.msra.mxu0 %v4308
        %6755 = vmatprep.subr.mxu0 0.0
        %6756 = vmatpush2.xpose.msra.mxu0 %v4305
        %6757 = vmatprep.subr.mxu0 0.0
        %6758 = vmatpush2.xpose.msra.mxu0 %v4302
        %6759 = vmatprep.subr.mxu0 0.0
        %6760 = vmatpush2.xpose.msra.mxu0 %v4299
        %6761 = vmatprep.subr.mxu0 0.0
        %6762 = vmatpush2.xpose.msra.mxu0 %v4296
        %6763 = vmatprep.subr.mxu0 0.0
        %6764 = vmatpush2.xpose.msra.mxu0 %v4293
        %6765 = vmatprep.subr.mxu0 0.0
        %6766 = vmatpush2.xpose.msra.mxu0 %v4290
        %6767 = vmatprep.subr.mxu0 0.0
        %6768 = vmatpush2.xpose.msra.mxu0 %v4287
        %6769 = vmatprep.subr.mxu0 0.0
        %6770 = vmatpush2.xpose.msra.mxu0 %v4284
        %6771 = vmatprep.mubr.f32.mxu0 0.0
        %6772 = vmatmul.mubr.f32.gmra.mxu0 %v1929
        %v6773 = vpop.f32.mrf.mxu0
        %v6774 = vadd.f32 %v1802, %v6773
        %v6775 = vpop.f32.mrf.mxu0
        %v6776 = vadd.f32 %v1806, %v6775
        %6777 = vdwg.mxu0
        %6778 = vmatprep.subr.mxu0 0.0
        %6779 = vmatpush1.xpose.msra.mxu0 %v4377
        %6780 = vmatprep.subr.mxu0 0.0
        %6781 = vmatpush1.xpose.msra.mxu0 %v4374
        %6782 = vmatprep.subr.mxu0 0.0
        %6783 = vmatpush1.xpose.msra.mxu0 %v4371
        %6784 = vmatprep.subr.mxu0 0.0
        %6785 = vmatpush1.xpose.msra.mxu0 %v4368
        %6786 = vmatprep.subr.mxu0 0.0
        %6787 = vmatpush1.xpose.msra.mxu0 %v4365
        %6788 = vmatprep.subr.mxu0 0.0
        %6789 = vmatpush1.xpose.msra.mxu0 %v4362
        %6790 = vmatprep.subr.mxu0 0.0
        %6791 = vmatpush1.xpose.msra.mxu0 %v4359
        %6792 = vmatprep.subr.mxu0 0.0
        %6793 = vmatpush1.xpose.msra.mxu0 %v4356
        %6794 = vmatprep.subr.mxu0 0.0
        %6795 = vmatpush1.xpose.msra.mxu0 %v4353
        %6796 = vmatprep.subr.mxu0 0.0
        %6797 = vmatpush1.xpose.msra.mxu0 %v4350
        %6798 = vmatprep.subr.mxu0 0.0
        %6799 = vmatpush1.xpose.msra.mxu0 %v4347
        %6800 = vmatprep.subr.mxu0 0.0
        %6801 = vmatpush1.xpose.msra.mxu0 %v4344
        %6802 = vmatprep.subr.mxu0 0.0
        %6803 = vmatpush1.xpose.msra.mxu0 %v4341
        %6804 = vmatprep.subr.mxu0 0.0
        %6805 = vmatpush1.xpose.msra.mxu0 %v4338
        %6806 = vmatprep.subr.mxu0 0.0
        %6807 = vmatpush1.xpose.msra.mxu0 %v4335
        %6808 = vmatprep.subr.mxu0 0.0
        %6809 = vmatpush1.xpose.msra.mxu0 %v4332
        %6810 = vmatprep.subr.mxu0 0.0
        %6811 = vmatpush2.xpose.msra.mxu0 %v4425
        %6812 = vmatprep.subr.mxu0 0.0
        %6813 = vmatpush2.xpose.msra.mxu0 %v4422
        %6814 = vmatprep.subr.mxu0 0.0
        %6815 = vmatpush2.xpose.msra.mxu0 %v4419
        %6816 = vmatprep.subr.mxu0 0.0
        %6817 = vmatpush2.xpose.msra.mxu0 %v4416
        %6818 = vmatprep.subr.mxu0 0.0
        %6819 = vmatpush2.xpose.msra.mxu0 %v4413
        %6820 = vmatprep.subr.mxu0 0.0
        %6821 = vmatpush2.xpose.msra.mxu0 %v4410
        %6822 = vmatprep.subr.mxu0 0.0
        %6823 = vmatpush2.xpose.msra.mxu0 %v4407
        %6824 = vmatprep.subr.mxu0 0.0
        %6825 = vmatpush2.xpose.msra.mxu0 %v4404
        %6826 = vmatprep.subr.mxu0 0.0
        %6827 = vmatpush2.xpose.msra.mxu0 %v4401
        %6828 = vmatprep.subr.mxu0 0.0
        %6829 = vmatpush2.xpose.msra.mxu0 %v4398
        %6830 = vmatprep.subr.mxu0 0.0
        %6831 = vmatpush2.xpose.msra.mxu0 %v4395
        %6832 = vmatprep.subr.mxu0 0.0
        %6833 = vmatpush2.xpose.msra.mxu0 %v4392
        %6834 = vmatprep.subr.mxu0 0.0
        %6835 = vmatpush2.xpose.msra.mxu0 %v4389
        %6836 = vmatprep.subr.mxu0 0.0
        %6837 = vmatpush2.xpose.msra.mxu0 %v4386
        %6838 = vmatprep.subr.mxu0 0.0
        %6839 = vmatpush2.xpose.msra.mxu0 %v4383
        %6840 = vmatprep.subr.mxu0 0.0
        %6841 = vmatpush2.xpose.msra.mxu0 %v4380
        %6842 = vmatprep.mubr.f32.mxu0 0.0
        %6843 = vmatmul.mubr.f32.gmra.mxu0 %v1929
        %v6844 = vpop.f32.mrf.mxu0
        %v6845 = vadd.f32 %v1810, %v6844
        %v6846 = vpop.f32.mrf.mxu0
        %v6847 = vadd.f32 %v1814, %v6846
        %6848 = vdwg.mxu0
        %6849 = vmatprep.subr.mxu0 0.0
        %6850 = vmatpush1.xpose.msra.mxu0 %v4473
        %6851 = vmatprep.subr.mxu0 0.0
        %6852 = vmatpush1.xpose.msra.mxu0 %v4470
        %6853 = vmatprep.subr.mxu0 0.0
        %6854 = vmatpush1.xpose.msra.mxu0 %v4467
        %6855 = vmatprep.subr.mxu0 0.0
        %6856 = vmatpush1.xpose.msra.mxu0 %v4464
        %6857 = vmatprep.subr.mxu0 0.0
        %6858 = vmatpush1.xpose.msra.mxu0 %v4461
        %6859 = vmatprep.subr.mxu0 0.0
        %6860 = vmatpush1.xpose.msra.mxu0 %v4458
        %6861 = vmatprep.subr.mxu0 0.0
        %6862 = vmatpush1.xpose.msra.mxu0 %v4455
        %6863 = vmatprep.subr.mxu0 0.0
        %6864 = vmatpush1.xpose.msra.mxu0 %v4452
        %6865 = vmatprep.subr.mxu0 0.0
        %6866 = vmatpush1.xpose.msra.mxu0 %v4449
        %6867 = vmatprep.subr.mxu0 0.0
        %6868 = vmatpush1.xpose.msra.mxu0 %v4446
        %6869 = vmatprep.subr.mxu0 0.0
        %6870 = vmatpush1.xpose.msra.mxu0 %v4443
        %6871 = vmatprep.subr.mxu0 0.0
        %6872 = vmatpush1.xpose.msra.mxu0 %v4440
        %6873 = vmatprep.subr.mxu0 0.0
        %6874 = vmatpush1.xpose.msra.mxu0 %v4437
        %6875 = vmatprep.subr.mxu0 0.0
        %6876 = vmatpush1.xpose.msra.mxu0 %v4434
        %6877 = vmatprep.subr.mxu0 0.0
        %6878 = vmatpush1.xpose.msra.mxu0 %v4431
        %6879 = vmatprep.subr.mxu0 0.0
        %6880 = vmatpush1.xpose.msra.mxu0 %v4428
        %6881 = vmatprep.subr.mxu0 0.0
        %6882 = vmatpush2.xpose.msra.mxu0 %v4521
        %6883 = vmatprep.subr.mxu0 0.0
        %6884 = vmatpush2.xpose.msra.mxu0 %v4518
        %6885 = vmatprep.subr.mxu0 0.0
        %6886 = vmatpush2.xpose.msra.mxu0 %v4515
        %6887 = vmatprep.subr.mxu0 0.0
        %6888 = vmatpush2.xpose.msra.mxu0 %v4512
        %6889 = vmatprep.subr.mxu0 0.0
        %6890 = vmatpush2.xpose.msra.mxu0 %v4509
        %6891 = vmatprep.subr.mxu0 0.0
        %6892 = vmatpush2.xpose.msra.mxu0 %v4506
        %6893 = vmatprep.subr.mxu0 0.0
        %6894 = vmatpush2.xpose.msra.mxu0 %v4503
        %6895 = vmatprep.subr.mxu0 0.0
        %6896 = vmatpush2.xpose.msra.mxu0 %v4500
        %6897 = vmatprep.subr.mxu0 0.0
        %6898 = vmatpush2.xpose.msra.mxu0 %v4497
        %6899 = vmatprep.subr.mxu0 0.0
        %6900 = vmatpush2.xpose.msra.mxu0 %v4494
        %6901 = vmatprep.subr.mxu0 0.0
        %6902 = vmatpush2.xpose.msra.mxu0 %v4491
        %6903 = vmatprep.subr.mxu0 0.0
        %6904 = vmatpush2.xpose.msra.mxu0 %v4488
        %6905 = vmatprep.subr.mxu0 0.0
        %6906 = vmatpush2.xpose.msra.mxu0 %v4485
        %6907 = vmatprep.subr.mxu0 0.0
        %6908 = vmatpush2.xpose.msra.mxu0 %v4482
        %6909 = vmatprep.subr.mxu0 0.0
        %6910 = vmatpush2.xpose.msra.mxu0 %v4479
        %6911 = vmatprep.subr.mxu0 0.0
        %6912 = vmatpush2.xpose.msra.mxu0 %v4476
        %6913 = vmatprep.mubr.f32.mxu0 0.0
        %6914 = vmatmul.mubr.f32.gmra.mxu0 %v1929
        %v6915 = vpop.f32.mrf.mxu0
        %v6916 = vadd.f32 %v1818, %v6915
        %v6917 = vpop.f32.mrf.mxu0
        %v6918 = vadd.f32 %v1822, %v6917
        %6919 = vdwg.mxu0
        %6920 = vmatprep.subr.mxu0 0.0
        %6921 = vmatpush1.xpose.msra.mxu0 %v4569
        %6922 = vmatprep.subr.mxu0 0.0
        %6923 = vmatpush1.xpose.msra.mxu0 %v4566
        %6924 = vmatprep.subr.mxu0 0.0
        %6925 = vmatpush1.xpose.msra.mxu0 %v4563
        %6926 = vmatprep.subr.mxu0 0.0
        %6927 = vmatpush1.xpose.msra.mxu0 %v4560
        %6928 = vmatprep.subr.mxu0 0.0
        %6929 = vmatpush1.xpose.msra.mxu0 %v4557
        %6930 = vmatprep.subr.mxu0 0.0
        %6931 = vmatpush1.xpose.msra.mxu0 %v4554
        %6932 = vmatprep.subr.mxu0 0.0
        %6933 = vmatpush1.xpose.msra.mxu0 %v4551
        %6934 = vmatprep.subr.mxu0 0.0
        %6935 = vmatpush1.xpose.msra.mxu0 %v4548
        %6936 = vmatprep.subr.mxu0 0.0
        %6937 = vmatpush1.xpose.msra.mxu0 %v4545
        %6938 = vmatprep.subr.mxu0 0.0
        %6939 = vmatpush1.xpose.msra.mxu0 %v4542
        %6940 = vmatprep.subr.mxu0 0.0
        %6941 = vmatpush1.xpose.msra.mxu0 %v4539
        %6942 = vmatprep.subr.mxu0 0.0
        %6943 = vmatpush1.xpose.msra.mxu0 %v4536
        %6944 = vmatprep.subr.mxu0 0.0
        %6945 = vmatpush1.xpose.msra.mxu0 %v4533
        %6946 = vmatprep.subr.mxu0 0.0
        %6947 = vmatpush1.xpose.msra.mxu0 %v4530
        %6948 = vmatprep.subr.mxu0 0.0
        %6949 = vmatpush1.xpose.msra.mxu0 %v4527
        %6950 = vmatprep.subr.mxu0 0.0
        %6951 = vmatpush1.xpose.msra.mxu0 %v4524
        %6952 = vmatprep.subr.mxu0 0.0
        %6953 = vmatpush2.xpose.msra.mxu0 %v4617
        %6954 = vmatprep.subr.mxu0 0.0
        %6955 = vmatpush2.xpose.msra.mxu0 %v4614
        %6956 = vmatprep.subr.mxu0 0.0
        %6957 = vmatpush2.xpose.msra.mxu0 %v4611
        %6958 = vmatprep.subr.mxu0 0.0
        %6959 = vmatpush2.xpose.msra.mxu0 %v4608
        %6960 = vmatprep.subr.mxu0 0.0
        %6961 = vmatpush2.xpose.msra.mxu0 %v4605
        %6962 = vmatprep.subr.mxu0 0.0
        %6963 = vmatpush2.xpose.msra.mxu0 %v4602
        %6964 = vmatprep.subr.mxu0 0.0
        %6965 = vmatpush2.xpose.msra.mxu0 %v4599
        %6966 = vmatprep.subr.mxu0 0.0
        %6967 = vmatpush2.xpose.msra.mxu0 %v4596
        %6968 = vmatprep.subr.mxu0 0.0
        %6969 = vmatpush2.xpose.msra.mxu0 %v4593
        %6970 = vmatprep.subr.mxu0 0.0
        %6971 = vmatpush2.xpose.msra.mxu0 %v4590
        %6972 = vmatprep.subr.mxu0 0.0
        %6973 = vmatpush2.xpose.msra.mxu0 %v4587
        %6974 = vmatprep.subr.mxu0 0.0
        %6975 = vmatpush2.xpose.msra.mxu0 %v4584
        %6976 = vmatprep.subr.mxu0 0.0
        %6977 = vmatpush2.xpose.msra.mxu0 %v4581
        %6978 = vmatprep.subr.mxu0 0.0
        %6979 = vmatpush2.xpose.msra.mxu0 %v4578
        %6980 = vmatprep.subr.mxu0 0.0
        %6981 = vmatpush2.xpose.msra.mxu0 %v4575
        %6982 = vmatprep.subr.mxu0 0.0
        %6983 = vmatpush2.xpose.msra.mxu0 %v4572
        %6984 = vmatprep.mubr.f32.mxu0 0.0
        %6985 = vmatmul.mubr.f32.gmra.mxu0 %v1929
        %v6986 = vpop.f32.mrf.mxu0
        %v6987 = vadd.f32 %v1826, %v6986
        %v6988 = vpop.f32.mrf.mxu0
        %v6989 = vadd.f32 %v1830, %v6988
        %6990 = vdwg.mxu0
        %6991 = vmatprep.subr.mxu0 0.0
        %6992 = vmatpush1.xpose.msra.mxu0 %v4665
        %6993 = vmatprep.subr.mxu0 0.0
        %6994 = vmatpush1.xpose.msra.mxu0 %v4662
        %6995 = vmatprep.subr.mxu0 0.0
        %6996 = vmatpush1.xpose.msra.mxu0 %v4659
        %6997 = vmatprep.subr.mxu0 0.0
        %6998 = vmatpush1.xpose.msra.mxu0 %v4656
        %6999 = vmatprep.subr.mxu0 0.0
        %7000 = vmatpush1.xpose.msra.mxu0 %v4653
        %7001 = vmatprep.subr.mxu0 0.0
        %7002 = vmatpush1.xpose.msra.mxu0 %v4650
        %7003 = vmatprep.subr.mxu0 0.0
        %7004 = vmatpush1.xpose.msra.mxu0 %v4647
        %7005 = vmatprep.subr.mxu0 0.0
        %7006 = vmatpush1.xpose.msra.mxu0 %v4644
        %7007 = vmatprep.subr.mxu0 0.0
        %7008 = vmatpush1.xpose.msra.mxu0 %v4641
        %7009 = vmatprep.subr.mxu0 0.0
        %7010 = vmatpush1.xpose.msra.mxu0 %v4638
        %7011 = vmatprep.subr.mxu0 0.0
        %7012 = vmatpush1.xpose.msra.mxu0 %v4635
        %7013 = vmatprep.subr.mxu0 0.0
        %7014 = vmatpush1.xpose.msra.mxu0 %v4632
        %7015 = vmatprep.subr.mxu0 0.0
        %7016 = vmatpush1.xpose.msra.mxu0 %v4629
        %7017 = vmatprep.subr.mxu0 0.0
        %7018 = vmatpush1.xpose.msra.mxu0 %v4626
        %7019 = vmatprep.subr.mxu0 0.0
        %7020 = vmatpush1.xpose.msra.mxu0 %v4623
        %7021 = vmatprep.subr.mxu0 0.0
        %7022 = vmatpush1.xpose.msra.mxu0 %v4620
        %7023 = vmatprep.subr.mxu0 0.0
        %7024 = vmatpush2.xpose.msra.mxu0 %v4713
        %7025 = vmatprep.subr.mxu0 0.0
        %7026 = vmatpush2.xpose.msra.mxu0 %v4710
        %7027 = vmatprep.subr.mxu0 0.0
        %7028 = vmatpush2.xpose.msra.mxu0 %v4707
        %7029 = vmatprep.subr.mxu0 0.0
        %7030 = vmatpush2.xpose.msra.mxu0 %v4704
        %7031 = vmatprep.subr.mxu0 0.0
        %7032 = vmatpush2.xpose.msra.mxu0 %v4701
        %7033 = vmatprep.subr.mxu0 0.0
        %7034 = vmatpush2.xpose.msra.mxu0 %v4698
        %7035 = vmatprep.subr.mxu0 0.0
        %7036 = vmatpush2.xpose.msra.mxu0 %v4695
        %7037 = vmatprep.subr.mxu0 0.0
        %7038 = vmatpush2.xpose.msra.mxu0 %v4692
        %7039 = vmatprep.subr.mxu0 0.0
        %7040 = vmatpush2.xpose.msra.mxu0 %v4689
        %7041 = vmatprep.subr.mxu0 0.0
        %7042 = vmatpush2.xpose.msra.mxu0 %v4686
        %7043 = vmatprep.subr.mxu0 0.0
        %7044 = vmatpush2.xpose.msra.mxu0 %v4683
        %7045 = vmatprep.subr.mxu0 0.0
        %7046 = vmatpush2.xpose.msra.mxu0 %v4680
        %7047 = vmatprep.subr.mxu0 0.0
        %7048 = vmatpush2.xpose.msra.mxu0 %v4677
        %7049 = vmatprep.subr.mxu0 0.0
        %7050 = vmatpush2.xpose.msra.mxu0 %v4674
        %7051 = vmatprep.subr.mxu0 0.0
        %7052 = vmatpush2.xpose.msra.mxu0 %v4671
        %7053 = vmatprep.subr.mxu0 0.0
        %7054 = vmatpush2.xpose.msra.mxu0 %v4668
        %7055 = vmatprep.mubr.f32.mxu0 0.0
        %7056 = vmatmul.mubr.f32.gmra.mxu0 %v1929
        %v7057 = vpop.f32.mrf.mxu0
        %v7058 = vadd.f32 %v1834, %v7057
        %v7059 = vpop.f32.mrf.mxu0
        %v7060 = vadd.f32 %v1838, %v7059
        %7061 = vdwg.mxu0
        %7062 = vmatprep.subr.mxu0 0.0
        %7063 = vmatpush1.xpose.msra.mxu0 %v4761
        %7064 = vmatprep.subr.mxu0 0.0
        %7065 = vmatpush1.xpose.msra.mxu0 %v4758
        %7066 = vmatprep.subr.mxu0 0.0
        %7067 = vmatpush1.xpose.msra.mxu0 %v4755
        %7068 = vmatprep.subr.mxu0 0.0
        %7069 = vmatpush1.xpose.msra.mxu0 %v4752
        %7070 = vmatprep.subr.mxu0 0.0
        %7071 = vmatpush1.xpose.msra.mxu0 %v4749
        %7072 = vmatprep.subr.mxu0 0.0
        %7073 = vmatpush1.xpose.msra.mxu0 %v4746
        %7074 = vmatprep.subr.mxu0 0.0
        %7075 = vmatpush1.xpose.msra.mxu0 %v4743
        %7076 = vmatprep.subr.mxu0 0.0
        %7077 = vmatpush1.xpose.msra.mxu0 %v4740
        %7078 = vmatprep.subr.mxu0 0.0
        %7079 = vmatpush1.xpose.msra.mxu0 %v4737
        %7080 = vmatprep.subr.mxu0 0.0
        %7081 = vmatpush1.xpose.msra.mxu0 %v4734
        %7082 = vmatprep.subr.mxu0 0.0
        %7083 = vmatpush1.xpose.msra.mxu0 %v4731
        %7084 = vmatprep.subr.mxu0 0.0
        %7085 = vmatpush1.xpose.msra.mxu0 %v4728
        %7086 = vmatprep.subr.mxu0 0.0
        %7087 = vmatpush1.xpose.msra.mxu0 %v4725
        %7088 = vmatprep.subr.mxu0 0.0
        %7089 = vmatpush1.xpose.msra.mxu0 %v4722
        %7090 = vmatprep.subr.mxu0 0.0
        %7091 = vmatpush1.xpose.msra.mxu0 %v4719
        %7092 = vmatprep.subr.mxu0 0.0
        %7093 = vmatpush1.xpose.msra.mxu0 %v4716
        %7094 = vmatprep.subr.mxu0 0.0
        %7095 = vmatpush2.xpose.msra.mxu0 %v4809
        %7096 = vmatprep.subr.mxu0 0.0
        %7097 = vmatpush2.xpose.msra.mxu0 %v4806
        %7098 = vmatprep.subr.mxu0 0.0
        %7099 = vmatpush2.xpose.msra.mxu0 %v4803
        %7100 = vmatprep.subr.mxu0 0.0
        %7101 = vmatpush2.xpose.msra.mxu0 %v4800
        %7102 = vmatprep.subr.mxu0 0.0
        %7103 = vmatpush2.xpose.msra.mxu0 %v4797
        %7104 = vmatprep.subr.mxu0 0.0
        %7105 = vmatpush2.xpose.msra.mxu0 %v4794
        %7106 = vmatprep.subr.mxu0 0.0
        %7107 = vmatpush2.xpose.msra.mxu0 %v4791
        %7108 = vmatprep.subr.mxu0 0.0
        %7109 = vmatpush2.xpose.msra.mxu0 %v4788
        %7110 = vmatprep.subr.mxu0 0.0
        %7111 = vmatpush2.xpose.msra.mxu0 %v4785
        %7112 = vmatprep.subr.mxu0 0.0
        %7113 = vmatpush2.xpose.msra.mxu0 %v4782
        %7114 = vmatprep.subr.mxu0 0.0
        %7115 = vmatpush2.xpose.msra.mxu0 %v4779
        %7116 = vmatprep.subr.mxu0 0.0
        %7117 = vmatpush2.xpose.msra.mxu0 %v4776
        %7118 = vmatprep.subr.mxu0 0.0
        %7119 = vmatpush2.xpose.msra.mxu0 %v4773
        %7120 = vmatprep.subr.mxu0 0.0
        %7121 = vmatpush2.xpose.msra.mxu0 %v4770
        %7122 = vmatprep.subr.mxu0 0.0
        %7123 = vmatpush2.xpose.msra.mxu0 %v4767
        %7124 = vmatprep.subr.mxu0 0.0
        %7125 = vmatpush2.xpose.msra.mxu0 %v4764
        %7126 = vmatprep.mubr.f32.mxu0 0.0
        %7127 = vmatmul.mubr.f32.gmra.mxu0 %v1929
        %v7128 = vpop.f32.mrf.mxu0
        %v7129 = vadd.f32 %v1842, %v7128
        %v7130 = vpop.f32.mrf.mxu0
        %v7131 = vadd.f32 %v1846, %v7130
        %7132 = vdwg.mxu0
        %7133 = vmatprep.subr.mxu0 0.0
        %7134 = vmatpush1.xpose.msra.mxu0 %v4857
        %7135 = vmatprep.subr.mxu0 0.0
        %7136 = vmatpush1.xpose.msra.mxu0 %v4854
        %7137 = vmatprep.subr.mxu0 0.0
        %7138 = vmatpush1.xpose.msra.mxu0 %v4851
        %7139 = vmatprep.subr.mxu0 0.0
        %7140 = vmatpush1.xpose.msra.mxu0 %v4848
        %7141 = vmatprep.subr.mxu0 0.0
        %7142 = vmatpush1.xpose.msra.mxu0 %v4845
        %7143 = vmatprep.subr.mxu0 0.0
        %7144 = vmatpush1.xpose.msra.mxu0 %v4842
        %7145 = vmatprep.subr.mxu0 0.0
        %7146 = vmatpush1.xpose.msra.mxu0 %v4839
        %7147 = vmatprep.subr.mxu0 0.0
        %7148 = vmatpush1.xpose.msra.mxu0 %v4836
        %7149 = vmatprep.subr.mxu0 0.0
        %7150 = vmatpush1.xpose.msra.mxu0 %v4833
        %7151 = vmatprep.subr.mxu0 0.0
        %7152 = vmatpush1.xpose.msra.mxu0 %v4830
        %7153 = vmatprep.subr.mxu0 0.0
        %7154 = vmatpush1.xpose.msra.mxu0 %v4827
        %7155 = vmatprep.subr.mxu0 0.0
        %7156 = vmatpush1.xpose.msra.mxu0 %v4824
        %7157 = vmatprep.subr.mxu0 0.0
        %7158 = vmatpush1.xpose.msra.mxu0 %v4821
        %7159 = vmatprep.subr.mxu0 0.0
        %7160 = vmatpush1.xpose.msra.mxu0 %v4818
        %7161 = vmatprep.subr.mxu0 0.0
        %7162 = vmatpush1.xpose.msra.mxu0 %v4815
        %7163 = vmatprep.subr.mxu0 0.0
        %7164 = vmatpush1.xpose.msra.mxu0 %v4812
        %7165 = vmatprep.subr.mxu0 0.0
        %7166 = vmatpush2.xpose.msra.mxu0 %v4905
        %7167 = vmatprep.subr.mxu0 0.0
        %7168 = vmatpush2.xpose.msra.mxu0 %v4902
        %7169 = vmatprep.subr.mxu0 0.0
        %7170 = vmatpush2.xpose.msra.mxu0 %v4899
        %7171 = vmatprep.subr.mxu0 0.0
        %7172 = vmatpush2.xpose.msra.mxu0 %v4896
        %7173 = vmatprep.subr.mxu0 0.0
        %7174 = vmatpush2.xpose.msra.mxu0 %v4893
        %7175 = vmatprep.subr.mxu0 0.0
        %7176 = vmatpush2.xpose.msra.mxu0 %v4890
        %7177 = vmatprep.subr.mxu0 0.0
        %7178 = vmatpush2.xpose.msra.mxu0 %v4887
        %7179 = vmatprep.subr.mxu0 0.0
        %7180 = vmatpush2.xpose.msra.mxu0 %v4884
        %7181 = vmatprep.subr.mxu0 0.0
        %7182 = vmatpush2.xpose.msra.mxu0 %v4881
        %7183 = vmatprep.subr.mxu0 0.0
        %7184 = vmatpush2.xpose.msra.mxu0 %v4878
        %7185 = vmatprep.subr.mxu0 0.0
        %7186 = vmatpush2.xpose.msra.mxu0 %v4875
        %7187 = vmatprep.subr.mxu0 0.0
        %7188 = vmatpush2.xpose.msra.mxu0 %v4872
        %7189 = vmatprep.subr.mxu0 0.0
        %7190 = vmatpush2.xpose.msra.mxu0 %v4869
        %7191 = vmatprep.subr.mxu0 0.0
        %7192 = vmatpush2.xpose.msra.mxu0 %v4866
        %7193 = vmatprep.subr.mxu0 0.0
        %7194 = vmatpush2.xpose.msra.mxu0 %v4863
        %7195 = vmatprep.subr.mxu0 0.0
        %7196 = vmatpush2.xpose.msra.mxu0 %v4860
        %7197 = vmatprep.mubr.f32.mxu0 0.0
        %7198 = vmatmul.mubr.f32.gmra.mxu0 %v1929
        %v7199 = vpop.f32.mrf.mxu0
        %v7200 = vadd.f32 %v1850, %v7199
        %v7201 = vpop.f32.mrf.mxu0
        %v7202 = vadd.f32 %v1854, %v7201
        %7203 = vdwg.mxu0
        %7204 = vmatprep.subr.mxu0 0.0
        %7205 = vmatpush1.xpose.msra.mxu0 %v4953
        %7206 = vmatprep.subr.mxu0 0.0
        %7207 = vmatpush1.xpose.msra.mxu0 %v4950
        %7208 = vmatprep.subr.mxu0 0.0
        %7209 = vmatpush1.xpose.msra.mxu0 %v4947
        %7210 = vmatprep.subr.mxu0 0.0
        %7211 = vmatpush1.xpose.msra.mxu0 %v4944
        %7212 = vmatprep.subr.mxu0 0.0
        %7213 = vmatpush1.xpose.msra.mxu0 %v4941
        %7214 = vmatprep.subr.mxu0 0.0
        %7215 = vmatpush1.xpose.msra.mxu0 %v4938
        %7216 = vmatprep.subr.mxu0 0.0
        %7217 = vmatpush1.xpose.msra.mxu0 %v4935
        %7218 = vmatprep.subr.mxu0 0.0
        %7219 = vmatpush1.xpose.msra.mxu0 %v4932
        %7220 = vmatprep.subr.mxu0 0.0
        %7221 = vmatpush1.xpose.msra.mxu0 %v4929
        %7222 = vmatprep.subr.mxu0 0.0
        %7223 = vmatpush1.xpose.msra.mxu0 %v4926
        %7224 = vmatprep.subr.mxu0 0.0
        %7225 = vmatpush1.xpose.msra.mxu0 %v4923
        %7226 = vmatprep.subr.mxu0 0.0
        %7227 = vmatpush1.xpose.msra.mxu0 %v4920
        %7228 = vmatprep.subr.mxu0 0.0
        %7229 = vmatpush1.xpose.msra.mxu0 %v4917
        %7230 = vmatprep.subr.mxu0 0.0
        %7231 = vmatpush1.xpose.msra.mxu0 %v4914
        %7232 = vmatprep.subr.mxu0 0.0
        %7233 = vmatpush1.xpose.msra.mxu0 %v4911
        %7234 = vmatprep.subr.mxu0 0.0
        %7235 = vmatpush1.xpose.msra.mxu0 %v4908
        %7236 = vmatprep.subr.mxu0 0.0
        %7237 = vmatpush2.xpose.msra.mxu0 %v5001
        %7238 = vmatprep.subr.mxu0 0.0
        %7239 = vmatpush2.xpose.msra.mxu0 %v4998
        %7240 = vmatprep.subr.mxu0 0.0
        %7241 = vmatpush2.xpose.msra.mxu0 %v4995
        %7242 = vmatprep.subr.mxu0 0.0
        %7243 = vmatpush2.xpose.msra.mxu0 %v4992
        %7244 = vmatprep.subr.mxu0 0.0
        %7245 = vmatpush2.xpose.msra.mxu0 %v4989
        %7246 = vmatprep.subr.mxu0 0.0
        %7247 = vmatpush2.xpose.msra.mxu0 %v4986
        %7248 = vmatprep.subr.mxu0 0.0
        %7249 = vmatpush2.xpose.msra.mxu0 %v4983
        %7250 = vmatprep.subr.mxu0 0.0
        %7251 = vmatpush2.xpose.msra.mxu0 %v4980
        %7252 = vmatprep.subr.mxu0 0.0
        %7253 = vmatpush2.xpose.msra.mxu0 %v4977
        %7254 = vmatprep.subr.mxu0 0.0
        %7255 = vmatpush2.xpose.msra.mxu0 %v4974
        %7256 = vmatprep.subr.mxu0 0.0
        %7257 = vmatpush2.xpose.msra.mxu0 %v4971
        %7258 = vmatprep.subr.mxu0 0.0
        %7259 = vmatpush2.xpose.msra.mxu0 %v4968
        %7260 = vmatprep.subr.mxu0 0.0
        %7261 = vmatpush2.xpose.msra.mxu0 %v4965
        %7262 = vmatprep.subr.mxu0 0.0
        %7263 = vmatpush2.xpose.msra.mxu0 %v4962
        %7264 = vmatprep.subr.mxu0 0.0
        %7265 = vmatpush2.xpose.msra.mxu0 %v4959
        %7266 = vmatprep.subr.mxu0 0.0
        %7267 = vmatpush2.xpose.msra.mxu0 %v4956
        %7268 = vmatprep.mubr.f32.mxu0 0.0
        %7269 = vmatmul.mubr.f32.gmra.mxu0 %v1929
        %v7270 = vpop.f32.mrf.mxu0
        %v7271 = vadd.f32 %v1858, %v7270
        %v7272 = vpop.f32.mrf.mxu0
        %v7273 = vadd.f32 %v1862, %v7272
        %7274 = vdwg.mxu0
        %v7275 = vmax.f32 %v5070, 0.0
        %v7276 = vmax.f32 %v5072, 0.0
        %v7277 = vmax.f32 %v5141, 0.0
        %v7278 = vmax.f32 %v5143, 0.0
        %v7279 = vmax.f32 %v5212, 0.0
        %v7280 = vmax.f32 %v5214, 0.0
        %v7281 = vmax.f32 %v5283, 0.0
        %v7282 = vmax.f32 %v5285, 0.0
        %v7283 = vmax.f32 %v5354, 0.0
        %v7284 = vmax.f32 %v5356, 0.0
        %v7285 = vmax.f32 %v5425, 0.0
        %v7286 = vmax.f32 %v5427, 0.0
        %v7287 = vmax.f32 %v5496, 0.0
        %v7288 = vmax.f32 %v5498, 0.0
        %v7289 = vmax.f32 %v5567, 0.0
        %v7290 = vmax.f32 %v5569, 0.0
        %v7291 = vmax.f32 %v5638, 0.0
        %v7292 = vmax.f32 %v5640, 0.0
        %v7293 = vmax.f32 %v5709, 0.0
        %v7294 = vmax.f32 %v5711, 0.0
        %v7295 = vmax.f32 %v5780, 0.0
        %v7296 = vmax.f32 %v5782, 0.0
        %v7297 = vmax.f32 %v5851, 0.0
        %v7298 = vmax.f32 %v5853, 0.0
        %v7299 = vmax.f32 %v5922, 0.0
        %v7300 = vmax.f32 %v5924, 0.0
        %v7301 = vmax.f32 %v5993, 0.0
        %v7302 = vmax.f32 %v5995, 0.0
        %v7303 = vmax.f32 %v6064, 0.0
        %v7304 = vmax.f32 %v6066, 0.0
        %v7305 = vmax.f32 %v6135, 0.0
        %v7306 = vmax.f32 %v6137, 0.0
        %v7307 = vmax.f32 %v6206, 0.0
        %v7308 = vmax.f32 %v6208, 0.0
        %v7309 = vmax.f32 %v6277, 0.0
        %v7310 = vmax.f32 %v6279, 0.0
        %v7311 = vmax.f32 %v6348, 0.0
        %v7312 = vmax.f32 %v6350, 0.0
        %v7313 = vmax.f32 %v6419, 0.0
        %v7314 = vmax.f32 %v6421, 0.0
        %v7315 = vmax.f32 %v6490, 0.0
        %v7316 = vmax.f32 %v6492, 0.0
        %v7317 = vmax.f32 %v6561, 0.0
        %v7318 = vmax.f32 %v6563, 0.0
        %v7319 = vmax.f32 %v6632, 0.0
        %v7320 = vmax.f32 %v6634, 0.0
        %v7321 = vmax.f32 %v6703, 0.0
        %v7322 = vmax.f32 %v6705, 0.0
        %v7323 = vmax.f32 %v6774, 0.0
        %v7324 = vmax.f32 %v6776, 0.0
        %v7325 = vmax.f32 %v6845, 0.0
        %v7326 = vmax.f32 %v6847, 0.0
        %v7327 = vmax.f32 %v6916, 0.0
        %v7328 = vmax.f32 %v6918, 0.0
        %v7329 = vmax.f32 %v6987, 0.0
        %v7330 = vmax.f32 %v6989, 0.0
        %v7331 = vmax.f32 %v7058, 0.0
        %v7332 = vmax.f32 %v7060, 0.0
        %v7333 = vmax.f32 %v7129, 0.0
        %v7334 = vmax.f32 %v7131, 0.0
        %v7335 = vmax.f32 %v7200, 0.0
        %v7336 = vmax.f32 %v7202, 0.0
        %v7337 = vmax.f32 %v7271, 0.0
        %v7338 = vmax.f32 %v7273, 0.0
        %7339 = vst [vmem:[%s550] sm:$0xff] %v7275
        %7340 = vst [vmem:[%s550 + $0x8] sm:$0xff] %v7276
        %7341 = vst [vmem:[%s550 + $0x10] sm:$0xff] %v7277
        %7342 = vst [vmem:[%s550 + $0x18] sm:$0xff] %v7278
        %7343 = vst [vmem:[%s550 + $0x20] sm:$0xff] %v7279
        %7344 = vst [vmem:[%s550 + $0x28] sm:$0xff] %v7280
        %7345 = vst [vmem:[%s550 + $0x30] sm:$0xff] %v7281
        %7346 = vst [vmem:[%s550 + $0x38] sm:$0xff] %v7282
        %7347 = vst [vmem:[%s550 + $0x40] sm:$0xff] %v7283
        %7348 = vst [vmem:[%s550 + $0x48] sm:$0xff] %v7284
        %7349 = vst [vmem:[%s550 + $0x50] sm:$0xff] %v7285
        %7350 = vst [vmem:[%s550 + $0x58] sm:$0xff] %v7286
        %7351 = vst [vmem:[%s550 + $0x60] sm:$0xff] %v7287
        %7352 = vst [vmem:[%s550 + $0x68] sm:$0xff] %v7288
        %7353 = vst [vmem:[%s550 + $0x70] sm:$0xff] %v7289
        %7354 = vst [vmem:[%s550 + $0x78] sm:$0xff] %v7290
        %7355 = vst [vmem:[%s550 + $0x80] sm:$0xff] %v7291
        %7356 = vst [vmem:[%s550 + $0x88] sm:$0xff] %v7292
        %7357 = vst [vmem:[%s550 + $0x90] sm:$0xff] %v7293
        %7358 = vst [vmem:[%s550 + $0x98] sm:$0xff] %v7294
        %7359 = vst [vmem:[%s550 + $0xa0] sm:$0xff] %v7295
        %7360 = vst [vmem:[%s550 + $0xa8] sm:$0xff] %v7296
        %7361 = vst [vmem:[%s550 + $0xb0] sm:$0xff] %v7297
        %7362 = vst [vmem:[%s550 + $0xb8] sm:$0xff] %v7298
        %7363 = vst [vmem:[%s550 + $0xc0] sm:$0xff] %v7299
        %7364 = vst [vmem:[%s550 + $0xc8] sm:$0xff] %v7300
        %7365 = vst [vmem:[%s550 + $0xd0] sm:$0xff] %v7301
        %7366 = vst [vmem:[%s550 + $0xd8] sm:$0xff] %v7302
        %7367 = vst [vmem:[%s550 + $0xe0] sm:$0xff] %v7303
        %7368 = vst [vmem:[%s550 + $0xe8] sm:$0xff] %v7304
        %7369 = vst [vmem:[%s550 + $0xf0] sm:$0xff] %v7305
        %7370 = vst [vmem:[%s550 + $0xf8] sm:$0xff] %v7306
        %7371 = vst [vmem:[%s550 + $0x100] sm:$0xff] %v7307
        %7372 = vst [vmem:[%s550 + $0x108] sm:$0xff] %v7308
        %7373 = vst [vmem:[%s550 + $0x110] sm:$0xff] %v7309
        %7374 = vst [vmem:[%s550 + $0x118] sm:$0xff] %v7310
        %7375 = vst [vmem:[%s550 + $0x120] sm:$0xff] %v7311
        %7376 = vst [vmem:[%s550 + $0x128] sm:$0xff] %v7312
        %7377 = vst [vmem:[%s550 + $0x130] sm:$0xff] %v7313
        %7378 = vst [vmem:[%s550 + $0x138] sm:$0xff] %v7314
        %7379 = vst [vmem:[%s550 + $0x140] sm:$0xff] %v7315
        %7380 = vst [vmem:[%s550 + $0x148] sm:$0xff] %v7316
        %7381 = vst [vmem:[%s550 + $0x150] sm:$0xff] %v7317
        %7382 = vst [vmem:[%s550 + $0x158] sm:$0xff] %v7318
        %7383 = vst [vmem:[%s550 + $0x160] sm:$0xff] %v7319
        %7384 = vst [vmem:[%s550 + $0x168] sm:$0xff] %v7320
        %7385 = vst [vmem:[%s550 + $0x170] sm:$0xff] %v7321
        %7386 = vst [vmem:[%s550 + $0x178] sm:$0xff] %v7322
        %7387 = vst [vmem:[%s550 + $0x180] sm:$0xff] %v7323
        %7388 = vst [vmem:[%s550 + $0x188] sm:$0xff] %v7324
        %7389 = vst [vmem:[%s550 + $0x190] sm:$0xff] %v7325
        %7390 = vst [vmem:[%s550 + $0x198] sm:$0xff] %v7326
        %7391 = vst [vmem:[%s550 + $0x1a0] sm:$0xff] %v7327
        %7392 = vst [vmem:[%s550 + $0x1a8] sm:$0xff] %v7328
        %7393 = vst [vmem:[%s550 + $0x1b0] sm:$0xff] %v7329
        %7394 = vst [vmem:[%s550 + $0x1b8] sm:$0xff] %v7330
        %7395 = vst [vmem:[%s550 + $0x1c0] sm:$0xff] %v7331
        %7396 = vst [vmem:[%s550 + $0x1c8] sm:$0xff] %v7332
        %7397 = vst [vmem:[%s550 + $0x1d0] sm:$0xff] %v7333
        %7398 = vst [vmem:[%s550 + $0x1d8] sm:$0xff] %v7334
        %7399 = vst [vmem:[%s550 + $0x1e0] sm:$0xff] %v7335
        %7400 = vst [vmem:[%s550 + $0x1e8] sm:$0xff] %v7336
        %7401 = vst [vmem:[%s550 + $0x1f0] sm:$0xff] %v7337
        %7402 = vst [vmem:[%s550 + $0x1f8] sm:$0xff] %v7338
        %p7403 = scmp.eq.s32.totalorder %s22, 0
        // Predicated region
        $region64: #{mlp_forward.1} parent=58 // pred_check
          %p7404 = pneg %p7403
        $region65: #{mlp_forward.1} parent=58 // pred_check_branch
          %7406 = sbr.rel (%p7404) target = $region67
        $region66: #{mlp_forward.1} parent=58 // pred_region
          %vm7407 = vcmask 80896
          %7408 = vst.msk [vmem:[#allocation2] sm:$0xff] %vm7407, 0.0
        $region67: #{mlp_forward.1} parent=58 // pred_fallthru
          _
        %v7409 = vld [vmem:[#allocation2] sm:$0xff]
        %v7410 = vld [vmem:[%s517] sm:$0xff]
        %v7411 = vld [vmem:[%s517 + $0x8] sm:$0xff]
        %v7412 = vld [vmem:[%s517 + $0x10] sm:$0xff]
        %v7413 = vld [vmem:[%s517 + $0x18] sm:$0xff]
        %v7414 = vld [vmem:[%s517 + $0x20] sm:$0xff]
        %v7415 = vld [vmem:[%s517 + $0x28] sm:$0xff]
        %v7416 = vld [vmem:[%s517 + $0x30] sm:$0xff]
        %v7417 = vld [vmem:[%s517 + $0x38] sm:$0xff]
        %v7418 = vld [vmem:[%s517 + $0x40] sm:$0xff]
        %v7419 = vld [vmem:[%s517 + $0x48] sm:$0xff]
        %v7420 = vld [vmem:[%s517 + $0x50] sm:$0xff]
        %v7421 = vld [vmem:[%s517 + $0x58] sm:$0xff]
        %v7422 = vld [vmem:[%s517 + $0x60] sm:$0xff]
        %v7423 = vld [vmem:[%s517 + $0x68] sm:$0xff]
        %v7424 = vld [vmem:[%s517 + $0x70] sm:$0xff]
        %v7425 = vld [vmem:[%s517 + $0x78] sm:$0xff]
        %v7426 = vld [vmem:[%s517 + $0x80] sm:$0xff]
        %v7427 = vld [vmem:[%s517 + $0x88] sm:$0xff]
        %v7428 = vld [vmem:[%s517 + $0x90] sm:$0xff]
        %v7429 = vld [vmem:[%s517 + $0x98] sm:$0xff]
        %v7430 = vld [vmem:[%s517 + $0xa0] sm:$0xff]
        %v7431 = vld [vmem:[%s517 + $0xa8] sm:$0xff]
        %v7432 = vld [vmem:[%s517 + $0xb0] sm:$0xff]
        %v7433 = vld [vmem:[%s517 + $0xb8] sm:$0xff]
        %v7434 = vld [vmem:[%s517 + $0xc0] sm:$0xff]
        %v7435 = vld [vmem:[%s517 + $0xc8] sm:$0xff]
        %v7436 = vld [vmem:[%s517 + $0xd0] sm:$0xff]
        %v7437 = vld [vmem:[%s517 + $0xd8] sm:$0xff]
        %v7438 = vld [vmem:[%s517 + $0xe0] sm:$0xff]
        %v7439 = vld [vmem:[%s517 + $0xe8] sm:$0xff]
        %v7440 = vld [vmem:[%s517 + $0xf0] sm:$0xff]
        %v7441 = vld [vmem:[%s517 + $0xf8] sm:$0xff]
        %v7442 = vld [vmem:[%s517 + $0x100] sm:$0xff]
        %v7443 = vld [vmem:[%s517 + $0x108] sm:$0xff]
        %v7444 = vld [vmem:[%s517 + $0x110] sm:$0xff]
        %v7445 = vld [vmem:[%s517 + $0x118] sm:$0xff]
        %v7446 = vld [vmem:[%s517 + $0x120] sm:$0xff]
        %v7447 = vld [vmem:[%s517 + $0x128] sm:$0xff]
        %v7448 = vld [vmem:[%s517 + $0x130] sm:$0xff]
        %v7449 = vld [vmem:[%s517 + $0x138] sm:$0xff]
        %v7450 = vld [vmem:[%s517 + $0x140] sm:$0xff]
        %v7451 = vld [vmem:[%s517 + $0x148] sm:$0xff]
        %v7452 = vld [vmem:[%s517 + $0x150] sm:$0xff]
        %v7453 = vld [vmem:[%s517 + $0x158] sm:$0xff]
        %v7454 = vld [vmem:[%s517 + $0x160] sm:$0xff]
        %v7455 = vld [vmem:[%s517 + $0x168] sm:$0xff]
        %v7456 = vld [vmem:[%s517 + $0x170] sm:$0xff]
        %v7457 = vld [vmem:[%s517 + $0x178] sm:$0xff]
        %v7458 = vld [vmem:[%s517 + $0x180] sm:$0xff]
        %v7459 = vld [vmem:[%s517 + $0x188] sm:$0xff]
        %v7460 = vld [vmem:[%s517 + $0x190] sm:$0xff]
        %v7461 = vld [vmem:[%s517 + $0x198] sm:$0xff]
        %v7462 = vld [vmem:[%s517 + $0x1a0] sm:$0xff]
        %v7463 = vld [vmem:[%s517 + $0x1a8] sm:$0xff]
        %v7464 = vld [vmem:[%s517 + $0x1b0] sm:$0xff]
        %v7465 = vld [vmem:[%s517 + $0x1b8] sm:$0xff]
        %v7466 = vld [vmem:[%s517 + $0x1c0] sm:$0xff]
        %v7467 = vld [vmem:[%s517 + $0x1c8] sm:$0xff]
        %v7468 = vld [vmem:[%s517 + $0x1d0] sm:$0xff]
        %v7469 = vld [vmem:[%s517 + $0x1d8] sm:$0xff]
        %v7470 = vld [vmem:[%s517 + $0x1e0] sm:$0xff]
        %v7471 = vld [vmem:[%s517 + $0x1e8] sm:$0xff]
        %v7472 = vld [vmem:[%s517 + $0x1f0] sm:$0xff]
        %v7473 = vld [vmem:[%s517 + $0x1f8] sm:$0xff]
        %v7474 = vld [vmem:[%s517 + $0x200] sm:$0x3]
        %v7475 = vld [vmem:[%s517 + $0x208] sm:$0x3]
        %v7476 = vld [vmem:[%s517 + $0x210] sm:$0x3]
        %v7477 = vld [vmem:[%s517 + $0x218] sm:$0x3]
        %v7478 = vld [vmem:[%s517 + $0x220] sm:$0x3]
        %v7479 = vld [vmem:[%s517 + $0x228] sm:$0x3]
        %v7480 = vld [vmem:[%s517 + $0x230] sm:$0x3]
        %v7481 = vld [vmem:[%s517 + $0x238] sm:$0x3]
        %v7482 = vld [vmem:[%s517 + $0x240] sm:$0x3]
        %v7483 = vld [vmem:[%s517 + $0x248] sm:$0x3]
        %v7484 = vld [vmem:[%s517 + $0x250] sm:$0x3]
        %v7485 = vld [vmem:[%s517 + $0x258] sm:$0x3]
        %v7486 = vld [vmem:[%s517 + $0x260] sm:$0x3]
        %v7487 = vld [vmem:[%s517 + $0x268] sm:$0x3]
        %v7488 = vld [vmem:[%s517 + $0x270] sm:$0x3]
        %v7489 = vld [vmem:[%s517 + $0x278] sm:$0x3]
        %v7490 = vld [vmem:[%s517 + $0x280] sm:$0x3]
        %v7491 = vld [vmem:[%s517 + $0x288] sm:$0x3]
        %v7492 = vld [vmem:[%s517 + $0x290] sm:$0x3]
        %v7493 = vld [vmem:[%s517 + $0x298] sm:$0x3]
        %v7494 = vld [vmem:[%s517 + $0x2a0] sm:$0x3]
        %v7495 = vld [vmem:[%s517 + $0x2a8] sm:$0x3]
        %v7496 = vld [vmem:[%s517 + $0x2b0] sm:$0x3]
        %v7497 = vld [vmem:[%s517 + $0x2b8] sm:$0x3]
        %v7498 = vld [vmem:[%s517 + $0x2c0] sm:$0x3]
        %v7499 = vld [vmem:[%s517 + $0x2c8] sm:$0x3]
        %v7500 = vld [vmem:[%s517 + $0x2d0] sm:$0x3]
        %v7501 = vld [vmem:[%s517 + $0x2d8] sm:$0x3]
        %v7502 = vld [vmem:[%s517 + $0x2e0] sm:$0x3]
        %v7503 = vld [vmem:[%s517 + $0x2e8] sm:$0x3]
        %v7504 = vld [vmem:[%s517 + $0x2f0] sm:$0x3]
        %v7505 = vld [vmem:[%s517 + $0x2f8] sm:$0x3]
        %v7506 = vld [vmem:[%s517 + $0x300] sm:$0x3]
        %v7507 = vld [vmem:[%s517 + $0x308] sm:$0x3]
        %v7508 = vld [vmem:[%s517 + $0x310] sm:$0x3]
        %v7509 = vld [vmem:[%s517 + $0x318] sm:$0x3]
        %v7510 = vld [vmem:[%s517 + $0x320] sm:$0x3]
        %v7511 = vld [vmem:[%s517 + $0x328] sm:$0x3]
        %v7512 = vld [vmem:[%s517 + $0x330] sm:$0x3]
        %v7513 = vld [vmem:[%s517 + $0x338] sm:$0x3]
        %v7514 = vld [vmem:[%s517 + $0x340] sm:$0x3]
        %v7515 = vld [vmem:[%s517 + $0x348] sm:$0x3]
        %v7516 = vld [vmem:[%s517 + $0x350] sm:$0x3]
        %v7517 = vld [vmem:[%s517 + $0x358] sm:$0x3]
        %v7518 = vld [vmem:[%s517 + $0x360] sm:$0x3]
        %v7519 = vld [vmem:[%s517 + $0x368] sm:$0x3]
        %v7520 = vld [vmem:[%s517 + $0x370] sm:$0x3]
        %v7521 = vld [vmem:[%s517 + $0x378] sm:$0x3]
        %v7522 = vld [vmem:[%s517 + $0x380] sm:$0x3]
        %v7523 = vld [vmem:[%s517 + $0x388] sm:$0x3]
        %v7524 = vld [vmem:[%s517 + $0x390] sm:$0x3]
        %v7525 = vld [vmem:[%s517 + $0x398] sm:$0x3]
        %v7526 = vld [vmem:[%s517 + $0x3a0] sm:$0x3]
        %v7527 = vld [vmem:[%s517 + $0x3a8] sm:$0x3]
        %v7528 = vld [vmem:[%s517 + $0x3b0] sm:$0x3]
        %v7529 = vld [vmem:[%s517 + $0x3b8] sm:$0x3]
        %v7530 = vld [vmem:[%s517 + $0x3c0] sm:$0x3]
        %v7531 = vld [vmem:[%s517 + $0x3c8] sm:$0x3]
        %v7532 = vld [vmem:[%s517 + $0x3d0] sm:$0x3]
        %v7533 = vld [vmem:[%s517 + $0x3d8] sm:$0x3]
        %v7534 = vld [vmem:[%s517 + $0x3e0] sm:$0x3]
        %v7535 = vld [vmem:[%s517 + $0x3e8] sm:$0x3]
        %v7536 = vld [vmem:[%s517 + $0x3f0] sm:$0x3]
        %v7537 = vld [vmem:[%s517 + $0x3f8] sm:$0x3]
        %7538 = vmatprep.subr.mxu0 0.0
        %7539 = vmatpush1.xpose.msra.mxu0 0.0
        %7540 = vmatprep.subr.mxu0 0.0
        %7541 = vmatpush1.xpose.msra.mxu0 0.0
        %7542 = vmatprep.subr.mxu0 0.0
        %7543 = vmatpush1.xpose.msra.mxu0 0.0
        %7544 = vmatprep.subr.mxu0 0.0
        %7545 = vmatpush1.xpose.msra.mxu0 0.0
        %7546 = vmatprep.subr.mxu0 0.0
        %7547 = vmatpush1.xpose.msra.mxu0 0.0
        %7548 = vmatprep.subr.mxu0 0.0
        %7549 = vmatpush1.xpose.msra.mxu0 0.0
        %7550 = vmatprep.subr.mxu0 0.0
        %7551 = vmatpush1.xpose.msra.mxu0 0.0
        %7552 = vmatprep.subr.mxu0 0.0
        %7553 = vmatpush1.xpose.msra.mxu0 0.0
        %7554 = vmatprep.subr.mxu0 0.0
        %7555 = vmatpush1.xpose.msra.mxu0 0.0
        %7556 = vmatprep.subr.mxu0 0.0
        %7557 = vmatpush1.xpose.msra.mxu0 0.0
        %7558 = vmatprep.subr.mxu0 0.0
        %7559 = vmatpush1.xpose.msra.mxu0 0.0
        %7560 = vmatprep.subr.mxu0 0.0
        %7561 = vmatpush1.xpose.msra.mxu0 0.0
        %7562 = vmatprep.subr.mxu0 0.0
        %7563 = vmatpush1.xpose.msra.mxu0 0.0
        %7564 = vmatprep.subr.mxu0 0.0
        %7565 = vmatpush1.xpose.msra.mxu0 0.0
        %7566 = vmatprep.subr.mxu0 %v7475
        %7567 = vmatpush1.xpose.msra.mxu0 %v7474
        %7568 = vmatprep.subr.mxu0 %v7411
        %7569 = vmatpush1.xpose.msra.mxu0 %v7410
        %7570 = vmatprep.subr.mxu0 0.0
        %7571 = vmatpush2.xpose.msra.mxu0 0.0
        %7572 = vmatprep.subr.mxu0 0.0
        %7573 = vmatpush2.xpose.msra.mxu0 0.0
        %7574 = vmatprep.subr.mxu0 0.0
        %7575 = vmatpush2.xpose.msra.mxu0 0.0
        %7576 = vmatprep.subr.mxu0 0.0
        %7577 = vmatpush2.xpose.msra.mxu0 0.0
        %7578 = vmatprep.subr.mxu0 0.0
        %7579 = vmatpush2.xpose.msra.mxu0 0.0
        %7580 = vmatprep.subr.mxu0 0.0
        %7581 = vmatpush2.xpose.msra.mxu0 0.0
        %7582 = vmatprep.subr.mxu0 0.0
        %7583 = vmatpush2.xpose.msra.mxu0 0.0
        %7584 = vmatprep.subr.mxu0 0.0
        %7585 = vmatpush2.xpose.msra.mxu0 0.0
        %7586 = vmatprep.subr.mxu0 0.0
        %7587 = vmatpush2.xpose.msra.mxu0 0.0
        %7588 = vmatprep.subr.mxu0 0.0
        %7589 = vmatpush2.xpose.msra.mxu0 0.0
        %7590 = vmatprep.subr.mxu0 0.0
        %7591 = vmatpush2.xpose.msra.mxu0 0.0
        %7592 = vmatprep.subr.mxu0 0.0
        %7593 = vmatpush2.xpose.msra.mxu0 0.0
        %7594 = vmatprep.subr.mxu0 0.0
        %7595 = vmatpush2.xpose.msra.mxu0 0.0
        %7596 = vmatprep.subr.mxu0 0.0
        %7597 = vmatpush2.xpose.msra.mxu0 0.0
        %7598 = vmatprep.subr.mxu0 0.0
        %7599 = vmatpush2.xpose.msra.mxu0 0.0
        %7600 = vmatprep.subr.mxu0 0.0
        %7601 = vmatpush2.xpose.msra.mxu0 0.0
        %7602 = vmatprep.mubr.f32.mxu0 %v7276
        %7603 = vmatmul.mubr.f32.gmra.mxu0 %v7275
        %v7604 = vpop.f32.mrf.mxu0
        %v7605 = vadd.f32 0.0, %v7604
        %v7606 = vpop.f32.mrf.mxu0
        %7607 = vdwg.mxu0
        %7608 = vmatprep.subr.mxu0 0.0
        %7609 = vmatpush1.xpose.msra.mxu0 0.0
        %7610 = vmatprep.subr.mxu0 0.0
        %7611 = vmatpush1.xpose.msra.mxu0 0.0
        %7612 = vmatprep.subr.mxu0 0.0
        %7613 = vmatpush1.xpose.msra.mxu0 0.0
        %7614 = vmatprep.subr.mxu0 0.0
        %7615 = vmatpush1.xpose.msra.mxu0 0.0
        %7616 = vmatprep.subr.mxu0 0.0
        %7617 = vmatpush1.xpose.msra.mxu0 0.0
        %7618 = vmatprep.subr.mxu0 0.0
        %7619 = vmatpush1.xpose.msra.mxu0 0.0
        %7620 = vmatprep.subr.mxu0 0.0
        %7621 = vmatpush1.xpose.msra.mxu0 0.0
        %7622 = vmatprep.subr.mxu0 0.0
        %7623 = vmatpush1.xpose.msra.mxu0 0.0
        %7624 = vmatprep.subr.mxu0 0.0
        %7625 = vmatpush1.xpose.msra.mxu0 0.0
        %7626 = vmatprep.subr.mxu0 0.0
        %7627 = vmatpush1.xpose.msra.mxu0 0.0
        %7628 = vmatprep.subr.mxu0 0.0
        %7629 = vmatpush1.xpose.msra.mxu0 0.0
        %7630 = vmatprep.subr.mxu0 0.0
        %7631 = vmatpush1.xpose.msra.mxu0 0.0
        %7632 = vmatprep.subr.mxu0 0.0
        %7633 = vmatpush1.xpose.msra.mxu0 0.0
        %7634 = vmatprep.subr.mxu0 0.0
        %7635 = vmatpush1.xpose.msra.mxu0 0.0
        %7636 = vmatprep.subr.mxu0 %v7477
        %7637 = vmatpush1.xpose.msra.mxu0 %v7476
        %7638 = vmatprep.subr.mxu0 %v7413
        %7639 = vmatpush1.xpose.msra.mxu0 %v7412
        %7640 = vmatprep.subr.mxu0 0.0
        %7641 = vmatpush2.xpose.msra.mxu0 0.0
        %7642 = vmatprep.subr.mxu0 0.0
        %7643 = vmatpush2.xpose.msra.mxu0 0.0
        %7644 = vmatprep.subr.mxu0 0.0
        %7645 = vmatpush2.xpose.msra.mxu0 0.0
        %7646 = vmatprep.subr.mxu0 0.0
        %7647 = vmatpush2.xpose.msra.mxu0 0.0
        %7648 = vmatprep.subr.mxu0 0.0
        %7649 = vmatpush2.xpose.msra.mxu0 0.0
        %7650 = vmatprep.subr.mxu0 0.0
        %7651 = vmatpush2.xpose.msra.mxu0 0.0
        %7652 = vmatprep.subr.mxu0 0.0
        %7653 = vmatpush2.xpose.msra.mxu0 0.0
        %7654 = vmatprep.subr.mxu0 0.0
        %7655 = vmatpush2.xpose.msra.mxu0 0.0
        %7656 = vmatprep.subr.mxu0 0.0
        %7657 = vmatpush2.xpose.msra.mxu0 0.0
        %7658 = vmatprep.subr.mxu0 0.0
        %7659 = vmatpush2.xpose.msra.mxu0 0.0
        %7660 = vmatprep.subr.mxu0 0.0
        %7661 = vmatpush2.xpose.msra.mxu0 0.0
        %7662 = vmatprep.subr.mxu0 0.0
        %7663 = vmatpush2.xpose.msra.mxu0 0.0
        %7664 = vmatprep.subr.mxu0 0.0
        %7665 = vmatpush2.xpose.msra.mxu0 0.0
        %7666 = vmatprep.subr.mxu0 0.0
        %7667 = vmatpush2.xpose.msra.mxu0 0.0
        %7668 = vmatprep.subr.mxu0 0.0
        %7669 = vmatpush2.xpose.msra.mxu0 0.0
        %7670 = vmatprep.subr.mxu0 0.0
        %7671 = vmatpush2.xpose.msra.mxu0 0.0
        %7672 = vmatprep.mubr.f32.mxu0 %v7278
        %7673 = vmatmul.mubr.f32.gmra.mxu0 %v7277
        %v7674 = vpop.f32.mrf.mxu0
        %v7675 = vadd.f32 %v7605, %v7674
        %v7676 = vpop.f32.mrf.mxu0
        %7677 = vdwg.mxu0
        %7678 = vmatprep.subr.mxu0 0.0
        %7679 = vmatpush1.xpose.msra.mxu0 0.0
        %7680 = vmatprep.subr.mxu0 0.0
        %7681 = vmatpush1.xpose.msra.mxu0 0.0
        %7682 = vmatprep.subr.mxu0 0.0
        %7683 = vmatpush1.xpose.msra.mxu0 0.0
        %7684 = vmatprep.subr.mxu0 0.0
        %7685 = vmatpush1.xpose.msra.mxu0 0.0
        %7686 = vmatprep.subr.mxu0 0.0
        %7687 = vmatpush1.xpose.msra.mxu0 0.0
        %7688 = vmatprep.subr.mxu0 0.0
        %7689 = vmatpush1.xpose.msra.mxu0 0.0
        %7690 = vmatprep.subr.mxu0 0.0
        %7691 = vmatpush1.xpose.msra.mxu0 0.0
        %7692 = vmatprep.subr.mxu0 0.0
        %7693 = vmatpush1.xpose.msra.mxu0 0.0
        %7694 = vmatprep.subr.mxu0 0.0
        %7695 = vmatpush1.xpose.msra.mxu0 0.0
        %7696 = vmatprep.subr.mxu0 0.0
        %7697 = vmatpush1.xpose.msra.mxu0 0.0
        %7698 = vmatprep.subr.mxu0 0.0
        %7699 = vmatpush1.xpose.msra.mxu0 0.0
        %7700 = vmatprep.subr.mxu0 0.0
        %7701 = vmatpush1.xpose.msra.mxu0 0.0
        %7702 = vmatprep.subr.mxu0 0.0
        %7703 = vmatpush1.xpose.msra.mxu0 0.0
        %7704 = vmatprep.subr.mxu0 0.0
        %7705 = vmatpush1.xpose.msra.mxu0 0.0
        %7706 = vmatprep.subr.mxu0 %v7479
        %7707 = vmatpush1.xpose.msra.mxu0 %v7478
        %7708 = vmatprep.subr.mxu0 %v7415
        %7709 = vmatpush1.xpose.msra.mxu0 %v7414
        %7710 = vmatprep.subr.mxu0 0.0
        %7711 = vmatpush2.xpose.msra.mxu0 0.0
        %7712 = vmatprep.subr.mxu0 0.0
        %7713 = vmatpush2.xpose.msra.mxu0 0.0
        %7714 = vmatprep.subr.mxu0 0.0
        %7715 = vmatpush2.xpose.msra.mxu0 0.0
        %7716 = vmatprep.subr.mxu0 0.0
        %7717 = vmatpush2.xpose.msra.mxu0 0.0
        %7718 = vmatprep.subr.mxu0 0.0
        %7719 = vmatpush2.xpose.msra.mxu0 0.0
        %7720 = vmatprep.subr.mxu0 0.0
        %7721 = vmatpush2.xpose.msra.mxu0 0.0
        %7722 = vmatprep.subr.mxu0 0.0
        %7723 = vmatpush2.xpose.msra.mxu0 0.0
        %7724 = vmatprep.subr.mxu0 0.0
        %7725 = vmatpush2.xpose.msra.mxu0 0.0
        %7726 = vmatprep.subr.mxu0 0.0
        %7727 = vmatpush2.xpose.msra.mxu0 0.0
        %7728 = vmatprep.subr.mxu0 0.0
        %7729 = vmatpush2.xpose.msra.mxu0 0.0
        %7730 = vmatprep.subr.mxu0 0.0
        %7731 = vmatpush2.xpose.msra.mxu0 0.0
        %7732 = vmatprep.subr.mxu0 0.0
        %7733 = vmatpush2.xpose.msra.mxu0 0.0
        %7734 = vmatprep.subr.mxu0 0.0
        %7735 = vmatpush2.xpose.msra.mxu0 0.0
        %7736 = vmatprep.subr.mxu0 0.0
        %7737 = vmatpush2.xpose.msra.mxu0 0.0
        %7738 = vmatprep.subr.mxu0 0.0
        %7739 = vmatpush2.xpose.msra.mxu0 0.0
        %7740 = vmatprep.subr.mxu0 0.0
        %7741 = vmatpush2.xpose.msra.mxu0 0.0
        %7742 = vmatprep.mubr.f32.mxu0 %v7280
        %7743 = vmatmul.mubr.f32.gmra.mxu0 %v7279
        %v7744 = vpop.f32.mrf.mxu0
        %v7745 = vadd.f32 %v7675, %v7744
        %v7746 = vpop.f32.mrf.mxu0
        %7747 = vdwg.mxu0
        %7748 = vmatprep.subr.mxu0 0.0
        %7749 = vmatpush1.xpose.msra.mxu0 0.0
        %7750 = vmatprep.subr.mxu0 0.0
        %7751 = vmatpush1.xpose.msra.mxu0 0.0
        %7752 = vmatprep.subr.mxu0 0.0
        %7753 = vmatpush1.xpose.msra.mxu0 0.0
        %7754 = vmatprep.subr.mxu0 0.0
        %7755 = vmatpush1.xpose.msra.mxu0 0.0
        %7756 = vmatprep.subr.mxu0 0.0
        %7757 = vmatpush1.xpose.msra.mxu0 0.0
        %7758 = vmatprep.subr.mxu0 0.0
        %7759 = vmatpush1.xpose.msra.mxu0 0.0
        %7760 = vmatprep.subr.mxu0 0.0
        %7761 = vmatpush1.xpose.msra.mxu0 0.0
        %7762 = vmatprep.subr.mxu0 0.0
        %7763 = vmatpush1.xpose.msra.mxu0 0.0
        %7764 = vmatprep.subr.mxu0 0.0
        %7765 = vmatpush1.xpose.msra.mxu0 0.0
        %7766 = vmatprep.subr.mxu0 0.0
        %7767 = vmatpush1.xpose.msra.mxu0 0.0
        %7768 = vmatprep.subr.mxu0 0.0
        %7769 = vmatpush1.xpose.msra.mxu0 0.0
        %7770 = vmatprep.subr.mxu0 0.0
        %7771 = vmatpush1.xpose.msra.mxu0 0.0
        %7772 = vmatprep.subr.mxu0 0.0
        %7773 = vmatpush1.xpose.msra.mxu0 0.0
        %7774 = vmatprep.subr.mxu0 0.0
        %7775 = vmatpush1.xpose.msra.mxu0 0.0
        %7776 = vmatprep.subr.mxu0 %v7481
        %7777 = vmatpush1.xpose.msra.mxu0 %v7480
        %7778 = vmatprep.subr.mxu0 %v7417
        %7779 = vmatpush1.xpose.msra.mxu0 %v7416
        %7780 = vmatprep.subr.mxu0 0.0
        %7781 = vmatpush2.xpose.msra.mxu0 0.0
        %7782 = vmatprep.subr.mxu0 0.0
        %7783 = vmatpush2.xpose.msra.mxu0 0.0
        %7784 = vmatprep.subr.mxu0 0.0
        %7785 = vmatpush2.xpose.msra.mxu0 0.0
        %7786 = vmatprep.subr.mxu0 0.0
        %7787 = vmatpush2.xpose.msra.mxu0 0.0
        %7788 = vmatprep.subr.mxu0 0.0
        %7789 = vmatpush2.xpose.msra.mxu0 0.0
        %7790 = vmatprep.subr.mxu0 0.0
        %7791 = vmatpush2.xpose.msra.mxu0 0.0
        %7792 = vmatprep.subr.mxu0 0.0
        %7793 = vmatpush2.xpose.msra.mxu0 0.0
        %7794 = vmatprep.subr.mxu0 0.0
        %7795 = vmatpush2.xpose.msra.mxu0 0.0
        %7796 = vmatprep.subr.mxu0 0.0
        %7797 = vmatpush2.xpose.msra.mxu0 0.0
        %7798 = vmatprep.subr.mxu0 0.0
        %7799 = vmatpush2.xpose.msra.mxu0 0.0
        %7800 = vmatprep.subr.mxu0 0.0
        %7801 = vmatpush2.xpose.msra.mxu0 0.0
        %7802 = vmatprep.subr.mxu0 0.0
        %7803 = vmatpush2.xpose.msra.mxu0 0.0
        %7804 = vmatprep.subr.mxu0 0.0
        %7805 = vmatpush2.xpose.msra.mxu0 0.0
        %7806 = vmatprep.subr.mxu0 0.0
        %7807 = vmatpush2.xpose.msra.mxu0 0.0
        %7808 = vmatprep.subr.mxu0 0.0
        %7809 = vmatpush2.xpose.msra.mxu0 0.0
        %7810 = vmatprep.subr.mxu0 0.0
        %7811 = vmatpush2.xpose.msra.mxu0 0.0
        %7812 = vmatprep.mubr.f32.mxu0 %v7282
        %7813 = vmatmul.mubr.f32.gmra.mxu0 %v7281
        %v7814 = vpop.f32.mrf.mxu0
        %v7815 = vadd.f32 %v7745, %v7814
        %v7816 = vpop.f32.mrf.mxu0
        %7817 = vdwg.mxu0
        %7818 = vmatprep.subr.mxu0 0.0
        %7819 = vmatpush1.xpose.msra.mxu0 0.0
        %7820 = vmatprep.subr.mxu0 0.0
        %7821 = vmatpush1.xpose.msra.mxu0 0.0
        %7822 = vmatprep.subr.mxu0 0.0
        %7823 = vmatpush1.xpose.msra.mxu0 0.0
        %7824 = vmatprep.subr.mxu0 0.0
        %7825 = vmatpush1.xpose.msra.mxu0 0.0
        %7826 = vmatprep.subr.mxu0 0.0
        %7827 = vmatpush1.xpose.msra.mxu0 0.0
        %7828 = vmatprep.subr.mxu0 0.0
        %7829 = vmatpush1.xpose.msra.mxu0 0.0
        %7830 = vmatprep.subr.mxu0 0.0
        %7831 = vmatpush1.xpose.msra.mxu0 0.0
        %7832 = vmatprep.subr.mxu0 0.0
        %7833 = vmatpush1.xpose.msra.mxu0 0.0
        %7834 = vmatprep.subr.mxu0 0.0
        %7835 = vmatpush1.xpose.msra.mxu0 0.0
        %7836 = vmatprep.subr.mxu0 0.0
        %7837 = vmatpush1.xpose.msra.mxu0 0.0
        %7838 = vmatprep.subr.mxu0 0.0
        %7839 = vmatpush1.xpose.msra.mxu0 0.0
        %7840 = vmatprep.subr.mxu0 0.0
        %7841 = vmatpush1.xpose.msra.mxu0 0.0
        %7842 = vmatprep.subr.mxu0 0.0
        %7843 = vmatpush1.xpose.msra.mxu0 0.0
        %7844 = vmatprep.subr.mxu0 0.0
        %7845 = vmatpush1.xpose.msra.mxu0 0.0
        %7846 = vmatprep.subr.mxu0 %v7483
        %7847 = vmatpush1.xpose.msra.mxu0 %v7482
        %7848 = vmatprep.subr.mxu0 %v7419
        %7849 = vmatpush1.xpose.msra.mxu0 %v7418
        %7850 = vmatprep.subr.mxu0 0.0
        %7851 = vmatpush2.xpose.msra.mxu0 0.0
        %7852 = vmatprep.subr.mxu0 0.0
        %7853 = vmatpush2.xpose.msra.mxu0 0.0
        %7854 = vmatprep.subr.mxu0 0.0
        %7855 = vmatpush2.xpose.msra.mxu0 0.0
        %7856 = vmatprep.subr.mxu0 0.0
        %7857 = vmatpush2.xpose.msra.mxu0 0.0
        %7858 = vmatprep.subr.mxu0 0.0
        %7859 = vmatpush2.xpose.msra.mxu0 0.0
        %7860 = vmatprep.subr.mxu0 0.0
        %7861 = vmatpush2.xpose.msra.mxu0 0.0
        %7862 = vmatprep.subr.mxu0 0.0
        %7863 = vmatpush2.xpose.msra.mxu0 0.0
        %7864 = vmatprep.subr.mxu0 0.0
        %7865 = vmatpush2.xpose.msra.mxu0 0.0
        %7866 = vmatprep.subr.mxu0 0.0
        %7867 = vmatpush2.xpose.msra.mxu0 0.0
        %7868 = vmatprep.subr.mxu0 0.0
        %7869 = vmatpush2.xpose.msra.mxu0 0.0
        %7870 = vmatprep.subr.mxu0 0.0
        %7871 = vmatpush2.xpose.msra.mxu0 0.0
        %7872 = vmatprep.subr.mxu0 0.0
        %7873 = vmatpush2.xpose.msra.mxu0 0.0
        %7874 = vmatprep.subr.mxu0 0.0
        %7875 = vmatpush2.xpose.msra.mxu0 0.0
        %7876 = vmatprep.subr.mxu0 0.0
        %7877 = vmatpush2.xpose.msra.mxu0 0.0
        %7878 = vmatprep.subr.mxu0 0.0
        %7879 = vmatpush2.xpose.msra.mxu0 0.0
        %7880 = vmatprep.subr.mxu0 0.0
        %7881 = vmatpush2.xpose.msra.mxu0 0.0
        %7882 = vmatprep.mubr.f32.mxu0 %v7284
        %7883 = vmatmul.mubr.f32.gmra.mxu0 %v7283
        %v7884 = vpop.f32.mrf.mxu0
        %v7885 = vadd.f32 %v7815, %v7884
        %v7886 = vpop.f32.mrf.mxu0
        %7887 = vdwg.mxu0
        %7888 = vmatprep.subr.mxu0 0.0
        %7889 = vmatpush1.xpose.msra.mxu0 0.0
        %7890 = vmatprep.subr.mxu0 0.0
        %7891 = vmatpush1.xpose.msra.mxu0 0.0
        %7892 = vmatprep.subr.mxu0 0.0
        %7893 = vmatpush1.xpose.msra.mxu0 0.0
        %7894 = vmatprep.subr.mxu0 0.0
        %7895 = vmatpush1.xpose.msra.mxu0 0.0
        %7896 = vmatprep.subr.mxu0 0.0
        %7897 = vmatpush1.xpose.msra.mxu0 0.0
        %7898 = vmatprep.subr.mxu0 0.0
        %7899 = vmatpush1.xpose.msra.mxu0 0.0
        %7900 = vmatprep.subr.mxu0 0.0
        %7901 = vmatpush1.xpose.msra.mxu0 0.0
        %7902 = vmatprep.subr.mxu0 0.0
        %7903 = vmatpush1.xpose.msra.mxu0 0.0
        %7904 = vmatprep.subr.mxu0 0.0
        %7905 = vmatpush1.xpose.msra.mxu0 0.0
        %7906 = vmatprep.subr.mxu0 0.0
        %7907 = vmatpush1.xpose.msra.mxu0 0.0
        %7908 = vmatprep.subr.mxu0 0.0
        %7909 = vmatpush1.xpose.msra.mxu0 0.0
        %7910 = vmatprep.subr.mxu0 0.0
        %7911 = vmatpush1.xpose.msra.mxu0 0.0
        %7912 = vmatprep.subr.mxu0 0.0
        %7913 = vmatpush1.xpose.msra.mxu0 0.0
        %7914 = vmatprep.subr.mxu0 0.0
        %7915 = vmatpush1.xpose.msra.mxu0 0.0
        %7916 = vmatprep.subr.mxu0 %v7485
        %7917 = vmatpush1.xpose.msra.mxu0 %v7484
        %7918 = vmatprep.subr.mxu0 %v7421
        %7919 = vmatpush1.xpose.msra.mxu0 %v7420
        %7920 = vmatprep.subr.mxu0 0.0
        %7921 = vmatpush2.xpose.msra.mxu0 0.0
        %7922 = vmatprep.subr.mxu0 0.0
        %7923 = vmatpush2.xpose.msra.mxu0 0.0
        %7924 = vmatprep.subr.mxu0 0.0
        %7925 = vmatpush2.xpose.msra.mxu0 0.0
        %7926 = vmatprep.subr.mxu0 0.0
        %7927 = vmatpush2.xpose.msra.mxu0 0.0
        %7928 = vmatprep.subr.mxu0 0.0
        %7929 = vmatpush2.xpose.msra.mxu0 0.0
        %7930 = vmatprep.subr.mxu0 0.0
        %7931 = vmatpush2.xpose.msra.mxu0 0.0
        %7932 = vmatprep.subr.mxu0 0.0
        %7933 = vmatpush2.xpose.msra.mxu0 0.0
        %7934 = vmatprep.subr.mxu0 0.0
        %7935 = vmatpush2.xpose.msra.mxu0 0.0
        %7936 = vmatprep.subr.mxu0 0.0
        %7937 = vmatpush2.xpose.msra.mxu0 0.0
        %7938 = vmatprep.subr.mxu0 0.0
        %7939 = vmatpush2.xpose.msra.mxu0 0.0
        %7940 = vmatprep.subr.mxu0 0.0
        %7941 = vmatpush2.xpose.msra.mxu0 0.0
        %7942 = vmatprep.subr.mxu0 0.0
        %7943 = vmatpush2.xpose.msra.mxu0 0.0
        %7944 = vmatprep.subr.mxu0 0.0
        %7945 = vmatpush2.xpose.msra.mxu0 0.0
        %7946 = vmatprep.subr.mxu0 0.0
        %7947 = vmatpush2.xpose.msra.mxu0 0.0
        %7948 = vmatprep.subr.mxu0 0.0
        %7949 = vmatpush2.xpose.msra.mxu0 0.0
        %7950 = vmatprep.subr.mxu0 0.0
        %7951 = vmatpush2.xpose.msra.mxu0 0.0
        %7952 = vmatprep.mubr.f32.mxu0 %v7286
        %7953 = vmatmul.mubr.f32.gmra.mxu0 %v7285
        %v7954 = vpop.f32.mrf.mxu0
        %v7955 = vadd.f32 %v7885, %v7954
        %v7956 = vpop.f32.mrf.mxu0
        %7957 = vdwg.mxu0
        %7958 = vmatprep.subr.mxu0 0.0
        %7959 = vmatpush1.xpose.msra.mxu0 0.0
        %7960 = vmatprep.subr.mxu0 0.0
        %7961 = vmatpush1.xpose.msra.mxu0 0.0
        %7962 = vmatprep.subr.mxu0 0.0
        %7963 = vmatpush1.xpose.msra.mxu0 0.0
        %7964 = vmatprep.subr.mxu0 0.0
        %7965 = vmatpush1.xpose.msra.mxu0 0.0
        %7966 = vmatprep.subr.mxu0 0.0
        %7967 = vmatpush1.xpose.msra.mxu0 0.0
        %7968 = vmatprep.subr.mxu0 0.0
        %7969 = vmatpush1.xpose.msra.mxu0 0.0
        %7970 = vmatprep.subr.mxu0 0.0
        %7971 = vmatpush1.xpose.msra.mxu0 0.0
        %7972 = vmatprep.subr.mxu0 0.0
        %7973 = vmatpush1.xpose.msra.mxu0 0.0
        %7974 = vmatprep.subr.mxu0 0.0
        %7975 = vmatpush1.xpose.msra.mxu0 0.0
        %7976 = vmatprep.subr.mxu0 0.0
        %7977 = vmatpush1.xpose.msra.mxu0 0.0
        %7978 = vmatprep.subr.mxu0 0.0
        %7979 = vmatpush1.xpose.msra.mxu0 0.0
        %7980 = vmatprep.subr.mxu0 0.0
        %7981 = vmatpush1.xpose.msra.mxu0 0.0
        %7982 = vmatprep.subr.mxu0 0.0
        %7983 = vmatpush1.xpose.msra.mxu0 0.0
        %7984 = vmatprep.subr.mxu0 0.0
        %7985 = vmatpush1.xpose.msra.mxu0 0.0
        %7986 = vmatprep.subr.mxu0 %v7487
        %7987 = vmatpush1.xpose.msra.mxu0 %v7486
        %7988 = vmatprep.subr.mxu0 %v7423
        %7989 = vmatpush1.xpose.msra.mxu0 %v7422
        %7990 = vmatprep.subr.mxu0 0.0
        %7991 = vmatpush2.xpose.msra.mxu0 0.0
        %7992 = vmatprep.subr.mxu0 0.0
        %7993 = vmatpush2.xpose.msra.mxu0 0.0
        %7994 = vmatprep.subr.mxu0 0.0
        %7995 = vmatpush2.xpose.msra.mxu0 0.0
        %7996 = vmatprep.subr.mxu0 0.0
        %7997 = vmatpush2.xpose.msra.mxu0 0.0
        %7998 = vmatprep.subr.mxu0 0.0
        %7999 = vmatpush2.xpose.msra.mxu0 0.0
        %8000 = vmatprep.subr.mxu0 0.0
        %8001 = vmatpush2.xpose.msra.mxu0 0.0
        %8002 = vmatprep.subr.mxu0 0.0
        %8003 = vmatpush2.xpose.msra.mxu0 0.0
        %8004 = vmatprep.subr.mxu0 0.0
        %8005 = vmatpush2.xpose.msra.mxu0 0.0
        %8006 = vmatprep.subr.mxu0 0.0
        %8007 = vmatpush2.xpose.msra.mxu0 0.0
        %8008 = vmatprep.subr.mxu0 0.0
        %8009 = vmatpush2.xpose.msra.mxu0 0.0
        %8010 = vmatprep.subr.mxu0 0.0
        %8011 = vmatpush2.xpose.msra.mxu0 0.0
        %8012 = vmatprep.subr.mxu0 0.0
        %8013 = vmatpush2.xpose.msra.mxu0 0.0
        %8014 = vmatprep.subr.mxu0 0.0
        %8015 = vmatpush2.xpose.msra.mxu0 0.0
        %8016 = vmatprep.subr.mxu0 0.0
        %8017 = vmatpush2.xpose.msra.mxu0 0.0
        %8018 = vmatprep.subr.mxu0 0.0
        %8019 = vmatpush2.xpose.msra.mxu0 0.0
        %8020 = vmatprep.subr.mxu0 0.0
        %8021 = vmatpush2.xpose.msra.mxu0 0.0
        %8022 = vmatprep.mubr.f32.mxu0 %v7288
        %8023 = vmatmul.mubr.f32.gmra.mxu0 %v7287
        %v8024 = vpop.f32.mrf.mxu0
        %v8025 = vadd.f32 %v7955, %v8024
        %v8026 = vpop.f32.mrf.mxu0
        %8027 = vdwg.mxu0
        %8028 = vmatprep.subr.mxu0 0.0
        %8029 = vmatpush1.xpose.msra.mxu0 0.0
        %8030 = vmatprep.subr.mxu0 0.0
        %8031 = vmatpush1.xpose.msra.mxu0 0.0
        %8032 = vmatprep.subr.mxu0 0.0
        %8033 = vmatpush1.xpose.msra.mxu0 0.0
        %8034 = vmatprep.subr.mxu0 0.0
        %8035 = vmatpush1.xpose.msra.mxu0 0.0
        %8036 = vmatprep.subr.mxu0 0.0
        %8037 = vmatpush1.xpose.msra.mxu0 0.0
        %8038 = vmatprep.subr.mxu0 0.0
        %8039 = vmatpush1.xpose.msra.mxu0 0.0
        %8040 = vmatprep.subr.mxu0 0.0
        %8041 = vmatpush1.xpose.msra.mxu0 0.0
        %8042 = vmatprep.subr.mxu0 0.0
        %8043 = vmatpush1.xpose.msra.mxu0 0.0
        %8044 = vmatprep.subr.mxu0 0.0
        %8045 = vmatpush1.xpose.msra.mxu0 0.0
        %8046 = vmatprep.subr.mxu0 0.0
        %8047 = vmatpush1.xpose.msra.mxu0 0.0
        %8048 = vmatprep.subr.mxu0 0.0
        %8049 = vmatpush1.xpose.msra.mxu0 0.0
        %8050 = vmatprep.subr.mxu0 0.0
        %8051 = vmatpush1.xpose.msra.mxu0 0.0
        %8052 = vmatprep.subr.mxu0 0.0
        %8053 = vmatpush1.xpose.msra.mxu0 0.0
        %8054 = vmatprep.subr.mxu0 0.0
        %8055 = vmatpush1.xpose.msra.mxu0 0.0
        %8056 = vmatprep.subr.mxu0 %v7489
        %8057 = vmatpush1.xpose.msra.mxu0 %v7488
        %8058 = vmatprep.subr.mxu0 %v7425
        %8059 = vmatpush1.xpose.msra.mxu0 %v7424
        %8060 = vmatprep.subr.mxu0 0.0
        %8061 = vmatpush2.xpose.msra.mxu0 0.0
        %8062 = vmatprep.subr.mxu0 0.0
        %8063 = vmatpush2.xpose.msra.mxu0 0.0
        %8064 = vmatprep.subr.mxu0 0.0
        %8065 = vmatpush2.xpose.msra.mxu0 0.0
        %8066 = vmatprep.subr.mxu0 0.0
        %8067 = vmatpush2.xpose.msra.mxu0 0.0
        %8068 = vmatprep.subr.mxu0 0.0
        %8069 = vmatpush2.xpose.msra.mxu0 0.0
        %8070 = vmatprep.subr.mxu0 0.0
        %8071 = vmatpush2.xpose.msra.mxu0 0.0
        %8072 = vmatprep.subr.mxu0 0.0
        %8073 = vmatpush2.xpose.msra.mxu0 0.0
        %8074 = vmatprep.subr.mxu0 0.0
        %8075 = vmatpush2.xpose.msra.mxu0 0.0
        %8076 = vmatprep.subr.mxu0 0.0
        %8077 = vmatpush2.xpose.msra.mxu0 0.0
        %8078 = vmatprep.subr.mxu0 0.0
        %8079 = vmatpush2.xpose.msra.mxu0 0.0
        %8080 = vmatprep.subr.mxu0 0.0
        %8081 = vmatpush2.xpose.msra.mxu0 0.0
        %8082 = vmatprep.subr.mxu0 0.0
        %8083 = vmatpush2.xpose.msra.mxu0 0.0
        %8084 = vmatprep.subr.mxu0 0.0
        %8085 = vmatpush2.xpose.msra.mxu0 0.0
        %8086 = vmatprep.subr.mxu0 0.0
        %8087 = vmatpush2.xpose.msra.mxu0 0.0
        %8088 = vmatprep.subr.mxu0 0.0
        %8089 = vmatpush2.xpose.msra.mxu0 0.0
        %8090 = vmatprep.subr.mxu0 0.0
        %8091 = vmatpush2.xpose.msra.mxu0 0.0
        %8092 = vmatprep.mubr.f32.mxu0 %v7290
        %8093 = vmatmul.mubr.f32.gmra.mxu0 %v7289
        %v8094 = vpop.f32.mrf.mxu0
        %v8095 = vadd.f32 %v8025, %v8094
        %v8096 = vpop.f32.mrf.mxu0
        %8097 = vdwg.mxu0
        %8098 = vmatprep.subr.mxu0 0.0
        %8099 = vmatpush1.xpose.msra.mxu0 0.0
        %8100 = vmatprep.subr.mxu0 0.0
        %8101 = vmatpush1.xpose.msra.mxu0 0.0
        %8102 = vmatprep.subr.mxu0 0.0
        %8103 = vmatpush1.xpose.msra.mxu0 0.0
        %8104 = vmatprep.subr.mxu0 0.0
        %8105 = vmatpush1.xpose.msra.mxu0 0.0
        %8106 = vmatprep.subr.mxu0 0.0
        %8107 = vmatpush1.xpose.msra.mxu0 0.0
        %8108 = vmatprep.subr.mxu0 0.0
        %8109 = vmatpush1.xpose.msra.mxu0 0.0
        %8110 = vmatprep.subr.mxu0 0.0
        %8111 = vmatpush1.xpose.msra.mxu0 0.0
        %8112 = vmatprep.subr.mxu0 0.0
        %8113 = vmatpush1.xpose.msra.mxu0 0.0
        %8114 = vmatprep.subr.mxu0 0.0
        %8115 = vmatpush1.xpose.msra.mxu0 0.0
        %8116 = vmatprep.subr.mxu0 0.0
        %8117 = vmatpush1.xpose.msra.mxu0 0.0
        %8118 = vmatprep.subr.mxu0 0.0
        %8119 = vmatpush1.xpose.msra.mxu0 0.0
        %8120 = vmatprep.subr.mxu0 0.0
        %8121 = vmatpush1.xpose.msra.mxu0 0.0
        %8122 = vmatprep.subr.mxu0 0.0
        %8123 = vmatpush1.xpose.msra.mxu0 0.0
        %8124 = vmatprep.subr.mxu0 0.0
        %8125 = vmatpush1.xpose.msra.mxu0 0.0
        %8126 = vmatprep.subr.mxu0 %v7491
        %8127 = vmatpush1.xpose.msra.mxu0 %v7490
        %8128 = vmatprep.subr.mxu0 %v7427
        %8129 = vmatpush1.xpose.msra.mxu0 %v7426
        %8130 = vmatprep.subr.mxu0 0.0
        %8131 = vmatpush2.xpose.msra.mxu0 0.0
        %8132 = vmatprep.subr.mxu0 0.0
        %8133 = vmatpush2.xpose.msra.mxu0 0.0
        %8134 = vmatprep.subr.mxu0 0.0
        %8135 = vmatpush2.xpose.msra.mxu0 0.0
        %8136 = vmatprep.subr.mxu0 0.0
        %8137 = vmatpush2.xpose.msra.mxu0 0.0
        %8138 = vmatprep.subr.mxu0 0.0
        %8139 = vmatpush2.xpose.msra.mxu0 0.0
        %8140 = vmatprep.subr.mxu0 0.0
        %8141 = vmatpush2.xpose.msra.mxu0 0.0
        %8142 = vmatprep.subr.mxu0 0.0
        %8143 = vmatpush2.xpose.msra.mxu0 0.0
        %8144 = vmatprep.subr.mxu0 0.0
        %8145 = vmatpush2.xpose.msra.mxu0 0.0
        %8146 = vmatprep.subr.mxu0 0.0
        %8147 = vmatpush2.xpose.msra.mxu0 0.0
        %8148 = vmatprep.subr.mxu0 0.0
        %8149 = vmatpush2.xpose.msra.mxu0 0.0
        %8150 = vmatprep.subr.mxu0 0.0
        %8151 = vmatpush2.xpose.msra.mxu0 0.0
        %8152 = vmatprep.subr.mxu0 0.0
        %8153 = vmatpush2.xpose.msra.mxu0 0.0
        %8154 = vmatprep.subr.mxu0 0.0
        %8155 = vmatpush2.xpose.msra.mxu0 0.0
        %8156 = vmatprep.subr.mxu0 0.0
        %8157 = vmatpush2.xpose.msra.mxu0 0.0
        %8158 = vmatprep.subr.mxu0 0.0
        %8159 = vmatpush2.xpose.msra.mxu0 0.0
        %8160 = vmatprep.subr.mxu0 0.0
        %8161 = vmatpush2.xpose.msra.mxu0 0.0
        %8162 = vmatprep.mubr.f32.mxu0 %v7292
        %8163 = vmatmul.mubr.f32.gmra.mxu0 %v7291
        %v8164 = vpop.f32.mrf.mxu0
        %v8165 = vadd.f32 %v8095, %v8164
        %v8166 = vpop.f32.mrf.mxu0
        %8167 = vdwg.mxu0
        %8168 = vmatprep.subr.mxu0 0.0
        %8169 = vmatpush1.xpose.msra.mxu0 0.0
        %8170 = vmatprep.subr.mxu0 0.0
        %8171 = vmatpush1.xpose.msra.mxu0 0.0
        %8172 = vmatprep.subr.mxu0 0.0
        %8173 = vmatpush1.xpose.msra.mxu0 0.0
        %8174 = vmatprep.subr.mxu0 0.0
        %8175 = vmatpush1.xpose.msra.mxu0 0.0
        %8176 = vmatprep.subr.mxu0 0.0
        %8177 = vmatpush1.xpose.msra.mxu0 0.0
        %8178 = vmatprep.subr.mxu0 0.0
        %8179 = vmatpush1.xpose.msra.mxu0 0.0
        %8180 = vmatprep.subr.mxu0 0.0
        %8181 = vmatpush1.xpose.msra.mxu0 0.0
        %8182 = vmatprep.subr.mxu0 0.0
        %8183 = vmatpush1.xpose.msra.mxu0 0.0
        %8184 = vmatprep.subr.mxu0 0.0
        %8185 = vmatpush1.xpose.msra.mxu0 0.0
        %8186 = vmatprep.subr.mxu0 0.0
        %8187 = vmatpush1.xpose.msra.mxu0 0.0
        %8188 = vmatprep.subr.mxu0 0.0
        %8189 = vmatpush1.xpose.msra.mxu0 0.0
        %8190 = vmatprep.subr.mxu0 0.0
        %8191 = vmatpush1.xpose.msra.mxu0 0.0
        %8192 = vmatprep.subr.mxu0 0.0
        %8193 = vmatpush1.xpose.msra.mxu0 0.0
        %8194 = vmatprep.subr.mxu0 0.0
        %8195 = vmatpush1.xpose.msra.mxu0 0.0
        %8196 = vmatprep.subr.mxu0 %v7493
        %8197 = vmatpush1.xpose.msra.mxu0 %v7492
        %8198 = vmatprep.subr.mxu0 %v7429
        %8199 = vmatpush1.xpose.msra.mxu0 %v7428
        %8200 = vmatprep.subr.mxu0 0.0
        %8201 = vmatpush2.xpose.msra.mxu0 0.0
        %8202 = vmatprep.subr.mxu0 0.0
        %8203 = vmatpush2.xpose.msra.mxu0 0.0
        %8204 = vmatprep.subr.mxu0 0.0
        %8205 = vmatpush2.xpose.msra.mxu0 0.0
        %8206 = vmatprep.subr.mxu0 0.0
        %8207 = vmatpush2.xpose.msra.mxu0 0.0
        %8208 = vmatprep.subr.mxu0 0.0
        %8209 = vmatpush2.xpose.msra.mxu0 0.0
        %8210 = vmatprep.subr.mxu0 0.0
        %8211 = vmatpush2.xpose.msra.mxu0 0.0
        %8212 = vmatprep.subr.mxu0 0.0
        %8213 = vmatpush2.xpose.msra.mxu0 0.0
        %8214 = vmatprep.subr.mxu0 0.0
        %8215 = vmatpush2.xpose.msra.mxu0 0.0
        %8216 = vmatprep.subr.mxu0 0.0
        %8217 = vmatpush2.xpose.msra.mxu0 0.0
        %8218 = vmatprep.subr.mxu0 0.0
        %8219 = vmatpush2.xpose.msra.mxu0 0.0
        %8220 = vmatprep.subr.mxu0 0.0
        %8221 = vmatpush2.xpose.msra.mxu0 0.0
        %8222 = vmatprep.subr.mxu0 0.0
        %8223 = vmatpush2.xpose.msra.mxu0 0.0
        %8224 = vmatprep.subr.mxu0 0.0
        %8225 = vmatpush2.xpose.msra.mxu0 0.0
        %8226 = vmatprep.subr.mxu0 0.0
        %8227 = vmatpush2.xpose.msra.mxu0 0.0
        %8228 = vmatprep.subr.mxu0 0.0
        %8229 = vmatpush2.xpose.msra.mxu0 0.0
        %8230 = vmatprep.subr.mxu0 0.0
        %8231 = vmatpush2.xpose.msra.mxu0 0.0
        %8232 = vmatprep.mubr.f32.mxu0 %v7294
        %8233 = vmatmul.mubr.f32.gmra.mxu0 %v7293
        %v8234 = vpop.f32.mrf.mxu0
        %v8235 = vadd.f32 %v8165, %v8234
        %v8236 = vpop.f32.mrf.mxu0
        %8237 = vdwg.mxu0
        %8238 = vmatprep.subr.mxu0 0.0
        %8239 = vmatpush1.xpose.msra.mxu0 0.0
        %8240 = vmatprep.subr.mxu0 0.0
        %8241 = vmatpush1.xpose.msra.mxu0 0.0
        %8242 = vmatprep.subr.mxu0 0.0
        %8243 = vmatpush1.xpose.msra.mxu0 0.0
        %8244 = vmatprep.subr.mxu0 0.0
        %8245 = vmatpush1.xpose.msra.mxu0 0.0
        %8246 = vmatprep.subr.mxu0 0.0
        %8247 = vmatpush1.xpose.msra.mxu0 0.0
        %8248 = vmatprep.subr.mxu0 0.0
        %8249 = vmatpush1.xpose.msra.mxu0 0.0
        %8250 = vmatprep.subr.mxu0 0.0
        %8251 = vmatpush1.xpose.msra.mxu0 0.0
        %8252 = vmatprep.subr.mxu0 0.0
        %8253 = vmatpush1.xpose.msra.mxu0 0.0
        %8254 = vmatprep.subr.mxu0 0.0
        %8255 = vmatpush1.xpose.msra.mxu0 0.0
        %8256 = vmatprep.subr.mxu0 0.0
        %8257 = vmatpush1.xpose.msra.mxu0 0.0
        %8258 = vmatprep.subr.mxu0 0.0
        %8259 = vmatpush1.xpose.msra.mxu0 0.0
        %8260 = vmatprep.subr.mxu0 0.0
        %8261 = vmatpush1.xpose.msra.mxu0 0.0
        %8262 = vmatprep.subr.mxu0 0.0
        %8263 = vmatpush1.xpose.msra.mxu0 0.0
        %8264 = vmatprep.subr.mxu0 0.0
        %8265 = vmatpush1.xpose.msra.mxu0 0.0
        %8266 = vmatprep.subr.mxu0 %v7495
        %8267 = vmatpush1.xpose.msra.mxu0 %v7494
        %8268 = vmatprep.subr.mxu0 %v7431
        %8269 = vmatpush1.xpose.msra.mxu0 %v7430
        %8270 = vmatprep.subr.mxu0 0.0
        %8271 = vmatpush2.xpose.msra.mxu0 0.0
        %8272 = vmatprep.subr.mxu0 0.0
        %8273 = vmatpush2.xpose.msra.mxu0 0.0
        %8274 = vmatprep.subr.mxu0 0.0
        %8275 = vmatpush2.xpose.msra.mxu0 0.0
        %8276 = vmatprep.subr.mxu0 0.0
        %8277 = vmatpush2.xpose.msra.mxu0 0.0
        %8278 = vmatprep.subr.mxu0 0.0
        %8279 = vmatpush2.xpose.msra.mxu0 0.0
        %8280 = vmatprep.subr.mxu0 0.0
        %8281 = vmatpush2.xpose.msra.mxu0 0.0
        %8282 = vmatprep.subr.mxu0 0.0
        %8283 = vmatpush2.xpose.msra.mxu0 0.0
        %8284 = vmatprep.subr.mxu0 0.0
        %8285 = vmatpush2.xpose.msra.mxu0 0.0
        %8286 = vmatprep.subr.mxu0 0.0
        %8287 = vmatpush2.xpose.msra.mxu0 0.0
        %8288 = vmatprep.subr.mxu0 0.0
        %8289 = vmatpush2.xpose.msra.mxu0 0.0
        %8290 = vmatprep.subr.mxu0 0.0
        %8291 = vmatpush2.xpose.msra.mxu0 0.0
        %8292 = vmatprep.subr.mxu0 0.0
        %8293 = vmatpush2.xpose.msra.mxu0 0.0
        %8294 = vmatprep.subr.mxu0 0.0
        %8295 = vmatpush2.xpose.msra.mxu0 0.0
        %8296 = vmatprep.subr.mxu0 0.0
        %8297 = vmatpush2.xpose.msra.mxu0 0.0
        %8298 = vmatprep.subr.mxu0 0.0
        %8299 = vmatpush2.xpose.msra.mxu0 0.0
        %8300 = vmatprep.subr.mxu0 0.0
        %8301 = vmatpush2.xpose.msra.mxu0 0.0
        %8302 = vmatprep.mubr.f32.mxu0 %v7296
        %8303 = vmatmul.mubr.f32.gmra.mxu0 %v7295
        %v8304 = vpop.f32.mrf.mxu0
        %v8305 = vadd.f32 %v8235, %v8304
        %v8306 = vpop.f32.mrf.mxu0
        %8307 = vdwg.mxu0
        %8308 = vmatprep.subr.mxu0 0.0
        %8309 = vmatpush1.xpose.msra.mxu0 0.0
        %8310 = vmatprep.subr.mxu0 0.0
        %8311 = vmatpush1.xpose.msra.mxu0 0.0
        %8312 = vmatprep.subr.mxu0 0.0
        %8313 = vmatpush1.xpose.msra.mxu0 0.0
        %8314 = vmatprep.subr.mxu0 0.0
        %8315 = vmatpush1.xpose.msra.mxu0 0.0
        %8316 = vmatprep.subr.mxu0 0.0
        %8317 = vmatpush1.xpose.msra.mxu0 0.0
        %8318 = vmatprep.subr.mxu0 0.0
        %8319 = vmatpush1.xpose.msra.mxu0 0.0
        %8320 = vmatprep.subr.mxu0 0.0
        %8321 = vmatpush1.xpose.msra.mxu0 0.0
        %8322 = vmatprep.subr.mxu0 0.0
        %8323 = vmatpush1.xpose.msra.mxu0 0.0
        %8324 = vmatprep.subr.mxu0 0.0
        %8325 = vmatpush1.xpose.msra.mxu0 0.0
        %8326 = vmatprep.subr.mxu0 0.0
        %8327 = vmatpush1.xpose.msra.mxu0 0.0
        %8328 = vmatprep.subr.mxu0 0.0
        %8329 = vmatpush1.xpose.msra.mxu0 0.0
        %8330 = vmatprep.subr.mxu0 0.0
        %8331 = vmatpush1.xpose.msra.mxu0 0.0
        %8332 = vmatprep.subr.mxu0 0.0
        %8333 = vmatpush1.xpose.msra.mxu0 0.0
        %8334 = vmatprep.subr.mxu0 0.0
        %8335 = vmatpush1.xpose.msra.mxu0 0.0
        %8336 = vmatprep.subr.mxu0 %v7497
        %8337 = vmatpush1.xpose.msra.mxu0 %v7496
        %8338 = vmatprep.subr.mxu0 %v7433
        %8339 = vmatpush1.xpose.msra.mxu0 %v7432
        %8340 = vmatprep.subr.mxu0 0.0
        %8341 = vmatpush2.xpose.msra.mxu0 0.0
        %8342 = vmatprep.subr.mxu0 0.0
        %8343 = vmatpush2.xpose.msra.mxu0 0.0
        %8344 = vmatprep.subr.mxu0 0.0
        %8345 = vmatpush2.xpose.msra.mxu0 0.0
        %8346 = vmatprep.subr.mxu0 0.0
        %8347 = vmatpush2.xpose.msra.mxu0 0.0
        %8348 = vmatprep.subr.mxu0 0.0
        %8349 = vmatpush2.xpose.msra.mxu0 0.0
        %8350 = vmatprep.subr.mxu0 0.0
        %8351 = vmatpush2.xpose.msra.mxu0 0.0
        %8352 = vmatprep.subr.mxu0 0.0
        %8353 = vmatpush2.xpose.msra.mxu0 0.0
        %8354 = vmatprep.subr.mxu0 0.0
        %8355 = vmatpush2.xpose.msra.mxu0 0.0
        %8356 = vmatprep.subr.mxu0 0.0
        %8357 = vmatpush2.xpose.msra.mxu0 0.0
        %8358 = vmatprep.subr.mxu0 0.0
        %8359 = vmatpush2.xpose.msra.mxu0 0.0
        %8360 = vmatprep.subr.mxu0 0.0
        %8361 = vmatpush2.xpose.msra.mxu0 0.0
        %8362 = vmatprep.subr.mxu0 0.0
        %8363 = vmatpush2.xpose.msra.mxu0 0.0
        %8364 = vmatprep.subr.mxu0 0.0
        %8365 = vmatpush2.xpose.msra.mxu0 0.0
        %8366 = vmatprep.subr.mxu0 0.0
        %8367 = vmatpush2.xpose.msra.mxu0 0.0
        %8368 = vmatprep.subr.mxu0 0.0
        %8369 = vmatpush2.xpose.msra.mxu0 0.0
        %8370 = vmatprep.subr.mxu0 0.0
        %8371 = vmatpush2.xpose.msra.mxu0 0.0
        %8372 = vmatprep.mubr.f32.mxu0 %v7298
        %8373 = vmatmul.mubr.f32.gmra.mxu0 %v7297
        %v8374 = vpop.f32.mrf.mxu0
        %v8375 = vadd.f32 %v8305, %v8374
        %v8376 = vpop.f32.mrf.mxu0
        %8377 = vdwg.mxu0
        %8378 = vmatprep.subr.mxu0 0.0
        %8379 = vmatpush1.xpose.msra.mxu0 0.0
        %8380 = vmatprep.subr.mxu0 0.0
        %8381 = vmatpush1.xpose.msra.mxu0 0.0
        %8382 = vmatprep.subr.mxu0 0.0
        %8383 = vmatpush1.xpose.msra.mxu0 0.0
        %8384 = vmatprep.subr.mxu0 0.0
        %8385 = vmatpush1.xpose.msra.mxu0 0.0
        %8386 = vmatprep.subr.mxu0 0.0
        %8387 = vmatpush1.xpose.msra.mxu0 0.0
        %8388 = vmatprep.subr.mxu0 0.0
        %8389 = vmatpush1.xpose.msra.mxu0 0.0
        %8390 = vmatprep.subr.mxu0 0.0
        %8391 = vmatpush1.xpose.msra.mxu0 0.0
        %8392 = vmatprep.subr.mxu0 0.0
        %8393 = vmatpush1.xpose.msra.mxu0 0.0
        %8394 = vmatprep.subr.mxu0 0.0
        %8395 = vmatpush1.xpose.msra.mxu0 0.0
        %8396 = vmatprep.subr.mxu0 0.0
        %8397 = vmatpush1.xpose.msra.mxu0 0.0
        %8398 = vmatprep.subr.mxu0 0.0
        %8399 = vmatpush1.xpose.msra.mxu0 0.0
        %8400 = vmatprep.subr.mxu0 0.0
        %8401 = vmatpush1.xpose.msra.mxu0 0.0
        %8402 = vmatprep.subr.mxu0 0.0
        %8403 = vmatpush1.xpose.msra.mxu0 0.0
        %8404 = vmatprep.subr.mxu0 0.0
        %8405 = vmatpush1.xpose.msra.mxu0 0.0
        %8406 = vmatprep.subr.mxu0 %v7499
        %8407 = vmatpush1.xpose.msra.mxu0 %v7498
        %8408 = vmatprep.subr.mxu0 %v7435
        %8409 = vmatpush1.xpose.msra.mxu0 %v7434
        %8410 = vmatprep.subr.mxu0 0.0
        %8411 = vmatpush2.xpose.msra.mxu0 0.0
        %8412 = vmatprep.subr.mxu0 0.0
        %8413 = vmatpush2.xpose.msra.mxu0 0.0
        %8414 = vmatprep.subr.mxu0 0.0
        %8415 = vmatpush2.xpose.msra.mxu0 0.0
        %8416 = vmatprep.subr.mxu0 0.0
        %8417 = vmatpush2.xpose.msra.mxu0 0.0
        %8418 = vmatprep.subr.mxu0 0.0
        %8419 = vmatpush2.xpose.msra.mxu0 0.0
        %8420 = vmatprep.subr.mxu0 0.0
        %8421 = vmatpush2.xpose.msra.mxu0 0.0
        %8422 = vmatprep.subr.mxu0 0.0
        %8423 = vmatpush2.xpose.msra.mxu0 0.0
        %8424 = vmatprep.subr.mxu0 0.0
        %8425 = vmatpush2.xpose.msra.mxu0 0.0
        %8426 = vmatprep.subr.mxu0 0.0
        %8427 = vmatpush2.xpose.msra.mxu0 0.0
        %8428 = vmatprep.subr.mxu0 0.0
        %8429 = vmatpush2.xpose.msra.mxu0 0.0
        %8430 = vmatprep.subr.mxu0 0.0
        %8431 = vmatpush2.xpose.msra.mxu0 0.0
        %8432 = vmatprep.subr.mxu0 0.0
        %8433 = vmatpush2.xpose.msra.mxu0 0.0
        %8434 = vmatprep.subr.mxu0 0.0
        %8435 = vmatpush2.xpose.msra.mxu0 0.0
        %8436 = vmatprep.subr.mxu0 0.0
        %8437 = vmatpush2.xpose.msra.mxu0 0.0
        %8438 = vmatprep.subr.mxu0 0.0
        %8439 = vmatpush2.xpose.msra.mxu0 0.0
        %8440 = vmatprep.subr.mxu0 0.0
        %8441 = vmatpush2.xpose.msra.mxu0 0.0
        %8442 = vmatprep.mubr.f32.mxu0 %v7300
        %8443 = vmatmul.mubr.f32.gmra.mxu0 %v7299
        %v8444 = vpop.f32.mrf.mxu0
        %v8445 = vadd.f32 %v8375, %v8444
        %v8446 = vpop.f32.mrf.mxu0
        %8447 = vdwg.mxu0
        %8448 = vmatprep.subr.mxu0 0.0
        %8449 = vmatpush1.xpose.msra.mxu0 0.0
        %8450 = vmatprep.subr.mxu0 0.0
        %8451 = vmatpush1.xpose.msra.mxu0 0.0
        %8452 = vmatprep.subr.mxu0 0.0
        %8453 = vmatpush1.xpose.msra.mxu0 0.0
        %8454 = vmatprep.subr.mxu0 0.0
        %8455 = vmatpush1.xpose.msra.mxu0 0.0
        %8456 = vmatprep.subr.mxu0 0.0
        %8457 = vmatpush1.xpose.msra.mxu0 0.0
        %8458 = vmatprep.subr.mxu0 0.0
        %8459 = vmatpush1.xpose.msra.mxu0 0.0
        %8460 = vmatprep.subr.mxu0 0.0
        %8461 = vmatpush1.xpose.msra.mxu0 0.0
        %8462 = vmatprep.subr.mxu0 0.0
        %8463 = vmatpush1.xpose.msra.mxu0 0.0
        %8464 = vmatprep.subr.mxu0 0.0
        %8465 = vmatpush1.xpose.msra.mxu0 0.0
        %8466 = vmatprep.subr.mxu0 0.0
        %8467 = vmatpush1.xpose.msra.mxu0 0.0
        %8468 = vmatprep.subr.mxu0 0.0
        %8469 = vmatpush1.xpose.msra.mxu0 0.0
        %8470 = vmatprep.subr.mxu0 0.0
        %8471 = vmatpush1.xpose.msra.mxu0 0.0
        %8472 = vmatprep.subr.mxu0 0.0
        %8473 = vmatpush1.xpose.msra.mxu0 0.0
        %8474 = vmatprep.subr.mxu0 0.0
        %8475 = vmatpush1.xpose.msra.mxu0 0.0
        %8476 = vmatprep.subr.mxu0 %v7501
        %8477 = vmatpush1.xpose.msra.mxu0 %v7500
        %8478 = vmatprep.subr.mxu0 %v7437
        %8479 = vmatpush1.xpose.msra.mxu0 %v7436
        %8480 = vmatprep.subr.mxu0 0.0
        %8481 = vmatpush2.xpose.msra.mxu0 0.0
        %8482 = vmatprep.subr.mxu0 0.0
        %8483 = vmatpush2.xpose.msra.mxu0 0.0
        %8484 = vmatprep.subr.mxu0 0.0
        %8485 = vmatpush2.xpose.msra.mxu0 0.0
        %8486 = vmatprep.subr.mxu0 0.0
        %8487 = vmatpush2.xpose.msra.mxu0 0.0
        %8488 = vmatprep.subr.mxu0 0.0
        %8489 = vmatpush2.xpose.msra.mxu0 0.0
        %8490 = vmatprep.subr.mxu0 0.0
        %8491 = vmatpush2.xpose.msra.mxu0 0.0
        %8492 = vmatprep.subr.mxu0 0.0
        %8493 = vmatpush2.xpose.msra.mxu0 0.0
        %8494 = vmatprep.subr.mxu0 0.0
        %8495 = vmatpush2.xpose.msra.mxu0 0.0
        %8496 = vmatprep.subr.mxu0 0.0
        %8497 = vmatpush2.xpose.msra.mxu0 0.0
        %8498 = vmatprep.subr.mxu0 0.0
        %8499 = vmatpush2.xpose.msra.mxu0 0.0
        %8500 = vmatprep.subr.mxu0 0.0
        %8501 = vmatpush2.xpose.msra.mxu0 0.0
        %8502 = vmatprep.subr.mxu0 0.0
        %8503 = vmatpush2.xpose.msra.mxu0 0.0
        %8504 = vmatprep.subr.mxu0 0.0
        %8505 = vmatpush2.xpose.msra.mxu0 0.0
        %8506 = vmatprep.subr.mxu0 0.0
        %8507 = vmatpush2.xpose.msra.mxu0 0.0
        %8508 = vmatprep.subr.mxu0 0.0
        %8509 = vmatpush2.xpose.msra.mxu0 0.0
        %8510 = vmatprep.subr.mxu0 0.0
        %8511 = vmatpush2.xpose.msra.mxu0 0.0
        %8512 = vmatprep.mubr.f32.mxu0 %v7302
        %8513 = vmatmul.mubr.f32.gmra.mxu0 %v7301
        %v8514 = vpop.f32.mrf.mxu0
        %v8515 = vadd.f32 %v8445, %v8514
        %v8516 = vpop.f32.mrf.mxu0
        %8517 = vdwg.mxu0
        %8518 = vmatprep.subr.mxu0 0.0
        %8519 = vmatpush1.xpose.msra.mxu0 0.0
        %8520 = vmatprep.subr.mxu0 0.0
        %8521 = vmatpush1.xpose.msra.mxu0 0.0
        %8522 = vmatprep.subr.mxu0 0.0
        %8523 = vmatpush1.xpose.msra.mxu0 0.0
        %8524 = vmatprep.subr.mxu0 0.0
        %8525 = vmatpush1.xpose.msra.mxu0 0.0
        %8526 = vmatprep.subr.mxu0 0.0
        %8527 = vmatpush1.xpose.msra.mxu0 0.0
        %8528 = vmatprep.subr.mxu0 0.0
        %8529 = vmatpush1.xpose.msra.mxu0 0.0
        %8530 = vmatprep.subr.mxu0 0.0
        %8531 = vmatpush1.xpose.msra.mxu0 0.0
        %8532 = vmatprep.subr.mxu0 0.0
        %8533 = vmatpush1.xpose.msra.mxu0 0.0
        %8534 = vmatprep.subr.mxu0 0.0
        %8535 = vmatpush1.xpose.msra.mxu0 0.0
        %8536 = vmatprep.subr.mxu0 0.0
        %8537 = vmatpush1.xpose.msra.mxu0 0.0
        %8538 = vmatprep.subr.mxu0 0.0
        %8539 = vmatpush1.xpose.msra.mxu0 0.0
        %8540 = vmatprep.subr.mxu0 0.0
        %8541 = vmatpush1.xpose.msra.mxu0 0.0
        %8542 = vmatprep.subr.mxu0 0.0
        %8543 = vmatpush1.xpose.msra.mxu0 0.0
        %8544 = vmatprep.subr.mxu0 0.0
        %8545 = vmatpush1.xpose.msra.mxu0 0.0
        %8546 = vmatprep.subr.mxu0 %v7503
        %8547 = vmatpush1.xpose.msra.mxu0 %v7502
        %8548 = vmatprep.subr.mxu0 %v7439
        %8549 = vmatpush1.xpose.msra.mxu0 %v7438
        %8550 = vmatprep.subr.mxu0 0.0
        %8551 = vmatpush2.xpose.msra.mxu0 0.0
        %8552 = vmatprep.subr.mxu0 0.0
        %8553 = vmatpush2.xpose.msra.mxu0 0.0
        %8554 = vmatprep.subr.mxu0 0.0
        %8555 = vmatpush2.xpose.msra.mxu0 0.0
        %8556 = vmatprep.subr.mxu0 0.0
        %8557 = vmatpush2.xpose.msra.mxu0 0.0
        %8558 = vmatprep.subr.mxu0 0.0
        %8559 = vmatpush2.xpose.msra.mxu0 0.0
        %8560 = vmatprep.subr.mxu0 0.0
        %8561 = vmatpush2.xpose.msra.mxu0 0.0
        %8562 = vmatprep.subr.mxu0 0.0
        %8563 = vmatpush2.xpose.msra.mxu0 0.0
        %8564 = vmatprep.subr.mxu0 0.0
        %8565 = vmatpush2.xpose.msra.mxu0 0.0
        %8566 = vmatprep.subr.mxu0 0.0
        %8567 = vmatpush2.xpose.msra.mxu0 0.0
        %8568 = vmatprep.subr.mxu0 0.0
        %8569 = vmatpush2.xpose.msra.mxu0 0.0
        %8570 = vmatprep.subr.mxu0 0.0
        %8571 = vmatpush2.xpose.msra.mxu0 0.0
        %8572 = vmatprep.subr.mxu0 0.0
        %8573 = vmatpush2.xpose.msra.mxu0 0.0
        %8574 = vmatprep.subr.mxu0 0.0
        %8575 = vmatpush2.xpose.msra.mxu0 0.0
        %8576 = vmatprep.subr.mxu0 0.0
        %8577 = vmatpush2.xpose.msra.mxu0 0.0
        %8578 = vmatprep.subr.mxu0 0.0
        %8579 = vmatpush2.xpose.msra.mxu0 0.0
        %8580 = vmatprep.subr.mxu0 0.0
        %8581 = vmatpush2.xpose.msra.mxu0 0.0
        %8582 = vmatprep.mubr.f32.mxu0 %v7304
        %8583 = vmatmul.mubr.f32.gmra.mxu0 %v7303
        %v8584 = vpop.f32.mrf.mxu0
        %v8585 = vadd.f32 %v8515, %v8584
        %v8586 = vpop.f32.mrf.mxu0
        %8587 = vdwg.mxu0
        %8588 = vmatprep.subr.mxu0 0.0
        %8589 = vmatpush1.xpose.msra.mxu0 0.0
        %8590 = vmatprep.subr.mxu0 0.0
        %8591 = vmatpush1.xpose.msra.mxu0 0.0
        %8592 = vmatprep.subr.mxu0 0.0
        %8593 = vmatpush1.xpose.msra.mxu0 0.0
        %8594 = vmatprep.subr.mxu0 0.0
        %8595 = vmatpush1.xpose.msra.mxu0 0.0
        %8596 = vmatprep.subr.mxu0 0.0
        %8597 = vmatpush1.xpose.msra.mxu0 0.0
        %8598 = vmatprep.subr.mxu0 0.0
        %8599 = vmatpush1.xpose.msra.mxu0 0.0
        %8600 = vmatprep.subr.mxu0 0.0
        %8601 = vmatpush1.xpose.msra.mxu0 0.0
        %8602 = vmatprep.subr.mxu0 0.0
        %8603 = vmatpush1.xpose.msra.mxu0 0.0
        %8604 = vmatprep.subr.mxu0 0.0
        %8605 = vmatpush1.xpose.msra.mxu0 0.0
        %8606 = vmatprep.subr.mxu0 0.0
        %8607 = vmatpush1.xpose.msra.mxu0 0.0
        %8608 = vmatprep.subr.mxu0 0.0
        %8609 = vmatpush1.xpose.msra.mxu0 0.0
        %8610 = vmatprep.subr.mxu0 0.0
        %8611 = vmatpush1.xpose.msra.mxu0 0.0
        %8612 = vmatprep.subr.mxu0 0.0
        %8613 = vmatpush1.xpose.msra.mxu0 0.0
        %8614 = vmatprep.subr.mxu0 0.0
        %8615 = vmatpush1.xpose.msra.mxu0 0.0
        %8616 = vmatprep.subr.mxu0 %v7505
        %8617 = vmatpush1.xpose.msra.mxu0 %v7504
        %8618 = vmatprep.subr.mxu0 %v7441
        %8619 = vmatpush1.xpose.msra.mxu0 %v7440
        %8620 = vmatprep.subr.mxu0 0.0
        %8621 = vmatpush2.xpose.msra.mxu0 0.0
        %8622 = vmatprep.subr.mxu0 0.0
        %8623 = vmatpush2.xpose.msra.mxu0 0.0
        %8624 = vmatprep.subr.mxu0 0.0
        %8625 = vmatpush2.xpose.msra.mxu0 0.0
        %8626 = vmatprep.subr.mxu0 0.0
        %8627 = vmatpush2.xpose.msra.mxu0 0.0
        %8628 = vmatprep.subr.mxu0 0.0
        %8629 = vmatpush2.xpose.msra.mxu0 0.0
        %8630 = vmatprep.subr.mxu0 0.0
        %8631 = vmatpush2.xpose.msra.mxu0 0.0
        %8632 = vmatprep.subr.mxu0 0.0
        %8633 = vmatpush2.xpose.msra.mxu0 0.0
        %8634 = vmatprep.subr.mxu0 0.0
        %8635 = vmatpush2.xpose.msra.mxu0 0.0
        %8636 = vmatprep.subr.mxu0 0.0
        %8637 = vmatpush2.xpose.msra.mxu0 0.0
        %8638 = vmatprep.subr.mxu0 0.0
        %8639 = vmatpush2.xpose.msra.mxu0 0.0
        %8640 = vmatprep.subr.mxu0 0.0
        %8641 = vmatpush2.xpose.msra.mxu0 0.0
        %8642 = vmatprep.subr.mxu0 0.0
        %8643 = vmatpush2.xpose.msra.mxu0 0.0
        %8644 = vmatprep.subr.mxu0 0.0
        %8645 = vmatpush2.xpose.msra.mxu0 0.0
        %8646 = vmatprep.subr.mxu0 0.0
        %8647 = vmatpush2.xpose.msra.mxu0 0.0
        %8648 = vmatprep.subr.mxu0 0.0
        %8649 = vmatpush2.xpose.msra.mxu0 0.0
        %8650 = vmatprep.subr.mxu0 0.0
        %8651 = vmatpush2.xpose.msra.mxu0 0.0
        %8652 = vmatprep.mubr.f32.mxu0 %v7306
        %8653 = vmatmul.mubr.f32.gmra.mxu0 %v7305
        %v8654 = vpop.f32.mrf.mxu0
        %v8655 = vadd.f32 %v8585, %v8654
        %v8656 = vpop.f32.mrf.mxu0
        %8657 = vdwg.mxu0
        %8658 = vmatprep.subr.mxu0 0.0
        %8659 = vmatpush1.xpose.msra.mxu0 0.0
        %8660 = vmatprep.subr.mxu0 0.0
        %8661 = vmatpush1.xpose.msra.mxu0 0.0
        %8662 = vmatprep.subr.mxu0 0.0
        %8663 = vmatpush1.xpose.msra.mxu0 0.0
        %8664 = vmatprep.subr.mxu0 0.0
        %8665 = vmatpush1.xpose.msra.mxu0 0.0
        %8666 = vmatprep.subr.mxu0 0.0
        %8667 = vmatpush1.xpose.msra.mxu0 0.0
        %8668 = vmatprep.subr.mxu0 0.0
        %8669 = vmatpush1.xpose.msra.mxu0 0.0
        %8670 = vmatprep.subr.mxu0 0.0
        %8671 = vmatpush1.xpose.msra.mxu0 0.0
        %8672 = vmatprep.subr.mxu0 0.0
        %8673 = vmatpush1.xpose.msra.mxu0 0.0
        %8674 = vmatprep.subr.mxu0 0.0
        %8675 = vmatpush1.xpose.msra.mxu0 0.0
        %8676 = vmatprep.subr.mxu0 0.0
        %8677 = vmatpush1.xpose.msra.mxu0 0.0
        %8678 = vmatprep.subr.mxu0 0.0
        %8679 = vmatpush1.xpose.msra.mxu0 0.0
        %8680 = vmatprep.subr.mxu0 0.0
        %8681 = vmatpush1.xpose.msra.mxu0 0.0
        %8682 = vmatprep.subr.mxu0 0.0
        %8683 = vmatpush1.xpose.msra.mxu0 0.0
        %8684 = vmatprep.subr.mxu0 0.0
        %8685 = vmatpush1.xpose.msra.mxu0 0.0
        %8686 = vmatprep.subr.mxu0 %v7507
        %8687 = vmatpush1.xpose.msra.mxu0 %v7506
        %8688 = vmatprep.subr.mxu0 %v7443
        %8689 = vmatpush1.xpose.msra.mxu0 %v7442
        %8690 = vmatprep.subr.mxu0 0.0
        %8691 = vmatpush2.xpose.msra.mxu0 0.0
        %8692 = vmatprep.subr.mxu0 0.0
        %8693 = vmatpush2.xpose.msra.mxu0 0.0
        %8694 = vmatprep.subr.mxu0 0.0
        %8695 = vmatpush2.xpose.msra.mxu0 0.0
        %8696 = vmatprep.subr.mxu0 0.0
        %8697 = vmatpush2.xpose.msra.mxu0 0.0
        %8698 = vmatprep.subr.mxu0 0.0
        %8699 = vmatpush2.xpose.msra.mxu0 0.0
        %8700 = vmatprep.subr.mxu0 0.0
        %8701 = vmatpush2.xpose.msra.mxu0 0.0
        %8702 = vmatprep.subr.mxu0 0.0
        %8703 = vmatpush2.xpose.msra.mxu0 0.0
        %8704 = vmatprep.subr.mxu0 0.0
        %8705 = vmatpush2.xpose.msra.mxu0 0.0
        %8706 = vmatprep.subr.mxu0 0.0
        %8707 = vmatpush2.xpose.msra.mxu0 0.0
        %8708 = vmatprep.subr.mxu0 0.0
        %8709 = vmatpush2.xpose.msra.mxu0 0.0
        %8710 = vmatprep.subr.mxu0 0.0
        %8711 = vmatpush2.xpose.msra.mxu0 0.0
        %8712 = vmatprep.subr.mxu0 0.0
        %8713 = vmatpush2.xpose.msra.mxu0 0.0
        %8714 = vmatprep.subr.mxu0 0.0
        %8715 = vmatpush2.xpose.msra.mxu0 0.0
        %8716 = vmatprep.subr.mxu0 0.0
        %8717 = vmatpush2.xpose.msra.mxu0 0.0
        %8718 = vmatprep.subr.mxu0 0.0
        %8719 = vmatpush2.xpose.msra.mxu0 0.0
        %8720 = vmatprep.subr.mxu0 0.0
        %8721 = vmatpush2.xpose.msra.mxu0 0.0
        %8722 = vmatprep.mubr.f32.mxu0 %v7308
        %8723 = vmatmul.mubr.f32.gmra.mxu0 %v7307
        %v8724 = vpop.f32.mrf.mxu0
        %v8725 = vadd.f32 %v8655, %v8724
        %v8726 = vpop.f32.mrf.mxu0
        %8727 = vdwg.mxu0
        %8728 = vmatprep.subr.mxu0 0.0
        %8729 = vmatpush1.xpose.msra.mxu0 0.0
        %8730 = vmatprep.subr.mxu0 0.0
        %8731 = vmatpush1.xpose.msra.mxu0 0.0
        %8732 = vmatprep.subr.mxu0 0.0
        %8733 = vmatpush1.xpose.msra.mxu0 0.0
        %8734 = vmatprep.subr.mxu0 0.0
        %8735 = vmatpush1.xpose.msra.mxu0 0.0
        %8736 = vmatprep.subr.mxu0 0.0
        %8737 = vmatpush1.xpose.msra.mxu0 0.0
        %8738 = vmatprep.subr.mxu0 0.0
        %8739 = vmatpush1.xpose.msra.mxu0 0.0
        %8740 = vmatprep.subr.mxu0 0.0
        %8741 = vmatpush1.xpose.msra.mxu0 0.0
        %8742 = vmatprep.subr.mxu0 0.0
        %8743 = vmatpush1.xpose.msra.mxu0 0.0
        %8744 = vmatprep.subr.mxu0 0.0
        %8745 = vmatpush1.xpose.msra.mxu0 0.0
        %8746 = vmatprep.subr.mxu0 0.0
        %8747 = vmatpush1.xpose.msra.mxu0 0.0
        %8748 = vmatprep.subr.mxu0 0.0
        %8749 = vmatpush1.xpose.msra.mxu0 0.0
        %8750 = vmatprep.subr.mxu0 0.0
        %8751 = vmatpush1.xpose.msra.mxu0 0.0
        %8752 = vmatprep.subr.mxu0 0.0
        %8753 = vmatpush1.xpose.msra.mxu0 0.0
        %8754 = vmatprep.subr.mxu0 0.0
        %8755 = vmatpush1.xpose.msra.mxu0 0.0
        %8756 = vmatprep.subr.mxu0 %v7509
        %8757 = vmatpush1.xpose.msra.mxu0 %v7508
        %8758 = vmatprep.subr.mxu0 %v7445
        %8759 = vmatpush1.xpose.msra.mxu0 %v7444
        %8760 = vmatprep.subr.mxu0 0.0
        %8761 = vmatpush2.xpose.msra.mxu0 0.0
        %8762 = vmatprep.subr.mxu0 0.0
        %8763 = vmatpush2.xpose.msra.mxu0 0.0
        %8764 = vmatprep.subr.mxu0 0.0
        %8765 = vmatpush2.xpose.msra.mxu0 0.0
        %8766 = vmatprep.subr.mxu0 0.0
        %8767 = vmatpush2.xpose.msra.mxu0 0.0
        %8768 = vmatprep.subr.mxu0 0.0
        %8769 = vmatpush2.xpose.msra.mxu0 0.0
        %8770 = vmatprep.subr.mxu0 0.0
        %8771 = vmatpush2.xpose.msra.mxu0 0.0
        %8772 = vmatprep.subr.mxu0 0.0
        %8773 = vmatpush2.xpose.msra.mxu0 0.0
        %8774 = vmatprep.subr.mxu0 0.0
        %8775 = vmatpush2.xpose.msra.mxu0 0.0
        %8776 = vmatprep.subr.mxu0 0.0
        %8777 = vmatpush2.xpose.msra.mxu0 0.0
        %8778 = vmatprep.subr.mxu0 0.0
        %8779 = vmatpush2.xpose.msra.mxu0 0.0
        %8780 = vmatprep.subr.mxu0 0.0
        %8781 = vmatpush2.xpose.msra.mxu0 0.0
        %8782 = vmatprep.subr.mxu0 0.0
        %8783 = vmatpush2.xpose.msra.mxu0 0.0
        %8784 = vmatprep.subr.mxu0 0.0
        %8785 = vmatpush2.xpose.msra.mxu0 0.0
        %8786 = vmatprep.subr.mxu0 0.0
        %8787 = vmatpush2.xpose.msra.mxu0 0.0
        %8788 = vmatprep.subr.mxu0 0.0
        %8789 = vmatpush2.xpose.msra.mxu0 0.0
        %8790 = vmatprep.subr.mxu0 0.0
        %8791 = vmatpush2.xpose.msra.mxu0 0.0
        %8792 = vmatprep.mubr.f32.mxu0 %v7310
        %8793 = vmatmul.mubr.f32.gmra.mxu0 %v7309
        %v8794 = vpop.f32.mrf.mxu0
        %v8795 = vadd.f32 %v8725, %v8794
        %v8796 = vpop.f32.mrf.mxu0
        %8797 = vdwg.mxu0
        %8798 = vmatprep.subr.mxu0 0.0
        %8799 = vmatpush1.xpose.msra.mxu0 0.0
        %8800 = vmatprep.subr.mxu0 0.0
        %8801 = vmatpush1.xpose.msra.mxu0 0.0
        %8802 = vmatprep.subr.mxu0 0.0
        %8803 = vmatpush1.xpose.msra.mxu0 0.0
        %8804 = vmatprep.subr.mxu0 0.0
        %8805 = vmatpush1.xpose.msra.mxu0 0.0
        %8806 = vmatprep.subr.mxu0 0.0
        %8807 = vmatpush1.xpose.msra.mxu0 0.0
        %8808 = vmatprep.subr.mxu0 0.0
        %8809 = vmatpush1.xpose.msra.mxu0 0.0
        %8810 = vmatprep.subr.mxu0 0.0
        %8811 = vmatpush1.xpose.msra.mxu0 0.0
        %8812 = vmatprep.subr.mxu0 0.0
        %8813 = vmatpush1.xpose.msra.mxu0 0.0
        %8814 = vmatprep.subr.mxu0 0.0
        %8815 = vmatpush1.xpose.msra.mxu0 0.0
        %8816 = vmatprep.subr.mxu0 0.0
        %8817 = vmatpush1.xpose.msra.mxu0 0.0
        %8818 = vmatprep.subr.mxu0 0.0
        %8819 = vmatpush1.xpose.msra.mxu0 0.0
        %8820 = vmatprep.subr.mxu0 0.0
        %8821 = vmatpush1.xpose.msra.mxu0 0.0
        %8822 = vmatprep.subr.mxu0 0.0
        %8823 = vmatpush1.xpose.msra.mxu0 0.0
        %8824 = vmatprep.subr.mxu0 0.0
        %8825 = vmatpush1.xpose.msra.mxu0 0.0
        %8826 = vmatprep.subr.mxu0 %v7511
        %8827 = vmatpush1.xpose.msra.mxu0 %v7510
        %8828 = vmatprep.subr.mxu0 %v7447
        %8829 = vmatpush1.xpose.msra.mxu0 %v7446
        %8830 = vmatprep.subr.mxu0 0.0
        %8831 = vmatpush2.xpose.msra.mxu0 0.0
        %8832 = vmatprep.subr.mxu0 0.0
        %8833 = vmatpush2.xpose.msra.mxu0 0.0
        %8834 = vmatprep.subr.mxu0 0.0
        %8835 = vmatpush2.xpose.msra.mxu0 0.0
        %8836 = vmatprep.subr.mxu0 0.0
        %8837 = vmatpush2.xpose.msra.mxu0 0.0
        %8838 = vmatprep.subr.mxu0 0.0
        %8839 = vmatpush2.xpose.msra.mxu0 0.0
        %8840 = vmatprep.subr.mxu0 0.0
        %8841 = vmatpush2.xpose.msra.mxu0 0.0
        %8842 = vmatprep.subr.mxu0 0.0
        %8843 = vmatpush2.xpose.msra.mxu0 0.0
        %8844 = vmatprep.subr.mxu0 0.0
        %8845 = vmatpush2.xpose.msra.mxu0 0.0
        %8846 = vmatprep.subr.mxu0 0.0
        %8847 = vmatpush2.xpose.msra.mxu0 0.0
        %8848 = vmatprep.subr.mxu0 0.0
        %8849 = vmatpush2.xpose.msra.mxu0 0.0
        %8850 = vmatprep.subr.mxu0 0.0
        %8851 = vmatpush2.xpose.msra.mxu0 0.0
        %8852 = vmatprep.subr.mxu0 0.0
        %8853 = vmatpush2.xpose.msra.mxu0 0.0
        %8854 = vmatprep.subr.mxu0 0.0
        %8855 = vmatpush2.xpose.msra.mxu0 0.0
        %8856 = vmatprep.subr.mxu0 0.0
        %8857 = vmatpush2.xpose.msra.mxu0 0.0
        %8858 = vmatprep.subr.mxu0 0.0
        %8859 = vmatpush2.xpose.msra.mxu0 0.0
        %8860 = vmatprep.subr.mxu0 0.0
        %8861 = vmatpush2.xpose.msra.mxu0 0.0
        %8862 = vmatprep.mubr.f32.mxu0 %v7312
        %8863 = vmatmul.mubr.f32.gmra.mxu0 %v7311
        %v8864 = vpop.f32.mrf.mxu0
        %v8865 = vadd.f32 %v8795, %v8864
        %v8866 = vpop.f32.mrf.mxu0
        %8867 = vdwg.mxu0
        %8868 = vmatprep.subr.mxu0 0.0
        %8869 = vmatpush1.xpose.msra.mxu0 0.0
        %8870 = vmatprep.subr.mxu0 0.0
        %8871 = vmatpush1.xpose.msra.mxu0 0.0
        %8872 = vmatprep.subr.mxu0 0.0
        %8873 = vmatpush1.xpose.msra.mxu0 0.0
        %8874 = vmatprep.subr.mxu0 0.0
        %8875 = vmatpush1.xpose.msra.mxu0 0.0
        %8876 = vmatprep.subr.mxu0 0.0
        %8877 = vmatpush1.xpose.msra.mxu0 0.0
        %8878 = vmatprep.subr.mxu0 0.0
        %8879 = vmatpush1.xpose.msra.mxu0 0.0
        %8880 = vmatprep.subr.mxu0 0.0
        %8881 = vmatpush1.xpose.msra.mxu0 0.0
        %8882 = vmatprep.subr.mxu0 0.0
        %8883 = vmatpush1.xpose.msra.mxu0 0.0
        %8884 = vmatprep.subr.mxu0 0.0
        %8885 = vmatpush1.xpose.msra.mxu0 0.0
        %8886 = vmatprep.subr.mxu0 0.0
        %8887 = vmatpush1.xpose.msra.mxu0 0.0
        %8888 = vmatprep.subr.mxu0 0.0
        %8889 = vmatpush1.xpose.msra.mxu0 0.0
        %8890 = vmatprep.subr.mxu0 0.0
        %8891 = vmatpush1.xpose.msra.mxu0 0.0
        %8892 = vmatprep.subr.mxu0 0.0
        %8893 = vmatpush1.xpose.msra.mxu0 0.0
        %8894 = vmatprep.subr.mxu0 0.0
        %8895 = vmatpush1.xpose.msra.mxu0 0.0
        %8896 = vmatprep.subr.mxu0 %v7513
        %8897 = vmatpush1.xpose.msra.mxu0 %v7512
        %8898 = vmatprep.subr.mxu0 %v7449
        %8899 = vmatpush1.xpose.msra.mxu0 %v7448
        %8900 = vmatprep.subr.mxu0 0.0
        %8901 = vmatpush2.xpose.msra.mxu0 0.0
        %8902 = vmatprep.subr.mxu0 0.0
        %8903 = vmatpush2.xpose.msra.mxu0 0.0
        %8904 = vmatprep.subr.mxu0 0.0
        %8905 = vmatpush2.xpose.msra.mxu0 0.0
        %8906 = vmatprep.subr.mxu0 0.0
        %8907 = vmatpush2.xpose.msra.mxu0 0.0
        %8908 = vmatprep.subr.mxu0 0.0
        %8909 = vmatpush2.xpose.msra.mxu0 0.0
        %8910 = vmatprep.subr.mxu0 0.0
        %8911 = vmatpush2.xpose.msra.mxu0 0.0
        %8912 = vmatprep.subr.mxu0 0.0
        %8913 = vmatpush2.xpose.msra.mxu0 0.0
        %8914 = vmatprep.subr.mxu0 0.0
        %8915 = vmatpush2.xpose.msra.mxu0 0.0
        %8916 = vmatprep.subr.mxu0 0.0
        %8917 = vmatpush2.xpose.msra.mxu0 0.0
        %8918 = vmatprep.subr.mxu0 0.0
        %8919 = vmatpush2.xpose.msra.mxu0 0.0
        %8920 = vmatprep.subr.mxu0 0.0
        %8921 = vmatpush2.xpose.msra.mxu0 0.0
        %8922 = vmatprep.subr.mxu0 0.0
        %8923 = vmatpush2.xpose.msra.mxu0 0.0
        %8924 = vmatprep.subr.mxu0 0.0
        %8925 = vmatpush2.xpose.msra.mxu0 0.0
        %8926 = vmatprep.subr.mxu0 0.0
        %8927 = vmatpush2.xpose.msra.mxu0 0.0
        %8928 = vmatprep.subr.mxu0 0.0
        %8929 = vmatpush2.xpose.msra.mxu0 0.0
        %8930 = vmatprep.subr.mxu0 0.0
        %8931 = vmatpush2.xpose.msra.mxu0 0.0
        %8932 = vmatprep.mubr.f32.mxu0 %v7314
        %8933 = vmatmul.mubr.f32.gmra.mxu0 %v7313
        %v8934 = vpop.f32.mrf.mxu0
        %v8935 = vadd.f32 %v8865, %v8934
        %v8936 = vpop.f32.mrf.mxu0
        %8937 = vdwg.mxu0
        %8938 = vmatprep.subr.mxu0 0.0
        %8939 = vmatpush1.xpose.msra.mxu0 0.0
        %8940 = vmatprep.subr.mxu0 0.0
        %8941 = vmatpush1.xpose.msra.mxu0 0.0
        %8942 = vmatprep.subr.mxu0 0.0
        %8943 = vmatpush1.xpose.msra.mxu0 0.0
        %8944 = vmatprep.subr.mxu0 0.0
        %8945 = vmatpush1.xpose.msra.mxu0 0.0
        %8946 = vmatprep.subr.mxu0 0.0
        %8947 = vmatpush1.xpose.msra.mxu0 0.0
        %8948 = vmatprep.subr.mxu0 0.0
        %8949 = vmatpush1.xpose.msra.mxu0 0.0
        %8950 = vmatprep.subr.mxu0 0.0
        %8951 = vmatpush1.xpose.msra.mxu0 0.0
        %8952 = vmatprep.subr.mxu0 0.0
        %8953 = vmatpush1.xpose.msra.mxu0 0.0
        %8954 = vmatprep.subr.mxu0 0.0
        %8955 = vmatpush1.xpose.msra.mxu0 0.0
        %8956 = vmatprep.subr.mxu0 0.0
        %8957 = vmatpush1.xpose.msra.mxu0 0.0
        %8958 = vmatprep.subr.mxu0 0.0
        %8959 = vmatpush1.xpose.msra.mxu0 0.0
        %8960 = vmatprep.subr.mxu0 0.0
        %8961 = vmatpush1.xpose.msra.mxu0 0.0
        %8962 = vmatprep.subr.mxu0 0.0
        %8963 = vmatpush1.xpose.msra.mxu0 0.0
        %8964 = vmatprep.subr.mxu0 0.0
        %8965 = vmatpush1.xpose.msra.mxu0 0.0
        %8966 = vmatprep.subr.mxu0 %v7515
        %8967 = vmatpush1.xpose.msra.mxu0 %v7514
        %8968 = vmatprep.subr.mxu0 %v7451
        %8969 = vmatpush1.xpose.msra.mxu0 %v7450
        %8970 = vmatprep.subr.mxu0 0.0
        %8971 = vmatpush2.xpose.msra.mxu0 0.0
        %8972 = vmatprep.subr.mxu0 0.0
        %8973 = vmatpush2.xpose.msra.mxu0 0.0
        %8974 = vmatprep.subr.mxu0 0.0
        %8975 = vmatpush2.xpose.msra.mxu0 0.0
        %8976 = vmatprep.subr.mxu0 0.0
        %8977 = vmatpush2.xpose.msra.mxu0 0.0
        %8978 = vmatprep.subr.mxu0 0.0
        %8979 = vmatpush2.xpose.msra.mxu0 0.0
        %8980 = vmatprep.subr.mxu0 0.0
        %8981 = vmatpush2.xpose.msra.mxu0 0.0
        %8982 = vmatprep.subr.mxu0 0.0
        %8983 = vmatpush2.xpose.msra.mxu0 0.0
        %8984 = vmatprep.subr.mxu0 0.0
        %8985 = vmatpush2.xpose.msra.mxu0 0.0
        %8986 = vmatprep.subr.mxu0 0.0
        %8987 = vmatpush2.xpose.msra.mxu0 0.0
        %8988 = vmatprep.subr.mxu0 0.0
        %8989 = vmatpush2.xpose.msra.mxu0 0.0
        %8990 = vmatprep.subr.mxu0 0.0
        %8991 = vmatpush2.xpose.msra.mxu0 0.0
        %8992 = vmatprep.subr.mxu0 0.0
        %8993 = vmatpush2.xpose.msra.mxu0 0.0
        %8994 = vmatprep.subr.mxu0 0.0
        %8995 = vmatpush2.xpose.msra.mxu0 0.0
        %8996 = vmatprep.subr.mxu0 0.0
        %8997 = vmatpush2.xpose.msra.mxu0 0.0
        %8998 = vmatprep.subr.mxu0 0.0
        %8999 = vmatpush2.xpose.msra.mxu0 0.0
        %9000 = vmatprep.subr.mxu0 0.0
        %9001 = vmatpush2.xpose.msra.mxu0 0.0
        %9002 = vmatprep.mubr.f32.mxu0 %v7316
        %9003 = vmatmul.mubr.f32.gmra.mxu0 %v7315
        %v9004 = vpop.f32.mrf.mxu0
        %v9005 = vadd.f32 %v8935, %v9004
        %v9006 = vpop.f32.mrf.mxu0
        %9007 = vdwg.mxu0
        %9008 = vmatprep.subr.mxu0 0.0
        %9009 = vmatpush1.xpose.msra.mxu0 0.0
        %9010 = vmatprep.subr.mxu0 0.0
        %9011 = vmatpush1.xpose.msra.mxu0 0.0
        %9012 = vmatprep.subr.mxu0 0.0
        %9013 = vmatpush1.xpose.msra.mxu0 0.0
        %9014 = vmatprep.subr.mxu0 0.0
        %9015 = vmatpush1.xpose.msra.mxu0 0.0
        %9016 = vmatprep.subr.mxu0 0.0
        %9017 = vmatpush1.xpose.msra.mxu0 0.0
        %9018 = vmatprep.subr.mxu0 0.0
        %9019 = vmatpush1.xpose.msra.mxu0 0.0
        %9020 = vmatprep.subr.mxu0 0.0
        %9021 = vmatpush1.xpose.msra.mxu0 0.0
        %9022 = vmatprep.subr.mxu0 0.0
        %9023 = vmatpush1.xpose.msra.mxu0 0.0
        %9024 = vmatprep.subr.mxu0 0.0
        %9025 = vmatpush1.xpose.msra.mxu0 0.0
        %9026 = vmatprep.subr.mxu0 0.0
        %9027 = vmatpush1.xpose.msra.mxu0 0.0
        %9028 = vmatprep.subr.mxu0 0.0
        %9029 = vmatpush1.xpose.msra.mxu0 0.0
        %9030 = vmatprep.subr.mxu0 0.0
        %9031 = vmatpush1.xpose.msra.mxu0 0.0
        %9032 = vmatprep.subr.mxu0 0.0
        %9033 = vmatpush1.xpose.msra.mxu0 0.0
        %9034 = vmatprep.subr.mxu0 0.0
        %9035 = vmatpush1.xpose.msra.mxu0 0.0
        %9036 = vmatprep.subr.mxu0 %v7517
        %9037 = vmatpush1.xpose.msra.mxu0 %v7516
        %9038 = vmatprep.subr.mxu0 %v7453
        %9039 = vmatpush1.xpose.msra.mxu0 %v7452
        %9040 = vmatprep.subr.mxu0 0.0
        %9041 = vmatpush2.xpose.msra.mxu0 0.0
        %9042 = vmatprep.subr.mxu0 0.0
        %9043 = vmatpush2.xpose.msra.mxu0 0.0
        %9044 = vmatprep.subr.mxu0 0.0
        %9045 = vmatpush2.xpose.msra.mxu0 0.0
        %9046 = vmatprep.subr.mxu0 0.0
        %9047 = vmatpush2.xpose.msra.mxu0 0.0
        %9048 = vmatprep.subr.mxu0 0.0
        %9049 = vmatpush2.xpose.msra.mxu0 0.0
        %9050 = vmatprep.subr.mxu0 0.0
        %9051 = vmatpush2.xpose.msra.mxu0 0.0
        %9052 = vmatprep.subr.mxu0 0.0
        %9053 = vmatpush2.xpose.msra.mxu0 0.0
        %9054 = vmatprep.subr.mxu0 0.0
        %9055 = vmatpush2.xpose.msra.mxu0 0.0
        %9056 = vmatprep.subr.mxu0 0.0
        %9057 = vmatpush2.xpose.msra.mxu0 0.0
        %9058 = vmatprep.subr.mxu0 0.0
        %9059 = vmatpush2.xpose.msra.mxu0 0.0
        %9060 = vmatprep.subr.mxu0 0.0
        %9061 = vmatpush2.xpose.msra.mxu0 0.0
        %9062 = vmatprep.subr.mxu0 0.0
        %9063 = vmatpush2.xpose.msra.mxu0 0.0
        %9064 = vmatprep.subr.mxu0 0.0
        %9065 = vmatpush2.xpose.msra.mxu0 0.0
        %9066 = vmatprep.subr.mxu0 0.0
        %9067 = vmatpush2.xpose.msra.mxu0 0.0
        %9068 = vmatprep.subr.mxu0 0.0
        %9069 = vmatpush2.xpose.msra.mxu0 0.0
        %9070 = vmatprep.subr.mxu0 0.0
        %9071 = vmatpush2.xpose.msra.mxu0 0.0
        %9072 = vmatprep.mubr.f32.mxu0 %v7318
        %9073 = vmatmul.mubr.f32.gmra.mxu0 %v7317
        %v9074 = vpop.f32.mrf.mxu0
        %v9075 = vadd.f32 %v9005, %v9074
        %v9076 = vpop.f32.mrf.mxu0
        %9077 = vdwg.mxu0
        %9078 = vmatprep.subr.mxu0 0.0
        %9079 = vmatpush1.xpose.msra.mxu0 0.0
        %9080 = vmatprep.subr.mxu0 0.0
        %9081 = vmatpush1.xpose.msra.mxu0 0.0
        %9082 = vmatprep.subr.mxu0 0.0
        %9083 = vmatpush1.xpose.msra.mxu0 0.0
        %9084 = vmatprep.subr.mxu0 0.0
        %9085 = vmatpush1.xpose.msra.mxu0 0.0
        %9086 = vmatprep.subr.mxu0 0.0
        %9087 = vmatpush1.xpose.msra.mxu0 0.0
        %9088 = vmatprep.subr.mxu0 0.0
        %9089 = vmatpush1.xpose.msra.mxu0 0.0
        %9090 = vmatprep.subr.mxu0 0.0
        %9091 = vmatpush1.xpose.msra.mxu0 0.0
        %9092 = vmatprep.subr.mxu0 0.0
        %9093 = vmatpush1.xpose.msra.mxu0 0.0
        %9094 = vmatprep.subr.mxu0 0.0
        %9095 = vmatpush1.xpose.msra.mxu0 0.0
        %9096 = vmatprep.subr.mxu0 0.0
        %9097 = vmatpush1.xpose.msra.mxu0 0.0
        %9098 = vmatprep.subr.mxu0 0.0
        %9099 = vmatpush1.xpose.msra.mxu0 0.0
        %9100 = vmatprep.subr.mxu0 0.0
        %9101 = vmatpush1.xpose.msra.mxu0 0.0
        %9102 = vmatprep.subr.mxu0 0.0
        %9103 = vmatpush1.xpose.msra.mxu0 0.0
        %9104 = vmatprep.subr.mxu0 0.0
        %9105 = vmatpush1.xpose.msra.mxu0 0.0
        %9106 = vmatprep.subr.mxu0 %v7519
        %9107 = vmatpush1.xpose.msra.mxu0 %v7518
        %9108 = vmatprep.subr.mxu0 %v7455
        %9109 = vmatpush1.xpose.msra.mxu0 %v7454
        %9110 = vmatprep.subr.mxu0 0.0
        %9111 = vmatpush2.xpose.msra.mxu0 0.0
        %9112 = vmatprep.subr.mxu0 0.0
        %9113 = vmatpush2.xpose.msra.mxu0 0.0
        %9114 = vmatprep.subr.mxu0 0.0
        %9115 = vmatpush2.xpose.msra.mxu0 0.0
        %9116 = vmatprep.subr.mxu0 0.0
        %9117 = vmatpush2.xpose.msra.mxu0 0.0
        %9118 = vmatprep.subr.mxu0 0.0
        %9119 = vmatpush2.xpose.msra.mxu0 0.0
        %9120 = vmatprep.subr.mxu0 0.0
        %9121 = vmatpush2.xpose.msra.mxu0 0.0
        %9122 = vmatprep.subr.mxu0 0.0
        %9123 = vmatpush2.xpose.msra.mxu0 0.0
        %9124 = vmatprep.subr.mxu0 0.0
        %9125 = vmatpush2.xpose.msra.mxu0 0.0
        %9126 = vmatprep.subr.mxu0 0.0
        %9127 = vmatpush2.xpose.msra.mxu0 0.0
        %9128 = vmatprep.subr.mxu0 0.0
        %9129 = vmatpush2.xpose.msra.mxu0 0.0
        %9130 = vmatprep.subr.mxu0 0.0
        %9131 = vmatpush2.xpose.msra.mxu0 0.0
        %9132 = vmatprep.subr.mxu0 0.0
        %9133 = vmatpush2.xpose.msra.mxu0 0.0
        %9134 = vmatprep.subr.mxu0 0.0
        %9135 = vmatpush2.xpose.msra.mxu0 0.0
        %9136 = vmatprep.subr.mxu0 0.0
        %9137 = vmatpush2.xpose.msra.mxu0 0.0
        %9138 = vmatprep.subr.mxu0 0.0
        %9139 = vmatpush2.xpose.msra.mxu0 0.0
        %9140 = vmatprep.subr.mxu0 0.0
        %9141 = vmatpush2.xpose.msra.mxu0 0.0
        %9142 = vmatprep.mubr.f32.mxu0 %v7320
        %9143 = vmatmul.mubr.f32.gmra.mxu0 %v7319
        %v9144 = vpop.f32.mrf.mxu0
        %v9145 = vadd.f32 %v9075, %v9144
        %v9146 = vpop.f32.mrf.mxu0
        %9147 = vdwg.mxu0
        %9148 = vmatprep.subr.mxu0 0.0
        %9149 = vmatpush1.xpose.msra.mxu0 0.0
        %9150 = vmatprep.subr.mxu0 0.0
        %9151 = vmatpush1.xpose.msra.mxu0 0.0
        %9152 = vmatprep.subr.mxu0 0.0
        %9153 = vmatpush1.xpose.msra.mxu0 0.0
        %9154 = vmatprep.subr.mxu0 0.0
        %9155 = vmatpush1.xpose.msra.mxu0 0.0
        %9156 = vmatprep.subr.mxu0 0.0
        %9157 = vmatpush1.xpose.msra.mxu0 0.0
        %9158 = vmatprep.subr.mxu0 0.0
        %9159 = vmatpush1.xpose.msra.mxu0 0.0
        %9160 = vmatprep.subr.mxu0 0.0
        %9161 = vmatpush1.xpose.msra.mxu0 0.0
        %9162 = vmatprep.subr.mxu0 0.0
        %9163 = vmatpush1.xpose.msra.mxu0 0.0
        %9164 = vmatprep.subr.mxu0 0.0
        %9165 = vmatpush1.xpose.msra.mxu0 0.0
        %9166 = vmatprep.subr.mxu0 0.0
        %9167 = vmatpush1.xpose.msra.mxu0 0.0
        %9168 = vmatprep.subr.mxu0 0.0
        %9169 = vmatpush1.xpose.msra.mxu0 0.0
        %9170 = vmatprep.subr.mxu0 0.0
        %9171 = vmatpush1.xpose.msra.mxu0 0.0
        %9172 = vmatprep.subr.mxu0 0.0
        %9173 = vmatpush1.xpose.msra.mxu0 0.0
        %9174 = vmatprep.subr.mxu0 0.0
        %9175 = vmatpush1.xpose.msra.mxu0 0.0
        %9176 = vmatprep.subr.mxu0 %v7521
        %9177 = vmatpush1.xpose.msra.mxu0 %v7520
        %9178 = vmatprep.subr.mxu0 %v7457
        %9179 = vmatpush1.xpose.msra.mxu0 %v7456
        %9180 = vmatprep.subr.mxu0 0.0
        %9181 = vmatpush2.xpose.msra.mxu0 0.0
        %9182 = vmatprep.subr.mxu0 0.0
        %9183 = vmatpush2.xpose.msra.mxu0 0.0
        %9184 = vmatprep.subr.mxu0 0.0
        %9185 = vmatpush2.xpose.msra.mxu0 0.0
        %9186 = vmatprep.subr.mxu0 0.0
        %9187 = vmatpush2.xpose.msra.mxu0 0.0
        %9188 = vmatprep.subr.mxu0 0.0
        %9189 = vmatpush2.xpose.msra.mxu0 0.0
        %9190 = vmatprep.subr.mxu0 0.0
        %9191 = vmatpush2.xpose.msra.mxu0 0.0
        %9192 = vmatprep.subr.mxu0 0.0
        %9193 = vmatpush2.xpose.msra.mxu0 0.0
        %9194 = vmatprep.subr.mxu0 0.0
        %9195 = vmatpush2.xpose.msra.mxu0 0.0
        %9196 = vmatprep.subr.mxu0 0.0
        %9197 = vmatpush2.xpose.msra.mxu0 0.0
        %9198 = vmatprep.subr.mxu0 0.0
        %9199 = vmatpush2.xpose.msra.mxu0 0.0
        %9200 = vmatprep.subr.mxu0 0.0
        %9201 = vmatpush2.xpose.msra.mxu0 0.0
        %9202 = vmatprep.subr.mxu0 0.0
        %9203 = vmatpush2.xpose.msra.mxu0 0.0
        %9204 = vmatprep.subr.mxu0 0.0
        %9205 = vmatpush2.xpose.msra.mxu0 0.0
        %9206 = vmatprep.subr.mxu0 0.0
        %9207 = vmatpush2.xpose.msra.mxu0 0.0
        %9208 = vmatprep.subr.mxu0 0.0
        %9209 = vmatpush2.xpose.msra.mxu0 0.0
        %9210 = vmatprep.subr.mxu0 0.0
        %9211 = vmatpush2.xpose.msra.mxu0 0.0
        %9212 = vmatprep.mubr.f32.mxu0 %v7322
        %9213 = vmatmul.mubr.f32.gmra.mxu0 %v7321
        %v9214 = vpop.f32.mrf.mxu0
        %v9215 = vadd.f32 %v9145, %v9214
        %v9216 = vpop.f32.mrf.mxu0
        %9217 = vdwg.mxu0
        %9218 = vmatprep.subr.mxu0 0.0
        %9219 = vmatpush1.xpose.msra.mxu0 0.0
        %9220 = vmatprep.subr.mxu0 0.0
        %9221 = vmatpush1.xpose.msra.mxu0 0.0
        %9222 = vmatprep.subr.mxu0 0.0
        %9223 = vmatpush1.xpose.msra.mxu0 0.0
        %9224 = vmatprep.subr.mxu0 0.0
        %9225 = vmatpush1.xpose.msra.mxu0 0.0
        %9226 = vmatprep.subr.mxu0 0.0
        %9227 = vmatpush1.xpose.msra.mxu0 0.0
        %9228 = vmatprep.subr.mxu0 0.0
        %9229 = vmatpush1.xpose.msra.mxu0 0.0
        %9230 = vmatprep.subr.mxu0 0.0
        %9231 = vmatpush1.xpose.msra.mxu0 0.0
        %9232 = vmatprep.subr.mxu0 0.0
        %9233 = vmatpush1.xpose.msra.mxu0 0.0
        %9234 = vmatprep.subr.mxu0 0.0
        %9235 = vmatpush1.xpose.msra.mxu0 0.0
        %9236 = vmatprep.subr.mxu0 0.0
        %9237 = vmatpush1.xpose.msra.mxu0 0.0
        %9238 = vmatprep.subr.mxu0 0.0
        %9239 = vmatpush1.xpose.msra.mxu0 0.0
        %9240 = vmatprep.subr.mxu0 0.0
        %9241 = vmatpush1.xpose.msra.mxu0 0.0
        %9242 = vmatprep.subr.mxu0 0.0
        %9243 = vmatpush1.xpose.msra.mxu0 0.0
        %9244 = vmatprep.subr.mxu0 0.0
        %9245 = vmatpush1.xpose.msra.mxu0 0.0
        %9246 = vmatprep.subr.mxu0 %v7523
        %9247 = vmatpush1.xpose.msra.mxu0 %v7522
        %9248 = vmatprep.subr.mxu0 %v7459
        %9249 = vmatpush1.xpose.msra.mxu0 %v7458
        %9250 = vmatprep.subr.mxu0 0.0
        %9251 = vmatpush2.xpose.msra.mxu0 0.0
        %9252 = vmatprep.subr.mxu0 0.0
        %9253 = vmatpush2.xpose.msra.mxu0 0.0
        %9254 = vmatprep.subr.mxu0 0.0
        %9255 = vmatpush2.xpose.msra.mxu0 0.0
        %9256 = vmatprep.subr.mxu0 0.0
        %9257 = vmatpush2.xpose.msra.mxu0 0.0
        %9258 = vmatprep.subr.mxu0 0.0
        %9259 = vmatpush2.xpose.msra.mxu0 0.0
        %9260 = vmatprep.subr.mxu0 0.0
        %9261 = vmatpush2.xpose.msra.mxu0 0.0
        %9262 = vmatprep.subr.mxu0 0.0
        %9263 = vmatpush2.xpose.msra.mxu0 0.0
        %9264 = vmatprep.subr.mxu0 0.0
        %9265 = vmatpush2.xpose.msra.mxu0 0.0
        %9266 = vmatprep.subr.mxu0 0.0
        %9267 = vmatpush2.xpose.msra.mxu0 0.0
        %9268 = vmatprep.subr.mxu0 0.0
        %9269 = vmatpush2.xpose.msra.mxu0 0.0
        %9270 = vmatprep.subr.mxu0 0.0
        %9271 = vmatpush2.xpose.msra.mxu0 0.0
        %9272 = vmatprep.subr.mxu0 0.0
        %9273 = vmatpush2.xpose.msra.mxu0 0.0
        %9274 = vmatprep.subr.mxu0 0.0
        %9275 = vmatpush2.xpose.msra.mxu0 0.0
        %9276 = vmatprep.subr.mxu0 0.0
        %9277 = vmatpush2.xpose.msra.mxu0 0.0
        %9278 = vmatprep.subr.mxu0 0.0
        %9279 = vmatpush2.xpose.msra.mxu0 0.0
        %9280 = vmatprep.subr.mxu0 0.0
        %9281 = vmatpush2.xpose.msra.mxu0 0.0
        %9282 = vmatprep.mubr.f32.mxu0 %v7324
        %9283 = vmatmul.mubr.f32.gmra.mxu0 %v7323
        %v9284 = vpop.f32.mrf.mxu0
        %v9285 = vadd.f32 %v9215, %v9284
        %v9286 = vpop.f32.mrf.mxu0
        %9287 = vdwg.mxu0
        %9288 = vmatprep.subr.mxu0 0.0
        %9289 = vmatpush1.xpose.msra.mxu0 0.0
        %9290 = vmatprep.subr.mxu0 0.0
        %9291 = vmatpush1.xpose.msra.mxu0 0.0
        %9292 = vmatprep.subr.mxu0 0.0
        %9293 = vmatpush1.xpose.msra.mxu0 0.0
        %9294 = vmatprep.subr.mxu0 0.0
        %9295 = vmatpush1.xpose.msra.mxu0 0.0
        %9296 = vmatprep.subr.mxu0 0.0
        %9297 = vmatpush1.xpose.msra.mxu0 0.0
        %9298 = vmatprep.subr.mxu0 0.0
        %9299 = vmatpush1.xpose.msra.mxu0 0.0
        %9300 = vmatprep.subr.mxu0 0.0
        %9301 = vmatpush1.xpose.msra.mxu0 0.0
        %9302 = vmatprep.subr.mxu0 0.0
        %9303 = vmatpush1.xpose.msra.mxu0 0.0
        %9304 = vmatprep.subr.mxu0 0.0
        %9305 = vmatpush1.xpose.msra.mxu0 0.0
        %9306 = vmatprep.subr.mxu0 0.0
        %9307 = vmatpush1.xpose.msra.mxu0 0.0
        %9308 = vmatprep.subr.mxu0 0.0
        %9309 = vmatpush1.xpose.msra.mxu0 0.0
        %9310 = vmatprep.subr.mxu0 0.0
        %9311 = vmatpush1.xpose.msra.mxu0 0.0
        %9312 = vmatprep.subr.mxu0 0.0
        %9313 = vmatpush1.xpose.msra.mxu0 0.0
        %9314 = vmatprep.subr.mxu0 0.0
        %9315 = vmatpush1.xpose.msra.mxu0 0.0
        %9316 = vmatprep.subr.mxu0 %v7525
        %9317 = vmatpush1.xpose.msra.mxu0 %v7524
        %9318 = vmatprep.subr.mxu0 %v7461
        %9319 = vmatpush1.xpose.msra.mxu0 %v7460
        %9320 = vmatprep.subr.mxu0 0.0
        %9321 = vmatpush2.xpose.msra.mxu0 0.0
        %9322 = vmatprep.subr.mxu0 0.0
        %9323 = vmatpush2.xpose.msra.mxu0 0.0
        %9324 = vmatprep.subr.mxu0 0.0
        %9325 = vmatpush2.xpose.msra.mxu0 0.0
        %9326 = vmatprep.subr.mxu0 0.0
        %9327 = vmatpush2.xpose.msra.mxu0 0.0
        %9328 = vmatprep.subr.mxu0 0.0
        %9329 = vmatpush2.xpose.msra.mxu0 0.0
        %9330 = vmatprep.subr.mxu0 0.0
        %9331 = vmatpush2.xpose.msra.mxu0 0.0
        %9332 = vmatprep.subr.mxu0 0.0
        %9333 = vmatpush2.xpose.msra.mxu0 0.0
        %9334 = vmatprep.subr.mxu0 0.0
        %9335 = vmatpush2.xpose.msra.mxu0 0.0
        %9336 = vmatprep.subr.mxu0 0.0
        %9337 = vmatpush2.xpose.msra.mxu0 0.0
        %9338 = vmatprep.subr.mxu0 0.0
        %9339 = vmatpush2.xpose.msra.mxu0 0.0
        %9340 = vmatprep.subr.mxu0 0.0
        %9341 = vmatpush2.xpose.msra.mxu0 0.0
        %9342 = vmatprep.subr.mxu0 0.0
        %9343 = vmatpush2.xpose.msra.mxu0 0.0
        %9344 = vmatprep.subr.mxu0 0.0
        %9345 = vmatpush2.xpose.msra.mxu0 0.0
        %9346 = vmatprep.subr.mxu0 0.0
        %9347 = vmatpush2.xpose.msra.mxu0 0.0
        %9348 = vmatprep.subr.mxu0 0.0
        %9349 = vmatpush2.xpose.msra.mxu0 0.0
        %9350 = vmatprep.subr.mxu0 0.0
        %9351 = vmatpush2.xpose.msra.mxu0 0.0
        %9352 = vmatprep.mubr.f32.mxu0 %v7326
        %9353 = vmatmul.mubr.f32.gmra.mxu0 %v7325
        %v9354 = vpop.f32.mrf.mxu0
        %v9355 = vadd.f32 %v9285, %v9354
        %v9356 = vpop.f32.mrf.mxu0
        %9357 = vdwg.mxu0
        %9358 = vmatprep.subr.mxu0 0.0
        %9359 = vmatpush1.xpose.msra.mxu0 0.0
        %9360 = vmatprep.subr.mxu0 0.0
        %9361 = vmatpush1.xpose.msra.mxu0 0.0
        %9362 = vmatprep.subr.mxu0 0.0
        %9363 = vmatpush1.xpose.msra.mxu0 0.0
        %9364 = vmatprep.subr.mxu0 0.0
        %9365 = vmatpush1.xpose.msra.mxu0 0.0
        %9366 = vmatprep.subr.mxu0 0.0
        %9367 = vmatpush1.xpose.msra.mxu0 0.0
        %9368 = vmatprep.subr.mxu0 0.0
        %9369 = vmatpush1.xpose.msra.mxu0 0.0
        %9370 = vmatprep.subr.mxu0 0.0
        %9371 = vmatpush1.xpose.msra.mxu0 0.0
        %9372 = vmatprep.subr.mxu0 0.0
        %9373 = vmatpush1.xpose.msra.mxu0 0.0
        %9374 = vmatprep.subr.mxu0 0.0
        %9375 = vmatpush1.xpose.msra.mxu0 0.0
        %9376 = vmatprep.subr.mxu0 0.0
        %9377 = vmatpush1.xpose.msra.mxu0 0.0
        %9378 = vmatprep.subr.mxu0 0.0
        %9379 = vmatpush1.xpose.msra.mxu0 0.0
        %9380 = vmatprep.subr.mxu0 0.0
        %9381 = vmatpush1.xpose.msra.mxu0 0.0
        %9382 = vmatprep.subr.mxu0 0.0
        %9383 = vmatpush1.xpose.msra.mxu0 0.0
        %9384 = vmatprep.subr.mxu0 0.0
        %9385 = vmatpush1.xpose.msra.mxu0 0.0
        %9386 = vmatprep.subr.mxu0 %v7527
        %9387 = vmatpush1.xpose.msra.mxu0 %v7526
        %9388 = vmatprep.subr.mxu0 %v7463
        %9389 = vmatpush1.xpose.msra.mxu0 %v7462
        %9390 = vmatprep.subr.mxu0 0.0
        %9391 = vmatpush2.xpose.msra.mxu0 0.0
        %9392 = vmatprep.subr.mxu0 0.0
        %9393 = vmatpush2.xpose.msra.mxu0 0.0
        %9394 = vmatprep.subr.mxu0 0.0
        %9395 = vmatpush2.xpose.msra.mxu0 0.0
        %9396 = vmatprep.subr.mxu0 0.0
        %9397 = vmatpush2.xpose.msra.mxu0 0.0
        %9398 = vmatprep.subr.mxu0 0.0
        %9399 = vmatpush2.xpose.msra.mxu0 0.0
        %9400 = vmatprep.subr.mxu0 0.0
        %9401 = vmatpush2.xpose.msra.mxu0 0.0
        %9402 = vmatprep.subr.mxu0 0.0
        %9403 = vmatpush2.xpose.msra.mxu0 0.0
        %9404 = vmatprep.subr.mxu0 0.0
        %9405 = vmatpush2.xpose.msra.mxu0 0.0
        %9406 = vmatprep.subr.mxu0 0.0
        %9407 = vmatpush2.xpose.msra.mxu0 0.0
        %9408 = vmatprep.subr.mxu0 0.0
        %9409 = vmatpush2.xpose.msra.mxu0 0.0
        %9410 = vmatprep.subr.mxu0 0.0
        %9411 = vmatpush2.xpose.msra.mxu0 0.0
        %9412 = vmatprep.subr.mxu0 0.0
        %9413 = vmatpush2.xpose.msra.mxu0 0.0
        %9414 = vmatprep.subr.mxu0 0.0
        %9415 = vmatpush2.xpose.msra.mxu0 0.0
        %9416 = vmatprep.subr.mxu0 0.0
        %9417 = vmatpush2.xpose.msra.mxu0 0.0
        %9418 = vmatprep.subr.mxu0 0.0
        %9419 = vmatpush2.xpose.msra.mxu0 0.0
        %9420 = vmatprep.subr.mxu0 0.0
        %9421 = vmatpush2.xpose.msra.mxu0 0.0
        %9422 = vmatprep.mubr.f32.mxu0 %v7328
        %9423 = vmatmul.mubr.f32.gmra.mxu0 %v7327
        %v9424 = vpop.f32.mrf.mxu0
        %v9425 = vadd.f32 %v9355, %v9424
        %v9426 = vpop.f32.mrf.mxu0
        %9427 = vdwg.mxu0
        %9428 = vmatprep.subr.mxu0 0.0
        %9429 = vmatpush1.xpose.msra.mxu0 0.0
        %9430 = vmatprep.subr.mxu0 0.0
        %9431 = vmatpush1.xpose.msra.mxu0 0.0
        %9432 = vmatprep.subr.mxu0 0.0
        %9433 = vmatpush1.xpose.msra.mxu0 0.0
        %9434 = vmatprep.subr.mxu0 0.0
        %9435 = vmatpush1.xpose.msra.mxu0 0.0
        %9436 = vmatprep.subr.mxu0 0.0
        %9437 = vmatpush1.xpose.msra.mxu0 0.0
        %9438 = vmatprep.subr.mxu0 0.0
        %9439 = vmatpush1.xpose.msra.mxu0 0.0
        %9440 = vmatprep.subr.mxu0 0.0
        %9441 = vmatpush1.xpose.msra.mxu0 0.0
        %9442 = vmatprep.subr.mxu0 0.0
        %9443 = vmatpush1.xpose.msra.mxu0 0.0
        %9444 = vmatprep.subr.mxu0 0.0
        %9445 = vmatpush1.xpose.msra.mxu0 0.0
        %9446 = vmatprep.subr.mxu0 0.0
        %9447 = vmatpush1.xpose.msra.mxu0 0.0
        %9448 = vmatprep.subr.mxu0 0.0
        %9449 = vmatpush1.xpose.msra.mxu0 0.0
        %9450 = vmatprep.subr.mxu0 0.0
        %9451 = vmatpush1.xpose.msra.mxu0 0.0
        %9452 = vmatprep.subr.mxu0 0.0
        %9453 = vmatpush1.xpose.msra.mxu0 0.0
        %9454 = vmatprep.subr.mxu0 0.0
        %9455 = vmatpush1.xpose.msra.mxu0 0.0
        %9456 = vmatprep.subr.mxu0 %v7529
        %9457 = vmatpush1.xpose.msra.mxu0 %v7528
        %9458 = vmatprep.subr.mxu0 %v7465
        %9459 = vmatpush1.xpose.msra.mxu0 %v7464
        %9460 = vmatprep.subr.mxu0 0.0
        %9461 = vmatpush2.xpose.msra.mxu0 0.0
        %9462 = vmatprep.subr.mxu0 0.0
        %9463 = vmatpush2.xpose.msra.mxu0 0.0
        %9464 = vmatprep.subr.mxu0 0.0
        %9465 = vmatpush2.xpose.msra.mxu0 0.0
        %9466 = vmatprep.subr.mxu0 0.0
        %9467 = vmatpush2.xpose.msra.mxu0 0.0
        %9468 = vmatprep.subr.mxu0 0.0
        %9469 = vmatpush2.xpose.msra.mxu0 0.0
        %9470 = vmatprep.subr.mxu0 0.0
        %9471 = vmatpush2.xpose.msra.mxu0 0.0
        %9472 = vmatprep.subr.mxu0 0.0
        %9473 = vmatpush2.xpose.msra.mxu0 0.0
        %9474 = vmatprep.subr.mxu0 0.0
        %9475 = vmatpush2.xpose.msra.mxu0 0.0
        %9476 = vmatprep.subr.mxu0 0.0
        %9477 = vmatpush2.xpose.msra.mxu0 0.0
        %9478 = vmatprep.subr.mxu0 0.0
        %9479 = vmatpush2.xpose.msra.mxu0 0.0
        %9480 = vmatprep.subr.mxu0 0.0
        %9481 = vmatpush2.xpose.msra.mxu0 0.0
        %9482 = vmatprep.subr.mxu0 0.0
        %9483 = vmatpush2.xpose.msra.mxu0 0.0
        %9484 = vmatprep.subr.mxu0 0.0
        %9485 = vmatpush2.xpose.msra.mxu0 0.0
        %9486 = vmatprep.subr.mxu0 0.0
        %9487 = vmatpush2.xpose.msra.mxu0 0.0
        %9488 = vmatprep.subr.mxu0 0.0
        %9489 = vmatpush2.xpose.msra.mxu0 0.0
        %9490 = vmatprep.subr.mxu0 0.0
        %9491 = vmatpush2.xpose.msra.mxu0 0.0
        %9492 = vmatprep.mubr.f32.mxu0 %v7330
        %9493 = vmatmul.mubr.f32.gmra.mxu0 %v7329
        %v9494 = vpop.f32.mrf.mxu0
        %v9495 = vadd.f32 %v9425, %v9494
        %v9496 = vpop.f32.mrf.mxu0
        %9497 = vdwg.mxu0
        %9498 = vmatprep.subr.mxu0 0.0
        %9499 = vmatpush1.xpose.msra.mxu0 0.0
        %9500 = vmatprep.subr.mxu0 0.0
        %9501 = vmatpush1.xpose.msra.mxu0 0.0
        %9502 = vmatprep.subr.mxu0 0.0
        %9503 = vmatpush1.xpose.msra.mxu0 0.0
        %9504 = vmatprep.subr.mxu0 0.0
        %9505 = vmatpush1.xpose.msra.mxu0 0.0
        %9506 = vmatprep.subr.mxu0 0.0
        %9507 = vmatpush1.xpose.msra.mxu0 0.0
        %9508 = vmatprep.subr.mxu0 0.0
        %9509 = vmatpush1.xpose.msra.mxu0 0.0
        %9510 = vmatprep.subr.mxu0 0.0
        %9511 = vmatpush1.xpose.msra.mxu0 0.0
        %9512 = vmatprep.subr.mxu0 0.0
        %9513 = vmatpush1.xpose.msra.mxu0 0.0
        %9514 = vmatprep.subr.mxu0 0.0
        %9515 = vmatpush1.xpose.msra.mxu0 0.0
        %9516 = vmatprep.subr.mxu0 0.0
        %9517 = vmatpush1.xpose.msra.mxu0 0.0
        %9518 = vmatprep.subr.mxu0 0.0
        %9519 = vmatpush1.xpose.msra.mxu0 0.0
        %9520 = vmatprep.subr.mxu0 0.0
        %9521 = vmatpush1.xpose.msra.mxu0 0.0
        %9522 = vmatprep.subr.mxu0 0.0
        %9523 = vmatpush1.xpose.msra.mxu0 0.0
        %9524 = vmatprep.subr.mxu0 0.0
        %9525 = vmatpush1.xpose.msra.mxu0 0.0
        %9526 = vmatprep.subr.mxu0 %v7531
        %9527 = vmatpush1.xpose.msra.mxu0 %v7530
        %9528 = vmatprep.subr.mxu0 %v7467
        %9529 = vmatpush1.xpose.msra.mxu0 %v7466
        %9530 = vmatprep.subr.mxu0 0.0
        %9531 = vmatpush2.xpose.msra.mxu0 0.0
        %9532 = vmatprep.subr.mxu0 0.0
        %9533 = vmatpush2.xpose.msra.mxu0 0.0
        %9534 = vmatprep.subr.mxu0 0.0
        %9535 = vmatpush2.xpose.msra.mxu0 0.0
        %9536 = vmatprep.subr.mxu0 0.0
        %9537 = vmatpush2.xpose.msra.mxu0 0.0
        %9538 = vmatprep.subr.mxu0 0.0
        %9539 = vmatpush2.xpose.msra.mxu0 0.0
        %9540 = vmatprep.subr.mxu0 0.0
        %9541 = vmatpush2.xpose.msra.mxu0 0.0
        %9542 = vmatprep.subr.mxu0 0.0
        %9543 = vmatpush2.xpose.msra.mxu0 0.0
        %9544 = vmatprep.subr.mxu0 0.0
        %9545 = vmatpush2.xpose.msra.mxu0 0.0
        %9546 = vmatprep.subr.mxu0 0.0
        %9547 = vmatpush2.xpose.msra.mxu0 0.0
        %9548 = vmatprep.subr.mxu0 0.0
        %9549 = vmatpush2.xpose.msra.mxu0 0.0
        %9550 = vmatprep.subr.mxu0 0.0
        %9551 = vmatpush2.xpose.msra.mxu0 0.0
        %9552 = vmatprep.subr.mxu0 0.0
        %9553 = vmatpush2.xpose.msra.mxu0 0.0
        %9554 = vmatprep.subr.mxu0 0.0
        %9555 = vmatpush2.xpose.msra.mxu0 0.0
        %9556 = vmatprep.subr.mxu0 0.0
        %9557 = vmatpush2.xpose.msra.mxu0 0.0
        %9558 = vmatprep.subr.mxu0 0.0
        %9559 = vmatpush2.xpose.msra.mxu0 0.0
        %9560 = vmatprep.subr.mxu0 0.0
        %9561 = vmatpush2.xpose.msra.mxu0 0.0
        %9562 = vmatprep.mubr.f32.mxu0 %v7332
        %9563 = vmatmul.mubr.f32.gmra.mxu0 %v7331
        %v9564 = vpop.f32.mrf.mxu0
        %v9565 = vadd.f32 %v9495, %v9564
        %v9566 = vpop.f32.mrf.mxu0
        %9567 = vdwg.mxu0
        %9568 = vmatprep.subr.mxu0 0.0
        %9569 = vmatpush1.xpose.msra.mxu0 0.0
        %9570 = vmatprep.subr.mxu0 0.0
        %9571 = vmatpush1.xpose.msra.mxu0 0.0
        %9572 = vmatprep.subr.mxu0 0.0
        %9573 = vmatpush1.xpose.msra.mxu0 0.0
        %9574 = vmatprep.subr.mxu0 0.0
        %9575 = vmatpush1.xpose.msra.mxu0 0.0
        %9576 = vmatprep.subr.mxu0 0.0
        %9577 = vmatpush1.xpose.msra.mxu0 0.0
        %9578 = vmatprep.subr.mxu0 0.0
        %9579 = vmatpush1.xpose.msra.mxu0 0.0
        %9580 = vmatprep.subr.mxu0 0.0
        %9581 = vmatpush1.xpose.msra.mxu0 0.0
        %9582 = vmatprep.subr.mxu0 0.0
        %9583 = vmatpush1.xpose.msra.mxu0 0.0
        %9584 = vmatprep.subr.mxu0 0.0
        %9585 = vmatpush1.xpose.msra.mxu0 0.0
        %9586 = vmatprep.subr.mxu0 0.0
        %9587 = vmatpush1.xpose.msra.mxu0 0.0
        %9588 = vmatprep.subr.mxu0 0.0
        %9589 = vmatpush1.xpose.msra.mxu0 0.0
        %9590 = vmatprep.subr.mxu0 0.0
        %9591 = vmatpush1.xpose.msra.mxu0 0.0
        %9592 = vmatprep.subr.mxu0 0.0
        %9593 = vmatpush1.xpose.msra.mxu0 0.0
        %9594 = vmatprep.subr.mxu0 0.0
        %9595 = vmatpush1.xpose.msra.mxu0 0.0
        %9596 = vmatprep.subr.mxu0 %v7533
        %9597 = vmatpush1.xpose.msra.mxu0 %v7532
        %9598 = vmatprep.subr.mxu0 %v7469
        %9599 = vmatpush1.xpose.msra.mxu0 %v7468
        %9600 = vmatprep.subr.mxu0 0.0
        %9601 = vmatpush2.xpose.msra.mxu0 0.0
        %9602 = vmatprep.subr.mxu0 0.0
        %9603 = vmatpush2.xpose.msra.mxu0 0.0
        %9604 = vmatprep.subr.mxu0 0.0
        %9605 = vmatpush2.xpose.msra.mxu0 0.0
        %9606 = vmatprep.subr.mxu0 0.0
        %9607 = vmatpush2.xpose.msra.mxu0 0.0
        %9608 = vmatprep.subr.mxu0 0.0
        %9609 = vmatpush2.xpose.msra.mxu0 0.0
        %9610 = vmatprep.subr.mxu0 0.0
        %9611 = vmatpush2.xpose.msra.mxu0 0.0
        %9612 = vmatprep.subr.mxu0 0.0
        %9613 = vmatpush2.xpose.msra.mxu0 0.0
        %9614 = vmatprep.subr.mxu0 0.0
        %9615 = vmatpush2.xpose.msra.mxu0 0.0
        %9616 = vmatprep.subr.mxu0 0.0
        %9617 = vmatpush2.xpose.msra.mxu0 0.0
        %9618 = vmatprep.subr.mxu0 0.0
        %9619 = vmatpush2.xpose.msra.mxu0 0.0
        %9620 = vmatprep.subr.mxu0 0.0
        %9621 = vmatpush2.xpose.msra.mxu0 0.0
        %9622 = vmatprep.subr.mxu0 0.0
        %9623 = vmatpush2.xpose.msra.mxu0 0.0
        %9624 = vmatprep.subr.mxu0 0.0
        %9625 = vmatpush2.xpose.msra.mxu0 0.0
        %9626 = vmatprep.subr.mxu0 0.0
        %9627 = vmatpush2.xpose.msra.mxu0 0.0
        %9628 = vmatprep.subr.mxu0 0.0
        %9629 = vmatpush2.xpose.msra.mxu0 0.0
        %9630 = vmatprep.subr.mxu0 0.0
        %9631 = vmatpush2.xpose.msra.mxu0 0.0
        %9632 = vmatprep.mubr.f32.mxu0 %v7334
        %9633 = vmatmul.mubr.f32.gmra.mxu0 %v7333
        %v9634 = vpop.f32.mrf.mxu0
        %v9635 = vadd.f32 %v9565, %v9634
        %v9636 = vpop.f32.mrf.mxu0
        %9637 = vdwg.mxu0
        %9638 = vmatprep.subr.mxu0 0.0
        %9639 = vmatpush1.xpose.msra.mxu0 0.0
        %9640 = vmatprep.subr.mxu0 0.0
        %9641 = vmatpush1.xpose.msra.mxu0 0.0
        %9642 = vmatprep.subr.mxu0 0.0
        %9643 = vmatpush1.xpose.msra.mxu0 0.0
        %9644 = vmatprep.subr.mxu0 0.0
        %9645 = vmatpush1.xpose.msra.mxu0 0.0
        %9646 = vmatprep.subr.mxu0 0.0
        %9647 = vmatpush1.xpose.msra.mxu0 0.0
        %9648 = vmatprep.subr.mxu0 0.0
        %9649 = vmatpush1.xpose.msra.mxu0 0.0
        %9650 = vmatprep.subr.mxu0 0.0
        %9651 = vmatpush1.xpose.msra.mxu0 0.0
        %9652 = vmatprep.subr.mxu0 0.0
        %9653 = vmatpush1.xpose.msra.mxu0 0.0
        %9654 = vmatprep.subr.mxu0 0.0
        %9655 = vmatpush1.xpose.msra.mxu0 0.0
        %9656 = vmatprep.subr.mxu0 0.0
        %9657 = vmatpush1.xpose.msra.mxu0 0.0
        %9658 = vmatprep.subr.mxu0 0.0
        %9659 = vmatpush1.xpose.msra.mxu0 0.0
        %9660 = vmatprep.subr.mxu0 0.0
        %9661 = vmatpush1.xpose.msra.mxu0 0.0
        %9662 = vmatprep.subr.mxu0 0.0
        %9663 = vmatpush1.xpose.msra.mxu0 0.0
        %9664 = vmatprep.subr.mxu0 0.0
        %9665 = vmatpush1.xpose.msra.mxu0 0.0
        %9666 = vmatprep.subr.mxu0 %v7535
        %9667 = vmatpush1.xpose.msra.mxu0 %v7534
        %9668 = vmatprep.subr.mxu0 %v7471
        %9669 = vmatpush1.xpose.msra.mxu0 %v7470
        %9670 = vmatprep.subr.mxu0 0.0
        %9671 = vmatpush2.xpose.msra.mxu0 0.0
        %9672 = vmatprep.subr.mxu0 0.0
        %9673 = vmatpush2.xpose.msra.mxu0 0.0
        %9674 = vmatprep.subr.mxu0 0.0
        %9675 = vmatpush2.xpose.msra.mxu0 0.0
        %9676 = vmatprep.subr.mxu0 0.0
        %9677 = vmatpush2.xpose.msra.mxu0 0.0
        %9678 = vmatprep.subr.mxu0 0.0
        %9679 = vmatpush2.xpose.msra.mxu0 0.0
        %9680 = vmatprep.subr.mxu0 0.0
        %9681 = vmatpush2.xpose.msra.mxu0 0.0
        %9682 = vmatprep.subr.mxu0 0.0
        %9683 = vmatpush2.xpose.msra.mxu0 0.0
        %9684 = vmatprep.subr.mxu0 0.0
        %9685 = vmatpush2.xpose.msra.mxu0 0.0
        %9686 = vmatprep.subr.mxu0 0.0
        %9687 = vmatpush2.xpose.msra.mxu0 0.0
        %9688 = vmatprep.subr.mxu0 0.0
        %9689 = vmatpush2.xpose.msra.mxu0 0.0
        %9690 = vmatprep.subr.mxu0 0.0
        %9691 = vmatpush2.xpose.msra.mxu0 0.0
        %9692 = vmatprep.subr.mxu0 0.0
        %9693 = vmatpush2.xpose.msra.mxu0 0.0
        %9694 = vmatprep.subr.mxu0 0.0
        %9695 = vmatpush2.xpose.msra.mxu0 0.0
        %9696 = vmatprep.subr.mxu0 0.0
        %9697 = vmatpush2.xpose.msra.mxu0 0.0
        %9698 = vmatprep.subr.mxu0 0.0
        %9699 = vmatpush2.xpose.msra.mxu0 0.0
        %9700 = vmatprep.subr.mxu0 0.0
        %9701 = vmatpush2.xpose.msra.mxu0 0.0
        %9702 = vmatprep.mubr.f32.mxu0 %v7336
        %9703 = vmatmul.mubr.f32.gmra.mxu0 %v7335
        %v9704 = vpop.f32.mrf.mxu0
        %v9705 = vadd.f32 %v9635, %v9704
        %v9706 = vpop.f32.mrf.mxu0
        %9707 = vdwg.mxu0
        %9708 = vmatprep.subr.mxu0 0.0
        %9709 = vmatpush1.xpose.msra.mxu0 0.0
        %9710 = vmatprep.subr.mxu0 0.0
        %9711 = vmatpush1.xpose.msra.mxu0 0.0
        %9712 = vmatprep.subr.mxu0 0.0
        %9713 = vmatpush1.xpose.msra.mxu0 0.0
        %9714 = vmatprep.subr.mxu0 0.0
        %9715 = vmatpush1.xpose.msra.mxu0 0.0
        %9716 = vmatprep.subr.mxu0 0.0
        %9717 = vmatpush1.xpose.msra.mxu0 0.0
        %9718 = vmatprep.subr.mxu0 0.0
        %9719 = vmatpush1.xpose.msra.mxu0 0.0
        %9720 = vmatprep.subr.mxu0 0.0
        %9721 = vmatpush1.xpose.msra.mxu0 0.0
        %9722 = vmatprep.subr.mxu0 0.0
        %9723 = vmatpush1.xpose.msra.mxu0 0.0
        %9724 = vmatprep.subr.mxu0 0.0
        %9725 = vmatpush1.xpose.msra.mxu0 0.0
        %9726 = vmatprep.subr.mxu0 0.0
        %9727 = vmatpush1.xpose.msra.mxu0 0.0
        %9728 = vmatprep.subr.mxu0 0.0
        %9729 = vmatpush1.xpose.msra.mxu0 0.0
        %9730 = vmatprep.subr.mxu0 0.0
        %9731 = vmatpush1.xpose.msra.mxu0 0.0
        %9732 = vmatprep.subr.mxu0 0.0
        %9733 = vmatpush1.xpose.msra.mxu0 0.0
        %9734 = vmatprep.subr.mxu0 0.0
        %9735 = vmatpush1.xpose.msra.mxu0 0.0
        %9736 = vmatprep.subr.mxu0 %v7537
        %9737 = vmatpush1.xpose.msra.mxu0 %v7536
        %9738 = vmatprep.subr.mxu0 %v7473
        %9739 = vmatpush1.xpose.msra.mxu0 %v7472
        %9740 = vmatprep.subr.mxu0 0.0
        %9741 = vmatpush2.xpose.msra.mxu0 0.0
        %9742 = vmatprep.subr.mxu0 0.0
        %9743 = vmatpush2.xpose.msra.mxu0 0.0
        %9744 = vmatprep.subr.mxu0 0.0
        %9745 = vmatpush2.xpose.msra.mxu0 0.0
        %9746 = vmatprep.subr.mxu0 0.0
        %9747 = vmatpush2.xpose.msra.mxu0 0.0
        %9748 = vmatprep.subr.mxu0 0.0
        %9749 = vmatpush2.xpose.msra.mxu0 0.0
        %9750 = vmatprep.subr.mxu0 0.0
        %9751 = vmatpush2.xpose.msra.mxu0 0.0
        %9752 = vmatprep.subr.mxu0 0.0
        %9753 = vmatpush2.xpose.msra.mxu0 0.0
        %9754 = vmatprep.subr.mxu0 0.0
        %9755 = vmatpush2.xpose.msra.mxu0 0.0
        %9756 = vmatprep.subr.mxu0 0.0
        %9757 = vmatpush2.xpose.msra.mxu0 0.0
        %9758 = vmatprep.subr.mxu0 0.0
        %9759 = vmatpush2.xpose.msra.mxu0 0.0
        %9760 = vmatprep.subr.mxu0 0.0
        %9761 = vmatpush2.xpose.msra.mxu0 0.0
        %9762 = vmatprep.subr.mxu0 0.0
        %9763 = vmatpush2.xpose.msra.mxu0 0.0
        %9764 = vmatprep.subr.mxu0 0.0
        %9765 = vmatpush2.xpose.msra.mxu0 0.0
        %9766 = vmatprep.subr.mxu0 0.0
        %9767 = vmatpush2.xpose.msra.mxu0 0.0
        %9768 = vmatprep.subr.mxu0 0.0
        %9769 = vmatpush2.xpose.msra.mxu0 0.0
        %9770 = vmatprep.subr.mxu0 0.0
        %9771 = vmatpush2.xpose.msra.mxu0 0.0
        %9772 = vmatprep.mubr.f32.mxu0 %v7338
        %9773 = vmatmul.mubr.f32.gmra.mxu0 %v7337
        %v9774 = vpop.f32.mrf.mxu0
        %v9775 = vadd.f32 %v9705, %v9774
        %v9776 = vpop.f32.mrf.mxu0
        %9777 = vdwg.mxu0
        %v9778 = vadd.f32 %v7409, %v9775
        %vm9779 = vcmask 80896
        %9780 = vst.msk [vmem:[#allocation2] sm:$0xff] %vm9779, %v9778
        %p9781 = scmp.eq.s32.totalorder %s22, 1
        // Predicated region
        $region68: #{mlp_forward.1} parent=58 // pred_check
          %p9782 = pneg %p9781
        $region69: #{mlp_forward.1} parent=58 // pred_check_branch
          %9784 = sbr.rel (%p9782) target = $region71
        $region70: #{mlp_forward.1} parent=58 // pred_region
          %v9785 = vld [vmem:[#allocation2] sm:$0xff]
          %v9786 = vld [vmem:[%s4] sm:$0x1]
          %v9788 = vlaneseq
          %v9789 = vshrl.u32 %v9788, 7
          %v9790 = vsub.s32 0, %v9789
          %v9791 = vrot.slane %v9786, %v9790
          %v9793 = vadd.f32 %v9785, %v9791
          %9794 = vst.msk [vmem:[#allocation6] sm:$0xff] %vm9779, %v9793
        $region71: #{mlp_forward.1} parent=58 // pred_fallthru
          _
        %s9795 = sand.u32 %s150, 1
        %s9796 = scalar_lea.sflag [#allocation5], %s9795
        %s9797 = sand.u32 %s150, 1
        %s9798 = smul.addr %s9797, 512
        %s9799 = scalar_lea.vmem [#allocation4], %s9798
        // Predicated region
        $region72: #{mlp_forward.1} parent=58 // pred_check
          %p9800 = pneg %p160
        $region73: #{mlp_forward.1} parent=58 // pred_check_branch
          %9802 = sbr.rel (%p9800) target = $region75
        $region74: #{mlp_forward.1} parent=58 // pred_region
          %s9803 = smul.u32 64, %s22
          %s9805 = ssub.s32 8192, 8192
          %9806 = vsyncadd %s9796, %s9805
          %s9807 = smul.addr %s9803, 128
          %s9808 = scalar_lea.hbm %s5, %s9807
          %s9810 = sshll.u32 %s9799, 4
          %s9811 = int_to_ptr.vmem [resolvable:$true] %s9810
          %9813 = dma.vmem_to_hbm [thread:$0]  %s9811, 8192, %s9808, %s9796
        $region75: #{mlp_forward.1} parent=58 // pred_fallthru
          _
        // Predicated region
        $region76: #{mlp_forward.1} parent=58 // pred_check
          %p9814 = pneg %p181
        $region77: #{mlp_forward.1} parent=58 // pred_check_branch
          %9816 = sbr.rel (%p9814) target = $region79
        $region78: #{mlp_forward.1} parent=58 // pred_region
          %s9818 = ssub.s32 128, 128
          %9819 = vsyncadd [#allocation7], %s9818
          %s9821 = sshll.u32 [#allocation6], 4
          %s9822 = int_to_ptr.vmem [resolvable:$true] %s9821
          %9824 = dma.vmem_to_hbm [thread:$0]  %s9822, 128, %s6, [#allocation7]
        $region79: #{mlp_forward.1} parent=58 // pred_fallthru
          _
        // Predicated region
        $region80: #{mlp_forward.1} parent=58 // pred_check
          %p9825 = pneg %p181
        $region81: #{mlp_forward.1} parent=58 // pred_check_branch
          %9827 = sbr.rel (%p9825) target = $region83
        $region82: #{mlp_forward.1} parent=58 // pred_region
          %9828 = dma.done [#allocation7], 128
        $region83: #{mlp_forward.1} parent=58 // pred_fallthru
          _
      $region59: #{mlp_forward.1} parent=5 // pred_fallthru
        _
      %p9829 = scmp.le.s32.totalorder 2, %s17
      // Predicated region
      $region84: #{mlp_forward.1} parent=5 // pred_check
        %p9830 = pneg %p9829
      $region85: #{mlp_forward.1} parent=5 // pred_check_branch
        %9832 = sbr.rel (%p9830) target = $region87
      $region86: #{mlp_forward.1} parent=5 // pred_region
        %s9833 = ssub.s32 %s17, 2
        // Predicated region
        $region88: #{mlp_forward.1} parent=86 // pred_check
          %p9834 = pneg %p166
        $region89: #{mlp_forward.1} parent=86 // pred_check_branch
          %9836 = sbr.rel (%p9834) target = $region91
        $region90: #{mlp_forward.1} parent=86 // pred_region
          %s9837 = sand.u32 %s151, 1
          %s9838 = scalar_lea.sflag [#allocation5], %s9837
          %s9839 = sand.u32 %s151, 1
          %s9840 = smul.addr %s9839, 512
          %s9841 = scalar_lea.vmem [#allocation4], %s9840
          %9842 = dma.done %s9838, 8192
        $region91: #{mlp_forward.1} parent=86 // pred_fallthru
          _
      $region87: #{mlp_forward.1} parent=5 // pred_fallthru
        _
    $region6: #{mlp_forward.1} parent=1 // loop_footer
      %s21 = sadd.s32 1, %s17
    $region7: #{mlp_forward.1} parent=1 // loop_footer_branch
      %16 = sbr.rel target = $region3
    $region8: #{mlp_forward.1} parent=1 // loop_exit
      _
    %9843 = vsyncpa [#allocation5], 1
    %s9844 = scalar_lea.sflag [#allocation5], 1
    %9845 = vsyncpa %s9844, 1
    %9846 = vsyncpa [#allocation7], 1

</llo_original>
